<compile_context>
chip_gen: v7x
topology: tpu7x:2x2x1
jax: 0.10.0
libtpu: 0.0.40
codegen_flags: <defaults>
</compile_context>

<pallas_src>
import jax
import jax.numpy as jnp
from jax.experimental import pallas as pl
from jax.experimental.pallas import tpu as pltpu


# --------------------------------------------------------------------------------------
# Kernel factory: num_linear = number of Linear layers in the head (len(lin_layers) + 1).
# Ref order: x, w1(2,9,32), b1(2,32), w2_ch1(288,32), b2_ch1(1,32), w2_ch2, b2_ch2,
#            [W_i, b_i] * num_linear, out_ref.
# --------------------------------------------------------------------------------------
def _make_kernel(num_linear):
    def kernel(*refs):
        x_ref, w1_ref, b1_ref, w2a_ref, b2a_ref, w2b_ref, b2b_ref = refs[:7]
        lin_refs = refs[7:7 + 2 * num_linear]
        out_ref = refs[7 + 2 * num_linear]

        f32 = jnp.float32
        x = x_ref[...]                                   # (2, 14, 14, B)  [branch, H, W, batch]
        B = x.shape[-1]
        w1 = w1_ref[...]                                 # (2, 9, 32)      [branch, tap, cout]
        b1 = b1_ref[...][:, None, None, None, :]         # (2, 1, 1, 1, 32)
        taps = [(di, dj) for di in range(3) for dj in range(3)]

        # ---- conv1 -> ReLU -> 2x2 maxpool, fused per pooled output row (f32 VPU) -------
        pooled_rows = []
        for pr in range(6):
            acc = None
            for t, (di, dj) in enumerate(taps):
                xs = x[:, 2 * pr + di:2 * pr + di + 2, dj:dj + 12, :]       # (2, 2, 12, B)
                term = xs[..., None] * w1[:, t, :][:, None, None, None, :]  # (2, 2, 12, B, 32)
                acc = term if acc is None else acc + term
            c = jnp.maximum(acc + b1, 0.0)                                  # (2, 2, 12, B, 32)
            rmax = jnp.maximum(c[:, 0], c[:, 1])                            # pool rows
            rmax = rmax.reshape(2, 6, 2, B, 32)
            pooled_rows.append(jnp.maximum(rmax[:, :, 0], rmax[:, :, 1]))   # (2, 6, B, 32)
        pooled = jnp.stack(pooled_rows, axis=1)                             # (2, 6, 6, B, 32)

        # ---- conv2 as ONE im2col matmul per branch (M = 16*B, K = 288, N = 32) ---------
        patch = jnp.concatenate(
            [pooled[:, di:di + 4, dj:dj + 4] for (di, dj) in taps], axis=-1)  # (2, 4, 4, B, 288)
        w2a = w2a_ref[...]
        w2b = w2b_ref[...]
        mxu = w2a.dtype                                   # f32 or bf16 (set in wrapper)
        p0 = patch[0].reshape(16 * B, 288).astype(mxu)
        p1 = patch[1].reshape(16 * B, 288).astype(mxu)
        c2_0 = jnp.maximum(jnp.dot(p0, w2a, preferred_element_type=f32) + b2a_ref[...], 0.0)
        c2_1 = jnp.maximum(jnp.dot(p1, w2b, preferred_element_type=f32) + b2b_ref[...], 0.0)

        # ---- gather per-sample features (B, 1024); row blocks are sublane-aligned ------
        feats = jnp.concatenate(
            [c2_0[p * B:(p + 1) * B] for p in range(16)]
            + [c2_1[p * B:(p + 1) * B] for p in range(16)], axis=-1)         # (B, 1024)

        # ---- linear stack: Linear+ReLU per hidden layer, final Linear + Sigmoid --------
        h = feats
        for i in range(num_linear - 1):
            w = lin_refs[2 * i][...]
            b = lin_refs[2 * i + 1][...]
            h = jnp.maximum(jnp.dot(h.astype(w.dtype), w, preferred_element_type=f32) + b, 0.0)
        w = lin_refs[2 * (num_linear - 1)][...]
        b = lin_refs[2 * (num_linear - 1) + 1][...]
        # num_out is tiny (2) so the output store is lane-narrow; acceptable at this size.
        out_ref[...] = jax.nn.sigmoid(
            jnp.dot(h.astype(w.dtype), w, preferred_element_type=f32) + b)

    return kernel


# --------------------------------------------------------------------------------------
# Wrapper: layout / weight-permutation glue + pallas_call with a batch-parallel grid
# --------------------------------------------------------------------------------------
def plain_model_forward_pallas(x, params, *, matmul_dtype=jnp.float32, max_batch_block=128):
    N = x.shape[0]
    assert x.shape[1:] == (2, 14, 14), "expects (N, 2, 14, 14) input"
    assert max_batch_block % 128 == 0

    lin = params['lin']
    num_linear = len(lin)
    assert lin[0][0].shape[1] == 1024, "fc1 must take the 1024-wide flattened conv features"
    num_out = lin[-1][0].shape[0]

    # batch block: full padded batch when small (block == full dim is always legal),
    # otherwise a multiple of 128 since the batch sits on the lane axis of the x block.
    # (max_batch_block=128 is a safe cross-generation default; v5e/v6e can afford 256-512.)
    if N <= max_batch_block:
        n_pad = max(((N + 7) // 8) * 8, 8)
        b_blk = n_pad
    else:
        b_blk = max_batch_block
        n_pad = ((N + b_blk - 1) // b_blk) * b_blk

    # input glue: NCHW -> (branch, H, W, batch). Ideally upstream stores data batch-minor
    # so this extra HBM transpose pass disappears.
    xk = jnp.transpose(x.astype(jnp.float32), (1, 2, 3, 0))            # (2, 14, 14, N)
    if n_pad != N:
        xk = jnp.pad(xk, ((0, 0), (0, 0), (0, 0), (0, n_pad - N)))

    # ---- weight repacking (pure permutations / reshapes) --------------------------------
    def prep_conv1(w):                                   # (32,1,3,3) -> (9, 32)  [tap, cout]
        return jnp.transpose(w[:, 0], (1, 2, 0)).reshape(9, 32).astype(jnp.float32)

    def prep_conv2(w):                                   # (32,32,3,3) -> (288, 32) [tap*32+cin, cout]
        return jnp.transpose(w, (2, 3, 1, 0)).reshape(288, 32).astype(matmul_dtype)

    ch1, ch2 = params['ch1'], params['ch2']
    w1 = jnp.stack([prep_conv1(ch1['conv1_w']), prep_conv1(ch2['conv1_w'])])   # (2, 9, 32)
    b1 = jnp.stack([ch1['conv1_b'], ch2['conv1_b']]).astype(jnp.float32)       # (2, 32)
    w2a, w2b = prep_conv2(ch1['conv2_w']), prep_conv2(ch2['conv2_w'])
    b2a = ch1['conv2_b'].reshape(1, 32).astype(jnp.float32)
    b2b = ch2['conv2_b'].reshape(1, 32).astype(jnp.float32)

    # fc1: torch flatten order f = branch*512 + c*16 + pos ; kernel feature order is
    # g = branch*512 + pos*32 + c  -> permute columns once in the wrapper.
    w_fc1, b_fc1 = lin[0]
    L0 = w_fc1.shape[0]
    w_fc1p = jnp.transpose(w_fc1.reshape(L0, 2, 32, 16), (1, 3, 2, 0)).reshape(1024, L0)
    lin_ops = [(w_fc1p.astype(matmul_dtype), b_fc1.reshape(1, -1).astype(jnp.float32))]
    for w, b in lin[1:]:
        lin_ops.append((w.T.astype(matmul_dtype), b.reshape(1, -1).astype(jnp.float32)))
    flat_lin = [a for wb in lin_ops for a in wb]

    inputs = [xk, w1, b1, w2a, b2a, w2b, b2b] + flat_lin

    # ---- specs: batch-tiled x / output, VMEM-resident weights (constant index maps) -----
    def const_spec(a):
        nd = a.ndim
        return pl.BlockSpec(a.shape, lambda i, nd=nd: (0,) * nd)

    in_specs = [pl.BlockSpec((2, 14, 14, b_blk), lambda i: (0, 0, 0, i))]
    in_specs += [const_spec(a) for a in inputs[1:]]
    out_specs = pl.BlockSpec((b_blk, num_out), lambda i: (i, 0))

    out = pl.pallas_call(
        _make_kernel(num_linear),
        out_shape=jax.ShapeDtypeStruct((n_pad, num_out), jnp.float32),
        grid_spec=pltpu.PrefetchScalarGridSpec(
            num_scalar_prefetch=0,
            grid=(n_pad // b_blk,),
            in_specs=in_specs,
            out_specs=out_specs,
        ),
        compiler_params=pltpu.CompilerParams(
            dimension_semantics=("parallel",),
            vmem_limit_bytes=64 * 1024 * 1024,
        ),
    )(*inputs)

    return jnp.squeeze(out[:N])                          # torch.squeeze(x)


# --------------------------------------------------------------------------------------
# Deterministic parameter construction (shapes per the module __init__)
# --------------------------------------------------------------------------------------
def make_params(key, lin_layers=(32, 32), num_out=2):
    n_keys = 8 + 2 * (len(lin_layers) + 1)
    keys = list(jax.random.split(key, n_keys))
    it = iter(keys)

    def uinit(shape, fan_in):
        bound = 1.0 / (fan_in ** 0.5)
        return jax.random.uniform(next(it), shape, jnp.float32, -bound, bound)

    def conv_branch():
        return {'conv1_w': uinit((32, 1, 3, 3), 9),   'conv1_b': uinit((32,), 9),
                'conv2_w': uinit((32, 32, 3, 3), 288), 'conv2_b': uinit((32,), 288)}

    ch1, ch2 = conv_branch(), conv_branch()
    sizes = [1024] + list(lin_layers)
    lin = []
    for i, L in enumerate(lin_layers):
        lin.append((uinit((L, sizes[i]), sizes[i]), uinit((L,), sizes[i])))
    lin.append((uinit((num_out, lin_layers[-1]), lin_layers[-1]),
                uinit((num_out,), lin_layers[-1])))
    return {'ch1': ch1, 'ch2': ch2, 'lin': lin}


# --------------------------------------------------------------------------------------
# Pure-JAX reference mirroring the PyTorch forward (for numerical verification)
# --------------------------------------------------------------------------------------
def plain_model_forward_ref(x, params):
    hp = jax.lax.Precision.HIGHEST

    def branch(xb, bp):
        y = jax.lax.conv_general_dilated(
            xb, bp['conv1_w'], (1, 1), 'VALID',
            dimension_numbers=('NCHW', 'OIHW', 'NCHW'), precision=hp)
        y = jnp.maximum(y + bp['conv1_b'][None, :, None, None], 0.0)
        n, c, h, w = y.shape
        y = y.reshape(n, c, h // 2, 2, w // 2, 2).max(axis=(3, 5))          # MaxPool2d(2,2)
        y = jax.lax.conv_general_dilated(
            y, bp['conv2_w'], (1, 1), 'VALID',
            dimension_numbers=('NCHW', 'OIHW', 'NCHW'), precision=hp)
        return jnp.maximum(y + bp['conv2_b'][None, :, None, None], 0.0)

    y1 = branch(x[:, 0:1], params['ch1'])
    y2 = branch(x[:, 1:2], params['ch2'])
    h = jnp.concatenate([y1, y2], axis=1).reshape(x.shape[0], -1)           # (N, 1024)
    for w, b in params['lin'][:-1]:
        h = jnp.maximum(jnp.matmul(h, w.T, precision=hp) + b, 0.0)
    w, b = params['lin'][-1]
    out = jax.nn.sigmoid(jnp.matmul(h, w.T, precision=hp) + b)
    return jnp.squeeze(out)


if __name__ == "__main__":
    key = jax.random.PRNGKey(0)
    kx, kp = jax.random.split(key)
    # paired-image input (N, 2, 14, 14) implied by conv(3) -> pool(2) -> conv(3) -> 1024 flatten
    x = jax.random.normal(kx, (2, 2, 14, 14), jnp.float32)
    params = make_params(kp, lin_layers=(32, 32), num_out=2)

    out = jax.block_until_ready(plain_model_forward_pallas(x, params))       # f32 path
    ref = plain_model_forward_ref(x, params)
    assert out.shape == ref.shape, (out.shape, ref.shape)
    assert jnp.allclose(out, ref, atol=2e-3, rtol=2e-3), "f32 path mismatch vs reference"

    # bf16 MXU-operand path (production setting for v6e/v7x; f32 accumulation preserved)
    out_bf16 = jax.block_until_ready(
        plain_model_forward_pallas(x, params, matmul_dtype=jnp.bfloat16))
    assert jnp.allclose(out_bf16, ref, atol=3e-2, rtol=3e-2), "bf16 MXU path mismatch"

    print("KERNEL_OK")
</pallas_src>

<mosaic_0001>
module attributes {stable_mosaic.version = 11 : i64} {
  func.func @kernel(%arg0: i32, %arg1: memref<2x14x14x8xf32, #tpu.memory_space<vmem>>, %arg2: memref<2x9x32xf32, #tpu.memory_space<vmem>>, %arg3: memref<2x32xf32, #tpu.memory_space<vmem>>, %arg4: memref<288x32xf32, #tpu.memory_space<vmem>>, %arg5: memref<1x32xf32, #tpu.memory_space<vmem>>, %arg6: memref<288x32xf32, #tpu.memory_space<vmem>>, %arg7: memref<1x32xf32, #tpu.memory_space<vmem>>, %arg8: memref<1024x32xf32, #tpu.memory_space<vmem>>, %arg9: memref<1x32xf32, #tpu.memory_space<vmem>>, %arg10: memref<32x32xf32, #tpu.memory_space<vmem>>, %arg11: memref<1x32xf32, #tpu.memory_space<vmem>>, %arg12: memref<32x2xf32, #tpu.memory_space<vmem>>, %arg13: memref<1x2xf32, #tpu.memory_space<vmem>>, %arg14: memref<8x2xf32, #tpu.memory_space<vmem>>) attributes {dimension_semantics = [#tpu.dimension_semantics<parallel>], iteration_bounds = array<i64: 1>, scalar_prefetch = 0 : i64, scratch_operands = 0 : i64, tpu.core_type = #tpu.core_type<tc>, window_params = [{transform_indices = @transform_0, window_bounds = array<i64: 2, 14, 14, 8>}, {pipeline_mode = #tpu.pipeline_mode<synchronous>, transform_indices = @transform_1, window_bounds = array<i64: 2, 9, 32>}, {pipeline_mode = #tpu.pipeline_mode<synchronous>, transform_indices = @transform_2, window_bounds = array<i64: 2, 32>}, {pipeline_mode = #tpu.pipeline_mode<synchronous>, transform_indices = @transform_3, window_bounds = array<i64: 288, 32>}, {pipeline_mode = #tpu.pipeline_mode<synchronous>, transform_indices = @transform_4, window_bounds = array<i64: 1, 32>}, {pipeline_mode = #tpu.pipeline_mode<synchronous>, transform_indices = @transform_5, window_bounds = array<i64: 288, 32>}, {pipeline_mode = #tpu.pipeline_mode<synchronous>, transform_indices = @transform_6, window_bounds = array<i64: 1, 32>}, {pipeline_mode = #tpu.pipeline_mode<synchronous>, transform_indices = @transform_7, window_bounds = array<i64: 1024, 32>}, {pipeline_mode = #tpu.pipeline_mode<synchronous>, transform_indices = @transform_8, window_bounds = array<i64: 1, 32>}, {pipeline_mode = #tpu.pipeline_mode<synchronous>, transform_indices = @transform_9, window_bounds = array<i64: 32, 32>}, {pipeline_mode = #tpu.pipeline_mode<synchronous>, transform_indices = @transform_10, window_bounds = array<i64: 1, 32>}, {pipeline_mode = #tpu.pipeline_mode<synchronous>, transform_indices = @transform_11, window_bounds = array<i64: 32, 2>}, {pipeline_mode = #tpu.pipeline_mode<synchronous>, transform_indices = @transform_12, window_bounds = array<i64: 1, 2>}, {transform_indices = @transform_13, window_bounds = array<i64: 8, 2>}]} {
    %c0 = arith.constant 0 : index
    %c0_0 = arith.constant 0 : index
    %c0_1 = arith.constant 0 : index
    %c0_2 = arith.constant 0 : index
    %0 = vector.load %arg1[%c0, %c0_0, %c0_1, %c0_2] : memref<2x14x14x8xf32, #tpu.memory_space<vmem>>, vector<2x14x14x8xf32>
    %c0_3 = arith.constant 0 : index
    %c0_4 = arith.constant 0 : index
    %c0_5 = arith.constant 0 : index
    %1 = vector.load %arg2[%c0_3, %c0_4, %c0_5] : memref<2x9x32xf32, #tpu.memory_space<vmem>>, vector<2x9x32xf32>
    %c0_6 = arith.constant 0 : index
    %c0_7 = arith.constant 0 : index
    %2 = vector.load %arg3[%c0_6, %c0_7] : memref<2x32xf32, #tpu.memory_space<vmem>>, vector<2x32xf32>
    %3 = vector.shape_cast %2 : vector<2x32xf32> to vector<2x1x1x1x32xf32>
    %4 = vector.extract_strided_slice %0 {offsets = [0, 0, 0, 0], sizes = [2, 2, 12, 8], strides = [1, 1, 1, 1]} : vector<2x14x14x8xf32> to vector<2x2x12x8xf32>
    %5 = vector.shape_cast %4 : vector<2x2x12x8xf32> to vector<2x2x12x8x1xf32>
    %6 = vector.extract_strided_slice %1 {offsets = [0, 0, 0], sizes = [2, 1, 32], strides = [1, 1, 1]} : vector<2x9x32xf32> to vector<2x1x32xf32>
    %7 = vector.shape_cast %6 : vector<2x1x32xf32> to vector<2x32xf32>
    %8 = vector.shape_cast %7 : vector<2x32xf32> to vector<2x1x1x1x32xf32>
    %9 = vector.broadcast %5 : vector<2x2x12x8x1xf32> to vector<2x2x12x8x32xf32>
    %10 = vector.broadcast %8 : vector<2x1x1x1x32xf32> to vector<2x2x12x8x32xf32>
    %11 = arith.mulf %9, %10 : vector<2x2x12x8x32xf32>
    %12 = vector.extract_strided_slice %0 {offsets = [0, 0, 1, 0], sizes = [2, 2, 12, 8], strides = [1, 1, 1, 1]} : vector<2x14x14x8xf32> to vector<2x2x12x8xf32>
    %13 = vector.shape_cast %12 : vector<2x2x12x8xf32> to vector<2x2x12x8x1xf32>
    %14 = vector.extract_strided_slice %1 {offsets = [0, 1, 0], sizes = [2, 1, 32], strides = [1, 1, 1]} : vector<2x9x32xf32> to vector<2x1x32xf32>
    %15 = vector.shape_cast %14 : vector<2x1x32xf32> to vector<2x32xf32>
    %16 = vector.shape_cast %15 : vector<2x32xf32> to vector<2x1x1x1x32xf32>
    %17 = vector.broadcast %13 : vector<2x2x12x8x1xf32> to vector<2x2x12x8x32xf32>
    %18 = vector.broadcast %16 : vector<2x1x1x1x32xf32> to vector<2x2x12x8x32xf32>
    %19 = arith.mulf %17, %18 : vector<2x2x12x8x32xf32>
    %20 = arith.addf %11, %19 : vector<2x2x12x8x32xf32>
    %21 = vector.extract_strided_slice %0 {offsets = [0, 0, 2, 0], sizes = [2, 2, 12, 8], strides = [1, 1, 1, 1]} : vector<2x14x14x8xf32> to vector<2x2x12x8xf32>
    %22 = vector.shape_cast %21 : vector<2x2x12x8xf32> to vector<2x2x12x8x1xf32>
    %23 = vector.extract_strided_slice %1 {offsets = [0, 2, 0], sizes = [2, 1, 32], strides = [1, 1, 1]} : vector<2x9x32xf32> to vector<2x1x32xf32>
    %24 = vector.shape_cast %23 : vector<2x1x32xf32> to vector<2x32xf32>
    %25 = vector.shape_cast %24 : vector<2x32xf32> to vector<2x1x1x1x32xf32>
    %26 = vector.broadcast %22 : vector<2x2x12x8x1xf32> to vector<2x2x12x8x32xf32>
    %27 = vector.broadcast %25 : vector<2x1x1x1x32xf32> to vector<2x2x12x8x32xf32>
    %28 = arith.mulf %26, %27 : vector<2x2x12x8x32xf32>
    %29 = arith.addf %20, %28 : vector<2x2x12x8x32xf32>
    %30 = vector.extract_strided_slice %0 {offsets = [0, 1, 0, 0], sizes = [2, 2, 12, 8], strides = [1, 1, 1, 1]} : vector<2x14x14x8xf32> to vector<2x2x12x8xf32>
    %31 = vector.shape_cast %30 : vector<2x2x12x8xf32> to vector<2x2x12x8x1xf32>
    %32 = vector.extract_strided_slice %1 {offsets = [0, 3, 0], sizes = [2, 1, 32], strides = [1, 1, 1]} : vector<2x9x32xf32> to vector<2x1x32xf32>
    %33 = vector.shape_cast %32 : vector<2x1x32xf32> to vector<2x32xf32>
    %34 = vector.shape_cast %33 : vector<2x32xf32> to vector<2x1x1x1x32xf32>
    %35 = vector.broadcast %31 : vector<2x2x12x8x1xf32> to vector<2x2x12x8x32xf32>
    %36 = vector.broadcast %34 : vector<2x1x1x1x32xf32> to vector<2x2x12x8x32xf32>
    %37 = arith.mulf %35, %36 : vector<2x2x12x8x32xf32>
    %38 = arith.addf %29, %37 : vector<2x2x12x8x32xf32>
    %39 = vector.extract_strided_slice %0 {offsets = [0, 1, 1, 0], sizes = [2, 2, 12, 8], strides = [1, 1, 1, 1]} : vector<2x14x14x8xf32> to vector<2x2x12x8xf32>
    %40 = vector.shape_cast %39 : vector<2x2x12x8xf32> to vector<2x2x12x8x1xf32>
    %41 = vector.extract_strided_slice %1 {offsets = [0, 4, 0], sizes = [2, 1, 32], strides = [1, 1, 1]} : vector<2x9x32xf32> to vector<2x1x32xf32>
    %42 = vector.shape_cast %41 : vector<2x1x32xf32> to vector<2x32xf32>
    %43 = vector.shape_cast %42 : vector<2x32xf32> to vector<2x1x1x1x32xf32>
    %44 = vector.broadcast %40 : vector<2x2x12x8x1xf32> to vector<2x2x12x8x32xf32>
    %45 = vector.broadcast %43 : vector<2x1x1x1x32xf32> to vector<2x2x12x8x32xf32>
    %46 = arith.mulf %44, %45 : vector<2x2x12x8x32xf32>
    %47 = arith.addf %38, %46 : vector<2x2x12x8x32xf32>
    %48 = vector.extract_strided_slice %0 {offsets = [0, 1, 2, 0], sizes = [2, 2, 12, 8], strides = [1, 1, 1, 1]} : vector<2x14x14x8xf32> to vector<2x2x12x8xf32>
    %49 = vector.shape_cast %48 : vector<2x2x12x8xf32> to vector<2x2x12x8x1xf32>
    %50 = vector.extract_strided_slice %1 {offsets = [0, 5, 0], sizes = [2, 1, 32], strides = [1, 1, 1]} : vector<2x9x32xf32> to vector<2x1x32xf32>
    %51 = vector.shape_cast %50 : vector<2x1x32xf32> to vector<2x32xf32>
    %52 = vector.shape_cast %51 : vector<2x32xf32> to vector<2x1x1x1x32xf32>
    %53 = vector.broadcast %49 : vector<2x2x12x8x1xf32> to vector<2x2x12x8x32xf32>
    %54 = vector.broadcast %52 : vector<2x1x1x1x32xf32> to vector<2x2x12x8x32xf32>
    %55 = arith.mulf %53, %54 : vector<2x2x12x8x32xf32>
    %56 = arith.addf %47, %55 : vector<2x2x12x8x32xf32>
    %57 = vector.extract_strided_slice %0 {offsets = [0, 2, 0, 0], sizes = [2, 2, 12, 8], strides = [1, 1, 1, 1]} : vector<2x14x14x8xf32> to vector<2x2x12x8xf32>
    %58 = vector.shape_cast %57 : vector<2x2x12x8xf32> to vector<2x2x12x8x1xf32>
    %59 = vector.extract_strided_slice %1 {offsets = [0, 6, 0], sizes = [2, 1, 32], strides = [1, 1, 1]} : vector<2x9x32xf32> to vector<2x1x32xf32>
    %60 = vector.shape_cast %59 : vector<2x1x32xf32> to vector<2x32xf32>
    %61 = vector.shape_cast %60 : vector<2x32xf32> to vector<2x1x1x1x32xf32>
    %62 = vector.broadcast %58 : vector<2x2x12x8x1xf32> to vector<2x2x12x8x32xf32>
    %63 = vector.broadcast %61 : vector<2x1x1x1x32xf32> to vector<2x2x12x8x32xf32>
    %64 = arith.mulf %62, %63 : vector<2x2x12x8x32xf32>
    %65 = arith.addf %56, %64 : vector<2x2x12x8x32xf32>
    %66 = vector.extract_strided_slice %0 {offsets = [0, 2, 1, 0], sizes = [2, 2, 12, 8], strides = [1, 1, 1, 1]} : vector<2x14x14x8xf32> to vector<2x2x12x8xf32>
    %67 = vector.shape_cast %66 : vector<2x2x12x8xf32> to vector<2x2x12x8x1xf32>
    %68 = vector.extract_strided_slice %1 {offsets = [0, 7, 0], sizes = [2, 1, 32], strides = [1, 1, 1]} : vector<2x9x32xf32> to vector<2x1x32xf32>
    %69 = vector.shape_cast %68 : vector<2x1x32xf32> to vector<2x32xf32>
    %70 = vector.shape_cast %69 : vector<2x32xf32> to vector<2x1x1x1x32xf32>
    %71 = vector.broadcast %67 : vector<2x2x12x8x1xf32> to vector<2x2x12x8x32xf32>
    %72 = vector.broadcast %70 : vector<2x1x1x1x32xf32> to vector<2x2x12x8x32xf32>
    %73 = arith.mulf %71, %72 : vector<2x2x12x8x32xf32>
    %74 = arith.addf %65, %73 : vector<2x2x12x8x32xf32>
    %75 = vector.extract_strided_slice %0 {offsets = [0, 2, 2, 0], sizes = [2, 2, 12, 8], strides = [1, 1, 1, 1]} : vector<2x14x14x8xf32> to vector<2x2x12x8xf32>
    %76 = vector.shape_cast %75 : vector<2x2x12x8xf32> to vector<2x2x12x8x1xf32>
    %77 = vector.extract_strided_slice %1 {offsets = [0, 8, 0], sizes = [2, 1, 32], strides = [1, 1, 1]} : vector<2x9x32xf32> to vector<2x1x32xf32>
    %78 = vector.shape_cast %77 : vector<2x1x32xf32> to vector<2x32xf32>
    %79 = vector.shape_cast %78 : vector<2x32xf32> to vector<2x1x1x1x32xf32>
    %80 = vector.broadcast %76 : vector<2x2x12x8x1xf32> to vector<2x2x12x8x32xf32>
    %81 = vector.broadcast %79 : vector<2x1x1x1x32xf32> to vector<2x2x12x8x32xf32>
    %82 = arith.mulf %80, %81 : vector<2x2x12x8x32xf32>
    %83 = arith.addf %74, %82 : vector<2x2x12x8x32xf32>
    %84 = vector.broadcast %3 : vector<2x1x1x1x32xf32> to vector<2x2x12x8x32xf32>
    %85 = arith.addf %83, %84 : vector<2x2x12x8x32xf32>
    %cst = arith.constant 0.000000e+00 : f32
    %86 = vector.broadcast %cst : f32 to vector<2x2x12x8x32xf32>
    %87 = arith.maximumf %85, %86 : vector<2x2x12x8x32xf32>
    %88 = vector.extract_strided_slice %87 {offsets = [0, 0, 0, 0, 0], sizes = [2, 1, 12, 8, 32], strides = [1, 1, 1, 1, 1]} : vector<2x2x12x8x32xf32> to vector<2x1x12x8x32xf32>
    %89 = vector.shape_cast %88 : vector<2x1x12x8x32xf32> to vector<2x12x8x32xf32>
    %90 = vector.extract_strided_slice %87 {offsets = [0, 1, 0, 0, 0], sizes = [2, 1, 12, 8, 32], strides = [1, 1, 1, 1, 1]} : vector<2x2x12x8x32xf32> to vector<2x1x12x8x32xf32>
    %91 = vector.shape_cast %90 : vector<2x1x12x8x32xf32> to vector<2x12x8x32xf32>
    %92 = arith.maximumf %89, %91 : vector<2x12x8x32xf32>
    %93 = vector.shape_cast %92 : vector<2x12x8x32xf32> to vector<2x6x2x8x32xf32>
    %94 = vector.extract_strided_slice %93 {offsets = [0, 0, 0, 0, 0], sizes = [2, 6, 1, 8, 32], strides = [1, 1, 1, 1, 1]} : vector<2x6x2x8x32xf32> to vector<2x6x1x8x32xf32>
    %95 = vector.shape_cast %94 : vector<2x6x1x8x32xf32> to vector<2x6x8x32xf32>
    %96 = vector.extract_strided_slice %93 {offsets = [0, 0, 1, 0, 0], sizes = [2, 6, 1, 8, 32], strides = [1, 1, 1, 1, 1]} : vector<2x6x2x8x32xf32> to vector<2x6x1x8x32xf32>
    %97 = vector.shape_cast %96 : vector<2x6x1x8x32xf32> to vector<2x6x8x32xf32>
    %98 = arith.maximumf %95, %97 : vector<2x6x8x32xf32>
    %99 = vector.extract_strided_slice %0 {offsets = [0, 2, 0, 0], sizes = [2, 2, 12, 8], strides = [1, 1, 1, 1]} : vector<2x14x14x8xf32> to vector<2x2x12x8xf32>
    %100 = vector.shape_cast %99 : vector<2x2x12x8xf32> to vector<2x2x12x8x1xf32>
    %101 = vector.extract_strided_slice %1 {offsets = [0, 0, 0], sizes = [2, 1, 32], strides = [1, 1, 1]} : vector<2x9x32xf32> to vector<2x1x32xf32>
    %102 = vector.shape_cast %101 : vector<2x1x32xf32> to vector<2x32xf32>
    %103 = vector.shape_cast %102 : vector<2x32xf32> to vector<2x1x1x1x32xf32>
    %104 = vector.broadcast %100 : vector<2x2x12x8x1xf32> to vector<2x2x12x8x32xf32>
    %105 = vector.broadcast %103 : vector<2x1x1x1x32xf32> to vector<2x2x12x8x32xf32>
    %106 = arith.mulf %104, %105 : vector<2x2x12x8x32xf32>
    %107 = vector.extract_strided_slice %0 {offsets = [0, 2, 1, 0], sizes = [2, 2, 12, 8], strides = [1, 1, 1, 1]} : vector<2x14x14x8xf32> to vector<2x2x12x8xf32>
    %108 = vector.shape_cast %107 : vector<2x2x12x8xf32> to vector<2x2x12x8x1xf32>
    %109 = vector.extract_strided_slice %1 {offsets = [0, 1, 0], sizes = [2, 1, 32], strides = [1, 1, 1]} : vector<2x9x32xf32> to vector<2x1x32xf32>
    %110 = vector.shape_cast %109 : vector<2x1x32xf32> to vector<2x32xf32>
    %111 = vector.shape_cast %110 : vector<2x32xf32> to vector<2x1x1x1x32xf32>
    %112 = vector.broadcast %108 : vector<2x2x12x8x1xf32> to vector<2x2x12x8x32xf32>
    %113 = vector.broadcast %111 : vector<2x1x1x1x32xf32> to vector<2x2x12x8x32xf32>
    %114 = arith.mulf %112, %113 : vector<2x2x12x8x32xf32>
    %115 = arith.addf %106, %114 : vector<2x2x12x8x32xf32>
    %116 = vector.extract_strided_slice %0 {offsets = [0, 2, 2, 0], sizes = [2, 2, 12, 8], strides = [1, 1, 1, 1]} : vector<2x14x14x8xf32> to vector<2x2x12x8xf32>
    %117 = vector.shape_cast %116 : vector<2x2x12x8xf32> to vector<2x2x12x8x1xf32>
    %118 = vector.extract_strided_slice %1 {offsets = [0, 2, 0], sizes = [2, 1, 32], strides = [1, 1, 1]} : vector<2x9x32xf32> to vector<2x1x32xf32>
    %119 = vector.shape_cast %118 : vector<2x1x32xf32> to vector<2x32xf32>
    %120 = vector.shape_cast %119 : vector<2x32xf32> to vector<2x1x1x1x32xf32>
    %121 = vector.broadcast %117 : vector<2x2x12x8x1xf32> to vector<2x2x12x8x32xf32>
    %122 = vector.broadcast %120 : vector<2x1x1x1x32xf32> to vector<2x2x12x8x32xf32>
    %123 = arith.mulf %121, %122 : vector<2x2x12x8x32xf32>
    %124 = arith.addf %115, %123 : vector<2x2x12x8x32xf32>
    %125 = vector.extract_strided_slice %0 {offsets = [0, 3, 0, 0], sizes = [2, 2, 12, 8], strides = [1, 1, 1, 1]} : vector<2x14x14x8xf32> to vector<2x2x12x8xf32>
    %126 = vector.shape_cast %125 : vector<2x2x12x8xf32> to vector<2x2x12x8x1xf32>
    %127 = vector.extract_strided_slice %1 {offsets = [0, 3, 0], sizes = [2, 1, 32], strides = [1, 1, 1]} : vector<2x9x32xf32> to vector<2x1x32xf32>
    %128 = vector.shape_cast %127 : vector<2x1x32xf32> to vector<2x32xf32>
    %129 = vector.shape_cast %128 : vector<2x32xf32> to vector<2x1x1x1x32xf32>
    %130 = vector.broadcast %126 : vector<2x2x12x8x1xf32> to vector<2x2x12x8x32xf32>
    %131 = vector.broadcast %129 : vector<2x1x1x1x32xf32> to vector<2x2x12x8x32xf32>
    %132 = arith.mulf %130, %131 : vector<2x2x12x8x32xf32>
    %133 = arith.addf %124, %132 : vector<2x2x12x8x32xf32>
    %134 = vector.extract_strided_slice %0 {offsets = [0, 3, 1, 0], sizes = [2, 2, 12, 8], strides = [1, 1, 1, 1]} : vector<2x14x14x8xf32> to vector<2x2x12x8xf32>
    %135 = vector.shape_cast %134 : vector<2x2x12x8xf32> to vector<2x2x12x8x1xf32>
    %136 = vector.extract_strided_slice %1 {offsets = [0, 4, 0], sizes = [2, 1, 32], strides = [1, 1, 1]} : vector<2x9x32xf32> to vector<2x1x32xf32>
    %137 = vector.shape_cast %136 : vector<2x1x32xf32> to vector<2x32xf32>
    %138 = vector.shape_cast %137 : vector<2x32xf32> to vector<2x1x1x1x32xf32>
    %139 = vector.broadcast %135 : vector<2x2x12x8x1xf32> to vector<2x2x12x8x32xf32>
    %140 = vector.broadcast %138 : vector<2x1x1x1x32xf32> to vector<2x2x12x8x32xf32>
    %141 = arith.mulf %139, %140 : vector<2x2x12x8x32xf32>
    %142 = arith.addf %133, %141 : vector<2x2x12x8x32xf32>
    %143 = vector.extract_strided_slice %0 {offsets = [0, 3, 2, 0], sizes = [2, 2, 12, 8], strides = [1, 1, 1, 1]} : vector<2x14x14x8xf32> to vector<2x2x12x8xf32>
    %144 = vector.shape_cast %143 : vector<2x2x12x8xf32> to vector<2x2x12x8x1xf32>
    %145 = vector.extract_strided_slice %1 {offsets = [0, 5, 0], sizes = [2, 1, 32], strides = [1, 1, 1]} : vector<2x9x32xf32> to vector<2x1x32xf32>
    %146 = vector.shape_cast %145 : vector<2x1x32xf32> to vector<2x32xf32>
    %147 = vector.shape_cast %146 : vector<2x32xf32> to vector<2x1x1x1x32xf32>
    %148 = vector.broadcast %144 : vector<2x2x12x8x1xf32> to vector<2x2x12x8x32xf32>
    %149 = vector.broadcast %147 : vector<2x1x1x1x32xf32> to vector<2x2x12x8x32xf32>
    %150 = arith.mulf %148, %149 : vector<2x2x12x8x32xf32>
    %151 = arith.addf %142, %150 : vector<2x2x12x8x32xf32>
    %152 = vector.extract_strided_slice %0 {offsets = [0, 4, 0, 0], sizes = [2, 2, 12, 8], strides = [1, 1, 1, 1]} : vector<2x14x14x8xf32> to vector<2x2x12x8xf32>
    %153 = vector.shape_cast %152 : vector<2x2x12x8xf32> to vector<2x2x12x8x1xf32>
    %154 = vector.extract_strided_slice %1 {offsets = [0, 6, 0], sizes = [2, 1, 32], strides = [1, 1, 1]} : vector<2x9x32xf32> to vector<2x1x32xf32>
    %155 = vector.shape_cast %154 : vector<2x1x32xf32> to vector<2x32xf32>
    %156 = vector.shape_cast %155 : vector<2x32xf32> to vector<2x1x1x1x32xf32>
    %157 = vector.broadcast %153 : vector<2x2x12x8x1xf32> to vector<2x2x12x8x32xf32>
    %158 = vector.broadcast %156 : vector<2x1x1x1x32xf32> to vector<2x2x12x8x32xf32>
    %159 = arith.mulf %157, %158 : vector<2x2x12x8x32xf32>
    %160 = arith.addf %151, %159 : vector<2x2x12x8x32xf32>
    %161 = vector.extract_strided_slice %0 {offsets = [0, 4, 1, 0], sizes = [2, 2, 12, 8], strides = [1, 1, 1, 1]} : vector<2x14x14x8xf32> to vector<2x2x12x8xf32>
    %162 = vector.shape_cast %161 : vector<2x2x12x8xf32> to vector<2x2x12x8x1xf32>
    %163 = vector.extract_strided_slice %1 {offsets = [0, 7, 0], sizes = [2, 1, 32], strides = [1, 1, 1]} : vector<2x9x32xf32> to vector<2x1x32xf32>
    %164 = vector.shape_cast %163 : vector<2x1x32xf32> to vector<2x32xf32>
    %165 = vector.shape_cast %164 : vector<2x32xf32> to vector<2x1x1x1x32xf32>
    %166 = vector.broadcast %162 : vector<2x2x12x8x1xf32> to vector<2x2x12x8x32xf32>
    %167 = vector.broadcast %165 : vector<2x1x1x1x32xf32> to vector<2x2x12x8x32xf32>
    %168 = arith.mulf %166, %167 : vector<2x2x12x8x32xf32>
    %169 = arith.addf %160, %168 : vector<2x2x12x8x32xf32>
    %170 = vector.extract_strided_slice %0 {offsets = [0, 4, 2, 0], sizes = [2, 2, 12, 8], strides = [1, 1, 1, 1]} : vector<2x14x14x8xf32> to vector<2x2x12x8xf32>
    %171 = vector.shape_cast %170 : vector<2x2x12x8xf32> to vector<2x2x12x8x1xf32>
    %172 = vector.extract_strided_slice %1 {offsets = [0, 8, 0], sizes = [2, 1, 32], strides = [1, 1, 1]} : vector<2x9x32xf32> to vector<2x1x32xf32>
    %173 = vector.shape_cast %172 : vector<2x1x32xf32> to vector<2x32xf32>
    %174 = vector.shape_cast %173 : vector<2x32xf32> to vector<2x1x1x1x32xf32>
    %175 = vector.broadcast %171 : vector<2x2x12x8x1xf32> to vector<2x2x12x8x32xf32>
    %176 = vector.broadcast %174 : vector<2x1x1x1x32xf32> to vector<2x2x12x8x32xf32>
    %177 = arith.mulf %175, %176 : vector<2x2x12x8x32xf32>
    %178 = arith.addf %169, %177 : vector<2x2x12x8x32xf32>
    %179 = vector.broadcast %3 : vector<2x1x1x1x32xf32> to vector<2x2x12x8x32xf32>
    %180 = arith.addf %178, %179 : vector<2x2x12x8x32xf32>
    %cst_8 = arith.constant 0.000000e+00 : f32
    %181 = vector.broadcast %cst_8 : f32 to vector<2x2x12x8x32xf32>
    %182 = arith.maximumf %180, %181 : vector<2x2x12x8x32xf32>
    %183 = vector.extract_strided_slice %182 {offsets = [0, 0, 0, 0, 0], sizes = [2, 1, 12, 8, 32], strides = [1, 1, 1, 1, 1]} : vector<2x2x12x8x32xf32> to vector<2x1x12x8x32xf32>
    %184 = vector.shape_cast %183 : vector<2x1x12x8x32xf32> to vector<2x12x8x32xf32>
    %185 = vector.extract_strided_slice %182 {offsets = [0, 1, 0, 0, 0], sizes = [2, 1, 12, 8, 32], strides = [1, 1, 1, 1, 1]} : vector<2x2x12x8x32xf32> to vector<2x1x12x8x32xf32>
    %186 = vector.shape_cast %185 : vector<2x1x12x8x32xf32> to vector<2x12x8x32xf32>
    %187 = arith.maximumf %184, %186 : vector<2x12x8x32xf32>
    %188 = vector.shape_cast %187 : vector<2x12x8x32xf32> to vector<2x6x2x8x32xf32>
    %189 = vector.extract_strided_slice %188 {offsets = [0, 0, 0, 0, 0], sizes = [2, 6, 1, 8, 32], strides = [1, 1, 1, 1, 1]} : vector<2x6x2x8x32xf32> to vector<2x6x1x8x32xf32>
    %190 = vector.shape_cast %189 : vector<2x6x1x8x32xf32> to vector<2x6x8x32xf32>
    %191 = vector.extract_strided_slice %188 {offsets = [0, 0, 1, 0, 0], sizes = [2, 6, 1, 8, 32], strides = [1, 1, 1, 1, 1]} : vector<2x6x2x8x32xf32> to vector<2x6x1x8x32xf32>
    %192 = vector.shape_cast %191 : vector<2x6x1x8x32xf32> to vector<2x6x8x32xf32>
    %193 = arith.maximumf %190, %192 : vector<2x6x8x32xf32>
    %194 = vector.extract_strided_slice %0 {offsets = [0, 4, 0, 0], sizes = [2, 2, 12, 8], strides = [1, 1, 1, 1]} : vector<2x14x14x8xf32> to vector<2x2x12x8xf32>
    %195 = vector.shape_cast %194 : vector<2x2x12x8xf32> to vector<2x2x12x8x1xf32>
    %196 = vector.extract_strided_slice %1 {offsets = [0, 0, 0], sizes = [2, 1, 32], strides = [1, 1, 1]} : vector<2x9x32xf32> to vector<2x1x32xf32>
    %197 = vector.shape_cast %196 : vector<2x1x32xf32> to vector<2x32xf32>
    %198 = vector.shape_cast %197 : vector<2x32xf32> to vector<2x1x1x1x32xf32>
    %199 = vector.broadcast %195 : vector<2x2x12x8x1xf32> to vector<2x2x12x8x32xf32>
    %200 = vector.broadcast %198 : vector<2x1x1x1x32xf32> to vector<2x2x12x8x32xf32>
    %201 = arith.mulf %199, %200 : vector<2x2x12x8x32xf32>
    %202 = vector.extract_strided_slice %0 {offsets = [0, 4, 1, 0], sizes = [2, 2, 12, 8], strides = [1, 1, 1, 1]} : vector<2x14x14x8xf32> to vector<2x2x12x8xf32>
    %203 = vector.shape_cast %202 : vector<2x2x12x8xf32> to vector<2x2x12x8x1xf32>
    %204 = vector.extract_strided_slice %1 {offsets = [0, 1, 0], sizes = [2, 1, 32], strides = [1, 1, 1]} : vector<2x9x32xf32> to vector<2x1x32xf32>
    %205 = vector.shape_cast %204 : vector<2x1x32xf32> to vector<2x32xf32>
    %206 = vector.shape_cast %205 : vector<2x32xf32> to vector<2x1x1x1x32xf32>
    %207 = vector.broadcast %203 : vector<2x2x12x8x1xf32> to vector<2x2x12x8x32xf32>
    %208 = vector.broadcast %206 : vector<2x1x1x1x32xf32> to vector<2x2x12x8x32xf32>
    %209 = arith.mulf %207, %208 : vector<2x2x12x8x32xf32>
    %210 = arith.addf %201, %209 : vector<2x2x12x8x32xf32>
    %211 = vector.extract_strided_slice %0 {offsets = [0, 4, 2, 0], sizes = [2, 2, 12, 8], strides = [1, 1, 1, 1]} : vector<2x14x14x8xf32> to vector<2x2x12x8xf32>
    %212 = vector.shape_cast %211 : vector<2x2x12x8xf32> to vector<2x2x12x8x1xf32>
    %213 = vector.extract_strided_slice %1 {offsets = [0, 2, 0], sizes = [2, 1, 32], strides = [1, 1, 1]} : vector<2x9x32xf32> to vector<2x1x32xf32>
    %214 = vector.shape_cast %213 : vector<2x1x32xf32> to vector<2x32xf32>
    %215 = vector.shape_cast %214 : vector<2x32xf32> to vector<2x1x1x1x32xf32>
    %216 = vector.broadcast %212 : vector<2x2x12x8x1xf32> to vector<2x2x12x8x32xf32>
    %217 = vector.broadcast %215 : vector<2x1x1x1x32xf32> to vector<2x2x12x8x32xf32>
    %218 = arith.mulf %216, %217 : vector<2x2x12x8x32xf32>
    %219 = arith.addf %210, %218 : vector<2x2x12x8x32xf32>
    %220 = vector.extract_strided_slice %0 {offsets = [0, 5, 0, 0], sizes = [2, 2, 12, 8], strides = [1, 1, 1, 1]} : vector<2x14x14x8xf32> to vector<2x2x12x8xf32>
    %221 = vector.shape_cast %220 : vector<2x2x12x8xf32> to vector<2x2x12x8x1xf32>
    %222 = vector.extract_strided_slice %1 {offsets = [0, 3, 0], sizes = [2, 1, 32], strides = [1, 1, 1]} : vector<2x9x32xf32> to vector<2x1x32xf32>
    %223 = vector.shape_cast %222 : vector<2x1x32xf32> to vector<2x32xf32>
    %224 = vector.shape_cast %223 : vector<2x32xf32> to vector<2x1x1x1x32xf32>
    %225 = vector.broadcast %221 : vector<2x2x12x8x1xf32> to vector<2x2x12x8x32xf32>
    %226 = vector.broadcast %224 : vector<2x1x1x1x32xf32> to vector<2x2x12x8x32xf32>
    %227 = arith.mulf %225, %226 : vector<2x2x12x8x32xf32>
    %228 = arith.addf %219, %227 : vector<2x2x12x8x32xf32>
    %229 = vector.extract_strided_slice %0 {offsets = [0, 5, 1, 0], sizes = [2, 2, 12, 8], strides = [1, 1, 1, 1]} : vector<2x14x14x8xf32> to vector<2x2x12x8xf32>
    %230 = vector.shape_cast %229 : vector<2x2x12x8xf32> to vector<2x2x12x8x1xf32>
    %231 = vector.extract_strided_slice %1 {offsets = [0, 4, 0], sizes = [2, 1, 32], strides = [1, 1, 1]} : vector<2x9x32xf32> to vector<2x1x32xf32>
    %232 = vector.shape_cast %231 : vector<2x1x32xf32> to vector<2x32xf32>
    %233 = vector.shape_cast %232 : vector<2x32xf32> to vector<2x1x1x1x32xf32>
    %234 = vector.broadcast %230 : vector<2x2x12x8x1xf32> to vector<2x2x12x8x32xf32>
    %235 = vector.broadcast %233 : vector<2x1x1x1x32xf32> to vector<2x2x12x8x32xf32>
    %236 = arith.mulf %234, %235 : vector<2x2x12x8x32xf32>
    %237 = arith.addf %228, %236 : vector<2x2x12x8x32xf32>
    %238 = vector.extract_strided_slice %0 {offsets = [0, 5, 2, 0], sizes = [2, 2, 12, 8], strides = [1, 1, 1, 1]} : vector<2x14x14x8xf32> to vector<2x2x12x8xf32>
    %239 = vector.shape_cast %238 : vector<2x2x12x8xf32> to vector<2x2x12x8x1xf32>
    %240 = vector.extract_strided_slice %1 {offsets = [0, 5, 0], sizes = [2, 1, 32], strides = [1, 1, 1]} : vector<2x9x32xf32> to vector<2x1x32xf32>
    %241 = vector.shape_cast %240 : vector<2x1x32xf32> to vector<2x32xf32>
    %242 = vector.shape_cast %241 : vector<2x32xf32> to vector<2x1x1x1x32xf32>
    %243 = vector.broadcast %239 : vector<2x2x12x8x1xf32> to vector<2x2x12x8x32xf32>
    %244 = vector.broadcast %242 : vector<2x1x1x1x32xf32> to vector<2x2x12x8x32xf32>
    %245 = arith.mulf %243, %244 : vector<2x2x12x8x32xf32>
    %246 = arith.addf %237, %245 : vector<2x2x12x8x32xf32>
    %247 = vector.extract_strided_slice %0 {offsets = [0, 6, 0, 0], sizes = [2, 2, 12, 8], strides = [1, 1, 1, 1]} : vector<2x14x14x8xf32> to vector<2x2x12x8xf32>
    %248 = vector.shape_cast %247 : vector<2x2x12x8xf32> to vector<2x2x12x8x1xf32>
    %249 = vector.extract_strided_slice %1 {offsets = [0, 6, 0], sizes = [2, 1, 32], strides = [1, 1, 1]} : vector<2x9x32xf32> to vector<2x1x32xf32>
    %250 = vector.shape_cast %249 : vector<2x1x32xf32> to vector<2x32xf32>
    %251 = vector.shape_cast %250 : vector<2x32xf32> to vector<2x1x1x1x32xf32>
    %252 = vector.broadcast %248 : vector<2x2x12x8x1xf32> to vector<2x2x12x8x32xf32>
    %253 = vector.broadcast %251 : vector<2x1x1x1x32xf32> to vector<2x2x12x8x32xf32>
    %254 = arith.mulf %252, %253 : vector<2x2x12x8x32xf32>
    %255 = arith.addf %246, %254 : vector<2x2x12x8x32xf32>
    %256 = vector.extract_strided_slice %0 {offsets = [0, 6, 1, 0], sizes = [2, 2, 12, 8], strides = [1, 1, 1, 1]} : vector<2x14x14x8xf32> to vector<2x2x12x8xf32>
    %257 = vector.shape_cast %256 : vector<2x2x12x8xf32> to vector<2x2x12x8x1xf32>
    %258 = vector.extract_strided_slice %1 {offsets = [0, 7, 0], sizes = [2, 1, 32], strides = [1, 1, 1]} : vector<2x9x32xf32> to vector<2x1x32xf32>
    %259 = vector.shape_cast %258 : vector<2x1x32xf32> to vector<2x32xf32>
    %260 = vector.shape_cast %259 : vector<2x32xf32> to vector<2x1x1x1x32xf32>
    %261 = vector.broadcast %257 : vector<2x2x12x8x1xf32> to vector<2x2x12x8x32xf32>
    %262 = vector.broadcast %260 : vector<2x1x1x1x32xf32> to vector<2x2x12x8x32xf32>
    %263 = arith.mulf %261, %262 : vector<2x2x12x8x32xf32>
    %264 = arith.addf %255, %263 : vector<2x2x12x8x32xf32>
    %265 = vector.extract_strided_slice %0 {offsets = [0, 6, 2, 0], sizes = [2, 2, 12, 8], strides = [1, 1, 1, 1]} : vector<2x14x14x8xf32> to vector<2x2x12x8xf32>
    %266 = vector.shape_cast %265 : vector<2x2x12x8xf32> to vector<2x2x12x8x1xf32>
    %267 = vector.extract_strided_slice %1 {offsets = [0, 8, 0], sizes = [2, 1, 32], strides = [1, 1, 1]} : vector<2x9x32xf32> to vector<2x1x32xf32>
    %268 = vector.shape_cast %267 : vector<2x1x32xf32> to vector<2x32xf32>
    %269 = vector.shape_cast %268 : vector<2x32xf32> to vector<2x1x1x1x32xf32>
    %270 = vector.broadcast %266 : vector<2x2x12x8x1xf32> to vector<2x2x12x8x32xf32>
    %271 = vector.broadcast %269 : vector<2x1x1x1x32xf32> to vector<2x2x12x8x32xf32>
    %272 = arith.mulf %270, %271 : vector<2x2x12x8x32xf32>
    %273 = arith.addf %264, %272 : vector<2x2x12x8x32xf32>
    %274 = vector.broadcast %3 : vector<2x1x1x1x32xf32> to vector<2x2x12x8x32xf32>
    %275 = arith.addf %273, %274 : vector<2x2x12x8x32xf32>
    %cst_9 = arith.constant 0.000000e+00 : f32
    %276 = vector.broadcast %cst_9 : f32 to vector<2x2x12x8x32xf32>
    %277 = arith.maximumf %275, %276 : vector<2x2x12x8x32xf32>
    %278 = vector.extract_strided_slice %277 {offsets = [0, 0, 0, 0, 0], sizes = [2, 1, 12, 8, 32], strides = [1, 1, 1, 1, 1]} : vector<2x2x12x8x32xf32> to vector<2x1x12x8x32xf32>
    %279 = vector.shape_cast %278 : vector<2x1x12x8x32xf32> to vector<2x12x8x32xf32>
    %280 = vector.extract_strided_slice %277 {offsets = [0, 1, 0, 0, 0], sizes = [2, 1, 12, 8, 32], strides = [1, 1, 1, 1, 1]} : vector<2x2x12x8x32xf32> to vector<2x1x12x8x32xf32>
    %281 = vector.shape_cast %280 : vector<2x1x12x8x32xf32> to vector<2x12x8x32xf32>
    %282 = arith.maximumf %279, %281 : vector<2x12x8x32xf32>
    %283 = vector.shape_cast %282 : vector<2x12x8x32xf32> to vector<2x6x2x8x32xf32>
    %284 = vector.extract_strided_slice %283 {offsets = [0, 0, 0, 0, 0], sizes = [2, 6, 1, 8, 32], strides = [1, 1, 1, 1, 1]} : vector<2x6x2x8x32xf32> to vector<2x6x1x8x32xf32>
    %285 = vector.shape_cast %284 : vector<2x6x1x8x32xf32> to vector<2x6x8x32xf32>
    %286 = vector.extract_strided_slice %283 {offsets = [0, 0, 1, 0, 0], sizes = [2, 6, 1, 8, 32], strides = [1, 1, 1, 1, 1]} : vector<2x6x2x8x32xf32> to vector<2x6x1x8x32xf32>
    %287 = vector.shape_cast %286 : vector<2x6x1x8x32xf32> to vector<2x6x8x32xf32>
    %288 = arith.maximumf %285, %287 : vector<2x6x8x32xf32>
    %289 = vector.extract_strided_slice %0 {offsets = [0, 6, 0, 0], sizes = [2, 2, 12, 8], strides = [1, 1, 1, 1]} : vector<2x14x14x8xf32> to vector<2x2x12x8xf32>
    %290 = vector.shape_cast %289 : vector<2x2x12x8xf32> to vector<2x2x12x8x1xf32>
    %291 = vector.extract_strided_slice %1 {offsets = [0, 0, 0], sizes = [2, 1, 32], strides = [1, 1, 1]} : vector<2x9x32xf32> to vector<2x1x32xf32>
    %292 = vector.shape_cast %291 : vector<2x1x32xf32> to vector<2x32xf32>
    %293 = vector.shape_cast %292 : vector<2x32xf32> to vector<2x1x1x1x32xf32>
    %294 = vector.broadcast %290 : vector<2x2x12x8x1xf32> to vector<2x2x12x8x32xf32>
    %295 = vector.broadcast %293 : vector<2x1x1x1x32xf32> to vector<2x2x12x8x32xf32>
    %296 = arith.mulf %294, %295 : vector<2x2x12x8x32xf32>
    %297 = vector.extract_strided_slice %0 {offsets = [0, 6, 1, 0], sizes = [2, 2, 12, 8], strides = [1, 1, 1, 1]} : vector<2x14x14x8xf32> to vector<2x2x12x8xf32>
    %298 = vector.shape_cast %297 : vector<2x2x12x8xf32> to vector<2x2x12x8x1xf32>
    %299 = vector.extract_strided_slice %1 {offsets = [0, 1, 0], sizes = [2, 1, 32], strides = [1, 1, 1]} : vector<2x9x32xf32> to vector<2x1x32xf32>
    %300 = vector.shape_cast %299 : vector<2x1x32xf32> to vector<2x32xf32>
    %301 = vector.shape_cast %300 : vector<2x32xf32> to vector<2x1x1x1x32xf32>
    %302 = vector.broadcast %298 : vector<2x2x12x8x1xf32> to vector<2x2x12x8x32xf32>
    %303 = vector.broadcast %301 : vector<2x1x1x1x32xf32> to vector<2x2x12x8x32xf32>
    %304 = arith.mulf %302, %303 : vector<2x2x12x8x32xf32>
    %305 = arith.addf %296, %304 : vector<2x2x12x8x32xf32>
    %306 = vector.extract_strided_slice %0 {offsets = [0, 6, 2, 0], sizes = [2, 2, 12, 8], strides = [1, 1, 1, 1]} : vector<2x14x14x8xf32> to vector<2x2x12x8xf32>
    %307 = vector.shape_cast %306 : vector<2x2x12x8xf32> to vector<2x2x12x8x1xf32>
    %308 = vector.extract_strided_slice %1 {offsets = [0, 2, 0], sizes = [2, 1, 32], strides = [1, 1, 1]} : vector<2x9x32xf32> to vector<2x1x32xf32>
    %309 = vector.shape_cast %308 : vector<2x1x32xf32> to vector<2x32xf32>
    %310 = vector.shape_cast %309 : vector<2x32xf32> to vector<2x1x1x1x32xf32>
    %311 = vector.broadcast %307 : vector<2x2x12x8x1xf32> to vector<2x2x12x8x32xf32>
    %312 = vector.broadcast %310 : vector<2x1x1x1x32xf32> to vector<2x2x12x8x32xf32>
    %313 = arith.mulf %311, %312 : vector<2x2x12x8x32xf32>
    %314 = arith.addf %305, %313 : vector<2x2x12x8x32xf32>
    %315 = vector.extract_strided_slice %0 {offsets = [0, 7, 0, 0], sizes = [2, 2, 12, 8], strides = [1, 1, 1, 1]} : vector<2x14x14x8xf32> to vector<2x2x12x8xf32>
    %316 = vector.shape_cast %315 : vector<2x2x12x8xf32> to vector<2x2x12x8x1xf32>
    %317 = vector.extract_strided_slice %1 {offsets = [0, 3, 0], sizes = [2, 1, 32], strides = [1, 1, 1]} : vector<2x9x32xf32> to vector<2x1x32xf32>
    %318 = vector.shape_cast %317 : vector<2x1x32xf32> to vector<2x32xf32>
    %319 = vector.shape_cast %318 : vector<2x32xf32> to vector<2x1x1x1x32xf32>
    %320 = vector.broadcast %316 : vector<2x2x12x8x1xf32> to vector<2x2x12x8x32xf32>
    %321 = vector.broadcast %319 : vector<2x1x1x1x32xf32> to vector<2x2x12x8x32xf32>
    %322 = arith.mulf %320, %321 : vector<2x2x12x8x32xf32>
    %323 = arith.addf %314, %322 : vector<2x2x12x8x32xf32>
    %324 = vector.extract_strided_slice %0 {offsets = [0, 7, 1, 0], sizes = [2, 2, 12, 8], strides = [1, 1, 1, 1]} : vector<2x14x14x8xf32> to vector<2x2x12x8xf32>
    %325 = vector.shape_cast %324 : vector<2x2x12x8xf32> to vector<2x2x12x8x1xf32>
    %326 = vector.extract_strided_slice %1 {offsets = [0, 4, 0], sizes = [2, 1, 32], strides = [1, 1, 1]} : vector<2x9x32xf32> to vector<2x1x32xf32>
    %327 = vector.shape_cast %326 : vector<2x1x32xf32> to vector<2x32xf32>
    %328 = vector.shape_cast %327 : vector<2x32xf32> to vector<2x1x1x1x32xf32>
    %329 = vector.broadcast %325 : vector<2x2x12x8x1xf32> to vector<2x2x12x8x32xf32>
    %330 = vector.broadcast %328 : vector<2x1x1x1x32xf32> to vector<2x2x12x8x32xf32>
    %331 = arith.mulf %329, %330 : vector<2x2x12x8x32xf32>
    %332 = arith.addf %323, %331 : vector<2x2x12x8x32xf32>
    %333 = vector.extract_strided_slice %0 {offsets = [0, 7, 2, 0], sizes = [2, 2, 12, 8], strides = [1, 1, 1, 1]} : vector<2x14x14x8xf32> to vector<2x2x12x8xf32>
    %334 = vector.shape_cast %333 : vector<2x2x12x8xf32> to vector<2x2x12x8x1xf32>
    %335 = vector.extract_strided_slice %1 {offsets = [0, 5, 0], sizes = [2, 1, 32], strides = [1, 1, 1]} : vector<2x9x32xf32> to vector<2x1x32xf32>
    %336 = vector.shape_cast %335 : vector<2x1x32xf32> to vector<2x32xf32>
    %337 = vector.shape_cast %336 : vector<2x32xf32> to vector<2x1x1x1x32xf32>
    %338 = vector.broadcast %334 : vector<2x2x12x8x1xf32> to vector<2x2x12x8x32xf32>
    %339 = vector.broadcast %337 : vector<2x1x1x1x32xf32> to vector<2x2x12x8x32xf32>
    %340 = arith.mulf %338, %339 : vector<2x2x12x8x32xf32>
    %341 = arith.addf %332, %340 : vector<2x2x12x8x32xf32>
    %342 = vector.extract_strided_slice %0 {offsets = [0, 8, 0, 0], sizes = [2, 2, 12, 8], strides = [1, 1, 1, 1]} : vector<2x14x14x8xf32> to vector<2x2x12x8xf32>
    %343 = vector.shape_cast %342 : vector<2x2x12x8xf32> to vector<2x2x12x8x1xf32>
    %344 = vector.extract_strided_slice %1 {offsets = [0, 6, 0], sizes = [2, 1, 32], strides = [1, 1, 1]} : vector<2x9x32xf32> to vector<2x1x32xf32>
    %345 = vector.shape_cast %344 : vector<2x1x32xf32> to vector<2x32xf32>
    %346 = vector.shape_cast %345 : vector<2x32xf32> to vector<2x1x1x1x32xf32>
    %347 = vector.broadcast %343 : vector<2x2x12x8x1xf32> to vector<2x2x12x8x32xf32>
    %348 = vector.broadcast %346 : vector<2x1x1x1x32xf32> to vector<2x2x12x8x32xf32>
    %349 = arith.mulf %347, %348 : vector<2x2x12x8x32xf32>
    %350 = arith.addf %341, %349 : vector<2x2x12x8x32xf32>
    %351 = vector.extract_strided_slice %0 {offsets = [0, 8, 1, 0], sizes = [2, 2, 12, 8], strides = [1, 1, 1, 1]} : vector<2x14x14x8xf32> to vector<2x2x12x8xf32>
    %352 = vector.shape_cast %351 : vector<2x2x12x8xf32> to vector<2x2x12x8x1xf32>
    %353 = vector.extract_strided_slice %1 {offsets = [0, 7, 0], sizes = [2, 1, 32], strides = [1, 1, 1]} : vector<2x9x32xf32> to vector<2x1x32xf32>
    %354 = vector.shape_cast %353 : vector<2x1x32xf32> to vector<2x32xf32>
    %355 = vector.shape_cast %354 : vector<2x32xf32> to vector<2x1x1x1x32xf32>
    %356 = vector.broadcast %352 : vector<2x2x12x8x1xf32> to vector<2x2x12x8x32xf32>
    %357 = vector.broadcast %355 : vector<2x1x1x1x32xf32> to vector<2x2x12x8x32xf32>
    %358 = arith.mulf %356, %357 : vector<2x2x12x8x32xf32>
    %359 = arith.addf %350, %358 : vector<2x2x12x8x32xf32>
    %360 = vector.extract_strided_slice %0 {offsets = [0, 8, 2, 0], sizes = [2, 2, 12, 8], strides = [1, 1, 1, 1]} : vector<2x14x14x8xf32> to vector<2x2x12x8xf32>
    %361 = vector.shape_cast %360 : vector<2x2x12x8xf32> to vector<2x2x12x8x1xf32>
    %362 = vector.extract_strided_slice %1 {offsets = [0, 8, 0], sizes = [2, 1, 32], strides = [1, 1, 1]} : vector<2x9x32xf32> to vector<2x1x32xf32>
    %363 = vector.shape_cast %362 : vector<2x1x32xf32> to vector<2x32xf32>
    %364 = vector.shape_cast %363 : vector<2x32xf32> to vector<2x1x1x1x32xf32>
    %365 = vector.broadcast %361 : vector<2x2x12x8x1xf32> to vector<2x2x12x8x32xf32>
    %366 = vector.broadcast %364 : vector<2x1x1x1x32xf32> to vector<2x2x12x8x32xf32>
    %367 = arith.mulf %365, %366 : vector<2x2x12x8x32xf32>
    %368 = arith.addf %359, %367 : vector<2x2x12x8x32xf32>
    %369 = vector.broadcast %3 : vector<2x1x1x1x32xf32> to vector<2x2x12x8x32xf32>
    %370 = arith.addf %368, %369 : vector<2x2x12x8x32xf32>
    %cst_10 = arith.constant 0.000000e+00 : f32
    %371 = vector.broadcast %cst_10 : f32 to vector<2x2x12x8x32xf32>
    %372 = arith.maximumf %370, %371 : vector<2x2x12x8x32xf32>
    %373 = vector.extract_strided_slice %372 {offsets = [0, 0, 0, 0, 0], sizes = [2, 1, 12, 8, 32], strides = [1, 1, 1, 1, 1]} : vector<2x2x12x8x32xf32> to vector<2x1x12x8x32xf32>
    %374 = vector.shape_cast %373 : vector<2x1x12x8x32xf32> to vector<2x12x8x32xf32>
    %375 = vector.extract_strided_slice %372 {offsets = [0, 1, 0, 0, 0], sizes = [2, 1, 12, 8, 32], strides = [1, 1, 1, 1, 1]} : vector<2x2x12x8x32xf32> to vector<2x1x12x8x32xf32>
    %376 = vector.shape_cast %375 : vector<2x1x12x8x32xf32> to vector<2x12x8x32xf32>
    %377 = arith.maximumf %374, %376 : vector<2x12x8x32xf32>
    %378 = vector.shape_cast %377 : vector<2x12x8x32xf32> to vector<2x6x2x8x32xf32>
    %379 = vector.extract_strided_slice %378 {offsets = [0, 0, 0, 0, 0], sizes = [2, 6, 1, 8, 32], strides = [1, 1, 1, 1, 1]} : vector<2x6x2x8x32xf32> to vector<2x6x1x8x32xf32>
    %380 = vector.shape_cast %379 : vector<2x6x1x8x32xf32> to vector<2x6x8x32xf32>
    %381 = vector.extract_strided_slice %378 {offsets = [0, 0, 1, 0, 0], sizes = [2, 6, 1, 8, 32], strides = [1, 1, 1, 1, 1]} : vector<2x6x2x8x32xf32> to vector<2x6x1x8x32xf32>
    %382 = vector.shape_cast %381 : vector<2x6x1x8x32xf32> to vector<2x6x8x32xf32>
    %383 = arith.maximumf %380, %382 : vector<2x6x8x32xf32>
    %384 = vector.extract_strided_slice %0 {offsets = [0, 8, 0, 0], sizes = [2, 2, 12, 8], strides = [1, 1, 1, 1]} : vector<2x14x14x8xf32> to vector<2x2x12x8xf32>
    %385 = vector.shape_cast %384 : vector<2x2x12x8xf32> to vector<2x2x12x8x1xf32>
    %386 = vector.extract_strided_slice %1 {offsets = [0, 0, 0], sizes = [2, 1, 32], strides = [1, 1, 1]} : vector<2x9x32xf32> to vector<2x1x32xf32>
    %387 = vector.shape_cast %386 : vector<2x1x32xf32> to vector<2x32xf32>
    %388 = vector.shape_cast %387 : vector<2x32xf32> to vector<2x1x1x1x32xf32>
    %389 = vector.broadcast %385 : vector<2x2x12x8x1xf32> to vector<2x2x12x8x32xf32>
    %390 = vector.broadcast %388 : vector<2x1x1x1x32xf32> to vector<2x2x12x8x32xf32>
    %391 = arith.mulf %389, %390 : vector<2x2x12x8x32xf32>
    %392 = vector.extract_strided_slice %0 {offsets = [0, 8, 1, 0], sizes = [2, 2, 12, 8], strides = [1, 1, 1, 1]} : vector<2x14x14x8xf32> to vector<2x2x12x8xf32>
    %393 = vector.shape_cast %392 : vector<2x2x12x8xf32> to vector<2x2x12x8x1xf32>
    %394 = vector.extract_strided_slice %1 {offsets = [0, 1, 0], sizes = [2, 1, 32], strides = [1, 1, 1]} : vector<2x9x32xf32> to vector<2x1x32xf32>
    %395 = vector.shape_cast %394 : vector<2x1x32xf32> to vector<2x32xf32>
    %396 = vector.shape_cast %395 : vector<2x32xf32> to vector<2x1x1x1x32xf32>
    %397 = vector.broadcast %393 : vector<2x2x12x8x1xf32> to vector<2x2x12x8x32xf32>
    %398 = vector.broadcast %396 : vector<2x1x1x1x32xf32> to vector<2x2x12x8x32xf32>
    %399 = arith.mulf %397, %398 : vector<2x2x12x8x32xf32>
    %400 = arith.addf %391, %399 : vector<2x2x12x8x32xf32>
    %401 = vector.extract_strided_slice %0 {offsets = [0, 8, 2, 0], sizes = [2, 2, 12, 8], strides = [1, 1, 1, 1]} : vector<2x14x14x8xf32> to vector<2x2x12x8xf32>
    %402 = vector.shape_cast %401 : vector<2x2x12x8xf32> to vector<2x2x12x8x1xf32>
    %403 = vector.extract_strided_slice %1 {offsets = [0, 2, 0], sizes = [2, 1, 32], strides = [1, 1, 1]} : vector<2x9x32xf32> to vector<2x1x32xf32>
    %404 = vector.shape_cast %403 : vector<2x1x32xf32> to vector<2x32xf32>
    %405 = vector.shape_cast %404 : vector<2x32xf32> to vector<2x1x1x1x32xf32>
    %406 = vector.broadcast %402 : vector<2x2x12x8x1xf32> to vector<2x2x12x8x32xf32>
    %407 = vector.broadcast %405 : vector<2x1x1x1x32xf32> to vector<2x2x12x8x32xf32>
    %408 = arith.mulf %406, %407 : vector<2x2x12x8x32xf32>
    %409 = arith.addf %400, %408 : vector<2x2x12x8x32xf32>
    %410 = vector.extract_strided_slice %0 {offsets = [0, 9, 0, 0], sizes = [2, 2, 12, 8], strides = [1, 1, 1, 1]} : vector<2x14x14x8xf32> to vector<2x2x12x8xf32>
    %411 = vector.shape_cast %410 : vector<2x2x12x8xf32> to vector<2x2x12x8x1xf32>
    %412 = vector.extract_strided_slice %1 {offsets = [0, 3, 0], sizes = [2, 1, 32], strides = [1, 1, 1]} : vector<2x9x32xf32> to vector<2x1x32xf32>
    %413 = vector.shape_cast %412 : vector<2x1x32xf32> to vector<2x32xf32>
    %414 = vector.shape_cast %413 : vector<2x32xf32> to vector<2x1x1x1x32xf32>
    %415 = vector.broadcast %411 : vector<2x2x12x8x1xf32> to vector<2x2x12x8x32xf32>
    %416 = vector.broadcast %414 : vector<2x1x1x1x32xf32> to vector<2x2x12x8x32xf32>
    %417 = arith.mulf %415, %416 : vector<2x2x12x8x32xf32>
    %418 = arith.addf %409, %417 : vector<2x2x12x8x32xf32>
    %419 = vector.extract_strided_slice %0 {offsets = [0, 9, 1, 0], sizes = [2, 2, 12, 8], strides = [1, 1, 1, 1]} : vector<2x14x14x8xf32> to vector<2x2x12x8xf32>
    %420 = vector.shape_cast %419 : vector<2x2x12x8xf32> to vector<2x2x12x8x1xf32>
    %421 = vector.extract_strided_slice %1 {offsets = [0, 4, 0], sizes = [2, 1, 32], strides = [1, 1, 1]} : vector<2x9x32xf32> to vector<2x1x32xf32>
    %422 = vector.shape_cast %421 : vector<2x1x32xf32> to vector<2x32xf32>
    %423 = vector.shape_cast %422 : vector<2x32xf32> to vector<2x1x1x1x32xf32>
    %424 = vector.broadcast %420 : vector<2x2x12x8x1xf32> to vector<2x2x12x8x32xf32>
    %425 = vector.broadcast %423 : vector<2x1x1x1x32xf32> to vector<2x2x12x8x32xf32>
    %426 = arith.mulf %424, %425 : vector<2x2x12x8x32xf32>
    %427 = arith.addf %418, %426 : vector<2x2x12x8x32xf32>
    %428 = vector.extract_strided_slice %0 {offsets = [0, 9, 2, 0], sizes = [2, 2, 12, 8], strides = [1, 1, 1, 1]} : vector<2x14x14x8xf32> to vector<2x2x12x8xf32>
    %429 = vector.shape_cast %428 : vector<2x2x12x8xf32> to vector<2x2x12x8x1xf32>
    %430 = vector.extract_strided_slice %1 {offsets = [0, 5, 0], sizes = [2, 1, 32], strides = [1, 1, 1]} : vector<2x9x32xf32> to vector<2x1x32xf32>
    %431 = vector.shape_cast %430 : vector<2x1x32xf32> to vector<2x32xf32>
    %432 = vector.shape_cast %431 : vector<2x32xf32> to vector<2x1x1x1x32xf32>
    %433 = vector.broadcast %429 : vector<2x2x12x8x1xf32> to vector<2x2x12x8x32xf32>
    %434 = vector.broadcast %432 : vector<2x1x1x1x32xf32> to vector<2x2x12x8x32xf32>
    %435 = arith.mulf %433, %434 : vector<2x2x12x8x32xf32>
    %436 = arith.addf %427, %435 : vector<2x2x12x8x32xf32>
    %437 = vector.extract_strided_slice %0 {offsets = [0, 10, 0, 0], sizes = [2, 2, 12, 8], strides = [1, 1, 1, 1]} : vector<2x14x14x8xf32> to vector<2x2x12x8xf32>
    %438 = vector.shape_cast %437 : vector<2x2x12x8xf32> to vector<2x2x12x8x1xf32>
    %439 = vector.extract_strided_slice %1 {offsets = [0, 6, 0], sizes = [2, 1, 32], strides = [1, 1, 1]} : vector<2x9x32xf32> to vector<2x1x32xf32>
    %440 = vector.shape_cast %439 : vector<2x1x32xf32> to vector<2x32xf32>
    %441 = vector.shape_cast %440 : vector<2x32xf32> to vector<2x1x1x1x32xf32>
    %442 = vector.broadcast %438 : vector<2x2x12x8x1xf32> to vector<2x2x12x8x32xf32>
    %443 = vector.broadcast %441 : vector<2x1x1x1x32xf32> to vector<2x2x12x8x32xf32>
    %444 = arith.mulf %442, %443 : vector<2x2x12x8x32xf32>
    %445 = arith.addf %436, %444 : vector<2x2x12x8x32xf32>
    %446 = vector.extract_strided_slice %0 {offsets = [0, 10, 1, 0], sizes = [2, 2, 12, 8], strides = [1, 1, 1, 1]} : vector<2x14x14x8xf32> to vector<2x2x12x8xf32>
    %447 = vector.shape_cast %446 : vector<2x2x12x8xf32> to vector<2x2x12x8x1xf32>
    %448 = vector.extract_strided_slice %1 {offsets = [0, 7, 0], sizes = [2, 1, 32], strides = [1, 1, 1]} : vector<2x9x32xf32> to vector<2x1x32xf32>
    %449 = vector.shape_cast %448 : vector<2x1x32xf32> to vector<2x32xf32>
    %450 = vector.shape_cast %449 : vector<2x32xf32> to vector<2x1x1x1x32xf32>
    %451 = vector.broadcast %447 : vector<2x2x12x8x1xf32> to vector<2x2x12x8x32xf32>
    %452 = vector.broadcast %450 : vector<2x1x1x1x32xf32> to vector<2x2x12x8x32xf32>
    %453 = arith.mulf %451, %452 : vector<2x2x12x8x32xf32>
    %454 = arith.addf %445, %453 : vector<2x2x12x8x32xf32>
    %455 = vector.extract_strided_slice %0 {offsets = [0, 10, 2, 0], sizes = [2, 2, 12, 8], strides = [1, 1, 1, 1]} : vector<2x14x14x8xf32> to vector<2x2x12x8xf32>
    %456 = vector.shape_cast %455 : vector<2x2x12x8xf32> to vector<2x2x12x8x1xf32>
    %457 = vector.extract_strided_slice %1 {offsets = [0, 8, 0], sizes = [2, 1, 32], strides = [1, 1, 1]} : vector<2x9x32xf32> to vector<2x1x32xf32>
    %458 = vector.shape_cast %457 : vector<2x1x32xf32> to vector<2x32xf32>
    %459 = vector.shape_cast %458 : vector<2x32xf32> to vector<2x1x1x1x32xf32>
    %460 = vector.broadcast %456 : vector<2x2x12x8x1xf32> to vector<2x2x12x8x32xf32>
    %461 = vector.broadcast %459 : vector<2x1x1x1x32xf32> to vector<2x2x12x8x32xf32>
    %462 = arith.mulf %460, %461 : vector<2x2x12x8x32xf32>
    %463 = arith.addf %454, %462 : vector<2x2x12x8x32xf32>
    %464 = vector.broadcast %3 : vector<2x1x1x1x32xf32> to vector<2x2x12x8x32xf32>
    %465 = arith.addf %463, %464 : vector<2x2x12x8x32xf32>
    %cst_11 = arith.constant 0.000000e+00 : f32
    %466 = vector.broadcast %cst_11 : f32 to vector<2x2x12x8x32xf32>
    %467 = arith.maximumf %465, %466 : vector<2x2x12x8x32xf32>
    %468 = vector.extract_strided_slice %467 {offsets = [0, 0, 0, 0, 0], sizes = [2, 1, 12, 8, 32], strides = [1, 1, 1, 1, 1]} : vector<2x2x12x8x32xf32> to vector<2x1x12x8x32xf32>
    %469 = vector.shape_cast %468 : vector<2x1x12x8x32xf32> to vector<2x12x8x32xf32>
    %470 = vector.extract_strided_slice %467 {offsets = [0, 1, 0, 0, 0], sizes = [2, 1, 12, 8, 32], strides = [1, 1, 1, 1, 1]} : vector<2x2x12x8x32xf32> to vector<2x1x12x8x32xf32>
    %471 = vector.shape_cast %470 : vector<2x1x12x8x32xf32> to vector<2x12x8x32xf32>
    %472 = arith.maximumf %469, %471 : vector<2x12x8x32xf32>
    %473 = vector.shape_cast %472 : vector<2x12x8x32xf32> to vector<2x6x2x8x32xf32>
    %474 = vector.extract_strided_slice %473 {offsets = [0, 0, 0, 0, 0], sizes = [2, 6, 1, 8, 32], strides = [1, 1, 1, 1, 1]} : vector<2x6x2x8x32xf32> to vector<2x6x1x8x32xf32>
    %475 = vector.shape_cast %474 : vector<2x6x1x8x32xf32> to vector<2x6x8x32xf32>
    %476 = vector.extract_strided_slice %473 {offsets = [0, 0, 1, 0, 0], sizes = [2, 6, 1, 8, 32], strides = [1, 1, 1, 1, 1]} : vector<2x6x2x8x32xf32> to vector<2x6x1x8x32xf32>
    %477 = vector.shape_cast %476 : vector<2x6x1x8x32xf32> to vector<2x6x8x32xf32>
    %478 = arith.maximumf %475, %477 : vector<2x6x8x32xf32>
    %479 = vector.extract_strided_slice %0 {offsets = [0, 10, 0, 0], sizes = [2, 2, 12, 8], strides = [1, 1, 1, 1]} : vector<2x14x14x8xf32> to vector<2x2x12x8xf32>
    %480 = vector.shape_cast %479 : vector<2x2x12x8xf32> to vector<2x2x12x8x1xf32>
    %481 = vector.extract_strided_slice %1 {offsets = [0, 0, 0], sizes = [2, 1, 32], strides = [1, 1, 1]} : vector<2x9x32xf32> to vector<2x1x32xf32>
    %482 = vector.shape_cast %481 : vector<2x1x32xf32> to vector<2x32xf32>
    %483 = vector.shape_cast %482 : vector<2x32xf32> to vector<2x1x1x1x32xf32>
    %484 = vector.broadcast %480 : vector<2x2x12x8x1xf32> to vector<2x2x12x8x32xf32>
    %485 = vector.broadcast %483 : vector<2x1x1x1x32xf32> to vector<2x2x12x8x32xf32>
    %486 = arith.mulf %484, %485 : vector<2x2x12x8x32xf32>
    %487 = vector.extract_strided_slice %0 {offsets = [0, 10, 1, 0], sizes = [2, 2, 12, 8], strides = [1, 1, 1, 1]} : vector<2x14x14x8xf32> to vector<2x2x12x8xf32>
    %488 = vector.shape_cast %487 : vector<2x2x12x8xf32> to vector<2x2x12x8x1xf32>
    %489 = vector.extract_strided_slice %1 {offsets = [0, 1, 0], sizes = [2, 1, 32], strides = [1, 1, 1]} : vector<2x9x32xf32> to vector<2x1x32xf32>
    %490 = vector.shape_cast %489 : vector<2x1x32xf32> to vector<2x32xf32>
    %491 = vector.shape_cast %490 : vector<2x32xf32> to vector<2x1x1x1x32xf32>
    %492 = vector.broadcast %488 : vector<2x2x12x8x1xf32> to vector<2x2x12x8x32xf32>
    %493 = vector.broadcast %491 : vector<2x1x1x1x32xf32> to vector<2x2x12x8x32xf32>
    %494 = arith.mulf %492, %493 : vector<2x2x12x8x32xf32>
    %495 = arith.addf %486, %494 : vector<2x2x12x8x32xf32>
    %496 = vector.extract_strided_slice %0 {offsets = [0, 10, 2, 0], sizes = [2, 2, 12, 8], strides = [1, 1, 1, 1]} : vector<2x14x14x8xf32> to vector<2x2x12x8xf32>
    %497 = vector.shape_cast %496 : vector<2x2x12x8xf32> to vector<2x2x12x8x1xf32>
    %498 = vector.extract_strided_slice %1 {offsets = [0, 2, 0], sizes = [2, 1, 32], strides = [1, 1, 1]} : vector<2x9x32xf32> to vector<2x1x32xf32>
    %499 = vector.shape_cast %498 : vector<2x1x32xf32> to vector<2x32xf32>
    %500 = vector.shape_cast %499 : vector<2x32xf32> to vector<2x1x1x1x32xf32>
    %501 = vector.broadcast %497 : vector<2x2x12x8x1xf32> to vector<2x2x12x8x32xf32>
    %502 = vector.broadcast %500 : vector<2x1x1x1x32xf32> to vector<2x2x12x8x32xf32>
    %503 = arith.mulf %501, %502 : vector<2x2x12x8x32xf32>
    %504 = arith.addf %495, %503 : vector<2x2x12x8x32xf32>
    %505 = vector.extract_strided_slice %0 {offsets = [0, 11, 0, 0], sizes = [2, 2, 12, 8], strides = [1, 1, 1, 1]} : vector<2x14x14x8xf32> to vector<2x2x12x8xf32>
    %506 = vector.shape_cast %505 : vector<2x2x12x8xf32> to vector<2x2x12x8x1xf32>
    %507 = vector.extract_strided_slice %1 {offsets = [0, 3, 0], sizes = [2, 1, 32], strides = [1, 1, 1]} : vector<2x9x32xf32> to vector<2x1x32xf32>
    %508 = vector.shape_cast %507 : vector<2x1x32xf32> to vector<2x32xf32>
    %509 = vector.shape_cast %508 : vector<2x32xf32> to vector<2x1x1x1x32xf32>
    %510 = vector.broadcast %506 : vector<2x2x12x8x1xf32> to vector<2x2x12x8x32xf32>
    %511 = vector.broadcast %509 : vector<2x1x1x1x32xf32> to vector<2x2x12x8x32xf32>
    %512 = arith.mulf %510, %511 : vector<2x2x12x8x32xf32>
    %513 = arith.addf %504, %512 : vector<2x2x12x8x32xf32>
    %514 = vector.extract_strided_slice %0 {offsets = [0, 11, 1, 0], sizes = [2, 2, 12, 8], strides = [1, 1, 1, 1]} : vector<2x14x14x8xf32> to vector<2x2x12x8xf32>
    %515 = vector.shape_cast %514 : vector<2x2x12x8xf32> to vector<2x2x12x8x1xf32>
    %516 = vector.extract_strided_slice %1 {offsets = [0, 4, 0], sizes = [2, 1, 32], strides = [1, 1, 1]} : vector<2x9x32xf32> to vector<2x1x32xf32>
    %517 = vector.shape_cast %516 : vector<2x1x32xf32> to vector<2x32xf32>
    %518 = vector.shape_cast %517 : vector<2x32xf32> to vector<2x1x1x1x32xf32>
    %519 = vector.broadcast %515 : vector<2x2x12x8x1xf32> to vector<2x2x12x8x32xf32>
    %520 = vector.broadcast %518 : vector<2x1x1x1x32xf32> to vector<2x2x12x8x32xf32>
    %521 = arith.mulf %519, %520 : vector<2x2x12x8x32xf32>
    %522 = arith.addf %513, %521 : vector<2x2x12x8x32xf32>
    %523 = vector.extract_strided_slice %0 {offsets = [0, 11, 2, 0], sizes = [2, 2, 12, 8], strides = [1, 1, 1, 1]} : vector<2x14x14x8xf32> to vector<2x2x12x8xf32>
    %524 = vector.shape_cast %523 : vector<2x2x12x8xf32> to vector<2x2x12x8x1xf32>
    %525 = vector.extract_strided_slice %1 {offsets = [0, 5, 0], sizes = [2, 1, 32], strides = [1, 1, 1]} : vector<2x9x32xf32> to vector<2x1x32xf32>
    %526 = vector.shape_cast %525 : vector<2x1x32xf32> to vector<2x32xf32>
    %527 = vector.shape_cast %526 : vector<2x32xf32> to vector<2x1x1x1x32xf32>
    %528 = vector.broadcast %524 : vector<2x2x12x8x1xf32> to vector<2x2x12x8x32xf32>
    %529 = vector.broadcast %527 : vector<2x1x1x1x32xf32> to vector<2x2x12x8x32xf32>
    %530 = arith.mulf %528, %529 : vector<2x2x12x8x32xf32>
    %531 = arith.addf %522, %530 : vector<2x2x12x8x32xf32>
    %532 = vector.extract_strided_slice %0 {offsets = [0, 12, 0, 0], sizes = [2, 2, 12, 8], strides = [1, 1, 1, 1]} : vector<2x14x14x8xf32> to vector<2x2x12x8xf32>
    %533 = vector.shape_cast %532 : vector<2x2x12x8xf32> to vector<2x2x12x8x1xf32>
    %534 = vector.extract_strided_slice %1 {offsets = [0, 6, 0], sizes = [2, 1, 32], strides = [1, 1, 1]} : vector<2x9x32xf32> to vector<2x1x32xf32>
    %535 = vector.shape_cast %534 : vector<2x1x32xf32> to vector<2x32xf32>
    %536 = vector.shape_cast %535 : vector<2x32xf32> to vector<2x1x1x1x32xf32>
    %537 = vector.broadcast %533 : vector<2x2x12x8x1xf32> to vector<2x2x12x8x32xf32>
    %538 = vector.broadcast %536 : vector<2x1x1x1x32xf32> to vector<2x2x12x8x32xf32>
    %539 = arith.mulf %537, %538 : vector<2x2x12x8x32xf32>
    %540 = arith.addf %531, %539 : vector<2x2x12x8x32xf32>
    %541 = vector.extract_strided_slice %0 {offsets = [0, 12, 1, 0], sizes = [2, 2, 12, 8], strides = [1, 1, 1, 1]} : vector<2x14x14x8xf32> to vector<2x2x12x8xf32>
    %542 = vector.shape_cast %541 : vector<2x2x12x8xf32> to vector<2x2x12x8x1xf32>
    %543 = vector.extract_strided_slice %1 {offsets = [0, 7, 0], sizes = [2, 1, 32], strides = [1, 1, 1]} : vector<2x9x32xf32> to vector<2x1x32xf32>
    %544 = vector.shape_cast %543 : vector<2x1x32xf32> to vector<2x32xf32>
    %545 = vector.shape_cast %544 : vector<2x32xf32> to vector<2x1x1x1x32xf32>
    %546 = vector.broadcast %542 : vector<2x2x12x8x1xf32> to vector<2x2x12x8x32xf32>
    %547 = vector.broadcast %545 : vector<2x1x1x1x32xf32> to vector<2x2x12x8x32xf32>
    %548 = arith.mulf %546, %547 : vector<2x2x12x8x32xf32>
    %549 = arith.addf %540, %548 : vector<2x2x12x8x32xf32>
    %550 = vector.extract_strided_slice %0 {offsets = [0, 12, 2, 0], sizes = [2, 2, 12, 8], strides = [1, 1, 1, 1]} : vector<2x14x14x8xf32> to vector<2x2x12x8xf32>
    %551 = vector.shape_cast %550 : vector<2x2x12x8xf32> to vector<2x2x12x8x1xf32>
    %552 = vector.extract_strided_slice %1 {offsets = [0, 8, 0], sizes = [2, 1, 32], strides = [1, 1, 1]} : vector<2x9x32xf32> to vector<2x1x32xf32>
    %553 = vector.shape_cast %552 : vector<2x1x32xf32> to vector<2x32xf32>
    %554 = vector.shape_cast %553 : vector<2x32xf32> to vector<2x1x1x1x32xf32>
    %555 = vector.broadcast %551 : vector<2x2x12x8x1xf32> to vector<2x2x12x8x32xf32>
    %556 = vector.broadcast %554 : vector<2x1x1x1x32xf32> to vector<2x2x12x8x32xf32>
    %557 = arith.mulf %555, %556 : vector<2x2x12x8x32xf32>
    %558 = arith.addf %549, %557 : vector<2x2x12x8x32xf32>
    %559 = vector.broadcast %3 : vector<2x1x1x1x32xf32> to vector<2x2x12x8x32xf32>
    %560 = arith.addf %558, %559 : vector<2x2x12x8x32xf32>
    %cst_12 = arith.constant 0.000000e+00 : f32
    %561 = vector.broadcast %cst_12 : f32 to vector<2x2x12x8x32xf32>
    %562 = arith.maximumf %560, %561 : vector<2x2x12x8x32xf32>
    %563 = vector.extract_strided_slice %562 {offsets = [0, 0, 0, 0, 0], sizes = [2, 1, 12, 8, 32], strides = [1, 1, 1, 1, 1]} : vector<2x2x12x8x32xf32> to vector<2x1x12x8x32xf32>
    %564 = vector.shape_cast %563 : vector<2x1x12x8x32xf32> to vector<2x12x8x32xf32>
    %565 = vector.extract_strided_slice %562 {offsets = [0, 1, 0, 0, 0], sizes = [2, 1, 12, 8, 32], strides = [1, 1, 1, 1, 1]} : vector<2x2x12x8x32xf32> to vector<2x1x12x8x32xf32>
    %566 = vector.shape_cast %565 : vector<2x1x12x8x32xf32> to vector<2x12x8x32xf32>
    %567 = arith.maximumf %564, %566 : vector<2x12x8x32xf32>
    %568 = vector.shape_cast %567 : vector<2x12x8x32xf32> to vector<2x6x2x8x32xf32>
    %569 = vector.extract_strided_slice %568 {offsets = [0, 0, 0, 0, 0], sizes = [2, 6, 1, 8, 32], strides = [1, 1, 1, 1, 1]} : vector<2x6x2x8x32xf32> to vector<2x6x1x8x32xf32>
    %570 = vector.shape_cast %569 : vector<2x6x1x8x32xf32> to vector<2x6x8x32xf32>
    %571 = vector.extract_strided_slice %568 {offsets = [0, 0, 1, 0, 0], sizes = [2, 6, 1, 8, 32], strides = [1, 1, 1, 1, 1]} : vector<2x6x2x8x32xf32> to vector<2x6x1x8x32xf32>
    %572 = vector.shape_cast %571 : vector<2x6x1x8x32xf32> to vector<2x6x8x32xf32>
    %573 = arith.maximumf %570, %572 : vector<2x6x8x32xf32>
    %574 = vector.shape_cast %98 : vector<2x6x8x32xf32> to vector<2x1x6x8x32xf32>
    %575 = vector.shape_cast %193 : vector<2x6x8x32xf32> to vector<2x1x6x8x32xf32>
    %576 = vector.shape_cast %288 : vector<2x6x8x32xf32> to vector<2x1x6x8x32xf32>
    %577 = vector.shape_cast %383 : vector<2x6x8x32xf32> to vector<2x1x6x8x32xf32>
    %578 = vector.shape_cast %478 : vector<2x6x8x32xf32> to vector<2x1x6x8x32xf32>
    %579 = vector.shape_cast %573 : vector<2x6x8x32xf32> to vector<2x1x6x8x32xf32>
    %580 = tpu.concatenate %574, %575, %576, %577, %578, %579 in 1 : vector<2x1x6x8x32xf32>, vector<2x1x6x8x32xf32>, vector<2x1x6x8x32xf32>, vector<2x1x6x8x32xf32>, vector<2x1x6x8x32xf32>, vector<2x1x6x8x32xf32> -> vector<2x6x6x8x32xf32>
    %581 = vector.extract_strided_slice %580 {offsets = [0, 0, 0, 0, 0], sizes = [2, 4, 4, 8, 32], strides = [1, 1, 1, 1, 1]} : vector<2x6x6x8x32xf32> to vector<2x4x4x8x32xf32>
    %582 = vector.extract_strided_slice %580 {offsets = [0, 0, 1, 0, 0], sizes = [2, 4, 4, 8, 32], strides = [1, 1, 1, 1, 1]} : vector<2x6x6x8x32xf32> to vector<2x4x4x8x32xf32>
    %583 = vector.extract_strided_slice %580 {offsets = [0, 0, 2, 0, 0], sizes = [2, 4, 4, 8, 32], strides = [1, 1, 1, 1, 1]} : vector<2x6x6x8x32xf32> to vector<2x4x4x8x32xf32>
    %584 = vector.extract_strided_slice %580 {offsets = [0, 1, 0, 0, 0], sizes = [2, 4, 4, 8, 32], strides = [1, 1, 1, 1, 1]} : vector<2x6x6x8x32xf32> to vector<2x4x4x8x32xf32>
    %585 = vector.extract_strided_slice %580 {offsets = [0, 1, 1, 0, 0], sizes = [2, 4, 4, 8, 32], strides = [1, 1, 1, 1, 1]} : vector<2x6x6x8x32xf32> to vector<2x4x4x8x32xf32>
    %586 = vector.extract_strided_slice %580 {offsets = [0, 1, 2, 0, 0], sizes = [2, 4, 4, 8, 32], strides = [1, 1, 1, 1, 1]} : vector<2x6x6x8x32xf32> to vector<2x4x4x8x32xf32>
    %587 = vector.extract_strided_slice %580 {offsets = [0, 2, 0, 0, 0], sizes = [2, 4, 4, 8, 32], strides = [1, 1, 1, 1, 1]} : vector<2x6x6x8x32xf32> to vector<2x4x4x8x32xf32>
    %588 = vector.extract_strided_slice %580 {offsets = [0, 2, 1, 0, 0], sizes = [2, 4, 4, 8, 32], strides = [1, 1, 1, 1, 1]} : vector<2x6x6x8x32xf32> to vector<2x4x4x8x32xf32>
    %589 = vector.extract_strided_slice %580 {offsets = [0, 2, 2, 0, 0], sizes = [2, 4, 4, 8, 32], strides = [1, 1, 1, 1, 1]} : vector<2x6x6x8x32xf32> to vector<2x4x4x8x32xf32>
    %590 = tpu.concatenate %581, %582, %583, %584, %585, %586, %587, %588, %589 in 4 : vector<2x4x4x8x32xf32>, vector<2x4x4x8x32xf32>, vector<2x4x4x8x32xf32>, vector<2x4x4x8x32xf32>, vector<2x4x4x8x32xf32>, vector<2x4x4x8x32xf32>, vector<2x4x4x8x32xf32>, vector<2x4x4x8x32xf32>, vector<2x4x4x8x32xf32> -> vector<2x4x4x8x288xf32>
    %c0_13 = arith.constant 0 : index
    %c0_14 = arith.constant 0 : index
    %591 = vector.load %arg4[%c0_13, %c0_14] : memref<288x32xf32, #tpu.memory_space<vmem>>, vector<288x32xf32>
    %c0_15 = arith.constant 0 : index
    %c0_16 = arith.constant 0 : index
    %592 = vector.load %arg6[%c0_15, %c0_16] : memref<288x32xf32, #tpu.memory_space<vmem>>, vector<288x32xf32>
    %593 = vector.extract_strided_slice %590 {offsets = [0, 0, 0, 0, 0], sizes = [1, 4, 4, 8, 288], strides = [1, 1, 1, 1, 1]} : vector<2x4x4x8x288xf32> to vector<1x4x4x8x288xf32>
    %594 = vector.shape_cast %593 : vector<1x4x4x8x288xf32> to vector<4x4x8x288xf32>
    %595 = vector.shape_cast %594 : vector<4x4x8x288xf32> to vector<128x288xf32>
    %596 = vector.extract_strided_slice %590 {offsets = [1, 0, 0, 0, 0], sizes = [1, 4, 4, 8, 288], strides = [1, 1, 1, 1, 1]} : vector<2x4x4x8x288xf32> to vector<1x4x4x8x288xf32>
    %597 = vector.shape_cast %596 : vector<1x4x4x8x288xf32> to vector<4x4x8x288xf32>
    %598 = vector.shape_cast %597 : vector<4x4x8x288xf32> to vector<128x288xf32>
    %cst_17 = arith.constant dense<0.000000e+00> : vector<128x32xf32>
    %599 = tpu.matmul %595, %591, %cst_17 {dimension_numbers = #tpu.dot_dimension_numbers<[1], [0], [0], [1], [0, 0, 1, 1], [], []>} : vector<128x288xf32>, vector<288x32xf32>, vector<128x32xf32> -> vector<128x32xf32>
    %c0_18 = arith.constant 0 : index
    %c0_19 = arith.constant 0 : index
    %600 = vector.load %arg5[%c0_18, %c0_19] : memref<1x32xf32, #tpu.memory_space<vmem>>, vector<1x32xf32>
    %601 = vector.broadcast %600 : vector<1x32xf32> to vector<128x32xf32>
    %602 = arith.addf %599, %601 : vector<128x32xf32>
    %cst_20 = arith.constant 0.000000e+00 : f32
    %603 = vector.broadcast %cst_20 : f32 to vector<128x32xf32>
    %604 = arith.maximumf %602, %603 : vector<128x32xf32>
    %cst_21 = arith.constant dense<0.000000e+00> : vector<128x32xf32>
    %605 = tpu.matmul %598, %592, %cst_21 {dimension_numbers = #tpu.dot_dimension_numbers<[1], [0], [0], [1], [0, 0, 1, 1], [], []>} : vector<128x288xf32>, vector<288x32xf32>, vector<128x32xf32> -> vector<128x32xf32>
    %c0_22 = arith.constant 0 : index
    %c0_23 = arith.constant 0 : index
    %606 = vector.load %arg7[%c0_22, %c0_23] : memref<1x32xf32, #tpu.memory_space<vmem>>, vector<1x32xf32>
    %607 = vector.broadcast %606 : vector<1x32xf32> to vector<128x32xf32>
    %608 = arith.addf %605, %607 : vector<128x32xf32>
    %cst_24 = arith.constant 0.000000e+00 : f32
    %609 = vector.broadcast %cst_24 : f32 to vector<128x32xf32>
    %610 = arith.maximumf %608, %609 : vector<128x32xf32>
    %611 = vector.extract_strided_slice %604 {offsets = [0, 0], sizes = [8, 32], strides = [1, 1]} : vector<128x32xf32> to vector<8x32xf32>
    %612 = vector.extract_strided_slice %604 {offsets = [8, 0], sizes = [8, 32], strides = [1, 1]} : vector<128x32xf32> to vector<8x32xf32>
    %613 = vector.extract_strided_slice %604 {offsets = [16, 0], sizes = [8, 32], strides = [1, 1]} : vector<128x32xf32> to vector<8x32xf32>
    %614 = vector.extract_strided_slice %604 {offsets = [24, 0], sizes = [8, 32], strides = [1, 1]} : vector<128x32xf32> to vector<8x32xf32>
    %615 = vector.extract_strided_slice %604 {offsets = [32, 0], sizes = [8, 32], strides = [1, 1]} : vector<128x32xf32> to vector<8x32xf32>
    %616 = vector.extract_strided_slice %604 {offsets = [40, 0], sizes = [8, 32], strides = [1, 1]} : vector<128x32xf32> to vector<8x32xf32>
    %617 = vector.extract_strided_slice %604 {offsets = [48, 0], sizes = [8, 32], strides = [1, 1]} : vector<128x32xf32> to vector<8x32xf32>
    %618 = vector.extract_strided_slice %604 {offsets = [56, 0], sizes = [8, 32], strides = [1, 1]} : vector<128x32xf32> to vector<8x32xf32>
    %619 = vector.extract_strided_slice %604 {offsets = [64, 0], sizes = [8, 32], strides = [1, 1]} : vector<128x32xf32> to vector<8x32xf32>
    %620 = vector.extract_strided_slice %604 {offsets = [72, 0], sizes = [8, 32], strides = [1, 1]} : vector<128x32xf32> to vector<8x32xf32>
    %621 = vector.extract_strided_slice %604 {offsets = [80, 0], sizes = [8, 32], strides = [1, 1]} : vector<128x32xf32> to vector<8x32xf32>
    %622 = vector.extract_strided_slice %604 {offsets = [88, 0], sizes = [8, 32], strides = [1, 1]} : vector<128x32xf32> to vector<8x32xf32>
    %623 = vector.extract_strided_slice %604 {offsets = [96, 0], sizes = [8, 32], strides = [1, 1]} : vector<128x32xf32> to vector<8x32xf32>
    %624 = vector.extract_strided_slice %604 {offsets = [104, 0], sizes = [8, 32], strides = [1, 1]} : vector<128x32xf32> to vector<8x32xf32>
    %625 = vector.extract_strided_slice %604 {offsets = [112, 0], sizes = [8, 32], strides = [1, 1]} : vector<128x32xf32> to vector<8x32xf32>
    %626 = vector.extract_strided_slice %604 {offsets = [120, 0], sizes = [8, 32], strides = [1, 1]} : vector<128x32xf32> to vector<8x32xf32>
    %627 = vector.extract_strided_slice %610 {offsets = [0, 0], sizes = [8, 32], strides = [1, 1]} : vector<128x32xf32> to vector<8x32xf32>
    %628 = vector.extract_strided_slice %610 {offsets = [8, 0], sizes = [8, 32], strides = [1, 1]} : vector<128x32xf32> to vector<8x32xf32>
    %629 = vector.extract_strided_slice %610 {offsets = [16, 0], sizes = [8, 32], strides = [1, 1]} : vector<128x32xf32> to vector<8x32xf32>
    %630 = vector.extract_strided_slice %610 {offsets = [24, 0], sizes = [8, 32], strides = [1, 1]} : vector<128x32xf32> to vector<8x32xf32>
    %631 = vector.extract_strided_slice %610 {offsets = [32, 0], sizes = [8, 32], strides = [1, 1]} : vector<128x32xf32> to vector<8x32xf32>
    %632 = vector.extract_strided_slice %610 {offsets = [40, 0], sizes = [8, 32], strides = [1, 1]} : vector<128x32xf32> to vector<8x32xf32>
    %633 = vector.extract_strided_slice %610 {offsets = [48, 0], sizes = [8, 32], strides = [1, 1]} : vector<128x32xf32> to vector<8x32xf32>
    %634 = vector.extract_strided_slice %610 {offsets = [56, 0], sizes = [8, 32], strides = [1, 1]} : vector<128x32xf32> to vector<8x32xf32>
    %635 = vector.extract_strided_slice %610 {offsets = [64, 0], sizes = [8, 32], strides = [1, 1]} : vector<128x32xf32> to vector<8x32xf32>
    %636 = vector.extract_strided_slice %610 {offsets = [72, 0], sizes = [8, 32], strides = [1, 1]} : vector<128x32xf32> to vector<8x32xf32>
    %637 = vector.extract_strided_slice %610 {offsets = [80, 0], sizes = [8, 32], strides = [1, 1]} : vector<128x32xf32> to vector<8x32xf32>
    %638 = vector.extract_strided_slice %610 {offsets = [88, 0], sizes = [8, 32], strides = [1, 1]} : vector<128x32xf32> to vector<8x32xf32>
    %639 = vector.extract_strided_slice %610 {offsets = [96, 0], sizes = [8, 32], strides = [1, 1]} : vector<128x32xf32> to vector<8x32xf32>
    %640 = vector.extract_strided_slice %610 {offsets = [104, 0], sizes = [8, 32], strides = [1, 1]} : vector<128x32xf32> to vector<8x32xf32>
    %641 = vector.extract_strided_slice %610 {offsets = [112, 0], sizes = [8, 32], strides = [1, 1]} : vector<128x32xf32> to vector<8x32xf32>
    %642 = vector.extract_strided_slice %610 {offsets = [120, 0], sizes = [8, 32], strides = [1, 1]} : vector<128x32xf32> to vector<8x32xf32>
    %643 = tpu.concatenate %611, %612, %613, %614, %615, %616, %617, %618, %619, %620, %621, %622, %623, %624, %625, %626 in 1 : vector<8x32xf32>, vector<8x32xf32>, vector<8x32xf32>, vector<8x32xf32>, vector<8x32xf32>, vector<8x32xf32>, vector<8x32xf32>, vector<8x32xf32>, vector<8x32xf32>, vector<8x32xf32>, vector<8x32xf32>, vector<8x32xf32>, vector<8x32xf32>, vector<8x32xf32>, vector<8x32xf32>, vector<8x32xf32> -> vector<8x512xf32>
    %644 = tpu.concatenate %627, %628, %629, %630, %631, %632, %633, %634, %635, %636, %637, %638, %639, %640, %641, %642 in 1 : vector<8x32xf32>, vector<8x32xf32>, vector<8x32xf32>, vector<8x32xf32>, vector<8x32xf32>, vector<8x32xf32>, vector<8x32xf32>, vector<8x32xf32>, vector<8x32xf32>, vector<8x32xf32>, vector<8x32xf32>, vector<8x32xf32>, vector<8x32xf32>, vector<8x32xf32>, vector<8x32xf32>, vector<8x32xf32> -> vector<8x512xf32>
    %645 = tpu.concatenate %643, %644 in 1 : vector<8x512xf32>, vector<8x512xf32> -> vector<8x1024xf32>
    %c0_25 = arith.constant 0 : index
    %c0_26 = arith.constant 0 : index
    %646 = vector.load %arg8[%c0_25, %c0_26] : memref<1024x32xf32, #tpu.memory_space<vmem>>, vector<1024x32xf32>
    %c0_27 = arith.constant 0 : index
    %c0_28 = arith.constant 0 : index
    %647 = vector.load %arg9[%c0_27, %c0_28] : memref<1x32xf32, #tpu.memory_space<vmem>>, vector<1x32xf32>
    %cst_29 = arith.constant dense<0.000000e+00> : vector<8x32xf32>
    %648 = tpu.matmul %645, %646, %cst_29 {dimension_numbers = #tpu.dot_dimension_numbers<[1], [0], [0], [1], [0, 0, 1, 1], [], []>} : vector<8x1024xf32>, vector<1024x32xf32>, vector<8x32xf32> -> vector<8x32xf32>
    %649 = vector.broadcast %647 : vector<1x32xf32> to vector<8x32xf32>
    %650 = arith.addf %648, %649 : vector<8x32xf32>
    %cst_30 = arith.constant 0.000000e+00 : f32
    %651 = vector.broadcast %cst_30 : f32 to vector<8x32xf32>
    %652 = arith.maximumf %650, %651 : vector<8x32xf32>
    %c0_31 = arith.constant 0 : index
    %c0_32 = arith.constant 0 : index
    %653 = vector.load %arg10[%c0_31, %c0_32] : memref<32x32xf32, #tpu.memory_space<vmem>>, vector<32x32xf32>
    %c0_33 = arith.constant 0 : index
    %c0_34 = arith.constant 0 : index
    %654 = vector.load %arg11[%c0_33, %c0_34] : memref<1x32xf32, #tpu.memory_space<vmem>>, vector<1x32xf32>
    %cst_35 = arith.constant dense<0.000000e+00> : vector<8x32xf32>
    %655 = tpu.matmul %652, %653, %cst_35 {dimension_numbers = #tpu.dot_dimension_numbers<[1], [0], [0], [1], [0, 0, 1, 1], [], []>} : vector<8x32xf32>, vector<32x32xf32>, vector<8x32xf32> -> vector<8x32xf32>
    %656 = vector.broadcast %654 : vector<1x32xf32> to vector<8x32xf32>
    %657 = arith.addf %655, %656 : vector<8x32xf32>
    %cst_36 = arith.constant 0.000000e+00 : f32
    %658 = vector.broadcast %cst_36 : f32 to vector<8x32xf32>
    %659 = arith.maximumf %657, %658 : vector<8x32xf32>
    %c0_37 = arith.constant 0 : index
    %c0_38 = arith.constant 0 : index
    %660 = vector.load %arg12[%c0_37, %c0_38] : memref<32x2xf32, #tpu.memory_space<vmem>>, vector<32x2xf32>
    %c0_39 = arith.constant 0 : index
    %c0_40 = arith.constant 0 : index
    %661 = vector.load %arg13[%c0_39, %c0_40] : memref<1x2xf32, #tpu.memory_space<vmem>>, vector<1x2xf32>
    %cst_41 = arith.constant dense<0.000000e+00> : vector<8x2xf32>
    %662 = tpu.matmul %659, %660, %cst_41 {dimension_numbers = #tpu.dot_dimension_numbers<[1], [0], [0], [1], [0, 0, 1, 1], [], []>} : vector<8x32xf32>, vector<32x2xf32>, vector<8x2xf32> -> vector<8x2xf32>
    %663 = vector.broadcast %661 : vector<1x2xf32> to vector<8x2xf32>
    %664 = arith.addf %662, %663 : vector<8x2xf32>
    %665 = arith.negf %664 : vector<8x2xf32>
    %666 = math.exp %665 : vector<8x2xf32>
    %cst_42 = arith.constant 1.000000e+00 : f32
    %667 = vector.broadcast %cst_42 : f32 to vector<8x2xf32>
    %668 = arith.addf %667, %666 : vector<8x2xf32>
    %669 = arith.divf %667, %668 : vector<8x2xf32>
    %c0_43 = arith.constant 0 : index
    %c0_44 = arith.constant 0 : index
    %670 = vector.load %arg14[%c0_43, %c0_44] : memref<8x2xf32, #tpu.memory_space<vmem>>, vector<8x2xf32>
    tpu.vector_store %arg14[%c0_43, %c0_44], %669 {strides = array<i32>} : memref<8x2xf32, #tpu.memory_space<vmem>>, vector<8x2xf32>,
    return
  }
  func.func @transform_0(%arg0: i32) -> (i32, i32, i32, i32) {
    %c0_i32 = arith.constant 0 : i32
    %c0_i32_0 = arith.constant 0 : i32
    %c0_i32_1 = arith.constant 0 : i32
    %c0_i32_2 = arith.constant 0 : i32
    return %c0_i32, %c0_i32_0, %c0_i32_1, %arg0 : i32, i32, i32, i32
  }
  func.func @transform_1(%arg0: i32) -> (i32, i32, i32) {
    %c0_i32 = arith.constant 0 : i32
    %c0_i32_0 = arith.constant 0 : i32
    %c0_i32_1 = arith.constant 0 : i32
    %c0_i32_2 = arith.constant 0 : i32
    return %c0_i32, %c0_i32_0, %c0_i32_1 : i32, i32, i32
  }
  func.func @transform_2(%arg0: i32) -> (i32, i32) {
    %c0_i32 = arith.constant 0 : i32
    %c0_i32_0 = arith.constant 0 : i32
    %c0_i32_1 = arith.constant 0 : i32
    return %c0_i32, %c0_i32_0 : i32, i32
  }
  func.func @transform_3(%arg0: i32) -> (i32, i32) {
    %c0_i32 = arith.constant 0 : i32
    %c0_i32_0 = arith.constant 0 : i32
    %c0_i32_1 = arith.constant 0 : i32
    return %c0_i32, %c0_i32_0 : i32, i32
  }
  func.func @transform_4(%arg0: i32) -> (i32, i32) {
    %c0_i32 = arith.constant 0 : i32
    %c0_i32_0 = arith.constant 0 : i32
    %c0_i32_1 = arith.constant 0 : i32
    return %c0_i32, %c0_i32_0 : i32, i32
  }
  func.func @transform_5(%arg0: i32) -> (i32, i32) {
    %c0_i32 = arith.constant 0 : i32
    %c0_i32_0 = arith.constant 0 : i32
    %c0_i32_1 = arith.constant 0 : i32
    return %c0_i32, %c0_i32_0 : i32, i32
  }
  func.func @transform_6(%arg0: i32) -> (i32, i32) {
    %c0_i32 = arith.constant 0 : i32
    %c0_i32_0 = arith.constant 0 : i32
    %c0_i32_1 = arith.constant 0 : i32
    return %c0_i32, %c0_i32_0 : i32, i32
  }
  func.func @transform_7(%arg0: i32) -> (i32, i32) {
    %c0_i32 = arith.constant 0 : i32
    %c0_i32_0 = arith.constant 0 : i32
    %c0_i32_1 = arith.constant 0 : i32
    return %c0_i32, %c0_i32_0 : i32, i32
  }
  func.func @transform_8(%arg0: i32) -> (i32, i32) {
    %c0_i32 = arith.constant 0 : i32
    %c0_i32_0 = arith.constant 0 : i32
    %c0_i32_1 = arith.constant 0 : i32
    return %c0_i32, %c0_i32_0 : i32, i32
  }
  func.func @transform_9(%arg0: i32) -> (i32, i32) {
    %c0_i32 = arith.constant 0 : i32
    %c0_i32_0 = arith.constant 0 : i32
    %c0_i32_1 = arith.constant 0 : i32
    return %c0_i32, %c0_i32_0 : i32, i32
  }
  func.func @transform_10(%arg0: i32) -> (i32, i32) {
    %c0_i32 = arith.constant 0 : i32
    %c0_i32_0 = arith.constant 0 : i32
    %c0_i32_1 = arith.constant 0 : i32
    return %c0_i32, %c0_i32_0 : i32, i32
  }
  func.func @transform_11(%arg0: i32) -> (i32, i32) {
    %c0_i32 = arith.constant 0 : i32
    %c0_i32_0 = arith.constant 0 : i32
    %c0_i32_1 = arith.constant 0 : i32
    return %c0_i32, %c0_i32_0 : i32, i32
  }
  func.func @transform_12(%arg0: i32) -> (i32, i32) {
    %c0_i32 = arith.constant 0 : i32
    %c0_i32_0 = arith.constant 0 : i32
    %c0_i32_1 = arith.constant 0 : i32
    return %c0_i32, %c0_i32_0 : i32, i32
  }
  func.func @transform_13(%arg0: i32) -> (i32, i32) {
    %c0_i32 = arith.constant 0 : i32
    %c0_i32_0 = arith.constant 0 : i32
    return %arg0, %c0_i32 : i32, i32
  }
}

</mosaic_0001>

<llo_original>
// kernel: tpu_custom_call.1
$region0: #{tpu_custom_call.1}
  #allocation0 [shape = 'u32[]', space=smem, size = 0x4, offset = 0x4, fixed_abs, tag = 'smem constant byte address 0x4 - core index']
  #allocation1 [shape = 'u32[144,128]{1,0:T(1,128)}', space=vmem, size = 0x12000, scoped, tag = 'internal scratch']
  %s0 = inlined_call_operand.hbm [shape: f32[2,14,14,8], index: 0, kind: input, shape index: {}]
  %s1 = inlined_call_operand.hbm [shape: f32[2,9,32], index: 1, kind: input, shape index: {}]
  %s2 = inlined_call_operand.hbm [shape: f32[2,32], index: 2, kind: input, shape index: {}]
  %s3 = inlined_call_operand.hbm [shape: f32[288,32], index: 3, kind: input, shape index: {}]
  %s4 = inlined_call_operand.hbm [shape: f32[1,32], index: 4, kind: input, shape index: {}]
  %s5 = inlined_call_operand.hbm [shape: f32[288,32], index: 5, kind: input, shape index: {}]
  %s6 = inlined_call_operand.hbm [shape: f32[1,32], index: 6, kind: input, shape index: {}]
  %s7 = inlined_call_operand.hbm [shape: f32[1024,32], index: 7, kind: input, shape index: {}]
  %s8 = inlined_call_operand.hbm [shape: f32[1,32], index: 8, kind: input, shape index: {}]
  %s9 = inlined_call_operand.hbm [shape: f32[32,32], index: 9, kind: input, shape index: {}]
  %s10 = inlined_call_operand.hbm [shape: f32[1,32], index: 10, kind: input, shape index: {}]
  %s11 = inlined_call_operand.hbm [shape: f32[32,2], index: 11, kind: input, shape index: {}]
  %s12 = inlined_call_operand.hbm [shape: f32[1,2], index: 12, kind: input, shape index: {}]
  %s13 = inlined_call_operand.hbm [shape: f32[8,2], index: 13, kind: output, shape index: {}]
  %s14 = sld [smem:[#allocation0]]
  $region114: #{tpu_custom_call.1} parent=0
    _
  %s16 = ssub.s32 1, %s14
  %s17 = scalar_select 0, %s16, %s14
  $region1: #{tpu_custom_call.1} parent=0
    #allocation2 [shape = 'u8[229376]{0}', space=vmem, size = 0x38000, scoped, tag = 'input window, operand 0, single buffered']
    #allocation3 [shape = 's32[1]{0}', space=sflag, size = 0x4, scoped, tag = 'scoped memory for tpu_custom_call.1']
    #allocation4 [shape = 's32[1]{0}', space=sflag, size = 0x4, scoped, tag = 'scoped memory for tpu_custom_call.1']
    #allocation5 [shape = 'u8[16384]{0}', space=vmem, size = 0x4000, scoped, tag = 'input window, operand 1, single buffered']
    #allocation6 [shape = 's32[1]{0}', space=sflag, size = 0x4, scoped, tag = 'scoped memory for tpu_custom_call.1']
    #allocation7 [shape = 'u8[1024]{0}', space=vmem, size = 0x400, scoped, tag = 'input window, operand 2, single buffered']
    #allocation8 [shape = 'u8[147456]{0}', space=vmem, size = 0x24000, scoped, tag = 'input window, operand 3, single buffered']
    #allocation9 [shape = 's32[1]{0}', space=sflag, size = 0x4, scoped, tag = 'scoped memory for tpu_custom_call.1']
    #allocation10 [shape = 'u8[512]{0}', space=vmem, size = 0x400, scoped, tag = 'input window, operand 4, single buffered']
    #allocation11 [shape = 'u8[147456]{0}', space=vmem, size = 0x24000, scoped, tag = 'input window, operand 5, single buffered']
    #allocation12 [shape = 's32[1]{0}', space=sflag, size = 0x4, scoped, tag = 'scoped memory for tpu_custom_call.1']
    #allocation13 [shape = 'u8[512]{0}', space=vmem, size = 0x400, scoped, tag = 'input window, operand 6, single buffered']
    #allocation14 [shape = 'u8[524288]{0}', space=vmem, size = 0x80000, scoped, tag = 'input window, operand 7, single buffered']
    #allocation15 [shape = 's32[1]{0}', space=sflag, size = 0x4, scoped, tag = 'scoped memory for tpu_custom_call.1']
    #allocation16 [shape = 'u8[512]{0}', space=vmem, size = 0x400, scoped, tag = 'input window, operand 8, single buffered']
    #allocation17 [shape = 'u8[16384]{0}', space=vmem, size = 0x4000, scoped, tag = 'input window, operand 9, single buffered']
    #allocation18 [shape = 's32[1]{0}', space=sflag, size = 0x4, scoped, tag = 'scoped memory for tpu_custom_call.1']
    #allocation19 [shape = 'u8[512]{0}', space=vmem, size = 0x400, scoped, tag = 'input window, operand 10, single buffered']
    #allocation20 [shape = 'u8[16384]{0}', space=vmem, size = 0x4000, scoped, tag = 'input window, operand 11, single buffered']
    #allocation21 [shape = 's32[1]{0}', space=sflag, size = 0x4, scoped, tag = 'scoped memory for tpu_custom_call.1']
    #allocation22 [shape = 'u8[512]{0}', space=vmem, size = 0x400, scoped, tag = 'input window, operand 12, single buffered']
    #allocation23 [shape = 'u8[4096]{0}', space=vmem, size = 0x1000, scoped, tag = 'output window, operand 0, single buffered']
    %18 = vsyncpa [#allocation3], 0
    %19 = vsyncpa [#allocation6], 0
    %20 = vsyncpa [#allocation9], 0
    %21 = vsyncpa [#allocation12], 0
    %22 = vsyncpa [#allocation15], 0
    %23 = vsyncpa [#allocation18], 0
    %24 = vsyncpa [#allocation21], 0
    %25 = vsyncpa [#allocation4], 0
    // Predicated region
    $region2: #{tpu_custom_call.1} parent=1 // pred_check
      _
    $region3: #{tpu_custom_call.1} parent=1 // pred_check_branch
      %27 = sbr.rel (0) target = $region5
    $region4: #{tpu_custom_call.1} parent=1 // pred_region
      %s29 = ssub.s32 7168, 7168
      %30 = vsyncadd [#allocation3], %s29
      %s31 = sshll.u32 [#allocation2], 4
      %s32 = int_to_ptr.vmem [resolvable:$true] %s31
      %37 = dma.hbm_to_vmem [thread:$0]  %s0, 7168, %s32, [#allocation3], 128, 128, 8
    $region5: #{tpu_custom_call.1} parent=1 // pred_fallthru
      _
    // Predicated region
    $region6: #{tpu_custom_call.1} parent=1 // pred_check
      _
    $region7: #{tpu_custom_call.1} parent=1 // pred_check_branch
      %39 = sbr.rel (0) target = $region9
    $region8: #{tpu_custom_call.1} parent=1 // pred_region
      %s41 = ssub.s32 512, 512
      %42 = vsyncadd [#allocation6], %s41
      %s43 = sshll.u32 [#allocation5], 4
      %s44 = int_to_ptr.vmem [resolvable:$true] %s43
      %49 = dma.hbm_to_vmem [thread:$0]  %s1, 512, %s44, [#allocation6], 128, 128, 8
    $region9: #{tpu_custom_call.1} parent=1 // pred_fallthru
      _
    // Predicated region
    $region10: #{tpu_custom_call.1} parent=1 // pred_check
      _
    $region11: #{tpu_custom_call.1} parent=1 // pred_check_branch
      %51 = sbr.rel (0) target = $region13
    $region12: #{tpu_custom_call.1} parent=1 // pred_region
      %s53 = ssub.s32 32, 32
      %54 = vsyncadd [#allocation6], %s53
      %s56 = sshll.u32 [#allocation7], 4
      %s57 = int_to_ptr.vmem [resolvable:$true] %s56
      %59 = dma.hbm_to_vmem [thread:$0]  %s2, 32, %s57, [#allocation6]
    $region13: #{tpu_custom_call.1} parent=1 // pred_fallthru
      _
    // Predicated region
    $region14: #{tpu_custom_call.1} parent=1 // pred_check
      _
    $region15: #{tpu_custom_call.1} parent=1 // pred_check_branch
      %61 = sbr.rel (0) target = $region17
    $region16: #{tpu_custom_call.1} parent=1 // pred_region
      %s63 = ssub.s32 4608, 4608
      %64 = vsyncadd [#allocation9], %s63
      %s65 = sshll.u32 [#allocation8], 4
      %s66 = int_to_ptr.vmem [resolvable:$true] %s65
      %71 = dma.hbm_to_vmem [thread:$0]  %s3, 4608, %s66, [#allocation9], 128, 128, 8
    $region17: #{tpu_custom_call.1} parent=1 // pred_fallthru
      _
    // Predicated region
    $region18: #{tpu_custom_call.1} parent=1 // pred_check
      _
    $region19: #{tpu_custom_call.1} parent=1 // pred_check_branch
      %73 = sbr.rel (0) target = $region21
    $region20: #{tpu_custom_call.1} parent=1 // pred_region
      %s75 = ssub.s32 16, 16
      %76 = vsyncadd [#allocation9], %s75
      %s78 = sshll.u32 [#allocation10], 4
      %s79 = int_to_ptr.vmem [resolvable:$true] %s78
      %81 = dma.hbm_to_vmem [thread:$0]  %s4, 16, %s79, [#allocation9]
    $region21: #{tpu_custom_call.1} parent=1 // pred_fallthru
      _
    // Predicated region
    $region22: #{tpu_custom_call.1} parent=1 // pred_check
      _
    $region23: #{tpu_custom_call.1} parent=1 // pred_check_branch
      %83 = sbr.rel (0) target = $region25
    $region24: #{tpu_custom_call.1} parent=1 // pred_region
      %s85 = ssub.s32 4608, 4608
      %86 = vsyncadd [#allocation12], %s85
      %s87 = sshll.u32 [#allocation11], 4
      %s88 = int_to_ptr.vmem [resolvable:$true] %s87
      %93 = dma.hbm_to_vmem [thread:$0]  %s5, 4608, %s88, [#allocation12], 128, 128, 8
    $region25: #{tpu_custom_call.1} parent=1 // pred_fallthru
      _
    // Predicated region
    $region26: #{tpu_custom_call.1} parent=1 // pred_check
      _
    $region27: #{tpu_custom_call.1} parent=1 // pred_check_branch
      %95 = sbr.rel (0) target = $region29
    $region28: #{tpu_custom_call.1} parent=1 // pred_region
      %s97 = ssub.s32 16, 16
      %98 = vsyncadd [#allocation12], %s97
      %s100 = sshll.u32 [#allocation13], 4
      %s101 = int_to_ptr.vmem [resolvable:$true] %s100
      %103 = dma.hbm_to_vmem [thread:$0]  %s6, 16, %s101, [#allocation12]
    $region29: #{tpu_custom_call.1} parent=1 // pred_fallthru
      _
    // Predicated region
    $region30: #{tpu_custom_call.1} parent=1 // pred_check
      _
    $region31: #{tpu_custom_call.1} parent=1 // pred_check_branch
      %105 = sbr.rel (0) target = $region33
    $region32: #{tpu_custom_call.1} parent=1 // pred_region
      %s107 = ssub.s32 16384, 16384
      %108 = vsyncadd [#allocation15], %s107
      %s109 = sshll.u32 [#allocation14], 4
      %s110 = int_to_ptr.vmem [resolvable:$true] %s109
      %115 = dma.hbm_to_vmem [thread:$0]  %s7, 16384, %s110, [#allocation15], 128, 128, 8
    $region33: #{tpu_custom_call.1} parent=1 // pred_fallthru
      _
    // Predicated region
    $region34: #{tpu_custom_call.1} parent=1 // pred_check
      _
    $region35: #{tpu_custom_call.1} parent=1 // pred_check_branch
      %117 = sbr.rel (0) target = $region37
    $region36: #{tpu_custom_call.1} parent=1 // pred_region
      %s119 = ssub.s32 16, 16
      %120 = vsyncadd [#allocation15], %s119
      %s122 = sshll.u32 [#allocation16], 4
      %s123 = int_to_ptr.vmem [resolvable:$true] %s122
      %125 = dma.hbm_to_vmem [thread:$0]  %s8, 16, %s123, [#allocation15]
    $region37: #{tpu_custom_call.1} parent=1 // pred_fallthru
      _
    // Predicated region
    $region38: #{tpu_custom_call.1} parent=1 // pred_check
      _
    $region39: #{tpu_custom_call.1} parent=1 // pred_check_branch
      %127 = sbr.rel (0) target = $region41
    $region40: #{tpu_custom_call.1} parent=1 // pred_region
      %s129 = ssub.s32 512, 512
      %130 = vsyncadd [#allocation18], %s129
      %s131 = sshll.u32 [#allocation17], 4
      %s132 = int_to_ptr.vmem [resolvable:$true] %s131
      %137 = dma.hbm_to_vmem [thread:$0]  %s9, 512, %s132, [#allocation18], 128, 128, 8
    $region41: #{tpu_custom_call.1} parent=1 // pred_fallthru
      _
    // Predicated region
    $region42: #{tpu_custom_call.1} parent=1 // pred_check
      _
    $region43: #{tpu_custom_call.1} parent=1 // pred_check_branch
      %139 = sbr.rel (0) target = $region45
    $region44: #{tpu_custom_call.1} parent=1 // pred_region
      %s141 = ssub.s32 16, 16
      %142 = vsyncadd [#allocation18], %s141
      %s144 = sshll.u32 [#allocation19], 4
      %s145 = int_to_ptr.vmem [resolvable:$true] %s144
      %147 = dma.hbm_to_vmem [thread:$0]  %s10, 16, %s145, [#allocation18]
    $region45: #{tpu_custom_call.1} parent=1 // pred_fallthru
      _
    // Predicated region
    $region46: #{tpu_custom_call.1} parent=1 // pred_check
      _
    $region47: #{tpu_custom_call.1} parent=1 // pred_check_branch
      %149 = sbr.rel (0) target = $region49
    $region48: #{tpu_custom_call.1} parent=1 // pred_region
      %s151 = ssub.s32 512, 512
      %152 = vsyncadd [#allocation21], %s151
      %s153 = sshll.u32 [#allocation20], 4
      %s154 = int_to_ptr.vmem [resolvable:$true] %s153
      %159 = dma.hbm_to_vmem [thread:$0]  %s11, 512, %s154, [#allocation21], 128, 128, 8
    $region49: #{tpu_custom_call.1} parent=1 // pred_fallthru
      _
    // Predicated region
    $region50: #{tpu_custom_call.1} parent=1 // pred_check
      _
    $region51: #{tpu_custom_call.1} parent=1 // pred_check_branch
      %161 = sbr.rel (0) target = $region53
    $region52: #{tpu_custom_call.1} parent=1 // pred_region
      %s163 = ssub.s32 16, 16
      %164 = vsyncadd [#allocation21], %s163
      %s166 = sshll.u32 [#allocation22], 4
      %s167 = int_to_ptr.vmem [resolvable:$true] %s166
      %169 = dma.hbm_to_vmem [thread:$0]  %s12, 16, %s167, [#allocation21]
    $region53: #{tpu_custom_call.1} parent=1 // pred_fallthru
      _
    // Predicated region
    $region54: #{tpu_custom_call.1} parent=1 // pred_check
      _
    $region55: #{tpu_custom_call.1} parent=1 // pred_check_branch
      %171 = sbr.rel (0) target = $region57
    $region56: #{tpu_custom_call.1} parent=1 // pred_region
      %172 = dma.done [#allocation3], 7168
    $region57: #{tpu_custom_call.1} parent=1 // pred_fallthru
      _
    // Predicated region
    $region58: #{tpu_custom_call.1} parent=1 // pred_check
      _
    $region59: #{tpu_custom_call.1} parent=1 // pred_check_branch
      %174 = sbr.rel (0) target = $region61
    $region60: #{tpu_custom_call.1} parent=1 // pred_region
      %175 = dma.done [#allocation6], 512
    $region61: #{tpu_custom_call.1} parent=1 // pred_fallthru
      _
    // Predicated region
    $region62: #{tpu_custom_call.1} parent=1 // pred_check
      _
    $region63: #{tpu_custom_call.1} parent=1 // pred_check_branch
      %177 = sbr.rel (0) target = $region65
    $region64: #{tpu_custom_call.1} parent=1 // pred_region
      %178 = dma.done [#allocation6], 32
    $region65: #{tpu_custom_call.1} parent=1 // pred_fallthru
      _
    // Predicated region
    $region66: #{tpu_custom_call.1} parent=1 // pred_check
      _
    $region67: #{tpu_custom_call.1} parent=1 // pred_check_branch
      %180 = sbr.rel (0) target = $region69
    $region68: #{tpu_custom_call.1} parent=1 // pred_region
      %181 = dma.done [#allocation9], 4608
    $region69: #{tpu_custom_call.1} parent=1 // pred_fallthru
      _
    // Predicated region
    $region70: #{tpu_custom_call.1} parent=1 // pred_check
      _
    $region71: #{tpu_custom_call.1} parent=1 // pred_check_branch
      %183 = sbr.rel (0) target = $region73
    $region72: #{tpu_custom_call.1} parent=1 // pred_region
      %184 = dma.done [#allocation9], 16
    $region73: #{tpu_custom_call.1} parent=1 // pred_fallthru
      _
    // Predicated region
    $region74: #{tpu_custom_call.1} parent=1 // pred_check
      _
    $region75: #{tpu_custom_call.1} parent=1 // pred_check_branch
      %186 = sbr.rel (0) target = $region77
    $region76: #{tpu_custom_call.1} parent=1 // pred_region
      %187 = dma.done [#allocation12], 4608
    $region77: #{tpu_custom_call.1} parent=1 // pred_fallthru
      _
    // Predicated region
    $region78: #{tpu_custom_call.1} parent=1 // pred_check
      _
    $region79: #{tpu_custom_call.1} parent=1 // pred_check_branch
      %189 = sbr.rel (0) target = $region81
    $region80: #{tpu_custom_call.1} parent=1 // pred_region
      %190 = dma.done [#allocation12], 16
    $region81: #{tpu_custom_call.1} parent=1 // pred_fallthru
      _
    // Predicated region
    $region82: #{tpu_custom_call.1} parent=1 // pred_check
      _
    $region83: #{tpu_custom_call.1} parent=1 // pred_check_branch
      %192 = sbr.rel (0) target = $region85
    $region84: #{tpu_custom_call.1} parent=1 // pred_region
      %193 = dma.done [#allocation15], 16384
    $region85: #{tpu_custom_call.1} parent=1 // pred_fallthru
      _
    // Predicated region
    $region86: #{tpu_custom_call.1} parent=1 // pred_check
      _
    $region87: #{tpu_custom_call.1} parent=1 // pred_check_branch
      %195 = sbr.rel (0) target = $region89
    $region88: #{tpu_custom_call.1} parent=1 // pred_region
      %196 = dma.done [#allocation15], 16
    $region89: #{tpu_custom_call.1} parent=1 // pred_fallthru
      _
    // Predicated region
    $region90: #{tpu_custom_call.1} parent=1 // pred_check
      _
    $region91: #{tpu_custom_call.1} parent=1 // pred_check_branch
      %198 = sbr.rel (0) target = $region93
    $region92: #{tpu_custom_call.1} parent=1 // pred_region
      %199 = dma.done [#allocation18], 512
    $region93: #{tpu_custom_call.1} parent=1 // pred_fallthru
      _
    // Predicated region
    $region94: #{tpu_custom_call.1} parent=1 // pred_check
      _
    $region95: #{tpu_custom_call.1} parent=1 // pred_check_branch
      %201 = sbr.rel (0) target = $region97
    $region96: #{tpu_custom_call.1} parent=1 // pred_region
      %202 = dma.done [#allocation18], 16
    $region97: #{tpu_custom_call.1} parent=1 // pred_fallthru
      _
    // Predicated region
    $region98: #{tpu_custom_call.1} parent=1 // pred_check
      _
    $region99: #{tpu_custom_call.1} parent=1 // pred_check_branch
      %204 = sbr.rel (0) target = $region101
    $region100: #{tpu_custom_call.1} parent=1 // pred_region
      %205 = dma.done [#allocation21], 512
    $region101: #{tpu_custom_call.1} parent=1 // pred_fallthru
      _
    // Predicated region
    $region102: #{tpu_custom_call.1} parent=1 // pred_check
      _
    $region103: #{tpu_custom_call.1} parent=1 // pred_check_branch
      %207 = sbr.rel (0) target = $region105
    $region104: #{tpu_custom_call.1} parent=1 // pred_region
      %208 = dma.done [#allocation21], 16
    $region105: #{tpu_custom_call.1} parent=1 // pred_fallthru
      _
    %v209 = vld [vmem:[#allocation2] sm:$0xff]
    %v210 = vld [vmem:[#allocation2 + $0x8] sm:$0x3f]
    %v211 = vld [vmem:[#allocation2 + $0x10] sm:$0xff]
    %v212 = vld [vmem:[#allocation2 + $0x18] sm:$0x3f]
    %v213 = vld [vmem:[#allocation2 + $0x20] sm:$0xff]
    %v214 = vld [vmem:[#allocation2 + $0x28] sm:$0x3f]
    %v215 = vld [vmem:[#allocation2 + $0x30] sm:$0xff]
    %v216 = vld [vmem:[#allocation2 + $0x38] sm:$0x3f]
    %v217 = vld [vmem:[#allocation2 + $0x40] sm:$0xff]
    %v218 = vld [vmem:[#allocation2 + $0x48] sm:$0x3f]
    %v219 = vld [vmem:[#allocation2 + $0x50] sm:$0xff]
    %v220 = vld [vmem:[#allocation2 + $0x58] sm:$0x3f]
    %v221 = vld [vmem:[#allocation2 + $0x60] sm:$0xff]
    %v222 = vld [vmem:[#allocation2 + $0x68] sm:$0x3f]
    %v223 = vld [vmem:[#allocation2 + $0x70] sm:$0xff]
    %v224 = vld [vmem:[#allocation2 + $0x78] sm:$0x3f]
    %v225 = vld [vmem:[#allocation2 + $0x80] sm:$0xff]
    %v226 = vld [vmem:[#allocation2 + $0x88] sm:$0x3f]
    %v227 = vld [vmem:[#allocation2 + $0x90] sm:$0xff]
    %v228 = vld [vmem:[#allocation2 + $0x98] sm:$0x3f]
    %v229 = vld [vmem:[#allocation2 + $0xa0] sm:$0xff]
    %v230 = vld [vmem:[#allocation2 + $0xa8] sm:$0x3f]
    %v231 = vld [vmem:[#allocation2 + $0xb0] sm:$0xff]
    %v232 = vld [vmem:[#allocation2 + $0xb8] sm:$0x3f]
    %v233 = vld [vmem:[#allocation2 + $0xc0] sm:$0xff]
    %v234 = vld [vmem:[#allocation2 + $0xc8] sm:$0x3f]
    %v235 = vld [vmem:[#allocation2 + $0xd0] sm:$0xff]
    %v236 = vld [vmem:[#allocation2 + $0xd8] sm:$0x3f]
    %v237 = vld [vmem:[#allocation2 + $0xe0] sm:$0xff]
    %v238 = vld [vmem:[#allocation2 + $0xe8] sm:$0x3f]
    %v239 = vld [vmem:[#allocation2 + $0xf0] sm:$0xff]
    %v240 = vld [vmem:[#allocation2 + $0xf8] sm:$0x3f]
    %v241 = vld [vmem:[#allocation2 + $0x100] sm:$0xff]
    %v242 = vld [vmem:[#allocation2 + $0x108] sm:$0x3f]
    %v243 = vld [vmem:[#allocation2 + $0x110] sm:$0xff]
    %v244 = vld [vmem:[#allocation2 + $0x118] sm:$0x3f]
    %v245 = vld [vmem:[#allocation2 + $0x120] sm:$0xff]
    %v246 = vld [vmem:[#allocation2 + $0x128] sm:$0x3f]
    %v247 = vld [vmem:[#allocation2 + $0x130] sm:$0xff]
    %v248 = vld [vmem:[#allocation2 + $0x138] sm:$0x3f]
    %v249 = vld [vmem:[#allocation2 + $0x140] sm:$0xff]
    %v250 = vld [vmem:[#allocation2 + $0x148] sm:$0x3f]
    %v251 = vld [vmem:[#allocation2 + $0x150] sm:$0xff]
    %v252 = vld [vmem:[#allocation2 + $0x158] sm:$0x3f]
    %v253 = vld [vmem:[#allocation2 + $0x160] sm:$0xff]
    %v254 = vld [vmem:[#allocation2 + $0x168] sm:$0x3f]
    %v255 = vld [vmem:[#allocation2 + $0x170] sm:$0xff]
    %v256 = vld [vmem:[#allocation2 + $0x178] sm:$0x3f]
    %v257 = vld [vmem:[#allocation2 + $0x180] sm:$0xff]
    %v258 = vld [vmem:[#allocation2 + $0x188] sm:$0x3f]
    %v259 = vld [vmem:[#allocation2 + $0x190] sm:$0xff]
    %v260 = vld [vmem:[#allocation2 + $0x198] sm:$0x3f]
    %v261 = vld [vmem:[#allocation2 + $0x1a0] sm:$0xff]
    %v262 = vld [vmem:[#allocation2 + $0x1a8] sm:$0x3f]
    %v263 = vld [vmem:[#allocation2 + $0x1b0] sm:$0xff]
    %v264 = vld [vmem:[#allocation2 + $0x1b8] sm:$0x3f]
    %v265 = vld [vmem:[#allocation5] sm:$0xff]
    %v266 = vld [vmem:[#allocation5 + $0x8] sm:$0x1]
    %v267 = vld [vmem:[#allocation5 + $0x10] sm:$0xff]
    %v268 = vld [vmem:[#allocation5 + $0x18] sm:$0x1]
    %v269 = vld [vmem:[#allocation7] sm:$0x3]
    %v272 = vunpack.c.l.s4 1966171168
    %v273 = vunpack.c.0.s8 %v272
    %v274 = vlaneseq
    %v275 = vshrl.u32 %v274, 7
    %v276 = vsub.s32 %v273, %v275
    %v277 = vrot.slane %v269, %v276
    %v278 = vcombine.high %v277, %v277
    %v280 = vunpack.c.l.s4 1966171168
    %v281 = vunpack.c.0.s8 %v280
    %v282 = vlaneseq
    %v283 = vshrl.u32 %v282, 7
    %v284 = vsub.s32 %v281, %v283
    %v285 = vrot.slane %v277, %v284
    %v287 = vunpack.c.l.s4 1966171168
    %v288 = vunpack.c.0.s8 %v287
    %v289 = vlaneseq
    %v290 = vshrl.u32 %v289, 7
    %v291 = vsub.s32 %v288, %v290
    %v292 = vrot.slane %v278, %v291
    %v293 = vlaneseq
    %v294 = vshrl.u32 %v293, 7
    %v295 = vsub.s32 0, %v294
    %v296 = vrot.slane %v209, %v295
    %298 = vbcast.lane.b32.xlu0 %v296, 256
    %v299 = vpop.permute.xlu0 %298
    %v300 = vlaneseq
    %v301 = vshrl.u32 %v300, 7
    %v302 = vsub.s32 1, %v301
    %v303 = vrot.slane %v209, %v302
    %305 = vbcast.lane.b32.xlu0 %v303, 256
    %v306 = vpop.permute.xlu0 %305
    %v307 = vlaneseq
    %v308 = vshrl.u32 %v307, 7
    %v309 = vsub.s32 2, %v308
    %v310 = vrot.slane %v209, %v309
    %312 = vbcast.lane.b32.xlu0 %v310, 256
    %v313 = vpop.permute.xlu0 %312
    %v314 = vlaneseq
    %v315 = vshrl.u32 %v314, 7
    %v316 = vsub.s32 3, %v315
    %v317 = vrot.slane %v209, %v316
    %319 = vbcast.lane.b32.xlu0 %v317, 256
    %v320 = vpop.permute.xlu0 %319
    %v321 = vlaneseq
    %v322 = vshrl.u32 %v321, 7
    %v323 = vsub.s32 4, %v322
    %v324 = vrot.slane %v209, %v323
    %326 = vbcast.lane.b32.xlu0 %v324, 256
    %v327 = vpop.permute.xlu0 %326
    %v328 = vlaneseq
    %v329 = vshrl.u32 %v328, 7
    %v330 = vsub.s32 5, %v329
    %v331 = vrot.slane %v209, %v330
    %333 = vbcast.lane.b32.xlu0 %v331, 256
    %v334 = vpop.permute.xlu0 %333
    %v335 = vlaneseq
    %v336 = vshrl.u32 %v335, 7
    %v337 = vsub.s32 6, %v336
    %v338 = vrot.slane %v209, %v337
    %340 = vbcast.lane.b32.xlu0 %v338, 256
    %v341 = vpop.permute.xlu0 %340
    %v342 = vlaneseq
    %v343 = vshrl.u32 %v342, 7
    %v344 = vsub.s32 7, %v343
    %v345 = vrot.slane %v209, %v344
    %347 = vbcast.lane.b32.xlu0 %v345, 256
    %v348 = vpop.permute.xlu0 %347
    %v349 = vlaneseq
    %v350 = vshrl.u32 %v349, 7
    %v351 = vsub.s32 0, %v350
    %v352 = vrot.slane %v210, %v351
    %354 = vbcast.lane.b32.xlu0 %v352, 256
    %v355 = vpop.permute.xlu0 %354
    %v356 = vlaneseq
    %v357 = vshrl.u32 %v356, 7
    %v358 = vsub.s32 1, %v357
    %v359 = vrot.slane %v210, %v358
    %361 = vbcast.lane.b32.xlu0 %v359, 256
    %v362 = vpop.permute.xlu0 %361
    %v363 = vlaneseq
    %v364 = vshrl.u32 %v363, 7
    %v365 = vsub.s32 2, %v364
    %v366 = vrot.slane %v210, %v365
    %368 = vbcast.lane.b32.xlu0 %v366, 256
    %v369 = vpop.permute.xlu0 %368
    %v370 = vlaneseq
    %v371 = vshrl.u32 %v370, 7
    %v372 = vsub.s32 3, %v371
    %v373 = vrot.slane %v210, %v372
    %375 = vbcast.lane.b32.xlu0 %v373, 256
    %v376 = vpop.permute.xlu0 %375
    %v377 = vlaneseq
    %v378 = vshrl.u32 %v377, 7
    %v379 = vsub.s32 0, %v378
    %v380 = vrot.slane %v211, %v379
    %382 = vbcast.lane.b32.xlu0 %v380, 256
    %v383 = vpop.permute.xlu0 %382
    %v384 = vlaneseq
    %v385 = vshrl.u32 %v384, 7
    %v386 = vsub.s32 1, %v385
    %v387 = vrot.slane %v211, %v386
    %389 = vbcast.lane.b32.xlu0 %v387, 256
    %v390 = vpop.permute.xlu0 %389
    %v391 = vlaneseq
    %v392 = vshrl.u32 %v391, 7
    %v393 = vsub.s32 2, %v392
    %v394 = vrot.slane %v211, %v393
    %396 = vbcast.lane.b32.xlu0 %v394, 256
    %v397 = vpop.permute.xlu0 %396
    %v398 = vlaneseq
    %v399 = vshrl.u32 %v398, 7
    %v400 = vsub.s32 3, %v399
    %v401 = vrot.slane %v211, %v400
    %403 = vbcast.lane.b32.xlu0 %v401, 256
    %v404 = vpop.permute.xlu0 %403
    %v405 = vlaneseq
    %v406 = vshrl.u32 %v405, 7
    %v407 = vsub.s32 4, %v406
    %v408 = vrot.slane %v211, %v407
    %410 = vbcast.lane.b32.xlu0 %v408, 256
    %v411 = vpop.permute.xlu0 %410
    %v412 = vlaneseq
    %v413 = vshrl.u32 %v412, 7
    %v414 = vsub.s32 5, %v413
    %v415 = vrot.slane %v211, %v414
    %417 = vbcast.lane.b32.xlu0 %v415, 256
    %v418 = vpop.permute.xlu0 %417
    %v419 = vlaneseq
    %v420 = vshrl.u32 %v419, 7
    %v421 = vsub.s32 6, %v420
    %v422 = vrot.slane %v211, %v421
    %424 = vbcast.lane.b32.xlu0 %v422, 256
    %v425 = vpop.permute.xlu0 %424
    %v426 = vlaneseq
    %v427 = vshrl.u32 %v426, 7
    %v428 = vsub.s32 7, %v427
    %v429 = vrot.slane %v211, %v428
    %431 = vbcast.lane.b32.xlu0 %v429, 256
    %v432 = vpop.permute.xlu0 %431
    %v433 = vlaneseq
    %v434 = vshrl.u32 %v433, 7
    %v435 = vsub.s32 0, %v434
    %v436 = vrot.slane %v212, %v435
    %438 = vbcast.lane.b32.xlu0 %v436, 256
    %v439 = vpop.permute.xlu0 %438
    %v440 = vlaneseq
    %v441 = vshrl.u32 %v440, 7
    %v442 = vsub.s32 1, %v441
    %v443 = vrot.slane %v212, %v442
    %445 = vbcast.lane.b32.xlu0 %v443, 256
    %v446 = vpop.permute.xlu0 %445
    %v447 = vlaneseq
    %v448 = vshrl.u32 %v447, 7
    %v449 = vsub.s32 2, %v448
    %v450 = vrot.slane %v212, %v449
    %452 = vbcast.lane.b32.xlu0 %v450, 256
    %v453 = vpop.permute.xlu0 %452
    %v454 = vlaneseq
    %v455 = vshrl.u32 %v454, 7
    %v456 = vsub.s32 3, %v455
    %v457 = vrot.slane %v212, %v456
    %459 = vbcast.lane.b32.xlu0 %v457, 256
    %v460 = vpop.permute.xlu0 %459
    %v461 = vlaneseq
    %v462 = vshrl.u32 %v461, 7
    %v463 = vsub.s32 0, %v462
    %v464 = vrot.slane %v237, %v463
    %466 = vbcast.lane.b32.xlu0 %v464, 256
    %v467 = vpop.permute.xlu0 %466
    %v468 = vlaneseq
    %v469 = vshrl.u32 %v468, 7
    %v470 = vsub.s32 1, %v469
    %v471 = vrot.slane %v237, %v470
    %473 = vbcast.lane.b32.xlu0 %v471, 256
    %v474 = vpop.permute.xlu0 %473
    %v475 = vlaneseq
    %v476 = vshrl.u32 %v475, 7
    %v477 = vsub.s32 2, %v476
    %v478 = vrot.slane %v237, %v477
    %480 = vbcast.lane.b32.xlu0 %v478, 256
    %v481 = vpop.permute.xlu0 %480
    %v482 = vlaneseq
    %v483 = vshrl.u32 %v482, 7
    %v484 = vsub.s32 3, %v483
    %v485 = vrot.slane %v237, %v484
    %487 = vbcast.lane.b32.xlu0 %v485, 256
    %v488 = vpop.permute.xlu0 %487
    %v489 = vlaneseq
    %v490 = vshrl.u32 %v489, 7
    %v491 = vsub.s32 4, %v490
    %v492 = vrot.slane %v237, %v491
    %494 = vbcast.lane.b32.xlu0 %v492, 256
    %v495 = vpop.permute.xlu0 %494
    %v496 = vlaneseq
    %v497 = vshrl.u32 %v496, 7
    %v498 = vsub.s32 5, %v497
    %v499 = vrot.slane %v237, %v498
    %501 = vbcast.lane.b32.xlu0 %v499, 256
    %v502 = vpop.permute.xlu0 %501
    %v503 = vlaneseq
    %v504 = vshrl.u32 %v503, 7
    %v505 = vsub.s32 6, %v504
    %v506 = vrot.slane %v237, %v505
    %508 = vbcast.lane.b32.xlu0 %v506, 256
    %v509 = vpop.permute.xlu0 %508
    %v510 = vlaneseq
    %v511 = vshrl.u32 %v510, 7
    %v512 = vsub.s32 7, %v511
    %v513 = vrot.slane %v237, %v512
    %515 = vbcast.lane.b32.xlu0 %v513, 256
    %v516 = vpop.permute.xlu0 %515
    %v517 = vlaneseq
    %v518 = vshrl.u32 %v517, 7
    %v519 = vsub.s32 0, %v518
    %v520 = vrot.slane %v238, %v519
    %522 = vbcast.lane.b32.xlu0 %v520, 256
    %v523 = vpop.permute.xlu0 %522
    %v524 = vlaneseq
    %v525 = vshrl.u32 %v524, 7
    %v526 = vsub.s32 1, %v525
    %v527 = vrot.slane %v238, %v526
    %529 = vbcast.lane.b32.xlu0 %v527, 256
    %v530 = vpop.permute.xlu0 %529
    %v531 = vlaneseq
    %v532 = vshrl.u32 %v531, 7
    %v533 = vsub.s32 2, %v532
    %v534 = vrot.slane %v238, %v533
    %536 = vbcast.lane.b32.xlu0 %v534, 256
    %v537 = vpop.permute.xlu0 %536
    %v538 = vlaneseq
    %v539 = vshrl.u32 %v538, 7
    %v540 = vsub.s32 3, %v539
    %v541 = vrot.slane %v238, %v540
    %543 = vbcast.lane.b32.xlu0 %v541, 256
    %v544 = vpop.permute.xlu0 %543
    %v545 = vlaneseq
    %v546 = vshrl.u32 %v545, 7
    %v547 = vsub.s32 0, %v546
    %v548 = vrot.slane %v239, %v547
    %550 = vbcast.lane.b32.xlu0 %v548, 256
    %v551 = vpop.permute.xlu0 %550
    %v552 = vlaneseq
    %v553 = vshrl.u32 %v552, 7
    %v554 = vsub.s32 1, %v553
    %v555 = vrot.slane %v239, %v554
    %557 = vbcast.lane.b32.xlu0 %v555, 256
    %v558 = vpop.permute.xlu0 %557
    %v559 = vlaneseq
    %v560 = vshrl.u32 %v559, 7
    %v561 = vsub.s32 2, %v560
    %v562 = vrot.slane %v239, %v561
    %564 = vbcast.lane.b32.xlu0 %v562, 256
    %v565 = vpop.permute.xlu0 %564
    %v566 = vlaneseq
    %v567 = vshrl.u32 %v566, 7
    %v568 = vsub.s32 3, %v567
    %v569 = vrot.slane %v239, %v568
    %571 = vbcast.lane.b32.xlu0 %v569, 256
    %v572 = vpop.permute.xlu0 %571
    %v573 = vlaneseq
    %v574 = vshrl.u32 %v573, 7
    %v575 = vsub.s32 4, %v574
    %v576 = vrot.slane %v239, %v575
    %578 = vbcast.lane.b32.xlu0 %v576, 256
    %v579 = vpop.permute.xlu0 %578
    %v580 = vlaneseq
    %v581 = vshrl.u32 %v580, 7
    %v582 = vsub.s32 5, %v581
    %v583 = vrot.slane %v239, %v582
    %585 = vbcast.lane.b32.xlu0 %v583, 256
    %v586 = vpop.permute.xlu0 %585
    %v587 = vlaneseq
    %v588 = vshrl.u32 %v587, 7
    %v589 = vsub.s32 6, %v588
    %v590 = vrot.slane %v239, %v589
    %592 = vbcast.lane.b32.xlu0 %v590, 256
    %v593 = vpop.permute.xlu0 %592
    %v594 = vlaneseq
    %v595 = vshrl.u32 %v594, 7
    %v596 = vsub.s32 7, %v595
    %v597 = vrot.slane %v239, %v596
    %599 = vbcast.lane.b32.xlu0 %v597, 256
    %v600 = vpop.permute.xlu0 %599
    %v601 = vlaneseq
    %v602 = vshrl.u32 %v601, 7
    %v603 = vsub.s32 0, %v602
    %v604 = vrot.slane %v240, %v603
    %606 = vbcast.lane.b32.xlu0 %v604, 256
    %v607 = vpop.permute.xlu0 %606
    %v608 = vlaneseq
    %v609 = vshrl.u32 %v608, 7
    %v610 = vsub.s32 1, %v609
    %v611 = vrot.slane %v240, %v610
    %613 = vbcast.lane.b32.xlu0 %v611, 256
    %v614 = vpop.permute.xlu0 %613
    %v615 = vlaneseq
    %v616 = vshrl.u32 %v615, 7
    %v617 = vsub.s32 2, %v616
    %v618 = vrot.slane %v240, %v617
    %620 = vbcast.lane.b32.xlu0 %v618, 256
    %v621 = vpop.permute.xlu0 %620
    %v622 = vlaneseq
    %v623 = vshrl.u32 %v622, 7
    %v624 = vsub.s32 3, %v623
    %v625 = vrot.slane %v240, %v624
    %627 = vbcast.lane.b32.xlu0 %v625, 256
    %v628 = vpop.permute.xlu0 %627
    %v629 = vlaneseq
    %v630 = vshrl.u32 %v629, 7
    %v631 = vsub.s32 0, %v630
    %v632 = vrot.slane %v265, %v631
    %v633 = vlaneseq
    %v634 = vshrl.u32 %v633, 7
    %v635 = vsub.s32 0, %v634
    %v636 = vrot.slane %v267, %v635
    %v637 = vmul.f32 %v299, %v632
    %v638 = vmul.f32 %v306, %v632
    %v639 = vmul.f32 %v313, %v632
    %v640 = vmul.f32 %v320, %v632
    %v641 = vmul.f32 %v327, %v632
    %v642 = vmul.f32 %v334, %v632
    %v643 = vmul.f32 %v341, %v632
    %v644 = vmul.f32 %v348, %v632
    %v645 = vmul.f32 %v355, %v632
    %v646 = vmul.f32 %v362, %v632
    %v647 = vmul.f32 %v369, %v632
    %v648 = vmul.f32 %v376, %v632
    %v649 = vmul.f32 %v383, %v632
    %v650 = vmul.f32 %v390, %v632
    %v651 = vmul.f32 %v397, %v632
    %v652 = vmul.f32 %v404, %v632
    %v653 = vmul.f32 %v411, %v632
    %v654 = vmul.f32 %v418, %v632
    %v655 = vmul.f32 %v425, %v632
    %v656 = vmul.f32 %v432, %v632
    %v657 = vmul.f32 %v439, %v632
    %v658 = vmul.f32 %v446, %v632
    %v659 = vmul.f32 %v453, %v632
    %v660 = vmul.f32 %v460, %v632
    %v661 = vmul.f32 %v467, %v636
    %v662 = vmul.f32 %v474, %v636
    %v663 = vmul.f32 %v481, %v636
    %v664 = vmul.f32 %v488, %v636
    %v665 = vmul.f32 %v495, %v636
    %v666 = vmul.f32 %v502, %v636
    %v667 = vmul.f32 %v509, %v636
    %v668 = vmul.f32 %v516, %v636
    %v669 = vmul.f32 %v523, %v636
    %v670 = vmul.f32 %v530, %v636
    %v671 = vmul.f32 %v537, %v636
    %v672 = vmul.f32 %v544, %v636
    %v673 = vmul.f32 %v551, %v636
    %v674 = vmul.f32 %v558, %v636
    %v675 = vmul.f32 %v565, %v636
    %v676 = vmul.f32 %v572, %v636
    %v677 = vmul.f32 %v579, %v636
    %v678 = vmul.f32 %v586, %v636
    %v679 = vmul.f32 %v593, %v636
    %v680 = vmul.f32 %v600, %v636
    %v681 = vmul.f32 %v607, %v636
    %v682 = vmul.f32 %v614, %v636
    %v683 = vmul.f32 %v621, %v636
    %v684 = vmul.f32 %v628, %v636
    %v685 = vlaneseq
    %v686 = vshrl.u32 %v685, 7
    %v687 = vsub.s32 4, %v686
    %v688 = vrot.slane %v210, %v687
    %690 = vbcast.lane.b32.xlu0 %v688, 256
    %v691 = vpop.permute.xlu0 %690
    %v692 = vlaneseq
    %v693 = vshrl.u32 %v692, 7
    %v694 = vsub.s32 4, %v693
    %v695 = vrot.slane %v212, %v694
    %697 = vbcast.lane.b32.xlu0 %v695, 256
    %v698 = vpop.permute.xlu0 %697
    %v699 = vlaneseq
    %v700 = vshrl.u32 %v699, 7
    %v701 = vsub.s32 4, %v700
    %v702 = vrot.slane %v238, %v701
    %704 = vbcast.lane.b32.xlu0 %v702, 256
    %v705 = vpop.permute.xlu0 %704
    %v706 = vlaneseq
    %v707 = vshrl.u32 %v706, 7
    %v708 = vsub.s32 4, %v707
    %v709 = vrot.slane %v240, %v708
    %711 = vbcast.lane.b32.xlu0 %v709, 256
    %v712 = vpop.permute.xlu0 %711
    %v713 = vlaneseq
    %v714 = vshrl.u32 %v713, 7
    %v715 = vsub.s32 1, %v714
    %v716 = vrot.slane %v265, %v715
    %v717 = vlaneseq
    %v718 = vshrl.u32 %v717, 7
    %v719 = vsub.s32 1, %v718
    %v720 = vrot.slane %v267, %v719
    %v721 = vmul.f32 %v306, %v716
    %v722 = vmul.f32 %v313, %v716
    %v723 = vmul.f32 %v320, %v716
    %v724 = vmul.f32 %v327, %v716
    %v725 = vmul.f32 %v334, %v716
    %v726 = vmul.f32 %v341, %v716
    %v727 = vmul.f32 %v348, %v716
    %v728 = vmul.f32 %v355, %v716
    %v729 = vmul.f32 %v362, %v716
    %v730 = vmul.f32 %v369, %v716
    %v731 = vmul.f32 %v376, %v716
    %v732 = vmul.f32 %v691, %v716
    %v733 = vmul.f32 %v390, %v716
    %v734 = vmul.f32 %v397, %v716
    %v735 = vmul.f32 %v404, %v716
    %v736 = vmul.f32 %v411, %v716
    %v737 = vmul.f32 %v418, %v716
    %v738 = vmul.f32 %v425, %v716
    %v739 = vmul.f32 %v432, %v716
    %v740 = vmul.f32 %v439, %v716
    %v741 = vmul.f32 %v446, %v716
    %v742 = vmul.f32 %v453, %v716
    %v743 = vmul.f32 %v460, %v716
    %v744 = vmul.f32 %v698, %v716
    %v745 = vmul.f32 %v474, %v720
    %v746 = vmul.f32 %v481, %v720
    %v747 = vmul.f32 %v488, %v720
    %v748 = vmul.f32 %v495, %v720
    %v749 = vmul.f32 %v502, %v720
    %v750 = vmul.f32 %v509, %v720
    %v751 = vmul.f32 %v516, %v720
    %v752 = vmul.f32 %v523, %v720
    %v753 = vmul.f32 %v530, %v720
    %v754 = vmul.f32 %v537, %v720
    %v755 = vmul.f32 %v544, %v720
    %v756 = vmul.f32 %v705, %v720
    %v757 = vmul.f32 %v558, %v720
    %v758 = vmul.f32 %v565, %v720
    %v759 = vmul.f32 %v572, %v720
    %v760 = vmul.f32 %v579, %v720
    %v761 = vmul.f32 %v586, %v720
    %v762 = vmul.f32 %v593, %v720
    %v763 = vmul.f32 %v600, %v720
    %v764 = vmul.f32 %v607, %v720
    %v765 = vmul.f32 %v614, %v720
    %v766 = vmul.f32 %v621, %v720
    %v767 = vmul.f32 %v628, %v720
    %v768 = vmul.f32 %v712, %v720
    %v769 = vadd.f32 %v637, %v721
    %v770 = vadd.f32 %v638, %v722
    %v771 = vadd.f32 %v639, %v723
    %v772 = vadd.f32 %v640, %v724
    %v773 = vadd.f32 %v641, %v725
    %v774 = vadd.f32 %v642, %v726
    %v775 = vadd.f32 %v643, %v727
    %v776 = vadd.f32 %v644, %v728
    %v777 = vadd.f32 %v645, %v729
    %v778 = vadd.f32 %v646, %v730
    %v779 = vadd.f32 %v647, %v731
    %v780 = vadd.f32 %v648, %v732
    %v781 = vadd.f32 %v649, %v733
    %v782 = vadd.f32 %v650, %v734
    %v783 = vadd.f32 %v651, %v735
    %v784 = vadd.f32 %v652, %v736
    %v785 = vadd.f32 %v653, %v737
    %v786 = vadd.f32 %v654, %v738
    %v787 = vadd.f32 %v655, %v739
    %v788 = vadd.f32 %v656, %v740
    %v789 = vadd.f32 %v657, %v741
    %v790 = vadd.f32 %v658, %v742
    %v791 = vadd.f32 %v659, %v743
    %v792 = vadd.f32 %v660, %v744
    %v793 = vadd.f32 %v661, %v745
    %v794 = vadd.f32 %v662, %v746
    %v795 = vadd.f32 %v663, %v747
    %v796 = vadd.f32 %v664, %v748
    %v797 = vadd.f32 %v665, %v749
    %v798 = vadd.f32 %v666, %v750
    %v799 = vadd.f32 %v667, %v751
    %v800 = vadd.f32 %v668, %v752
    %v801 = vadd.f32 %v669, %v753
    %v802 = vadd.f32 %v670, %v754
    %v803 = vadd.f32 %v671, %v755
    %v804 = vadd.f32 %v672, %v756
    %v805 = vadd.f32 %v673, %v757
    %v806 = vadd.f32 %v674, %v758
    %v807 = vadd.f32 %v675, %v759
    %v808 = vadd.f32 %v676, %v760
    %v809 = vadd.f32 %v677, %v761
    %v810 = vadd.f32 %v678, %v762
    %v811 = vadd.f32 %v679, %v763
    %v812 = vadd.f32 %v680, %v764
    %v813 = vadd.f32 %v681, %v765
    %v814 = vadd.f32 %v682, %v766
    %v815 = vadd.f32 %v683, %v767
    %v816 = vadd.f32 %v684, %v768
    %v817 = vlaneseq
    %v818 = vshrl.u32 %v817, 7
    %v819 = vsub.s32 5, %v818
    %v820 = vrot.slane %v210, %v819
    %822 = vbcast.lane.b32.xlu0 %v820, 256
    %v823 = vpop.permute.xlu0 %822
    %v824 = vlaneseq
    %v825 = vshrl.u32 %v824, 7
    %v826 = vsub.s32 5, %v825
    %v827 = vrot.slane %v212, %v826
    %829 = vbcast.lane.b32.xlu0 %v827, 256
    %v830 = vpop.permute.xlu0 %829
    %v831 = vlaneseq
    %v832 = vshrl.u32 %v831, 7
    %v833 = vsub.s32 5, %v832
    %v834 = vrot.slane %v238, %v833
    %836 = vbcast.lane.b32.xlu0 %v834, 256
    %v837 = vpop.permute.xlu0 %836
    %v838 = vlaneseq
    %v839 = vshrl.u32 %v838, 7
    %v840 = vsub.s32 5, %v839
    %v841 = vrot.slane %v240, %v840
    %843 = vbcast.lane.b32.xlu0 %v841, 256
    %v844 = vpop.permute.xlu0 %843
    %v845 = vlaneseq
    %v846 = vshrl.u32 %v845, 7
    %v847 = vsub.s32 2, %v846
    %v848 = vrot.slane %v265, %v847
    %v849 = vlaneseq
    %v850 = vshrl.u32 %v849, 7
    %v851 = vsub.s32 2, %v850
    %v852 = vrot.slane %v267, %v851
    %v853 = vmul.f32 %v313, %v848
    %v854 = vmul.f32 %v320, %v848
    %v855 = vmul.f32 %v327, %v848
    %v856 = vmul.f32 %v334, %v848
    %v857 = vmul.f32 %v341, %v848
    %v858 = vmul.f32 %v348, %v848
    %v859 = vmul.f32 %v355, %v848
    %v860 = vmul.f32 %v362, %v848
    %v861 = vmul.f32 %v369, %v848
    %v862 = vmul.f32 %v376, %v848
    %v863 = vmul.f32 %v691, %v848
    %v864 = vmul.f32 %v823, %v848
    %v865 = vmul.f32 %v397, %v848
    %v866 = vmul.f32 %v404, %v848
    %v867 = vmul.f32 %v411, %v848
    %v868 = vmul.f32 %v418, %v848
    %v869 = vmul.f32 %v425, %v848
    %v870 = vmul.f32 %v432, %v848
    %v871 = vmul.f32 %v439, %v848
    %v872 = vmul.f32 %v446, %v848
    %v873 = vmul.f32 %v453, %v848
    %v874 = vmul.f32 %v460, %v848
    %v875 = vmul.f32 %v698, %v848
    %v876 = vmul.f32 %v830, %v848
    %v877 = vmul.f32 %v481, %v852
    %v878 = vmul.f32 %v488, %v852
    %v879 = vmul.f32 %v495, %v852
    %v880 = vmul.f32 %v502, %v852
    %v881 = vmul.f32 %v509, %v852
    %v882 = vmul.f32 %v516, %v852
    %v883 = vmul.f32 %v523, %v852
    %v884 = vmul.f32 %v530, %v852
    %v885 = vmul.f32 %v537, %v852
    %v886 = vmul.f32 %v544, %v852
    %v887 = vmul.f32 %v705, %v852
    %v888 = vmul.f32 %v837, %v852
    %v889 = vmul.f32 %v565, %v852
    %v890 = vmul.f32 %v572, %v852
    %v891 = vmul.f32 %v579, %v852
    %v892 = vmul.f32 %v586, %v852
    %v893 = vmul.f32 %v593, %v852
    %v894 = vmul.f32 %v600, %v852
    %v895 = vmul.f32 %v607, %v852
    %v896 = vmul.f32 %v614, %v852
    %v897 = vmul.f32 %v621, %v852
    %v898 = vmul.f32 %v628, %v852
    %v899 = vmul.f32 %v712, %v852
    %v900 = vmul.f32 %v844, %v852
    %v901 = vadd.f32 %v769, %v853
    %v902 = vadd.f32 %v770, %v854
    %v903 = vadd.f32 %v771, %v855
    %v904 = vadd.f32 %v772, %v856
    %v905 = vadd.f32 %v773, %v857
    %v906 = vadd.f32 %v774, %v858
    %v907 = vadd.f32 %v775, %v859
    %v908 = vadd.f32 %v776, %v860
    %v909 = vadd.f32 %v777, %v861
    %v910 = vadd.f32 %v778, %v862
    %v911 = vadd.f32 %v779, %v863
    %v912 = vadd.f32 %v780, %v864
    %v913 = vadd.f32 %v781, %v865
    %v914 = vadd.f32 %v782, %v866
    %v915 = vadd.f32 %v783, %v867
    %v916 = vadd.f32 %v784, %v868
    %v917 = vadd.f32 %v785, %v869
    %v918 = vadd.f32 %v786, %v870
    %v919 = vadd.f32 %v787, %v871
    %v920 = vadd.f32 %v788, %v872
    %v921 = vadd.f32 %v789, %v873
    %v922 = vadd.f32 %v790, %v874
    %v923 = vadd.f32 %v791, %v875
    %v924 = vadd.f32 %v792, %v876
    %v925 = vadd.f32 %v793, %v877
    %v926 = vadd.f32 %v794, %v878
    %v927 = vadd.f32 %v795, %v879
    %v928 = vadd.f32 %v796, %v880
    %v929 = vadd.f32 %v797, %v881
    %v930 = vadd.f32 %v798, %v882
    %v931 = vadd.f32 %v799, %v883
    %v932 = vadd.f32 %v800, %v884
    %v933 = vadd.f32 %v801, %v885
    %v934 = vadd.f32 %v802, %v886
    %v935 = vadd.f32 %v803, %v887
    %v936 = vadd.f32 %v804, %v888
    %v937 = vadd.f32 %v805, %v889
    %v938 = vadd.f32 %v806, %v890
    %v939 = vadd.f32 %v807, %v891
    %v940 = vadd.f32 %v808, %v892
    %v941 = vadd.f32 %v809, %v893
    %v942 = vadd.f32 %v810, %v894
    %v943 = vadd.f32 %v811, %v895
    %v944 = vadd.f32 %v812, %v896
    %v945 = vadd.f32 %v813, %v897
    %v946 = vadd.f32 %v814, %v898
    %v947 = vadd.f32 %v815, %v899
    %v948 = vadd.f32 %v816, %v900
    %v949 = vlaneseq
    %v950 = vshrl.u32 %v949, 7
    %v951 = vsub.s32 0, %v950
    %v952 = vrot.slane %v213, %v951
    %954 = vbcast.lane.b32.xlu0 %v952, 256
    %v955 = vpop.permute.xlu0 %954
    %v956 = vlaneseq
    %v957 = vshrl.u32 %v956, 7
    %v958 = vsub.s32 1, %v957
    %v959 = vrot.slane %v213, %v958
    %961 = vbcast.lane.b32.xlu0 %v959, 256
    %v962 = vpop.permute.xlu0 %961
    %v963 = vlaneseq
    %v964 = vshrl.u32 %v963, 7
    %v965 = vsub.s32 2, %v964
    %v966 = vrot.slane %v213, %v965
    %968 = vbcast.lane.b32.xlu0 %v966, 256
    %v969 = vpop.permute.xlu0 %968
    %v970 = vlaneseq
    %v971 = vshrl.u32 %v970, 7
    %v972 = vsub.s32 3, %v971
    %v973 = vrot.slane %v213, %v972
    %975 = vbcast.lane.b32.xlu0 %v973, 256
    %v976 = vpop.permute.xlu0 %975
    %v977 = vlaneseq
    %v978 = vshrl.u32 %v977, 7
    %v979 = vsub.s32 4, %v978
    %v980 = vrot.slane %v213, %v979
    %982 = vbcast.lane.b32.xlu0 %v980, 256
    %v983 = vpop.permute.xlu0 %982
    %v984 = vlaneseq
    %v985 = vshrl.u32 %v984, 7
    %v986 = vsub.s32 5, %v985
    %v987 = vrot.slane %v213, %v986
    %989 = vbcast.lane.b32.xlu0 %v987, 256
    %v990 = vpop.permute.xlu0 %989
    %v991 = vlaneseq
    %v992 = vshrl.u32 %v991, 7
    %v993 = vsub.s32 6, %v992
    %v994 = vrot.slane %v213, %v993
    %996 = vbcast.lane.b32.xlu0 %v994, 256
    %v997 = vpop.permute.xlu0 %996
    %v998 = vlaneseq
    %v999 = vshrl.u32 %v998, 7
    %v1000 = vsub.s32 7, %v999
    %v1001 = vrot.slane %v213, %v1000
    %1003 = vbcast.lane.b32.xlu0 %v1001, 256
    %v1004 = vpop.permute.xlu0 %1003
    %v1005 = vlaneseq
    %v1006 = vshrl.u32 %v1005, 7
    %v1007 = vsub.s32 0, %v1006
    %v1008 = vrot.slane %v214, %v1007
    %1010 = vbcast.lane.b32.xlu0 %v1008, 256
    %v1011 = vpop.permute.xlu0 %1010
    %v1012 = vlaneseq
    %v1013 = vshrl.u32 %v1012, 7
    %v1014 = vsub.s32 1, %v1013
    %v1015 = vrot.slane %v214, %v1014
    %1017 = vbcast.lane.b32.xlu0 %v1015, 256
    %v1018 = vpop.permute.xlu0 %1017
    %v1019 = vlaneseq
    %v1020 = vshrl.u32 %v1019, 7
    %v1021 = vsub.s32 2, %v1020
    %v1022 = vrot.slane %v214, %v1021
    %1024 = vbcast.lane.b32.xlu0 %v1022, 256
    %v1025 = vpop.permute.xlu0 %1024
    %v1026 = vlaneseq
    %v1027 = vshrl.u32 %v1026, 7
    %v1028 = vsub.s32 3, %v1027
    %v1029 = vrot.slane %v214, %v1028
    %1031 = vbcast.lane.b32.xlu0 %v1029, 256
    %v1032 = vpop.permute.xlu0 %1031
    %v1033 = vlaneseq
    %v1034 = vshrl.u32 %v1033, 7
    %v1035 = vsub.s32 0, %v1034
    %v1036 = vrot.slane %v241, %v1035
    %1038 = vbcast.lane.b32.xlu0 %v1036, 256
    %v1039 = vpop.permute.xlu0 %1038
    %v1040 = vlaneseq
    %v1041 = vshrl.u32 %v1040, 7
    %v1042 = vsub.s32 1, %v1041
    %v1043 = vrot.slane %v241, %v1042
    %1045 = vbcast.lane.b32.xlu0 %v1043, 256
    %v1046 = vpop.permute.xlu0 %1045
    %v1047 = vlaneseq
    %v1048 = vshrl.u32 %v1047, 7
    %v1049 = vsub.s32 2, %v1048
    %v1050 = vrot.slane %v241, %v1049
    %1052 = vbcast.lane.b32.xlu0 %v1050, 256
    %v1053 = vpop.permute.xlu0 %1052
    %v1054 = vlaneseq
    %v1055 = vshrl.u32 %v1054, 7
    %v1056 = vsub.s32 3, %v1055
    %v1057 = vrot.slane %v241, %v1056
    %1059 = vbcast.lane.b32.xlu0 %v1057, 256
    %v1060 = vpop.permute.xlu0 %1059
    %v1061 = vlaneseq
    %v1062 = vshrl.u32 %v1061, 7
    %v1063 = vsub.s32 4, %v1062
    %v1064 = vrot.slane %v241, %v1063
    %1066 = vbcast.lane.b32.xlu0 %v1064, 256
    %v1067 = vpop.permute.xlu0 %1066
    %v1068 = vlaneseq
    %v1069 = vshrl.u32 %v1068, 7
    %v1070 = vsub.s32 5, %v1069
    %v1071 = vrot.slane %v241, %v1070
    %1073 = vbcast.lane.b32.xlu0 %v1071, 256
    %v1074 = vpop.permute.xlu0 %1073
    %v1075 = vlaneseq
    %v1076 = vshrl.u32 %v1075, 7
    %v1077 = vsub.s32 6, %v1076
    %v1078 = vrot.slane %v241, %v1077
    %1080 = vbcast.lane.b32.xlu0 %v1078, 256
    %v1081 = vpop.permute.xlu0 %1080
    %v1082 = vlaneseq
    %v1083 = vshrl.u32 %v1082, 7
    %v1084 = vsub.s32 7, %v1083
    %v1085 = vrot.slane %v241, %v1084
    %1087 = vbcast.lane.b32.xlu0 %v1085, 256
    %v1088 = vpop.permute.xlu0 %1087
    %v1089 = vlaneseq
    %v1090 = vshrl.u32 %v1089, 7
    %v1091 = vsub.s32 0, %v1090
    %v1092 = vrot.slane %v242, %v1091
    %1094 = vbcast.lane.b32.xlu0 %v1092, 256
    %v1095 = vpop.permute.xlu0 %1094
    %v1096 = vlaneseq
    %v1097 = vshrl.u32 %v1096, 7
    %v1098 = vsub.s32 1, %v1097
    %v1099 = vrot.slane %v242, %v1098
    %1101 = vbcast.lane.b32.xlu0 %v1099, 256
    %v1102 = vpop.permute.xlu0 %1101
    %v1103 = vlaneseq
    %v1104 = vshrl.u32 %v1103, 7
    %v1105 = vsub.s32 2, %v1104
    %v1106 = vrot.slane %v242, %v1105
    %1108 = vbcast.lane.b32.xlu0 %v1106, 256
    %v1109 = vpop.permute.xlu0 %1108
    %v1110 = vlaneseq
    %v1111 = vshrl.u32 %v1110, 7
    %v1112 = vsub.s32 3, %v1111
    %v1113 = vrot.slane %v242, %v1112
    %1115 = vbcast.lane.b32.xlu0 %v1113, 256
    %v1116 = vpop.permute.xlu0 %1115
    %v1117 = vlaneseq
    %v1118 = vshrl.u32 %v1117, 7
    %v1119 = vsub.s32 3, %v1118
    %v1120 = vrot.slane %v265, %v1119
    %v1121 = vlaneseq
    %v1122 = vshrl.u32 %v1121, 7
    %v1123 = vsub.s32 3, %v1122
    %v1124 = vrot.slane %v267, %v1123
    %v1125 = vmul.f32 %v383, %v1120
    %v1126 = vmul.f32 %v390, %v1120
    %v1127 = vmul.f32 %v397, %v1120
    %v1128 = vmul.f32 %v404, %v1120
    %v1129 = vmul.f32 %v411, %v1120
    %v1130 = vmul.f32 %v418, %v1120
    %v1131 = vmul.f32 %v425, %v1120
    %v1132 = vmul.f32 %v432, %v1120
    %v1133 = vmul.f32 %v439, %v1120
    %v1134 = vmul.f32 %v446, %v1120
    %v1135 = vmul.f32 %v453, %v1120
    %v1136 = vmul.f32 %v460, %v1120
    %v1137 = vmul.f32 %v955, %v1120
    %v1138 = vmul.f32 %v962, %v1120
    %v1139 = vmul.f32 %v969, %v1120
    %v1140 = vmul.f32 %v976, %v1120
    %v1141 = vmul.f32 %v983, %v1120
    %v1142 = vmul.f32 %v990, %v1120
    %v1143 = vmul.f32 %v997, %v1120
    %v1144 = vmul.f32 %v1004, %v1120
    %v1145 = vmul.f32 %v1011, %v1120
    %v1146 = vmul.f32 %v1018, %v1120
    %v1147 = vmul.f32 %v1025, %v1120
    %v1148 = vmul.f32 %v1032, %v1120
    %v1149 = vmul.f32 %v551, %v1124
    %v1150 = vmul.f32 %v558, %v1124
    %v1151 = vmul.f32 %v565, %v1124
    %v1152 = vmul.f32 %v572, %v1124
    %v1153 = vmul.f32 %v579, %v1124
    %v1154 = vmul.f32 %v586, %v1124
    %v1155 = vmul.f32 %v593, %v1124
    %v1156 = vmul.f32 %v600, %v1124
    %v1157 = vmul.f32 %v607, %v1124
    %v1158 = vmul.f32 %v614, %v1124
    %v1159 = vmul.f32 %v621, %v1124
    %v1160 = vmul.f32 %v628, %v1124
    %v1161 = vmul.f32 %v1039, %v1124
    %v1162 = vmul.f32 %v1046, %v1124
    %v1163 = vmul.f32 %v1053, %v1124
    %v1164 = vmul.f32 %v1060, %v1124
    %v1165 = vmul.f32 %v1067, %v1124
    %v1166 = vmul.f32 %v1074, %v1124
    %v1167 = vmul.f32 %v1081, %v1124
    %v1168 = vmul.f32 %v1088, %v1124
    %v1169 = vmul.f32 %v1095, %v1124
    %v1170 = vmul.f32 %v1102, %v1124
    %v1171 = vmul.f32 %v1109, %v1124
    %v1172 = vmul.f32 %v1116, %v1124
    %v1173 = vadd.f32 %v901, %v1125
    %v1174 = vadd.f32 %v902, %v1126
    %v1175 = vadd.f32 %v903, %v1127
    %v1176 = vadd.f32 %v904, %v1128
    %v1177 = vadd.f32 %v905, %v1129
    %v1178 = vadd.f32 %v906, %v1130
    %v1179 = vadd.f32 %v907, %v1131
    %v1180 = vadd.f32 %v908, %v1132
    %v1181 = vadd.f32 %v909, %v1133
    %v1182 = vadd.f32 %v910, %v1134
    %v1183 = vadd.f32 %v911, %v1135
    %v1184 = vadd.f32 %v912, %v1136
    %v1185 = vadd.f32 %v913, %v1137
    %v1186 = vadd.f32 %v914, %v1138
    %v1187 = vadd.f32 %v915, %v1139
    %v1188 = vadd.f32 %v916, %v1140
    %v1189 = vadd.f32 %v917, %v1141
    %v1190 = vadd.f32 %v918, %v1142
    %v1191 = vadd.f32 %v919, %v1143
    %v1192 = vadd.f32 %v920, %v1144
    %v1193 = vadd.f32 %v921, %v1145
    %v1194 = vadd.f32 %v922, %v1146
    %v1195 = vadd.f32 %v923, %v1147
    %v1196 = vadd.f32 %v924, %v1148
    %v1197 = vadd.f32 %v925, %v1149
    %v1198 = vadd.f32 %v926, %v1150
    %v1199 = vadd.f32 %v927, %v1151
    %v1200 = vadd.f32 %v928, %v1152
    %v1201 = vadd.f32 %v929, %v1153
    %v1202 = vadd.f32 %v930, %v1154
    %v1203 = vadd.f32 %v931, %v1155
    %v1204 = vadd.f32 %v932, %v1156
    %v1205 = vadd.f32 %v933, %v1157
    %v1206 = vadd.f32 %v934, %v1158
    %v1207 = vadd.f32 %v935, %v1159
    %v1208 = vadd.f32 %v936, %v1160
    %v1209 = vadd.f32 %v937, %v1161
    %v1210 = vadd.f32 %v938, %v1162
    %v1211 = vadd.f32 %v939, %v1163
    %v1212 = vadd.f32 %v940, %v1164
    %v1213 = vadd.f32 %v941, %v1165
    %v1214 = vadd.f32 %v942, %v1166
    %v1215 = vadd.f32 %v943, %v1167
    %v1216 = vadd.f32 %v944, %v1168
    %v1217 = vadd.f32 %v945, %v1169
    %v1218 = vadd.f32 %v946, %v1170
    %v1219 = vadd.f32 %v947, %v1171
    %v1220 = vadd.f32 %v948, %v1172
    %v1221 = vlaneseq
    %v1222 = vshrl.u32 %v1221, 7
    %v1223 = vsub.s32 4, %v1222
    %v1224 = vrot.slane %v214, %v1223
    %1226 = vbcast.lane.b32.xlu0 %v1224, 256
    %v1227 = vpop.permute.xlu0 %1226
    %v1228 = vlaneseq
    %v1229 = vshrl.u32 %v1228, 7
    %v1230 = vsub.s32 4, %v1229
    %v1231 = vrot.slane %v242, %v1230
    %1233 = vbcast.lane.b32.xlu0 %v1231, 256
    %v1234 = vpop.permute.xlu0 %1233
    %v1235 = vlaneseq
    %v1236 = vshrl.u32 %v1235, 7
    %v1237 = vsub.s32 4, %v1236
    %v1238 = vrot.slane %v265, %v1237
    %v1239 = vlaneseq
    %v1240 = vshrl.u32 %v1239, 7
    %v1241 = vsub.s32 4, %v1240
    %v1242 = vrot.slane %v267, %v1241
    %v1243 = vmul.f32 %v390, %v1238
    %v1244 = vmul.f32 %v397, %v1238
    %v1245 = vmul.f32 %v404, %v1238
    %v1246 = vmul.f32 %v411, %v1238
    %v1247 = vmul.f32 %v418, %v1238
    %v1248 = vmul.f32 %v425, %v1238
    %v1249 = vmul.f32 %v432, %v1238
    %v1250 = vmul.f32 %v439, %v1238
    %v1251 = vmul.f32 %v446, %v1238
    %v1252 = vmul.f32 %v453, %v1238
    %v1253 = vmul.f32 %v460, %v1238
    %v1254 = vmul.f32 %v698, %v1238
    %v1255 = vmul.f32 %v962, %v1238
    %v1256 = vmul.f32 %v969, %v1238
    %v1257 = vmul.f32 %v976, %v1238
    %v1258 = vmul.f32 %v983, %v1238
    %v1259 = vmul.f32 %v990, %v1238
    %v1260 = vmul.f32 %v997, %v1238
    %v1261 = vmul.f32 %v1004, %v1238
    %v1262 = vmul.f32 %v1011, %v1238
    %v1263 = vmul.f32 %v1018, %v1238
    %v1264 = vmul.f32 %v1025, %v1238
    %v1265 = vmul.f32 %v1032, %v1238
    %v1266 = vmul.f32 %v1227, %v1238
    %v1267 = vmul.f32 %v558, %v1242
    %v1268 = vmul.f32 %v565, %v1242
    %v1269 = vmul.f32 %v572, %v1242
    %v1270 = vmul.f32 %v579, %v1242
    %v1271 = vmul.f32 %v586, %v1242
    %v1272 = vmul.f32 %v593, %v1242
    %v1273 = vmul.f32 %v600, %v1242
    %v1274 = vmul.f32 %v607, %v1242
    %v1275 = vmul.f32 %v614, %v1242
    %v1276 = vmul.f32 %v621, %v1242
    %v1277 = vmul.f32 %v628, %v1242
    %v1278 = vmul.f32 %v712, %v1242
    %v1279 = vmul.f32 %v1046, %v1242
    %v1280 = vmul.f32 %v1053, %v1242
    %v1281 = vmul.f32 %v1060, %v1242
    %v1282 = vmul.f32 %v1067, %v1242
    %v1283 = vmul.f32 %v1074, %v1242
    %v1284 = vmul.f32 %v1081, %v1242
    %v1285 = vmul.f32 %v1088, %v1242
    %v1286 = vmul.f32 %v1095, %v1242
    %v1287 = vmul.f32 %v1102, %v1242
    %v1288 = vmul.f32 %v1109, %v1242
    %v1289 = vmul.f32 %v1116, %v1242
    %v1290 = vmul.f32 %v1234, %v1242
    %v1291 = vadd.f32 %v1173, %v1243
    %v1292 = vadd.f32 %v1174, %v1244
    %v1293 = vadd.f32 %v1175, %v1245
    %v1294 = vadd.f32 %v1176, %v1246
    %v1295 = vadd.f32 %v1177, %v1247
    %v1296 = vadd.f32 %v1178, %v1248
    %v1297 = vadd.f32 %v1179, %v1249
    %v1298 = vadd.f32 %v1180, %v1250
    %v1299 = vadd.f32 %v1181, %v1251
    %v1300 = vadd.f32 %v1182, %v1252
    %v1301 = vadd.f32 %v1183, %v1253
    %v1302 = vadd.f32 %v1184, %v1254
    %v1303 = vadd.f32 %v1185, %v1255
    %v1304 = vadd.f32 %v1186, %v1256
    %v1305 = vadd.f32 %v1187, %v1257
    %v1306 = vadd.f32 %v1188, %v1258
    %v1307 = vadd.f32 %v1189, %v1259
    %v1308 = vadd.f32 %v1190, %v1260
    %v1309 = vadd.f32 %v1191, %v1261
    %v1310 = vadd.f32 %v1192, %v1262
    %v1311 = vadd.f32 %v1193, %v1263
    %v1312 = vadd.f32 %v1194, %v1264
    %v1313 = vadd.f32 %v1195, %v1265
    %v1314 = vadd.f32 %v1196, %v1266
    %v1315 = vadd.f32 %v1197, %v1267
    %v1316 = vadd.f32 %v1198, %v1268
    %v1317 = vadd.f32 %v1199, %v1269
    %v1318 = vadd.f32 %v1200, %v1270
    %v1319 = vadd.f32 %v1201, %v1271
    %v1320 = vadd.f32 %v1202, %v1272
    %v1321 = vadd.f32 %v1203, %v1273
    %v1322 = vadd.f32 %v1204, %v1274
    %v1323 = vadd.f32 %v1205, %v1275
    %v1324 = vadd.f32 %v1206, %v1276
    %v1325 = vadd.f32 %v1207, %v1277
    %v1326 = vadd.f32 %v1208, %v1278
    %v1327 = vadd.f32 %v1209, %v1279
    %v1328 = vadd.f32 %v1210, %v1280
    %v1329 = vadd.f32 %v1211, %v1281
    %v1330 = vadd.f32 %v1212, %v1282
    %v1331 = vadd.f32 %v1213, %v1283
    %v1332 = vadd.f32 %v1214, %v1284
    %v1333 = vadd.f32 %v1215, %v1285
    %v1334 = vadd.f32 %v1216, %v1286
    %v1335 = vadd.f32 %v1217, %v1287
    %v1336 = vadd.f32 %v1218, %v1288
    %v1337 = vadd.f32 %v1219, %v1289
    %v1338 = vadd.f32 %v1220, %v1290
    %v1339 = vlaneseq
    %v1340 = vshrl.u32 %v1339, 7
    %v1341 = vsub.s32 5, %v1340
    %v1342 = vrot.slane %v214, %v1341
    %1344 = vbcast.lane.b32.xlu0 %v1342, 256
    %v1345 = vpop.permute.xlu0 %1344
    %v1346 = vlaneseq
    %v1347 = vshrl.u32 %v1346, 7
    %v1348 = vsub.s32 5, %v1347
    %v1349 = vrot.slane %v242, %v1348
    %1351 = vbcast.lane.b32.xlu0 %v1349, 256
    %v1352 = vpop.permute.xlu0 %1351
    %v1353 = vlaneseq
    %v1354 = vshrl.u32 %v1353, 7
    %v1355 = vsub.s32 5, %v1354
    %v1356 = vrot.slane %v265, %v1355
    %v1357 = vlaneseq
    %v1358 = vshrl.u32 %v1357, 7
    %v1359 = vsub.s32 5, %v1358
    %v1360 = vrot.slane %v267, %v1359
    %v1361 = vmul.f32 %v397, %v1356
    %v1362 = vmul.f32 %v404, %v1356
    %v1363 = vmul.f32 %v411, %v1356
    %v1364 = vmul.f32 %v418, %v1356
    %v1365 = vmul.f32 %v425, %v1356
    %v1366 = vmul.f32 %v432, %v1356
    %v1367 = vmul.f32 %v439, %v1356
    %v1368 = vmul.f32 %v446, %v1356
    %v1369 = vmul.f32 %v453, %v1356
    %v1370 = vmul.f32 %v460, %v1356
    %v1371 = vmul.f32 %v698, %v1356
    %v1372 = vmul.f32 %v830, %v1356
    %v1373 = vmul.f32 %v969, %v1356
    %v1374 = vmul.f32 %v976, %v1356
    %v1375 = vmul.f32 %v983, %v1356
    %v1376 = vmul.f32 %v990, %v1356
    %v1377 = vmul.f32 %v997, %v1356
    %v1378 = vmul.f32 %v1004, %v1356
    %v1379 = vmul.f32 %v1011, %v1356
    %v1380 = vmul.f32 %v1018, %v1356
    %v1381 = vmul.f32 %v1025, %v1356
    %v1382 = vmul.f32 %v1032, %v1356
    %v1383 = vmul.f32 %v1227, %v1356
    %v1384 = vmul.f32 %v1345, %v1356
    %v1385 = vmul.f32 %v565, %v1360
    %v1386 = vmul.f32 %v572, %v1360
    %v1387 = vmul.f32 %v579, %v1360
    %v1388 = vmul.f32 %v586, %v1360
    %v1389 = vmul.f32 %v593, %v1360
    %v1390 = vmul.f32 %v600, %v1360
    %v1391 = vmul.f32 %v607, %v1360
    %v1392 = vmul.f32 %v614, %v1360
    %v1393 = vmul.f32 %v621, %v1360
    %v1394 = vmul.f32 %v628, %v1360
    %v1395 = vmul.f32 %v712, %v1360
    %v1396 = vmul.f32 %v844, %v1360
    %v1397 = vmul.f32 %v1053, %v1360
    %v1398 = vmul.f32 %v1060, %v1360
    %v1399 = vmul.f32 %v1067, %v1360
    %v1400 = vmul.f32 %v1074, %v1360
    %v1401 = vmul.f32 %v1081, %v1360
    %v1402 = vmul.f32 %v1088, %v1360
    %v1403 = vmul.f32 %v1095, %v1360
    %v1404 = vmul.f32 %v1102, %v1360
    %v1405 = vmul.f32 %v1109, %v1360
    %v1406 = vmul.f32 %v1116, %v1360
    %v1407 = vmul.f32 %v1234, %v1360
    %v1408 = vmul.f32 %v1352, %v1360
    %v1409 = vadd.f32 %v1291, %v1361
    %v1410 = vadd.f32 %v1292, %v1362
    %v1411 = vadd.f32 %v1293, %v1363
    %v1412 = vadd.f32 %v1294, %v1364
    %v1413 = vadd.f32 %v1295, %v1365
    %v1414 = vadd.f32 %v1296, %v1366
    %v1415 = vadd.f32 %v1297, %v1367
    %v1416 = vadd.f32 %v1298, %v1368
    %v1417 = vadd.f32 %v1299, %v1369
    %v1418 = vadd.f32 %v1300, %v1370
    %v1419 = vadd.f32 %v1301, %v1371
    %v1420 = vadd.f32 %v1302, %v1372
    %v1421 = vadd.f32 %v1303, %v1373
    %v1422 = vadd.f32 %v1304, %v1374
    %v1423 = vadd.f32 %v1305, %v1375
    %v1424 = vadd.f32 %v1306, %v1376
    %v1425 = vadd.f32 %v1307, %v1377
    %v1426 = vadd.f32 %v1308, %v1378
    %v1427 = vadd.f32 %v1309, %v1379
    %v1428 = vadd.f32 %v1310, %v1380
    %v1429 = vadd.f32 %v1311, %v1381
    %v1430 = vadd.f32 %v1312, %v1382
    %v1431 = vadd.f32 %v1313, %v1383
    %v1432 = vadd.f32 %v1314, %v1384
    %v1433 = vadd.f32 %v1315, %v1385
    %v1434 = vadd.f32 %v1316, %v1386
    %v1435 = vadd.f32 %v1317, %v1387
    %v1436 = vadd.f32 %v1318, %v1388
    %v1437 = vadd.f32 %v1319, %v1389
    %v1438 = vadd.f32 %v1320, %v1390
    %v1439 = vadd.f32 %v1321, %v1391
    %v1440 = vadd.f32 %v1322, %v1392
    %v1441 = vadd.f32 %v1323, %v1393
    %v1442 = vadd.f32 %v1324, %v1394
    %v1443 = vadd.f32 %v1325, %v1395
    %v1444 = vadd.f32 %v1326, %v1396
    %v1445 = vadd.f32 %v1327, %v1397
    %v1446 = vadd.f32 %v1328, %v1398
    %v1447 = vadd.f32 %v1329, %v1399
    %v1448 = vadd.f32 %v1330, %v1400
    %v1449 = vadd.f32 %v1331, %v1401
    %v1450 = vadd.f32 %v1332, %v1402
    %v1451 = vadd.f32 %v1333, %v1403
    %v1452 = vadd.f32 %v1334, %v1404
    %v1453 = vadd.f32 %v1335, %v1405
    %v1454 = vadd.f32 %v1336, %v1406
    %v1455 = vadd.f32 %v1337, %v1407
    %v1456 = vadd.f32 %v1338, %v1408
    %v1457 = vlaneseq
    %v1458 = vshrl.u32 %v1457, 7
    %v1459 = vsub.s32 0, %v1458
    %v1460 = vrot.slane %v215, %v1459
    %1462 = vbcast.lane.b32.xlu0 %v1460, 256
    %v1463 = vpop.permute.xlu0 %1462
    %v1464 = vlaneseq
    %v1465 = vshrl.u32 %v1464, 7
    %v1466 = vsub.s32 1, %v1465
    %v1467 = vrot.slane %v215, %v1466
    %1469 = vbcast.lane.b32.xlu0 %v1467, 256
    %v1470 = vpop.permute.xlu0 %1469
    %v1471 = vlaneseq
    %v1472 = vshrl.u32 %v1471, 7
    %v1473 = vsub.s32 2, %v1472
    %v1474 = vrot.slane %v215, %v1473
    %1476 = vbcast.lane.b32.xlu0 %v1474, 256
    %v1477 = vpop.permute.xlu0 %1476
    %v1478 = vlaneseq
    %v1479 = vshrl.u32 %v1478, 7
    %v1480 = vsub.s32 3, %v1479
    %v1481 = vrot.slane %v215, %v1480
    %1483 = vbcast.lane.b32.xlu0 %v1481, 256
    %v1484 = vpop.permute.xlu0 %1483
    %v1485 = vlaneseq
    %v1486 = vshrl.u32 %v1485, 7
    %v1487 = vsub.s32 4, %v1486
    %v1488 = vrot.slane %v215, %v1487
    %1490 = vbcast.lane.b32.xlu0 %v1488, 256
    %v1491 = vpop.permute.xlu0 %1490
    %v1492 = vlaneseq
    %v1493 = vshrl.u32 %v1492, 7
    %v1494 = vsub.s32 5, %v1493
    %v1495 = vrot.slane %v215, %v1494
    %1497 = vbcast.lane.b32.xlu0 %v1495, 256
    %v1498 = vpop.permute.xlu0 %1497
    %v1499 = vlaneseq
    %v1500 = vshrl.u32 %v1499, 7
    %v1501 = vsub.s32 6, %v1500
    %v1502 = vrot.slane %v215, %v1501
    %1504 = vbcast.lane.b32.xlu0 %v1502, 256
    %v1505 = vpop.permute.xlu0 %1504
    %v1506 = vlaneseq
    %v1507 = vshrl.u32 %v1506, 7
    %v1508 = vsub.s32 7, %v1507
    %v1509 = vrot.slane %v215, %v1508
    %1511 = vbcast.lane.b32.xlu0 %v1509, 256
    %v1512 = vpop.permute.xlu0 %1511
    %v1513 = vlaneseq
    %v1514 = vshrl.u32 %v1513, 7
    %v1515 = vsub.s32 0, %v1514
    %v1516 = vrot.slane %v216, %v1515
    %1518 = vbcast.lane.b32.xlu0 %v1516, 256
    %v1519 = vpop.permute.xlu0 %1518
    %v1520 = vlaneseq
    %v1521 = vshrl.u32 %v1520, 7
    %v1522 = vsub.s32 1, %v1521
    %v1523 = vrot.slane %v216, %v1522
    %1525 = vbcast.lane.b32.xlu0 %v1523, 256
    %v1526 = vpop.permute.xlu0 %1525
    %v1527 = vlaneseq
    %v1528 = vshrl.u32 %v1527, 7
    %v1529 = vsub.s32 2, %v1528
    %v1530 = vrot.slane %v216, %v1529
    %1532 = vbcast.lane.b32.xlu0 %v1530, 256
    %v1533 = vpop.permute.xlu0 %1532
    %v1534 = vlaneseq
    %v1535 = vshrl.u32 %v1534, 7
    %v1536 = vsub.s32 3, %v1535
    %v1537 = vrot.slane %v216, %v1536
    %1539 = vbcast.lane.b32.xlu0 %v1537, 256
    %v1540 = vpop.permute.xlu0 %1539
    %v1541 = vlaneseq
    %v1542 = vshrl.u32 %v1541, 7
    %v1543 = vsub.s32 0, %v1542
    %v1544 = vrot.slane %v243, %v1543
    %1546 = vbcast.lane.b32.xlu0 %v1544, 256
    %v1547 = vpop.permute.xlu0 %1546
    %v1548 = vlaneseq
    %v1549 = vshrl.u32 %v1548, 7
    %v1550 = vsub.s32 1, %v1549
    %v1551 = vrot.slane %v243, %v1550
    %1553 = vbcast.lane.b32.xlu0 %v1551, 256
    %v1554 = vpop.permute.xlu0 %1553
    %v1555 = vlaneseq
    %v1556 = vshrl.u32 %v1555, 7
    %v1557 = vsub.s32 2, %v1556
    %v1558 = vrot.slane %v243, %v1557
    %1560 = vbcast.lane.b32.xlu0 %v1558, 256
    %v1561 = vpop.permute.xlu0 %1560
    %v1562 = vlaneseq
    %v1563 = vshrl.u32 %v1562, 7
    %v1564 = vsub.s32 3, %v1563
    %v1565 = vrot.slane %v243, %v1564
    %1567 = vbcast.lane.b32.xlu0 %v1565, 256
    %v1568 = vpop.permute.xlu0 %1567
    %v1569 = vlaneseq
    %v1570 = vshrl.u32 %v1569, 7
    %v1571 = vsub.s32 4, %v1570
    %v1572 = vrot.slane %v243, %v1571
    %1574 = vbcast.lane.b32.xlu0 %v1572, 256
    %v1575 = vpop.permute.xlu0 %1574
    %v1576 = vlaneseq
    %v1577 = vshrl.u32 %v1576, 7
    %v1578 = vsub.s32 5, %v1577
    %v1579 = vrot.slane %v243, %v1578
    %1581 = vbcast.lane.b32.xlu0 %v1579, 256
    %v1582 = vpop.permute.xlu0 %1581
    %v1583 = vlaneseq
    %v1584 = vshrl.u32 %v1583, 7
    %v1585 = vsub.s32 6, %v1584
    %v1586 = vrot.slane %v243, %v1585
    %1588 = vbcast.lane.b32.xlu0 %v1586, 256
    %v1589 = vpop.permute.xlu0 %1588
    %v1590 = vlaneseq
    %v1591 = vshrl.u32 %v1590, 7
    %v1592 = vsub.s32 7, %v1591
    %v1593 = vrot.slane %v243, %v1592
    %1595 = vbcast.lane.b32.xlu0 %v1593, 256
    %v1596 = vpop.permute.xlu0 %1595
    %v1597 = vlaneseq
    %v1598 = vshrl.u32 %v1597, 7
    %v1599 = vsub.s32 0, %v1598
    %v1600 = vrot.slane %v244, %v1599
    %1602 = vbcast.lane.b32.xlu0 %v1600, 256
    %v1603 = vpop.permute.xlu0 %1602
    %v1604 = vlaneseq
    %v1605 = vshrl.u32 %v1604, 7
    %v1606 = vsub.s32 1, %v1605
    %v1607 = vrot.slane %v244, %v1606
    %1609 = vbcast.lane.b32.xlu0 %v1607, 256
    %v1610 = vpop.permute.xlu0 %1609
    %v1611 = vlaneseq
    %v1612 = vshrl.u32 %v1611, 7
    %v1613 = vsub.s32 2, %v1612
    %v1614 = vrot.slane %v244, %v1613
    %1616 = vbcast.lane.b32.xlu0 %v1614, 256
    %v1617 = vpop.permute.xlu0 %1616
    %v1618 = vlaneseq
    %v1619 = vshrl.u32 %v1618, 7
    %v1620 = vsub.s32 3, %v1619
    %v1621 = vrot.slane %v244, %v1620
    %1623 = vbcast.lane.b32.xlu0 %v1621, 256
    %v1624 = vpop.permute.xlu0 %1623
    %v1625 = vlaneseq
    %v1626 = vshrl.u32 %v1625, 7
    %v1627 = vsub.s32 6, %v1626
    %v1628 = vrot.slane %v265, %v1627
    %v1629 = vlaneseq
    %v1630 = vshrl.u32 %v1629, 7
    %v1631 = vsub.s32 6, %v1630
    %v1632 = vrot.slane %v267, %v1631
    %v1633 = vmul.f32 %v955, %v1628
    %v1634 = vmul.f32 %v962, %v1628
    %v1635 = vmul.f32 %v969, %v1628
    %v1636 = vmul.f32 %v976, %v1628
    %v1637 = vmul.f32 %v983, %v1628
    %v1638 = vmul.f32 %v990, %v1628
    %v1639 = vmul.f32 %v997, %v1628
    %v1640 = vmul.f32 %v1004, %v1628
    %v1641 = vmul.f32 %v1011, %v1628
    %v1642 = vmul.f32 %v1018, %v1628
    %v1643 = vmul.f32 %v1025, %v1628
    %v1644 = vmul.f32 %v1032, %v1628
    %v1645 = vmul.f32 %v1463, %v1628
    %v1646 = vmul.f32 %v1470, %v1628
    %v1647 = vmul.f32 %v1477, %v1628
    %v1648 = vmul.f32 %v1484, %v1628
    %v1649 = vmul.f32 %v1491, %v1628
    %v1650 = vmul.f32 %v1498, %v1628
    %v1651 = vmul.f32 %v1505, %v1628
    %v1652 = vmul.f32 %v1512, %v1628
    %v1653 = vmul.f32 %v1519, %v1628
    %v1654 = vmul.f32 %v1526, %v1628
    %v1655 = vmul.f32 %v1533, %v1628
    %v1656 = vmul.f32 %v1540, %v1628
    %v1657 = vmul.f32 %v1039, %v1632
    %v1658 = vmul.f32 %v1046, %v1632
    %v1659 = vmul.f32 %v1053, %v1632
    %v1660 = vmul.f32 %v1060, %v1632
    %v1661 = vmul.f32 %v1067, %v1632
    %v1662 = vmul.f32 %v1074, %v1632
    %v1663 = vmul.f32 %v1081, %v1632
    %v1664 = vmul.f32 %v1088, %v1632
    %v1665 = vmul.f32 %v1095, %v1632
    %v1666 = vmul.f32 %v1102, %v1632
    %v1667 = vmul.f32 %v1109, %v1632
    %v1668 = vmul.f32 %v1116, %v1632
    %v1669 = vmul.f32 %v1547, %v1632
    %v1670 = vmul.f32 %v1554, %v1632
    %v1671 = vmul.f32 %v1561, %v1632
    %v1672 = vmul.f32 %v1568, %v1632
    %v1673 = vmul.f32 %v1575, %v1632
    %v1674 = vmul.f32 %v1582, %v1632
    %v1675 = vmul.f32 %v1589, %v1632
    %v1676 = vmul.f32 %v1596, %v1632
    %v1677 = vmul.f32 %v1603, %v1632
    %v1678 = vmul.f32 %v1610, %v1632
    %v1679 = vmul.f32 %v1617, %v1632
    %v1680 = vmul.f32 %v1624, %v1632
    %v1681 = vadd.f32 %v1409, %v1633
    %v1682 = vadd.f32 %v1410, %v1634
    %v1683 = vadd.f32 %v1411, %v1635
    %v1684 = vadd.f32 %v1412, %v1636
    %v1685 = vadd.f32 %v1413, %v1637
    %v1686 = vadd.f32 %v1414, %v1638
    %v1687 = vadd.f32 %v1415, %v1639
    %v1688 = vadd.f32 %v1416, %v1640
    %v1689 = vadd.f32 %v1417, %v1641
    %v1690 = vadd.f32 %v1418, %v1642
    %v1691 = vadd.f32 %v1419, %v1643
    %v1692 = vadd.f32 %v1420, %v1644
    %v1693 = vadd.f32 %v1421, %v1645
    %v1694 = vadd.f32 %v1422, %v1646
    %v1695 = vadd.f32 %v1423, %v1647
    %v1696 = vadd.f32 %v1424, %v1648
    %v1697 = vadd.f32 %v1425, %v1649
    %v1698 = vadd.f32 %v1426, %v1650
    %v1699 = vadd.f32 %v1427, %v1651
    %v1700 = vadd.f32 %v1428, %v1652
    %v1701 = vadd.f32 %v1429, %v1653
    %v1702 = vadd.f32 %v1430, %v1654
    %v1703 = vadd.f32 %v1431, %v1655
    %v1704 = vadd.f32 %v1432, %v1656
    %v1705 = vadd.f32 %v1433, %v1657
    %v1706 = vadd.f32 %v1434, %v1658
    %v1707 = vadd.f32 %v1435, %v1659
    %v1708 = vadd.f32 %v1436, %v1660
    %v1709 = vadd.f32 %v1437, %v1661
    %v1710 = vadd.f32 %v1438, %v1662
    %v1711 = vadd.f32 %v1439, %v1663
    %v1712 = vadd.f32 %v1440, %v1664
    %v1713 = vadd.f32 %v1441, %v1665
    %v1714 = vadd.f32 %v1442, %v1666
    %v1715 = vadd.f32 %v1443, %v1667
    %v1716 = vadd.f32 %v1444, %v1668
    %v1717 = vadd.f32 %v1445, %v1669
    %v1718 = vadd.f32 %v1446, %v1670
    %v1719 = vadd.f32 %v1447, %v1671
    %v1720 = vadd.f32 %v1448, %v1672
    %v1721 = vadd.f32 %v1449, %v1673
    %v1722 = vadd.f32 %v1450, %v1674
    %v1723 = vadd.f32 %v1451, %v1675
    %v1724 = vadd.f32 %v1452, %v1676
    %v1725 = vadd.f32 %v1453, %v1677
    %v1726 = vadd.f32 %v1454, %v1678
    %v1727 = vadd.f32 %v1455, %v1679
    %v1728 = vadd.f32 %v1456, %v1680
    %v1729 = vlaneseq
    %v1730 = vshrl.u32 %v1729, 7
    %v1731 = vsub.s32 4, %v1730
    %v1732 = vrot.slane %v216, %v1731
    %1734 = vbcast.lane.b32.xlu0 %v1732, 256
    %v1735 = vpop.permute.xlu0 %1734
    %v1736 = vlaneseq
    %v1737 = vshrl.u32 %v1736, 7
    %v1738 = vsub.s32 4, %v1737
    %v1739 = vrot.slane %v244, %v1738
    %1741 = vbcast.lane.b32.xlu0 %v1739, 256
    %v1742 = vpop.permute.xlu0 %1741
    %v1743 = vlaneseq
    %v1744 = vshrl.u32 %v1743, 7
    %v1745 = vsub.s32 7, %v1744
    %v1746 = vrot.slane %v265, %v1745
    %v1747 = vlaneseq
    %v1748 = vshrl.u32 %v1747, 7
    %v1749 = vsub.s32 7, %v1748
    %v1750 = vrot.slane %v267, %v1749
    %v1751 = vmul.f32 %v962, %v1746
    %v1752 = vmul.f32 %v969, %v1746
    %v1753 = vmul.f32 %v976, %v1746
    %v1754 = vmul.f32 %v983, %v1746
    %v1755 = vmul.f32 %v990, %v1746
    %v1756 = vmul.f32 %v997, %v1746
    %v1757 = vmul.f32 %v1004, %v1746
    %v1758 = vmul.f32 %v1011, %v1746
    %v1759 = vmul.f32 %v1018, %v1746
    %v1760 = vmul.f32 %v1025, %v1746
    %v1761 = vmul.f32 %v1032, %v1746
    %v1762 = vmul.f32 %v1227, %v1746
    %v1763 = vmul.f32 %v1470, %v1746
    %v1764 = vmul.f32 %v1477, %v1746
    %v1765 = vmul.f32 %v1484, %v1746
    %v1766 = vmul.f32 %v1491, %v1746
    %v1767 = vmul.f32 %v1498, %v1746
    %v1768 = vmul.f32 %v1505, %v1746
    %v1769 = vmul.f32 %v1512, %v1746
    %v1770 = vmul.f32 %v1519, %v1746
    %v1771 = vmul.f32 %v1526, %v1746
    %v1772 = vmul.f32 %v1533, %v1746
    %v1773 = vmul.f32 %v1540, %v1746
    %v1774 = vmul.f32 %v1735, %v1746
    %v1775 = vmul.f32 %v1046, %v1750
    %v1776 = vmul.f32 %v1053, %v1750
    %v1777 = vmul.f32 %v1060, %v1750
    %v1778 = vmul.f32 %v1067, %v1750
    %v1779 = vmul.f32 %v1074, %v1750
    %v1780 = vmul.f32 %v1081, %v1750
    %v1781 = vmul.f32 %v1088, %v1750
    %v1782 = vmul.f32 %v1095, %v1750
    %v1783 = vmul.f32 %v1102, %v1750
    %v1784 = vmul.f32 %v1109, %v1750
    %v1785 = vmul.f32 %v1116, %v1750
    %v1786 = vmul.f32 %v1234, %v1750
    %v1787 = vmul.f32 %v1554, %v1750
    %v1788 = vmul.f32 %v1561, %v1750
    %v1789 = vmul.f32 %v1568, %v1750
    %v1790 = vmul.f32 %v1575, %v1750
    %v1791 = vmul.f32 %v1582, %v1750
    %v1792 = vmul.f32 %v1589, %v1750
    %v1793 = vmul.f32 %v1596, %v1750
    %v1794 = vmul.f32 %v1603, %v1750
    %v1795 = vmul.f32 %v1610, %v1750
    %v1796 = vmul.f32 %v1617, %v1750
    %v1797 = vmul.f32 %v1624, %v1750
    %v1798 = vmul.f32 %v1742, %v1750
    %v1799 = vadd.f32 %v1681, %v1751
    %v1800 = vadd.f32 %v1682, %v1752
    %v1801 = vadd.f32 %v1683, %v1753
    %v1802 = vadd.f32 %v1684, %v1754
    %v1803 = vadd.f32 %v1685, %v1755
    %v1804 = vadd.f32 %v1686, %v1756
    %v1805 = vadd.f32 %v1687, %v1757
    %v1806 = vadd.f32 %v1688, %v1758
    %v1807 = vadd.f32 %v1689, %v1759
    %v1808 = vadd.f32 %v1690, %v1760
    %v1809 = vadd.f32 %v1691, %v1761
    %v1810 = vadd.f32 %v1692, %v1762
    %v1811 = vadd.f32 %v1693, %v1763
    %v1812 = vadd.f32 %v1694, %v1764
    %v1813 = vadd.f32 %v1695, %v1765
    %v1814 = vadd.f32 %v1696, %v1766
    %v1815 = vadd.f32 %v1697, %v1767
    %v1816 = vadd.f32 %v1698, %v1768
    %v1817 = vadd.f32 %v1699, %v1769
    %v1818 = vadd.f32 %v1700, %v1770
    %v1819 = vadd.f32 %v1701, %v1771
    %v1820 = vadd.f32 %v1702, %v1772
    %v1821 = vadd.f32 %v1703, %v1773
    %v1822 = vadd.f32 %v1704, %v1774
    %v1823 = vadd.f32 %v1705, %v1775
    %v1824 = vadd.f32 %v1706, %v1776
    %v1825 = vadd.f32 %v1707, %v1777
    %v1826 = vadd.f32 %v1708, %v1778
    %v1827 = vadd.f32 %v1709, %v1779
    %v1828 = vadd.f32 %v1710, %v1780
    %v1829 = vadd.f32 %v1711, %v1781
    %v1830 = vadd.f32 %v1712, %v1782
    %v1831 = vadd.f32 %v1713, %v1783
    %v1832 = vadd.f32 %v1714, %v1784
    %v1833 = vadd.f32 %v1715, %v1785
    %v1834 = vadd.f32 %v1716, %v1786
    %v1835 = vadd.f32 %v1717, %v1787
    %v1836 = vadd.f32 %v1718, %v1788
    %v1837 = vadd.f32 %v1719, %v1789
    %v1838 = vadd.f32 %v1720, %v1790
    %v1839 = vadd.f32 %v1721, %v1791
    %v1840 = vadd.f32 %v1722, %v1792
    %v1841 = vadd.f32 %v1723, %v1793
    %v1842 = vadd.f32 %v1724, %v1794
    %v1843 = vadd.f32 %v1725, %v1795
    %v1844 = vadd.f32 %v1726, %v1796
    %v1845 = vadd.f32 %v1727, %v1797
    %v1846 = vadd.f32 %v1728, %v1798
    %v1847 = vlaneseq
    %v1848 = vshrl.u32 %v1847, 7
    %v1849 = vsub.s32 5, %v1848
    %v1850 = vrot.slane %v216, %v1849
    %1852 = vbcast.lane.b32.xlu0 %v1850, 256
    %v1853 = vpop.permute.xlu0 %1852
    %v1854 = vlaneseq
    %v1855 = vshrl.u32 %v1854, 7
    %v1856 = vsub.s32 5, %v1855
    %v1857 = vrot.slane %v244, %v1856
    %1859 = vbcast.lane.b32.xlu0 %v1857, 256
    %v1860 = vpop.permute.xlu0 %1859
    %v1861 = vlaneseq
    %v1862 = vshrl.u32 %v1861, 7
    %v1863 = vsub.s32 0, %v1862
    %v1864 = vrot.slane %v266, %v1863
    %v1865 = vlaneseq
    %v1866 = vshrl.u32 %v1865, 7
    %v1867 = vsub.s32 0, %v1866
    %v1868 = vrot.slane %v268, %v1867
    %v1869 = vmul.f32 %v969, %v1864
    %v1870 = vmul.f32 %v976, %v1864
    %v1871 = vmul.f32 %v983, %v1864
    %v1872 = vmul.f32 %v990, %v1864
    %v1873 = vmul.f32 %v997, %v1864
    %v1874 = vmul.f32 %v1004, %v1864
    %v1875 = vmul.f32 %v1011, %v1864
    %v1876 = vmul.f32 %v1018, %v1864
    %v1877 = vmul.f32 %v1025, %v1864
    %v1878 = vmul.f32 %v1032, %v1864
    %v1879 = vmul.f32 %v1227, %v1864
    %v1880 = vmul.f32 %v1345, %v1864
    %v1881 = vmul.f32 %v1477, %v1864
    %v1882 = vmul.f32 %v1484, %v1864
    %v1883 = vmul.f32 %v1491, %v1864
    %v1884 = vmul.f32 %v1498, %v1864
    %v1885 = vmul.f32 %v1505, %v1864
    %v1886 = vmul.f32 %v1512, %v1864
    %v1887 = vmul.f32 %v1519, %v1864
    %v1888 = vmul.f32 %v1526, %v1864
    %v1889 = vmul.f32 %v1533, %v1864
    %v1890 = vmul.f32 %v1540, %v1864
    %v1891 = vmul.f32 %v1735, %v1864
    %v1892 = vmul.f32 %v1853, %v1864
    %v1893 = vmul.f32 %v1053, %v1868
    %v1894 = vmul.f32 %v1060, %v1868
    %v1895 = vmul.f32 %v1067, %v1868
    %v1896 = vmul.f32 %v1074, %v1868
    %v1897 = vmul.f32 %v1081, %v1868
    %v1898 = vmul.f32 %v1088, %v1868
    %v1899 = vmul.f32 %v1095, %v1868
    %v1900 = vmul.f32 %v1102, %v1868
    %v1901 = vmul.f32 %v1109, %v1868
    %v1902 = vmul.f32 %v1116, %v1868
    %v1903 = vmul.f32 %v1234, %v1868
    %v1904 = vmul.f32 %v1352, %v1868
    %v1905 = vmul.f32 %v1561, %v1868
    %v1906 = vmul.f32 %v1568, %v1868
    %v1907 = vmul.f32 %v1575, %v1868
    %v1908 = vmul.f32 %v1582, %v1868
    %v1909 = vmul.f32 %v1589, %v1868
    %v1910 = vmul.f32 %v1596, %v1868
    %v1911 = vmul.f32 %v1603, %v1868
    %v1912 = vmul.f32 %v1610, %v1868
    %v1913 = vmul.f32 %v1617, %v1868
    %v1914 = vmul.f32 %v1624, %v1868
    %v1915 = vmul.f32 %v1742, %v1868
    %v1916 = vmul.f32 %v1860, %v1868
    %v1917 = vadd.f32 %v1799, %v1869
    %v1918 = vadd.f32 %v1800, %v1870
    %v1919 = vadd.f32 %v1801, %v1871
    %v1920 = vadd.f32 %v1802, %v1872
    %v1921 = vadd.f32 %v1803, %v1873
    %v1922 = vadd.f32 %v1804, %v1874
    %v1923 = vadd.f32 %v1805, %v1875
    %v1924 = vadd.f32 %v1806, %v1876
    %v1925 = vadd.f32 %v1807, %v1877
    %v1926 = vadd.f32 %v1808, %v1878
    %v1927 = vadd.f32 %v1809, %v1879
    %v1928 = vadd.f32 %v1810, %v1880
    %v1929 = vadd.f32 %v1811, %v1881
    %v1930 = vadd.f32 %v1812, %v1882
    %v1931 = vadd.f32 %v1813, %v1883
    %v1932 = vadd.f32 %v1814, %v1884
    %v1933 = vadd.f32 %v1815, %v1885
    %v1934 = vadd.f32 %v1816, %v1886
    %v1935 = vadd.f32 %v1817, %v1887
    %v1936 = vadd.f32 %v1818, %v1888
    %v1937 = vadd.f32 %v1819, %v1889
    %v1938 = vadd.f32 %v1820, %v1890
    %v1939 = vadd.f32 %v1821, %v1891
    %v1940 = vadd.f32 %v1822, %v1892
    %v1941 = vadd.f32 %v1823, %v1893
    %v1942 = vadd.f32 %v1824, %v1894
    %v1943 = vadd.f32 %v1825, %v1895
    %v1944 = vadd.f32 %v1826, %v1896
    %v1945 = vadd.f32 %v1827, %v1897
    %v1946 = vadd.f32 %v1828, %v1898
    %v1947 = vadd.f32 %v1829, %v1899
    %v1948 = vadd.f32 %v1830, %v1900
    %v1949 = vadd.f32 %v1831, %v1901
    %v1950 = vadd.f32 %v1832, %v1902
    %v1951 = vadd.f32 %v1833, %v1903
    %v1952 = vadd.f32 %v1834, %v1904
    %v1953 = vadd.f32 %v1835, %v1905
    %v1954 = vadd.f32 %v1836, %v1906
    %v1955 = vadd.f32 %v1837, %v1907
    %v1956 = vadd.f32 %v1838, %v1908
    %v1957 = vadd.f32 %v1839, %v1909
    %v1958 = vadd.f32 %v1840, %v1910
    %v1959 = vadd.f32 %v1841, %v1911
    %v1960 = vadd.f32 %v1842, %v1912
    %v1961 = vadd.f32 %v1843, %v1913
    %v1962 = vadd.f32 %v1844, %v1914
    %v1963 = vadd.f32 %v1845, %v1915
    %v1964 = vadd.f32 %v1846, %v1916
    %v1965 = vlaneseq
    %v1966 = vshrl.u32 %v1965, 7
    %v1967 = vsub.s32 0, %v1966
    %v1968 = vrot.slane %v285, %v1967
    %v1969 = vlaneseq
    %v1970 = vshrl.u32 %v1969, 7
    %v1971 = vsub.s32 0, %v1970
    %v1972 = vrot.slane %v292, %v1971
    %v1975 = vadd.f32 %v1917, %v1968
    %v1976 = vadd.f32 %v1918, %v1968
    %v1977 = vadd.f32 %v1919, %v1968
    %v1978 = vadd.f32 %v1920, %v1968
    %v1979 = vadd.f32 %v1921, %v1968
    %v1980 = vadd.f32 %v1922, %v1968
    %v1981 = vadd.f32 %v1923, %v1968
    %v1982 = vadd.f32 %v1924, %v1968
    %v1983 = vadd.f32 %v1925, %v1968
    %v1984 = vadd.f32 %v1926, %v1968
    %v1985 = vadd.f32 %v1927, %v1968
    %v1986 = vadd.f32 %v1928, %v1968
    %v1987 = vadd.f32 %v1929, %v1968
    %v1988 = vadd.f32 %v1930, %v1968
    %v1989 = vadd.f32 %v1931, %v1968
    %v1990 = vadd.f32 %v1932, %v1968
    %v1991 = vadd.f32 %v1933, %v1968
    %v1992 = vadd.f32 %v1934, %v1968
    %v1993 = vadd.f32 %v1935, %v1968
    %v1994 = vadd.f32 %v1936, %v1968
    %v1995 = vadd.f32 %v1937, %v1968
    %v1996 = vadd.f32 %v1938, %v1968
    %v1997 = vadd.f32 %v1939, %v1968
    %v1998 = vadd.f32 %v1940, %v1968
    %v1999 = vadd.f32 %v1941, %v1972
    %v2000 = vadd.f32 %v1942, %v1972
    %v2001 = vadd.f32 %v1943, %v1972
    %v2002 = vadd.f32 %v1944, %v1972
    %v2003 = vadd.f32 %v1945, %v1972
    %v2004 = vadd.f32 %v1946, %v1972
    %v2005 = vadd.f32 %v1947, %v1972
    %v2006 = vadd.f32 %v1948, %v1972
    %v2007 = vadd.f32 %v1949, %v1972
    %v2008 = vadd.f32 %v1950, %v1972
    %v2009 = vadd.f32 %v1951, %v1972
    %v2010 = vadd.f32 %v1952, %v1972
    %v2011 = vadd.f32 %v1953, %v1972
    %v2012 = vadd.f32 %v1954, %v1972
    %v2013 = vadd.f32 %v1955, %v1972
    %v2014 = vadd.f32 %v1956, %v1972
    %v2015 = vadd.f32 %v1957, %v1972
    %v2016 = vadd.f32 %v1958, %v1972
    %v2017 = vadd.f32 %v1959, %v1972
    %v2018 = vadd.f32 %v1960, %v1972
    %v2019 = vadd.f32 %v1961, %v1972
    %v2020 = vadd.f32 %v1962, %v1972
    %v2021 = vadd.f32 %v1963, %v1972
    %v2022 = vadd.f32 %v1964, %v1972
    %v2023 = vmax.f32 %v1975, 0.0
    %v2024 = vmax.f32 %v1976, 0.0
    %v2025 = vmax.f32 %v1977, 0.0
    %v2026 = vmax.f32 %v1978, 0.0
    %v2027 = vmax.f32 %v1979, 0.0
    %v2028 = vmax.f32 %v1980, 0.0
    %v2029 = vmax.f32 %v1981, 0.0
    %v2030 = vmax.f32 %v1982, 0.0
    %v2031 = vmax.f32 %v1983, 0.0
    %v2032 = vmax.f32 %v1984, 0.0
    %v2033 = vmax.f32 %v1985, 0.0
    %v2034 = vmax.f32 %v1986, 0.0
    %v2035 = vmax.f32 %v1987, 0.0
    %v2036 = vmax.f32 %v1988, 0.0
    %v2037 = vmax.f32 %v1989, 0.0
    %v2038 = vmax.f32 %v1990, 0.0
    %v2039 = vmax.f32 %v1991, 0.0
    %v2040 = vmax.f32 %v1992, 0.0
    %v2041 = vmax.f32 %v1993, 0.0
    %v2042 = vmax.f32 %v1994, 0.0
    %v2043 = vmax.f32 %v1995, 0.0
    %v2044 = vmax.f32 %v1996, 0.0
    %v2045 = vmax.f32 %v1997, 0.0
    %v2046 = vmax.f32 %v1998, 0.0
    %v2047 = vmax.f32 %v1999, 0.0
    %v2048 = vmax.f32 %v2000, 0.0
    %v2049 = vmax.f32 %v2001, 0.0
    %v2050 = vmax.f32 %v2002, 0.0
    %v2051 = vmax.f32 %v2003, 0.0
    %v2052 = vmax.f32 %v2004, 0.0
    %v2053 = vmax.f32 %v2005, 0.0
    %v2054 = vmax.f32 %v2006, 0.0
    %v2055 = vmax.f32 %v2007, 0.0
    %v2056 = vmax.f32 %v2008, 0.0
    %v2057 = vmax.f32 %v2009, 0.0
    %v2058 = vmax.f32 %v2010, 0.0
    %v2059 = vmax.f32 %v2011, 0.0
    %v2060 = vmax.f32 %v2012, 0.0
    %v2061 = vmax.f32 %v2013, 0.0
    %v2062 = vmax.f32 %v2014, 0.0
    %v2063 = vmax.f32 %v2015, 0.0
    %v2064 = vmax.f32 %v2016, 0.0
    %v2065 = vmax.f32 %v2017, 0.0
    %v2066 = vmax.f32 %v2018, 0.0
    %v2067 = vmax.f32 %v2019, 0.0
    %v2068 = vmax.f32 %v2020, 0.0
    %v2069 = vmax.f32 %v2021, 0.0
    %v2070 = vmax.f32 %v2022, 0.0
    %v2071 = vmax.f32 %v2023, %v2035
    %v2072 = vmax.f32 %v2024, %v2036
    %v2073 = vmax.f32 %v2025, %v2037
    %v2074 = vmax.f32 %v2026, %v2038
    %v2075 = vmax.f32 %v2027, %v2039
    %v2076 = vmax.f32 %v2028, %v2040
    %v2077 = vmax.f32 %v2029, %v2041
    %v2078 = vmax.f32 %v2030, %v2042
    %v2079 = vmax.f32 %v2031, %v2043
    %v2080 = vmax.f32 %v2032, %v2044
    %v2081 = vmax.f32 %v2033, %v2045
    %v2082 = vmax.f32 %v2034, %v2046
    %v2083 = vmax.f32 %v2047, %v2059
    %v2084 = vmax.f32 %v2048, %v2060
    %v2085 = vmax.f32 %v2049, %v2061
    %v2086 = vmax.f32 %v2050, %v2062
    %v2087 = vmax.f32 %v2051, %v2063
    %v2088 = vmax.f32 %v2052, %v2064
    %v2089 = vmax.f32 %v2053, %v2065
    %v2090 = vmax.f32 %v2054, %v2066
    %v2091 = vmax.f32 %v2055, %v2067
    %v2092 = vmax.f32 %v2056, %v2068
    %v2093 = vmax.f32 %v2057, %v2069
    %v2094 = vmax.f32 %v2058, %v2070
    %v2095 = vmax.f32 %v2071, %v2072
    %v2096 = vmax.f32 %v2073, %v2074
    %v2097 = vmax.f32 %v2075, %v2076
    %v2098 = vmax.f32 %v2077, %v2078
    %v2099 = vmax.f32 %v2079, %v2080
    %v2100 = vmax.f32 %v2081, %v2082
    %v2101 = vmax.f32 %v2083, %v2084
    %v2102 = vmax.f32 %v2085, %v2086
    %v2103 = vmax.f32 %v2087, %v2088
    %v2104 = vmax.f32 %v2089, %v2090
    %v2105 = vmax.f32 %v2091, %v2092
    %v2106 = vmax.f32 %v2093, %v2094
    %v2107 = vmul.f32 %v955, %v632
    %v2108 = vmul.f32 %v962, %v632
    %v2109 = vmul.f32 %v969, %v632
    %v2110 = vmul.f32 %v976, %v632
    %v2111 = vmul.f32 %v983, %v632
    %v2112 = vmul.f32 %v990, %v632
    %v2113 = vmul.f32 %v997, %v632
    %v2114 = vmul.f32 %v1004, %v632
    %v2115 = vmul.f32 %v1011, %v632
    %v2116 = vmul.f32 %v1018, %v632
    %v2117 = vmul.f32 %v1025, %v632
    %v2118 = vmul.f32 %v1032, %v632
    %v2119 = vmul.f32 %v1463, %v632
    %v2120 = vmul.f32 %v1470, %v632
    %v2121 = vmul.f32 %v1477, %v632
    %v2122 = vmul.f32 %v1484, %v632
    %v2123 = vmul.f32 %v1491, %v632
    %v2124 = vmul.f32 %v1498, %v632
    %v2125 = vmul.f32 %v1505, %v632
    %v2126 = vmul.f32 %v1512, %v632
    %v2127 = vmul.f32 %v1519, %v632
    %v2128 = vmul.f32 %v1526, %v632
    %v2129 = vmul.f32 %v1533, %v632
    %v2130 = vmul.f32 %v1540, %v632
    %v2131 = vmul.f32 %v1039, %v636
    %v2132 = vmul.f32 %v1046, %v636
    %v2133 = vmul.f32 %v1053, %v636
    %v2134 = vmul.f32 %v1060, %v636
    %v2135 = vmul.f32 %v1067, %v636
    %v2136 = vmul.f32 %v1074, %v636
    %v2137 = vmul.f32 %v1081, %v636
    %v2138 = vmul.f32 %v1088, %v636
    %v2139 = vmul.f32 %v1095, %v636
    %v2140 = vmul.f32 %v1102, %v636
    %v2141 = vmul.f32 %v1109, %v636
    %v2142 = vmul.f32 %v1116, %v636
    %v2143 = vmul.f32 %v1547, %v636
    %v2144 = vmul.f32 %v1554, %v636
    %v2145 = vmul.f32 %v1561, %v636
    %v2146 = vmul.f32 %v1568, %v636
    %v2147 = vmul.f32 %v1575, %v636
    %v2148 = vmul.f32 %v1582, %v636
    %v2149 = vmul.f32 %v1589, %v636
    %v2150 = vmul.f32 %v1596, %v636
    %v2151 = vmul.f32 %v1603, %v636
    %v2152 = vmul.f32 %v1610, %v636
    %v2153 = vmul.f32 %v1617, %v636
    %v2154 = vmul.f32 %v1624, %v636
    %v2155 = vmul.f32 %v962, %v716
    %v2156 = vmul.f32 %v969, %v716
    %v2157 = vmul.f32 %v976, %v716
    %v2158 = vmul.f32 %v983, %v716
    %v2159 = vmul.f32 %v990, %v716
    %v2160 = vmul.f32 %v997, %v716
    %v2161 = vmul.f32 %v1004, %v716
    %v2162 = vmul.f32 %v1011, %v716
    %v2163 = vmul.f32 %v1018, %v716
    %v2164 = vmul.f32 %v1025, %v716
    %v2165 = vmul.f32 %v1032, %v716
    %v2166 = vmul.f32 %v1227, %v716
    %v2167 = vmul.f32 %v1470, %v716
    %v2168 = vmul.f32 %v1477, %v716
    %v2169 = vmul.f32 %v1484, %v716
    %v2170 = vmul.f32 %v1491, %v716
    %v2171 = vmul.f32 %v1498, %v716
    %v2172 = vmul.f32 %v1505, %v716
    %v2173 = vmul.f32 %v1512, %v716
    %v2174 = vmul.f32 %v1519, %v716
    %v2175 = vmul.f32 %v1526, %v716
    %v2176 = vmul.f32 %v1533, %v716
    %v2177 = vmul.f32 %v1540, %v716
    %v2178 = vmul.f32 %v1735, %v716
    %v2179 = vmul.f32 %v1046, %v720
    %v2180 = vmul.f32 %v1053, %v720
    %v2181 = vmul.f32 %v1060, %v720
    %v2182 = vmul.f32 %v1067, %v720
    %v2183 = vmul.f32 %v1074, %v720
    %v2184 = vmul.f32 %v1081, %v720
    %v2185 = vmul.f32 %v1088, %v720
    %v2186 = vmul.f32 %v1095, %v720
    %v2187 = vmul.f32 %v1102, %v720
    %v2188 = vmul.f32 %v1109, %v720
    %v2189 = vmul.f32 %v1116, %v720
    %v2190 = vmul.f32 %v1234, %v720
    %v2191 = vmul.f32 %v1554, %v720
    %v2192 = vmul.f32 %v1561, %v720
    %v2193 = vmul.f32 %v1568, %v720
    %v2194 = vmul.f32 %v1575, %v720
    %v2195 = vmul.f32 %v1582, %v720
    %v2196 = vmul.f32 %v1589, %v720
    %v2197 = vmul.f32 %v1596, %v720
    %v2198 = vmul.f32 %v1603, %v720
    %v2199 = vmul.f32 %v1610, %v720
    %v2200 = vmul.f32 %v1617, %v720
    %v2201 = vmul.f32 %v1624, %v720
    %v2202 = vmul.f32 %v1742, %v720
    %v2203 = vadd.f32 %v2107, %v2155
    %v2204 = vadd.f32 %v2108, %v2156
    %v2205 = vadd.f32 %v2109, %v2157
    %v2206 = vadd.f32 %v2110, %v2158
    %v2207 = vadd.f32 %v2111, %v2159
    %v2208 = vadd.f32 %v2112, %v2160
    %v2209 = vadd.f32 %v2113, %v2161
    %v2210 = vadd.f32 %v2114, %v2162
    %v2211 = vadd.f32 %v2115, %v2163
    %v2212 = vadd.f32 %v2116, %v2164
    %v2213 = vadd.f32 %v2117, %v2165
    %v2214 = vadd.f32 %v2118, %v2166
    %v2215 = vadd.f32 %v2119, %v2167
    %v2216 = vadd.f32 %v2120, %v2168
    %v2217 = vadd.f32 %v2121, %v2169
    %v2218 = vadd.f32 %v2122, %v2170
    %v2219 = vadd.f32 %v2123, %v2171
    %v2220 = vadd.f32 %v2124, %v2172
    %v2221 = vadd.f32 %v2125, %v2173
    %v2222 = vadd.f32 %v2126, %v2174
    %v2223 = vadd.f32 %v2127, %v2175
    %v2224 = vadd.f32 %v2128, %v2176
    %v2225 = vadd.f32 %v2129, %v2177
    %v2226 = vadd.f32 %v2130, %v2178
    %v2227 = vadd.f32 %v2131, %v2179
    %v2228 = vadd.f32 %v2132, %v2180
    %v2229 = vadd.f32 %v2133, %v2181
    %v2230 = vadd.f32 %v2134, %v2182
    %v2231 = vadd.f32 %v2135, %v2183
    %v2232 = vadd.f32 %v2136, %v2184
    %v2233 = vadd.f32 %v2137, %v2185
    %v2234 = vadd.f32 %v2138, %v2186
    %v2235 = vadd.f32 %v2139, %v2187
    %v2236 = vadd.f32 %v2140, %v2188
    %v2237 = vadd.f32 %v2141, %v2189
    %v2238 = vadd.f32 %v2142, %v2190
    %v2239 = vadd.f32 %v2143, %v2191
    %v2240 = vadd.f32 %v2144, %v2192
    %v2241 = vadd.f32 %v2145, %v2193
    %v2242 = vadd.f32 %v2146, %v2194
    %v2243 = vadd.f32 %v2147, %v2195
    %v2244 = vadd.f32 %v2148, %v2196
    %v2245 = vadd.f32 %v2149, %v2197
    %v2246 = vadd.f32 %v2150, %v2198
    %v2247 = vadd.f32 %v2151, %v2199
    %v2248 = vadd.f32 %v2152, %v2200
    %v2249 = vadd.f32 %v2153, %v2201
    %v2250 = vadd.f32 %v2154, %v2202
    %v2251 = vmul.f32 %v969, %v848
    %v2252 = vmul.f32 %v976, %v848
    %v2253 = vmul.f32 %v983, %v848
    %v2254 = vmul.f32 %v990, %v848
    %v2255 = vmul.f32 %v997, %v848
    %v2256 = vmul.f32 %v1004, %v848
    %v2257 = vmul.f32 %v1011, %v848
    %v2258 = vmul.f32 %v1018, %v848
    %v2259 = vmul.f32 %v1025, %v848
    %v2260 = vmul.f32 %v1032, %v848
    %v2261 = vmul.f32 %v1227, %v848
    %v2262 = vmul.f32 %v1345, %v848
    %v2263 = vmul.f32 %v1477, %v848
    %v2264 = vmul.f32 %v1484, %v848
    %v2265 = vmul.f32 %v1491, %v848
    %v2266 = vmul.f32 %v1498, %v848
    %v2267 = vmul.f32 %v1505, %v848
    %v2268 = vmul.f32 %v1512, %v848
    %v2269 = vmul.f32 %v1519, %v848
    %v2270 = vmul.f32 %v1526, %v848
    %v2271 = vmul.f32 %v1533, %v848
    %v2272 = vmul.f32 %v1540, %v848
    %v2273 = vmul.f32 %v1735, %v848
    %v2274 = vmul.f32 %v1853, %v848
    %v2275 = vmul.f32 %v1053, %v852
    %v2276 = vmul.f32 %v1060, %v852
    %v2277 = vmul.f32 %v1067, %v852
    %v2278 = vmul.f32 %v1074, %v852
    %v2279 = vmul.f32 %v1081, %v852
    %v2280 = vmul.f32 %v1088, %v852
    %v2281 = vmul.f32 %v1095, %v852
    %v2282 = vmul.f32 %v1102, %v852
    %v2283 = vmul.f32 %v1109, %v852
    %v2284 = vmul.f32 %v1116, %v852
    %v2285 = vmul.f32 %v1234, %v852
    %v2286 = vmul.f32 %v1352, %v852
    %v2287 = vmul.f32 %v1561, %v852
    %v2288 = vmul.f32 %v1568, %v852
    %v2289 = vmul.f32 %v1575, %v852
    %v2290 = vmul.f32 %v1582, %v852
    %v2291 = vmul.f32 %v1589, %v852
    %v2292 = vmul.f32 %v1596, %v852
    %v2293 = vmul.f32 %v1603, %v852
    %v2294 = vmul.f32 %v1610, %v852
    %v2295 = vmul.f32 %v1617, %v852
    %v2296 = vmul.f32 %v1624, %v852
    %v2297 = vmul.f32 %v1742, %v852
    %v2298 = vmul.f32 %v1860, %v852
    %v2299 = vadd.f32 %v2203, %v2251
    %v2300 = vadd.f32 %v2204, %v2252
    %v2301 = vadd.f32 %v2205, %v2253
    %v2302 = vadd.f32 %v2206, %v2254
    %v2303 = vadd.f32 %v2207, %v2255
    %v2304 = vadd.f32 %v2208, %v2256
    %v2305 = vadd.f32 %v2209, %v2257
    %v2306 = vadd.f32 %v2210, %v2258
    %v2307 = vadd.f32 %v2211, %v2259
    %v2308 = vadd.f32 %v2212, %v2260
    %v2309 = vadd.f32 %v2213, %v2261
    %v2310 = vadd.f32 %v2214, %v2262
    %v2311 = vadd.f32 %v2215, %v2263
    %v2312 = vadd.f32 %v2216, %v2264
    %v2313 = vadd.f32 %v2217, %v2265
    %v2314 = vadd.f32 %v2218, %v2266
    %v2315 = vadd.f32 %v2219, %v2267
    %v2316 = vadd.f32 %v2220, %v2268
    %v2317 = vadd.f32 %v2221, %v2269
    %v2318 = vadd.f32 %v2222, %v2270
    %v2319 = vadd.f32 %v2223, %v2271
    %v2320 = vadd.f32 %v2224, %v2272
    %v2321 = vadd.f32 %v2225, %v2273
    %v2322 = vadd.f32 %v2226, %v2274
    %v2323 = vadd.f32 %v2227, %v2275
    %v2324 = vadd.f32 %v2228, %v2276
    %v2325 = vadd.f32 %v2229, %v2277
    %v2326 = vadd.f32 %v2230, %v2278
    %v2327 = vadd.f32 %v2231, %v2279
    %v2328 = vadd.f32 %v2232, %v2280
    %v2329 = vadd.f32 %v2233, %v2281
    %v2330 = vadd.f32 %v2234, %v2282
    %v2331 = vadd.f32 %v2235, %v2283
    %v2332 = vadd.f32 %v2236, %v2284
    %v2333 = vadd.f32 %v2237, %v2285
    %v2334 = vadd.f32 %v2238, %v2286
    %v2335 = vadd.f32 %v2239, %v2287
    %v2336 = vadd.f32 %v2240, %v2288
    %v2337 = vadd.f32 %v2241, %v2289
    %v2338 = vadd.f32 %v2242, %v2290
    %v2339 = vadd.f32 %v2243, %v2291
    %v2340 = vadd.f32 %v2244, %v2292
    %v2341 = vadd.f32 %v2245, %v2293
    %v2342 = vadd.f32 %v2246, %v2294
    %v2343 = vadd.f32 %v2247, %v2295
    %v2344 = vadd.f32 %v2248, %v2296
    %v2345 = vadd.f32 %v2249, %v2297
    %v2346 = vadd.f32 %v2250, %v2298
    %v2347 = vlaneseq
    %v2348 = vshrl.u32 %v2347, 7
    %v2349 = vsub.s32 0, %v2348
    %v2350 = vrot.slane %v217, %v2349
    %2352 = vbcast.lane.b32.xlu0 %v2350, 256
    %v2353 = vpop.permute.xlu0 %2352
    %v2354 = vlaneseq
    %v2355 = vshrl.u32 %v2354, 7
    %v2356 = vsub.s32 1, %v2355
    %v2357 = vrot.slane %v217, %v2356
    %2359 = vbcast.lane.b32.xlu0 %v2357, 256
    %v2360 = vpop.permute.xlu0 %2359
    %v2361 = vlaneseq
    %v2362 = vshrl.u32 %v2361, 7
    %v2363 = vsub.s32 2, %v2362
    %v2364 = vrot.slane %v217, %v2363
    %2366 = vbcast.lane.b32.xlu0 %v2364, 256
    %v2367 = vpop.permute.xlu0 %2366
    %v2368 = vlaneseq
    %v2369 = vshrl.u32 %v2368, 7
    %v2370 = vsub.s32 3, %v2369
    %v2371 = vrot.slane %v217, %v2370
    %2373 = vbcast.lane.b32.xlu0 %v2371, 256
    %v2374 = vpop.permute.xlu0 %2373
    %v2375 = vlaneseq
    %v2376 = vshrl.u32 %v2375, 7
    %v2377 = vsub.s32 4, %v2376
    %v2378 = vrot.slane %v217, %v2377
    %2380 = vbcast.lane.b32.xlu0 %v2378, 256
    %v2381 = vpop.permute.xlu0 %2380
    %v2382 = vlaneseq
    %v2383 = vshrl.u32 %v2382, 7
    %v2384 = vsub.s32 5, %v2383
    %v2385 = vrot.slane %v217, %v2384
    %2387 = vbcast.lane.b32.xlu0 %v2385, 256
    %v2388 = vpop.permute.xlu0 %2387
    %v2389 = vlaneseq
    %v2390 = vshrl.u32 %v2389, 7
    %v2391 = vsub.s32 6, %v2390
    %v2392 = vrot.slane %v217, %v2391
    %2394 = vbcast.lane.b32.xlu0 %v2392, 256
    %v2395 = vpop.permute.xlu0 %2394
    %v2396 = vlaneseq
    %v2397 = vshrl.u32 %v2396, 7
    %v2398 = vsub.s32 7, %v2397
    %v2399 = vrot.slane %v217, %v2398
    %2401 = vbcast.lane.b32.xlu0 %v2399, 256
    %v2402 = vpop.permute.xlu0 %2401
    %v2403 = vlaneseq
    %v2404 = vshrl.u32 %v2403, 7
    %v2405 = vsub.s32 0, %v2404
    %v2406 = vrot.slane %v218, %v2405
    %2408 = vbcast.lane.b32.xlu0 %v2406, 256
    %v2409 = vpop.permute.xlu0 %2408
    %v2410 = vlaneseq
    %v2411 = vshrl.u32 %v2410, 7
    %v2412 = vsub.s32 1, %v2411
    %v2413 = vrot.slane %v218, %v2412
    %2415 = vbcast.lane.b32.xlu0 %v2413, 256
    %v2416 = vpop.permute.xlu0 %2415
    %v2417 = vlaneseq
    %v2418 = vshrl.u32 %v2417, 7
    %v2419 = vsub.s32 2, %v2418
    %v2420 = vrot.slane %v218, %v2419
    %2422 = vbcast.lane.b32.xlu0 %v2420, 256
    %v2423 = vpop.permute.xlu0 %2422
    %v2424 = vlaneseq
    %v2425 = vshrl.u32 %v2424, 7
    %v2426 = vsub.s32 3, %v2425
    %v2427 = vrot.slane %v218, %v2426
    %2429 = vbcast.lane.b32.xlu0 %v2427, 256
    %v2430 = vpop.permute.xlu0 %2429
    %v2431 = vlaneseq
    %v2432 = vshrl.u32 %v2431, 7
    %v2433 = vsub.s32 0, %v2432
    %v2434 = vrot.slane %v245, %v2433
    %2436 = vbcast.lane.b32.xlu0 %v2434, 256
    %v2437 = vpop.permute.xlu0 %2436
    %v2438 = vlaneseq
    %v2439 = vshrl.u32 %v2438, 7
    %v2440 = vsub.s32 1, %v2439
    %v2441 = vrot.slane %v245, %v2440
    %2443 = vbcast.lane.b32.xlu0 %v2441, 256
    %v2444 = vpop.permute.xlu0 %2443
    %v2445 = vlaneseq
    %v2446 = vshrl.u32 %v2445, 7
    %v2447 = vsub.s32 2, %v2446
    %v2448 = vrot.slane %v245, %v2447
    %2450 = vbcast.lane.b32.xlu0 %v2448, 256
    %v2451 = vpop.permute.xlu0 %2450
    %v2452 = vlaneseq
    %v2453 = vshrl.u32 %v2452, 7
    %v2454 = vsub.s32 3, %v2453
    %v2455 = vrot.slane %v245, %v2454
    %2457 = vbcast.lane.b32.xlu0 %v2455, 256
    %v2458 = vpop.permute.xlu0 %2457
    %v2459 = vlaneseq
    %v2460 = vshrl.u32 %v2459, 7
    %v2461 = vsub.s32 4, %v2460
    %v2462 = vrot.slane %v245, %v2461
    %2464 = vbcast.lane.b32.xlu0 %v2462, 256
    %v2465 = vpop.permute.xlu0 %2464
    %v2466 = vlaneseq
    %v2467 = vshrl.u32 %v2466, 7
    %v2468 = vsub.s32 5, %v2467
    %v2469 = vrot.slane %v245, %v2468
    %2471 = vbcast.lane.b32.xlu0 %v2469, 256
    %v2472 = vpop.permute.xlu0 %2471
    %v2473 = vlaneseq
    %v2474 = vshrl.u32 %v2473, 7
    %v2475 = vsub.s32 6, %v2474
    %v2476 = vrot.slane %v245, %v2475
    %2478 = vbcast.lane.b32.xlu0 %v2476, 256
    %v2479 = vpop.permute.xlu0 %2478
    %v2480 = vlaneseq
    %v2481 = vshrl.u32 %v2480, 7
    %v2482 = vsub.s32 7, %v2481
    %v2483 = vrot.slane %v245, %v2482
    %2485 = vbcast.lane.b32.xlu0 %v2483, 256
    %v2486 = vpop.permute.xlu0 %2485
    %v2487 = vlaneseq
    %v2488 = vshrl.u32 %v2487, 7
    %v2489 = vsub.s32 0, %v2488
    %v2490 = vrot.slane %v246, %v2489
    %2492 = vbcast.lane.b32.xlu0 %v2490, 256
    %v2493 = vpop.permute.xlu0 %2492
    %v2494 = vlaneseq
    %v2495 = vshrl.u32 %v2494, 7
    %v2496 = vsub.s32 1, %v2495
    %v2497 = vrot.slane %v246, %v2496
    %2499 = vbcast.lane.b32.xlu0 %v2497, 256
    %v2500 = vpop.permute.xlu0 %2499
    %v2501 = vlaneseq
    %v2502 = vshrl.u32 %v2501, 7
    %v2503 = vsub.s32 2, %v2502
    %v2504 = vrot.slane %v246, %v2503
    %2506 = vbcast.lane.b32.xlu0 %v2504, 256
    %v2507 = vpop.permute.xlu0 %2506
    %v2508 = vlaneseq
    %v2509 = vshrl.u32 %v2508, 7
    %v2510 = vsub.s32 3, %v2509
    %v2511 = vrot.slane %v246, %v2510
    %2513 = vbcast.lane.b32.xlu0 %v2511, 256
    %v2514 = vpop.permute.xlu0 %2513
    %v2515 = vmul.f32 %v1463, %v1120
    %v2516 = vmul.f32 %v1470, %v1120
    %v2517 = vmul.f32 %v1477, %v1120
    %v2518 = vmul.f32 %v1484, %v1120
    %v2519 = vmul.f32 %v1491, %v1120
    %v2520 = vmul.f32 %v1498, %v1120
    %v2521 = vmul.f32 %v1505, %v1120
    %v2522 = vmul.f32 %v1512, %v1120
    %v2523 = vmul.f32 %v1519, %v1120
    %v2524 = vmul.f32 %v1526, %v1120
    %v2525 = vmul.f32 %v1533, %v1120
    %v2526 = vmul.f32 %v1540, %v1120
    %v2527 = vmul.f32 %v2353, %v1120
    %v2528 = vmul.f32 %v2360, %v1120
    %v2529 = vmul.f32 %v2367, %v1120
    %v2530 = vmul.f32 %v2374, %v1120
    %v2531 = vmul.f32 %v2381, %v1120
    %v2532 = vmul.f32 %v2388, %v1120
    %v2533 = vmul.f32 %v2395, %v1120
    %v2534 = vmul.f32 %v2402, %v1120
    %v2535 = vmul.f32 %v2409, %v1120
    %v2536 = vmul.f32 %v2416, %v1120
    %v2537 = vmul.f32 %v2423, %v1120
    %v2538 = vmul.f32 %v2430, %v1120
    %v2539 = vmul.f32 %v1547, %v1124
    %v2540 = vmul.f32 %v1554, %v1124
    %v2541 = vmul.f32 %v1561, %v1124
    %v2542 = vmul.f32 %v1568, %v1124
    %v2543 = vmul.f32 %v1575, %v1124
    %v2544 = vmul.f32 %v1582, %v1124
    %v2545 = vmul.f32 %v1589, %v1124
    %v2546 = vmul.f32 %v1596, %v1124
    %v2547 = vmul.f32 %v1603, %v1124
    %v2548 = vmul.f32 %v1610, %v1124
    %v2549 = vmul.f32 %v1617, %v1124
    %v2550 = vmul.f32 %v1624, %v1124
    %v2551 = vmul.f32 %v2437, %v1124
    %v2552 = vmul.f32 %v2444, %v1124
    %v2553 = vmul.f32 %v2451, %v1124
    %v2554 = vmul.f32 %v2458, %v1124
    %v2555 = vmul.f32 %v2465, %v1124
    %v2556 = vmul.f32 %v2472, %v1124
    %v2557 = vmul.f32 %v2479, %v1124
    %v2558 = vmul.f32 %v2486, %v1124
    %v2559 = vmul.f32 %v2493, %v1124
    %v2560 = vmul.f32 %v2500, %v1124
    %v2561 = vmul.f32 %v2507, %v1124
    %v2562 = vmul.f32 %v2514, %v1124
    %v2563 = vadd.f32 %v2299, %v2515
    %v2564 = vadd.f32 %v2300, %v2516
    %v2565 = vadd.f32 %v2301, %v2517
    %v2566 = vadd.f32 %v2302, %v2518
    %v2567 = vadd.f32 %v2303, %v2519
    %v2568 = vadd.f32 %v2304, %v2520
    %v2569 = vadd.f32 %v2305, %v2521
    %v2570 = vadd.f32 %v2306, %v2522
    %v2571 = vadd.f32 %v2307, %v2523
    %v2572 = vadd.f32 %v2308, %v2524
    %v2573 = vadd.f32 %v2309, %v2525
    %v2574 = vadd.f32 %v2310, %v2526
    %v2575 = vadd.f32 %v2311, %v2527
    %v2576 = vadd.f32 %v2312, %v2528
    %v2577 = vadd.f32 %v2313, %v2529
    %v2578 = vadd.f32 %v2314, %v2530
    %v2579 = vadd.f32 %v2315, %v2531
    %v2580 = vadd.f32 %v2316, %v2532
    %v2581 = vadd.f32 %v2317, %v2533
    %v2582 = vadd.f32 %v2318, %v2534
    %v2583 = vadd.f32 %v2319, %v2535
    %v2584 = vadd.f32 %v2320, %v2536
    %v2585 = vadd.f32 %v2321, %v2537
    %v2586 = vadd.f32 %v2322, %v2538
    %v2587 = vadd.f32 %v2323, %v2539
    %v2588 = vadd.f32 %v2324, %v2540
    %v2589 = vadd.f32 %v2325, %v2541
    %v2590 = vadd.f32 %v2326, %v2542
    %v2591 = vadd.f32 %v2327, %v2543
    %v2592 = vadd.f32 %v2328, %v2544
    %v2593 = vadd.f32 %v2329, %v2545
    %v2594 = vadd.f32 %v2330, %v2546
    %v2595 = vadd.f32 %v2331, %v2547
    %v2596 = vadd.f32 %v2332, %v2548
    %v2597 = vadd.f32 %v2333, %v2549
    %v2598 = vadd.f32 %v2334, %v2550
    %v2599 = vadd.f32 %v2335, %v2551
    %v2600 = vadd.f32 %v2336, %v2552
    %v2601 = vadd.f32 %v2337, %v2553
    %v2602 = vadd.f32 %v2338, %v2554
    %v2603 = vadd.f32 %v2339, %v2555
    %v2604 = vadd.f32 %v2340, %v2556
    %v2605 = vadd.f32 %v2341, %v2557
    %v2606 = vadd.f32 %v2342, %v2558
    %v2607 = vadd.f32 %v2343, %v2559
    %v2608 = vadd.f32 %v2344, %v2560
    %v2609 = vadd.f32 %v2345, %v2561
    %v2610 = vadd.f32 %v2346, %v2562
    %v2611 = vlaneseq
    %v2612 = vshrl.u32 %v2611, 7
    %v2613 = vsub.s32 4, %v2612
    %v2614 = vrot.slane %v218, %v2613
    %2616 = vbcast.lane.b32.xlu0 %v2614, 256
    %v2617 = vpop.permute.xlu0 %2616
    %v2618 = vlaneseq
    %v2619 = vshrl.u32 %v2618, 7
    %v2620 = vsub.s32 4, %v2619
    %v2621 = vrot.slane %v246, %v2620
    %2623 = vbcast.lane.b32.xlu0 %v2621, 256
    %v2624 = vpop.permute.xlu0 %2623
    %v2625 = vmul.f32 %v1470, %v1238
    %v2626 = vmul.f32 %v1477, %v1238
    %v2627 = vmul.f32 %v1484, %v1238
    %v2628 = vmul.f32 %v1491, %v1238
    %v2629 = vmul.f32 %v1498, %v1238
    %v2630 = vmul.f32 %v1505, %v1238
    %v2631 = vmul.f32 %v1512, %v1238
    %v2632 = vmul.f32 %v1519, %v1238
    %v2633 = vmul.f32 %v1526, %v1238
    %v2634 = vmul.f32 %v1533, %v1238
    %v2635 = vmul.f32 %v1540, %v1238
    %v2636 = vmul.f32 %v1735, %v1238
    %v2637 = vmul.f32 %v2360, %v1238
    %v2638 = vmul.f32 %v2367, %v1238
    %v2639 = vmul.f32 %v2374, %v1238
    %v2640 = vmul.f32 %v2381, %v1238
    %v2641 = vmul.f32 %v2388, %v1238
    %v2642 = vmul.f32 %v2395, %v1238
    %v2643 = vmul.f32 %v2402, %v1238
    %v2644 = vmul.f32 %v2409, %v1238
    %v2645 = vmul.f32 %v2416, %v1238
    %v2646 = vmul.f32 %v2423, %v1238
    %v2647 = vmul.f32 %v2430, %v1238
    %v2648 = vmul.f32 %v2617, %v1238
    %v2649 = vmul.f32 %v1554, %v1242
    %v2650 = vmul.f32 %v1561, %v1242
    %v2651 = vmul.f32 %v1568, %v1242
    %v2652 = vmul.f32 %v1575, %v1242
    %v2653 = vmul.f32 %v1582, %v1242
    %v2654 = vmul.f32 %v1589, %v1242
    %v2655 = vmul.f32 %v1596, %v1242
    %v2656 = vmul.f32 %v1603, %v1242
    %v2657 = vmul.f32 %v1610, %v1242
    %v2658 = vmul.f32 %v1617, %v1242
    %v2659 = vmul.f32 %v1624, %v1242
    %v2660 = vmul.f32 %v1742, %v1242
    %v2661 = vmul.f32 %v2444, %v1242
    %v2662 = vmul.f32 %v2451, %v1242
    %v2663 = vmul.f32 %v2458, %v1242
    %v2664 = vmul.f32 %v2465, %v1242
    %v2665 = vmul.f32 %v2472, %v1242
    %v2666 = vmul.f32 %v2479, %v1242
    %v2667 = vmul.f32 %v2486, %v1242
    %v2668 = vmul.f32 %v2493, %v1242
    %v2669 = vmul.f32 %v2500, %v1242
    %v2670 = vmul.f32 %v2507, %v1242
    %v2671 = vmul.f32 %v2514, %v1242
    %v2672 = vmul.f32 %v2624, %v1242
    %v2673 = vadd.f32 %v2563, %v2625
    %v2674 = vadd.f32 %v2564, %v2626
    %v2675 = vadd.f32 %v2565, %v2627
    %v2676 = vadd.f32 %v2566, %v2628
    %v2677 = vadd.f32 %v2567, %v2629
    %v2678 = vadd.f32 %v2568, %v2630
    %v2679 = vadd.f32 %v2569, %v2631
    %v2680 = vadd.f32 %v2570, %v2632
    %v2681 = vadd.f32 %v2571, %v2633
    %v2682 = vadd.f32 %v2572, %v2634
    %v2683 = vadd.f32 %v2573, %v2635
    %v2684 = vadd.f32 %v2574, %v2636
    %v2685 = vadd.f32 %v2575, %v2637
    %v2686 = vadd.f32 %v2576, %v2638
    %v2687 = vadd.f32 %v2577, %v2639
    %v2688 = vadd.f32 %v2578, %v2640
    %v2689 = vadd.f32 %v2579, %v2641
    %v2690 = vadd.f32 %v2580, %v2642
    %v2691 = vadd.f32 %v2581, %v2643
    %v2692 = vadd.f32 %v2582, %v2644
    %v2693 = vadd.f32 %v2583, %v2645
    %v2694 = vadd.f32 %v2584, %v2646
    %v2695 = vadd.f32 %v2585, %v2647
    %v2696 = vadd.f32 %v2586, %v2648
    %v2697 = vadd.f32 %v2587, %v2649
    %v2698 = vadd.f32 %v2588, %v2650
    %v2699 = vadd.f32 %v2589, %v2651
    %v2700 = vadd.f32 %v2590, %v2652
    %v2701 = vadd.f32 %v2591, %v2653
    %v2702 = vadd.f32 %v2592, %v2654
    %v2703 = vadd.f32 %v2593, %v2655
    %v2704 = vadd.f32 %v2594, %v2656
    %v2705 = vadd.f32 %v2595, %v2657
    %v2706 = vadd.f32 %v2596, %v2658
    %v2707 = vadd.f32 %v2597, %v2659
    %v2708 = vadd.f32 %v2598, %v2660
    %v2709 = vadd.f32 %v2599, %v2661
    %v2710 = vadd.f32 %v2600, %v2662
    %v2711 = vadd.f32 %v2601, %v2663
    %v2712 = vadd.f32 %v2602, %v2664
    %v2713 = vadd.f32 %v2603, %v2665
    %v2714 = vadd.f32 %v2604, %v2666
    %v2715 = vadd.f32 %v2605, %v2667
    %v2716 = vadd.f32 %v2606, %v2668
    %v2717 = vadd.f32 %v2607, %v2669
    %v2718 = vadd.f32 %v2608, %v2670
    %v2719 = vadd.f32 %v2609, %v2671
    %v2720 = vadd.f32 %v2610, %v2672
    %v2721 = vlaneseq
    %v2722 = vshrl.u32 %v2721, 7
    %v2723 = vsub.s32 5, %v2722
    %v2724 = vrot.slane %v218, %v2723
    %2726 = vbcast.lane.b32.xlu0 %v2724, 256
    %v2727 = vpop.permute.xlu0 %2726
    %v2728 = vlaneseq
    %v2729 = vshrl.u32 %v2728, 7
    %v2730 = vsub.s32 5, %v2729
    %v2731 = vrot.slane %v246, %v2730
    %2733 = vbcast.lane.b32.xlu0 %v2731, 256
    %v2734 = vpop.permute.xlu0 %2733
    %v2735 = vmul.f32 %v1477, %v1356
    %v2736 = vmul.f32 %v1484, %v1356
    %v2737 = vmul.f32 %v1491, %v1356
    %v2738 = vmul.f32 %v1498, %v1356
    %v2739 = vmul.f32 %v1505, %v1356
    %v2740 = vmul.f32 %v1512, %v1356
    %v2741 = vmul.f32 %v1519, %v1356
    %v2742 = vmul.f32 %v1526, %v1356
    %v2743 = vmul.f32 %v1533, %v1356
    %v2744 = vmul.f32 %v1540, %v1356
    %v2745 = vmul.f32 %v1735, %v1356
    %v2746 = vmul.f32 %v1853, %v1356
    %v2747 = vmul.f32 %v2367, %v1356
    %v2748 = vmul.f32 %v2374, %v1356
    %v2749 = vmul.f32 %v2381, %v1356
    %v2750 = vmul.f32 %v2388, %v1356
    %v2751 = vmul.f32 %v2395, %v1356
    %v2752 = vmul.f32 %v2402, %v1356
    %v2753 = vmul.f32 %v2409, %v1356
    %v2754 = vmul.f32 %v2416, %v1356
    %v2755 = vmul.f32 %v2423, %v1356
    %v2756 = vmul.f32 %v2430, %v1356
    %v2757 = vmul.f32 %v2617, %v1356
    %v2758 = vmul.f32 %v2727, %v1356
    %v2759 = vmul.f32 %v1561, %v1360
    %v2760 = vmul.f32 %v1568, %v1360
    %v2761 = vmul.f32 %v1575, %v1360
    %v2762 = vmul.f32 %v1582, %v1360
    %v2763 = vmul.f32 %v1589, %v1360
    %v2764 = vmul.f32 %v1596, %v1360
    %v2765 = vmul.f32 %v1603, %v1360
    %v2766 = vmul.f32 %v1610, %v1360
    %v2767 = vmul.f32 %v1617, %v1360
    %v2768 = vmul.f32 %v1624, %v1360
    %v2769 = vmul.f32 %v1742, %v1360
    %v2770 = vmul.f32 %v1860, %v1360
    %v2771 = vmul.f32 %v2451, %v1360
    %v2772 = vmul.f32 %v2458, %v1360
    %v2773 = vmul.f32 %v2465, %v1360
    %v2774 = vmul.f32 %v2472, %v1360
    %v2775 = vmul.f32 %v2479, %v1360
    %v2776 = vmul.f32 %v2486, %v1360
    %v2777 = vmul.f32 %v2493, %v1360
    %v2778 = vmul.f32 %v2500, %v1360
    %v2779 = vmul.f32 %v2507, %v1360
    %v2780 = vmul.f32 %v2514, %v1360
    %v2781 = vmul.f32 %v2624, %v1360
    %v2782 = vmul.f32 %v2734, %v1360
    %v2783 = vadd.f32 %v2673, %v2735
    %v2784 = vadd.f32 %v2674, %v2736
    %v2785 = vadd.f32 %v2675, %v2737
    %v2786 = vadd.f32 %v2676, %v2738
    %v2787 = vadd.f32 %v2677, %v2739
    %v2788 = vadd.f32 %v2678, %v2740
    %v2789 = vadd.f32 %v2679, %v2741
    %v2790 = vadd.f32 %v2680, %v2742
    %v2791 = vadd.f32 %v2681, %v2743
    %v2792 = vadd.f32 %v2682, %v2744
    %v2793 = vadd.f32 %v2683, %v2745
    %v2794 = vadd.f32 %v2684, %v2746
    %v2795 = vadd.f32 %v2685, %v2747
    %v2796 = vadd.f32 %v2686, %v2748
    %v2797 = vadd.f32 %v2687, %v2749
    %v2798 = vadd.f32 %v2688, %v2750
    %v2799 = vadd.f32 %v2689, %v2751
    %v2800 = vadd.f32 %v2690, %v2752
    %v2801 = vadd.f32 %v2691, %v2753
    %v2802 = vadd.f32 %v2692, %v2754
    %v2803 = vadd.f32 %v2693, %v2755
    %v2804 = vadd.f32 %v2694, %v2756
    %v2805 = vadd.f32 %v2695, %v2757
    %v2806 = vadd.f32 %v2696, %v2758
    %v2807 = vadd.f32 %v2697, %v2759
    %v2808 = vadd.f32 %v2698, %v2760
    %v2809 = vadd.f32 %v2699, %v2761
    %v2810 = vadd.f32 %v2700, %v2762
    %v2811 = vadd.f32 %v2701, %v2763
    %v2812 = vadd.f32 %v2702, %v2764
    %v2813 = vadd.f32 %v2703, %v2765
    %v2814 = vadd.f32 %v2704, %v2766
    %v2815 = vadd.f32 %v2705, %v2767
    %v2816 = vadd.f32 %v2706, %v2768
    %v2817 = vadd.f32 %v2707, %v2769
    %v2818 = vadd.f32 %v2708, %v2770
    %v2819 = vadd.f32 %v2709, %v2771
    %v2820 = vadd.f32 %v2710, %v2772
    %v2821 = vadd.f32 %v2711, %v2773
    %v2822 = vadd.f32 %v2712, %v2774
    %v2823 = vadd.f32 %v2713, %v2775
    %v2824 = vadd.f32 %v2714, %v2776
    %v2825 = vadd.f32 %v2715, %v2777
    %v2826 = vadd.f32 %v2716, %v2778
    %v2827 = vadd.f32 %v2717, %v2779
    %v2828 = vadd.f32 %v2718, %v2780
    %v2829 = vadd.f32 %v2719, %v2781
    %v2830 = vadd.f32 %v2720, %v2782
    %v2831 = vlaneseq
    %v2832 = vshrl.u32 %v2831, 7
    %v2833 = vsub.s32 0, %v2832
    %v2834 = vrot.slane %v219, %v2833
    %2836 = vbcast.lane.b32.xlu0 %v2834, 256
    %v2837 = vpop.permute.xlu0 %2836
    %v2838 = vlaneseq
    %v2839 = vshrl.u32 %v2838, 7
    %v2840 = vsub.s32 1, %v2839
    %v2841 = vrot.slane %v219, %v2840
    %2843 = vbcast.lane.b32.xlu0 %v2841, 256
    %v2844 = vpop.permute.xlu0 %2843
    %v2845 = vlaneseq
    %v2846 = vshrl.u32 %v2845, 7
    %v2847 = vsub.s32 2, %v2846
    %v2848 = vrot.slane %v219, %v2847
    %2850 = vbcast.lane.b32.xlu0 %v2848, 256
    %v2851 = vpop.permute.xlu0 %2850
    %v2852 = vlaneseq
    %v2853 = vshrl.u32 %v2852, 7
    %v2854 = vsub.s32 3, %v2853
    %v2855 = vrot.slane %v219, %v2854
    %2857 = vbcast.lane.b32.xlu0 %v2855, 256
    %v2858 = vpop.permute.xlu0 %2857
    %v2859 = vlaneseq
    %v2860 = vshrl.u32 %v2859, 7
    %v2861 = vsub.s32 4, %v2860
    %v2862 = vrot.slane %v219, %v2861
    %2864 = vbcast.lane.b32.xlu0 %v2862, 256
    %v2865 = vpop.permute.xlu0 %2864
    %v2866 = vlaneseq
    %v2867 = vshrl.u32 %v2866, 7
    %v2868 = vsub.s32 5, %v2867
    %v2869 = vrot.slane %v219, %v2868
    %2871 = vbcast.lane.b32.xlu0 %v2869, 256
    %v2872 = vpop.permute.xlu0 %2871
    %v2873 = vlaneseq
    %v2874 = vshrl.u32 %v2873, 7
    %v2875 = vsub.s32 6, %v2874
    %v2876 = vrot.slane %v219, %v2875
    %2878 = vbcast.lane.b32.xlu0 %v2876, 256
    %v2879 = vpop.permute.xlu0 %2878
    %v2880 = vlaneseq
    %v2881 = vshrl.u32 %v2880, 7
    %v2882 = vsub.s32 7, %v2881
    %v2883 = vrot.slane %v219, %v2882
    %2885 = vbcast.lane.b32.xlu0 %v2883, 256
    %v2886 = vpop.permute.xlu0 %2885
    %v2887 = vlaneseq
    %v2888 = vshrl.u32 %v2887, 7
    %v2889 = vsub.s32 0, %v2888
    %v2890 = vrot.slane %v220, %v2889
    %2892 = vbcast.lane.b32.xlu0 %v2890, 256
    %v2893 = vpop.permute.xlu0 %2892
    %v2894 = vlaneseq
    %v2895 = vshrl.u32 %v2894, 7
    %v2896 = vsub.s32 1, %v2895
    %v2897 = vrot.slane %v220, %v2896
    %2899 = vbcast.lane.b32.xlu0 %v2897, 256
    %v2900 = vpop.permute.xlu0 %2899
    %v2901 = vlaneseq
    %v2902 = vshrl.u32 %v2901, 7
    %v2903 = vsub.s32 2, %v2902
    %v2904 = vrot.slane %v220, %v2903
    %2906 = vbcast.lane.b32.xlu0 %v2904, 256
    %v2907 = vpop.permute.xlu0 %2906
    %v2908 = vlaneseq
    %v2909 = vshrl.u32 %v2908, 7
    %v2910 = vsub.s32 3, %v2909
    %v2911 = vrot.slane %v220, %v2910
    %2913 = vbcast.lane.b32.xlu0 %v2911, 256
    %v2914 = vpop.permute.xlu0 %2913
    %v2915 = vlaneseq
    %v2916 = vshrl.u32 %v2915, 7
    %v2917 = vsub.s32 0, %v2916
    %v2918 = vrot.slane %v247, %v2917
    %2920 = vbcast.lane.b32.xlu0 %v2918, 256
    %v2921 = vpop.permute.xlu0 %2920
    %v2922 = vlaneseq
    %v2923 = vshrl.u32 %v2922, 7
    %v2924 = vsub.s32 1, %v2923
    %v2925 = vrot.slane %v247, %v2924
    %2927 = vbcast.lane.b32.xlu0 %v2925, 256
    %v2928 = vpop.permute.xlu0 %2927
    %v2929 = vlaneseq
    %v2930 = vshrl.u32 %v2929, 7
    %v2931 = vsub.s32 2, %v2930
    %v2932 = vrot.slane %v247, %v2931
    %2934 = vbcast.lane.b32.xlu0 %v2932, 256
    %v2935 = vpop.permute.xlu0 %2934
    %v2936 = vlaneseq
    %v2937 = vshrl.u32 %v2936, 7
    %v2938 = vsub.s32 3, %v2937
    %v2939 = vrot.slane %v247, %v2938
    %2941 = vbcast.lane.b32.xlu0 %v2939, 256
    %v2942 = vpop.permute.xlu0 %2941
    %v2943 = vlaneseq
    %v2944 = vshrl.u32 %v2943, 7
    %v2945 = vsub.s32 4, %v2944
    %v2946 = vrot.slane %v247, %v2945
    %2948 = vbcast.lane.b32.xlu0 %v2946, 256
    %v2949 = vpop.permute.xlu0 %2948
    %v2950 = vlaneseq
    %v2951 = vshrl.u32 %v2950, 7
    %v2952 = vsub.s32 5, %v2951
    %v2953 = vrot.slane %v247, %v2952
    %2955 = vbcast.lane.b32.xlu0 %v2953, 256
    %v2956 = vpop.permute.xlu0 %2955
    %v2957 = vlaneseq
    %v2958 = vshrl.u32 %v2957, 7
    %v2959 = vsub.s32 6, %v2958
    %v2960 = vrot.slane %v247, %v2959
    %2962 = vbcast.lane.b32.xlu0 %v2960, 256
    %v2963 = vpop.permute.xlu0 %2962
    %v2964 = vlaneseq
    %v2965 = vshrl.u32 %v2964, 7
    %v2966 = vsub.s32 7, %v2965
    %v2967 = vrot.slane %v247, %v2966
    %2969 = vbcast.lane.b32.xlu0 %v2967, 256
    %v2970 = vpop.permute.xlu0 %2969
    %v2971 = vlaneseq
    %v2972 = vshrl.u32 %v2971, 7
    %v2973 = vsub.s32 0, %v2972
    %v2974 = vrot.slane %v248, %v2973
    %2976 = vbcast.lane.b32.xlu0 %v2974, 256
    %v2977 = vpop.permute.xlu0 %2976
    %v2978 = vlaneseq
    %v2979 = vshrl.u32 %v2978, 7
    %v2980 = vsub.s32 1, %v2979
    %v2981 = vrot.slane %v248, %v2980
    %2983 = vbcast.lane.b32.xlu0 %v2981, 256
    %v2984 = vpop.permute.xlu0 %2983
    %v2985 = vlaneseq
    %v2986 = vshrl.u32 %v2985, 7
    %v2987 = vsub.s32 2, %v2986
    %v2988 = vrot.slane %v248, %v2987
    %2990 = vbcast.lane.b32.xlu0 %v2988, 256
    %v2991 = vpop.permute.xlu0 %2990
    %v2992 = vlaneseq
    %v2993 = vshrl.u32 %v2992, 7
    %v2994 = vsub.s32 3, %v2993
    %v2995 = vrot.slane %v248, %v2994
    %2997 = vbcast.lane.b32.xlu0 %v2995, 256
    %v2998 = vpop.permute.xlu0 %2997
    %v2999 = vmul.f32 %v2353, %v1628
    %v3000 = vmul.f32 %v2360, %v1628
    %v3001 = vmul.f32 %v2367, %v1628
    %v3002 = vmul.f32 %v2374, %v1628
    %v3003 = vmul.f32 %v2381, %v1628
    %v3004 = vmul.f32 %v2388, %v1628
    %v3005 = vmul.f32 %v2395, %v1628
    %v3006 = vmul.f32 %v2402, %v1628
    %v3007 = vmul.f32 %v2409, %v1628
    %v3008 = vmul.f32 %v2416, %v1628
    %v3009 = vmul.f32 %v2423, %v1628
    %v3010 = vmul.f32 %v2430, %v1628
    %v3011 = vmul.f32 %v2837, %v1628
    %v3012 = vmul.f32 %v2844, %v1628
    %v3013 = vmul.f32 %v2851, %v1628
    %v3014 = vmul.f32 %v2858, %v1628
    %v3015 = vmul.f32 %v2865, %v1628
    %v3016 = vmul.f32 %v2872, %v1628
    %v3017 = vmul.f32 %v2879, %v1628
    %v3018 = vmul.f32 %v2886, %v1628
    %v3019 = vmul.f32 %v2893, %v1628
    %v3020 = vmul.f32 %v2900, %v1628
    %v3021 = vmul.f32 %v2907, %v1628
    %v3022 = vmul.f32 %v2914, %v1628
    %v3023 = vmul.f32 %v2437, %v1632
    %v3024 = vmul.f32 %v2444, %v1632
    %v3025 = vmul.f32 %v2451, %v1632
    %v3026 = vmul.f32 %v2458, %v1632
    %v3027 = vmul.f32 %v2465, %v1632
    %v3028 = vmul.f32 %v2472, %v1632
    %v3029 = vmul.f32 %v2479, %v1632
    %v3030 = vmul.f32 %v2486, %v1632
    %v3031 = vmul.f32 %v2493, %v1632
    %v3032 = vmul.f32 %v2500, %v1632
    %v3033 = vmul.f32 %v2507, %v1632
    %v3034 = vmul.f32 %v2514, %v1632
    %v3035 = vmul.f32 %v2921, %v1632
    %v3036 = vmul.f32 %v2928, %v1632
    %v3037 = vmul.f32 %v2935, %v1632
    %v3038 = vmul.f32 %v2942, %v1632
    %v3039 = vmul.f32 %v2949, %v1632
    %v3040 = vmul.f32 %v2956, %v1632
    %v3041 = vmul.f32 %v2963, %v1632
    %v3042 = vmul.f32 %v2970, %v1632
    %v3043 = vmul.f32 %v2977, %v1632
    %v3044 = vmul.f32 %v2984, %v1632
    %v3045 = vmul.f32 %v2991, %v1632
    %v3046 = vmul.f32 %v2998, %v1632
    %v3047 = vadd.f32 %v2783, %v2999
    %v3048 = vadd.f32 %v2784, %v3000
    %v3049 = vadd.f32 %v2785, %v3001
    %v3050 = vadd.f32 %v2786, %v3002
    %v3051 = vadd.f32 %v2787, %v3003
    %v3052 = vadd.f32 %v2788, %v3004
    %v3053 = vadd.f32 %v2789, %v3005
    %v3054 = vadd.f32 %v2790, %v3006
    %v3055 = vadd.f32 %v2791, %v3007
    %v3056 = vadd.f32 %v2792, %v3008
    %v3057 = vadd.f32 %v2793, %v3009
    %v3058 = vadd.f32 %v2794, %v3010
    %v3059 = vadd.f32 %v2795, %v3011
    %v3060 = vadd.f32 %v2796, %v3012
    %v3061 = vadd.f32 %v2797, %v3013
    %v3062 = vadd.f32 %v2798, %v3014
    %v3063 = vadd.f32 %v2799, %v3015
    %v3064 = vadd.f32 %v2800, %v3016
    %v3065 = vadd.f32 %v2801, %v3017
    %v3066 = vadd.f32 %v2802, %v3018
    %v3067 = vadd.f32 %v2803, %v3019
    %v3068 = vadd.f32 %v2804, %v3020
    %v3069 = vadd.f32 %v2805, %v3021
    %v3070 = vadd.f32 %v2806, %v3022
    %v3071 = vadd.f32 %v2807, %v3023
    %v3072 = vadd.f32 %v2808, %v3024
    %v3073 = vadd.f32 %v2809, %v3025
    %v3074 = vadd.f32 %v2810, %v3026
    %v3075 = vadd.f32 %v2811, %v3027
    %v3076 = vadd.f32 %v2812, %v3028
    %v3077 = vadd.f32 %v2813, %v3029
    %v3078 = vadd.f32 %v2814, %v3030
    %v3079 = vadd.f32 %v2815, %v3031
    %v3080 = vadd.f32 %v2816, %v3032
    %v3081 = vadd.f32 %v2817, %v3033
    %v3082 = vadd.f32 %v2818, %v3034
    %v3083 = vadd.f32 %v2819, %v3035
    %v3084 = vadd.f32 %v2820, %v3036
    %v3085 = vadd.f32 %v2821, %v3037
    %v3086 = vadd.f32 %v2822, %v3038
    %v3087 = vadd.f32 %v2823, %v3039
    %v3088 = vadd.f32 %v2824, %v3040
    %v3089 = vadd.f32 %v2825, %v3041
    %v3090 = vadd.f32 %v2826, %v3042
    %v3091 = vadd.f32 %v2827, %v3043
    %v3092 = vadd.f32 %v2828, %v3044
    %v3093 = vadd.f32 %v2829, %v3045
    %v3094 = vadd.f32 %v2830, %v3046
    %v3095 = vlaneseq
    %v3096 = vshrl.u32 %v3095, 7
    %v3097 = vsub.s32 4, %v3096
    %v3098 = vrot.slane %v220, %v3097
    %3100 = vbcast.lane.b32.xlu0 %v3098, 256
    %v3101 = vpop.permute.xlu0 %3100
    %v3102 = vlaneseq
    %v3103 = vshrl.u32 %v3102, 7
    %v3104 = vsub.s32 4, %v3103
    %v3105 = vrot.slane %v248, %v3104
    %3107 = vbcast.lane.b32.xlu0 %v3105, 256
    %v3108 = vpop.permute.xlu0 %3107
    %v3109 = vmul.f32 %v2360, %v1746
    %v3110 = vmul.f32 %v2367, %v1746
    %v3111 = vmul.f32 %v2374, %v1746
    %v3112 = vmul.f32 %v2381, %v1746
    %v3113 = vmul.f32 %v2388, %v1746
    %v3114 = vmul.f32 %v2395, %v1746
    %v3115 = vmul.f32 %v2402, %v1746
    %v3116 = vmul.f32 %v2409, %v1746
    %v3117 = vmul.f32 %v2416, %v1746
    %v3118 = vmul.f32 %v2423, %v1746
    %v3119 = vmul.f32 %v2430, %v1746
    %v3120 = vmul.f32 %v2617, %v1746
    %v3121 = vmul.f32 %v2844, %v1746
    %v3122 = vmul.f32 %v2851, %v1746
    %v3123 = vmul.f32 %v2858, %v1746
    %v3124 = vmul.f32 %v2865, %v1746
    %v3125 = vmul.f32 %v2872, %v1746
    %v3126 = vmul.f32 %v2879, %v1746
    %v3127 = vmul.f32 %v2886, %v1746
    %v3128 = vmul.f32 %v2893, %v1746
    %v3129 = vmul.f32 %v2900, %v1746
    %v3130 = vmul.f32 %v2907, %v1746
    %v3131 = vmul.f32 %v2914, %v1746
    %v3132 = vmul.f32 %v3101, %v1746
    %v3133 = vmul.f32 %v2444, %v1750
    %v3134 = vmul.f32 %v2451, %v1750
    %v3135 = vmul.f32 %v2458, %v1750
    %v3136 = vmul.f32 %v2465, %v1750
    %v3137 = vmul.f32 %v2472, %v1750
    %v3138 = vmul.f32 %v2479, %v1750
    %v3139 = vmul.f32 %v2486, %v1750
    %v3140 = vmul.f32 %v2493, %v1750
    %v3141 = vmul.f32 %v2500, %v1750
    %v3142 = vmul.f32 %v2507, %v1750
    %v3143 = vmul.f32 %v2514, %v1750
    %v3144 = vmul.f32 %v2624, %v1750
    %v3145 = vmul.f32 %v2928, %v1750
    %v3146 = vmul.f32 %v2935, %v1750
    %v3147 = vmul.f32 %v2942, %v1750
    %v3148 = vmul.f32 %v2949, %v1750
    %v3149 = vmul.f32 %v2956, %v1750
    %v3150 = vmul.f32 %v2963, %v1750
    %v3151 = vmul.f32 %v2970, %v1750
    %v3152 = vmul.f32 %v2977, %v1750
    %v3153 = vmul.f32 %v2984, %v1750
    %v3154 = vmul.f32 %v2991, %v1750
    %v3155 = vmul.f32 %v2998, %v1750
    %v3156 = vmul.f32 %v3108, %v1750
    %v3157 = vadd.f32 %v3047, %v3109
    %v3158 = vadd.f32 %v3048, %v3110
    %v3159 = vadd.f32 %v3049, %v3111
    %v3160 = vadd.f32 %v3050, %v3112
    %v3161 = vadd.f32 %v3051, %v3113
    %v3162 = vadd.f32 %v3052, %v3114
    %v3163 = vadd.f32 %v3053, %v3115
    %v3164 = vadd.f32 %v3054, %v3116
    %v3165 = vadd.f32 %v3055, %v3117
    %v3166 = vadd.f32 %v3056, %v3118
    %v3167 = vadd.f32 %v3057, %v3119
    %v3168 = vadd.f32 %v3058, %v3120
    %v3169 = vadd.f32 %v3059, %v3121
    %v3170 = vadd.f32 %v3060, %v3122
    %v3171 = vadd.f32 %v3061, %v3123
    %v3172 = vadd.f32 %v3062, %v3124
    %v3173 = vadd.f32 %v3063, %v3125
    %v3174 = vadd.f32 %v3064, %v3126
    %v3175 = vadd.f32 %v3065, %v3127
    %v3176 = vadd.f32 %v3066, %v3128
    %v3177 = vadd.f32 %v3067, %v3129
    %v3178 = vadd.f32 %v3068, %v3130
    %v3179 = vadd.f32 %v3069, %v3131
    %v3180 = vadd.f32 %v3070, %v3132
    %v3181 = vadd.f32 %v3071, %v3133
    %v3182 = vadd.f32 %v3072, %v3134
    %v3183 = vadd.f32 %v3073, %v3135
    %v3184 = vadd.f32 %v3074, %v3136
    %v3185 = vadd.f32 %v3075, %v3137
    %v3186 = vadd.f32 %v3076, %v3138
    %v3187 = vadd.f32 %v3077, %v3139
    %v3188 = vadd.f32 %v3078, %v3140
    %v3189 = vadd.f32 %v3079, %v3141
    %v3190 = vadd.f32 %v3080, %v3142
    %v3191 = vadd.f32 %v3081, %v3143
    %v3192 = vadd.f32 %v3082, %v3144
    %v3193 = vadd.f32 %v3083, %v3145
    %v3194 = vadd.f32 %v3084, %v3146
    %v3195 = vadd.f32 %v3085, %v3147
    %v3196 = vadd.f32 %v3086, %v3148
    %v3197 = vadd.f32 %v3087, %v3149
    %v3198 = vadd.f32 %v3088, %v3150
    %v3199 = vadd.f32 %v3089, %v3151
    %v3200 = vadd.f32 %v3090, %v3152
    %v3201 = vadd.f32 %v3091, %v3153
    %v3202 = vadd.f32 %v3092, %v3154
    %v3203 = vadd.f32 %v3093, %v3155
    %v3204 = vadd.f32 %v3094, %v3156
    %v3205 = vlaneseq
    %v3206 = vshrl.u32 %v3205, 7
    %v3207 = vsub.s32 5, %v3206
    %v3208 = vrot.slane %v220, %v3207
    %3210 = vbcast.lane.b32.xlu0 %v3208, 256
    %v3211 = vpop.permute.xlu0 %3210
    %v3212 = vlaneseq
    %v3213 = vshrl.u32 %v3212, 7
    %v3214 = vsub.s32 5, %v3213
    %v3215 = vrot.slane %v248, %v3214
    %3217 = vbcast.lane.b32.xlu0 %v3215, 256
    %v3218 = vpop.permute.xlu0 %3217
    %v3219 = vmul.f32 %v2367, %v1864
    %v3220 = vmul.f32 %v2374, %v1864
    %v3221 = vmul.f32 %v2381, %v1864
    %v3222 = vmul.f32 %v2388, %v1864
    %v3223 = vmul.f32 %v2395, %v1864
    %v3224 = vmul.f32 %v2402, %v1864
    %v3225 = vmul.f32 %v2409, %v1864
    %v3226 = vmul.f32 %v2416, %v1864
    %v3227 = vmul.f32 %v2423, %v1864
    %v3228 = vmul.f32 %v2430, %v1864
    %v3229 = vmul.f32 %v2617, %v1864
    %v3230 = vmul.f32 %v2727, %v1864
    %v3231 = vmul.f32 %v2851, %v1864
    %v3232 = vmul.f32 %v2858, %v1864
    %v3233 = vmul.f32 %v2865, %v1864
    %v3234 = vmul.f32 %v2872, %v1864
    %v3235 = vmul.f32 %v2879, %v1864
    %v3236 = vmul.f32 %v2886, %v1864
    %v3237 = vmul.f32 %v2893, %v1864
    %v3238 = vmul.f32 %v2900, %v1864
    %v3239 = vmul.f32 %v2907, %v1864
    %v3240 = vmul.f32 %v2914, %v1864
    %v3241 = vmul.f32 %v3101, %v1864
    %v3242 = vmul.f32 %v3211, %v1864
    %v3243 = vmul.f32 %v2451, %v1868
    %v3244 = vmul.f32 %v2458, %v1868
    %v3245 = vmul.f32 %v2465, %v1868
    %v3246 = vmul.f32 %v2472, %v1868
    %v3247 = vmul.f32 %v2479, %v1868
    %v3248 = vmul.f32 %v2486, %v1868
    %v3249 = vmul.f32 %v2493, %v1868
    %v3250 = vmul.f32 %v2500, %v1868
    %v3251 = vmul.f32 %v2507, %v1868
    %v3252 = vmul.f32 %v2514, %v1868
    %v3253 = vmul.f32 %v2624, %v1868
    %v3254 = vmul.f32 %v2734, %v1868
    %v3255 = vmul.f32 %v2935, %v1868
    %v3256 = vmul.f32 %v2942, %v1868
    %v3257 = vmul.f32 %v2949, %v1868
    %v3258 = vmul.f32 %v2956, %v1868
    %v3259 = vmul.f32 %v2963, %v1868
    %v3260 = vmul.f32 %v2970, %v1868
    %v3261 = vmul.f32 %v2977, %v1868
    %v3262 = vmul.f32 %v2984, %v1868
    %v3263 = vmul.f32 %v2991, %v1868
    %v3264 = vmul.f32 %v2998, %v1868
    %v3265 = vmul.f32 %v3108, %v1868
    %v3266 = vmul.f32 %v3218, %v1868
    %v3267 = vadd.f32 %v3157, %v3219
    %v3268 = vadd.f32 %v3158, %v3220
    %v3269 = vadd.f32 %v3159, %v3221
    %v3270 = vadd.f32 %v3160, %v3222
    %v3271 = vadd.f32 %v3161, %v3223
    %v3272 = vadd.f32 %v3162, %v3224
    %v3273 = vadd.f32 %v3163, %v3225
    %v3274 = vadd.f32 %v3164, %v3226
    %v3275 = vadd.f32 %v3165, %v3227
    %v3276 = vadd.f32 %v3166, %v3228
    %v3277 = vadd.f32 %v3167, %v3229
    %v3278 = vadd.f32 %v3168, %v3230
    %v3279 = vadd.f32 %v3169, %v3231
    %v3280 = vadd.f32 %v3170, %v3232
    %v3281 = vadd.f32 %v3171, %v3233
    %v3282 = vadd.f32 %v3172, %v3234
    %v3283 = vadd.f32 %v3173, %v3235
    %v3284 = vadd.f32 %v3174, %v3236
    %v3285 = vadd.f32 %v3175, %v3237
    %v3286 = vadd.f32 %v3176, %v3238
    %v3287 = vadd.f32 %v3177, %v3239
    %v3288 = vadd.f32 %v3178, %v3240
    %v3289 = vadd.f32 %v3179, %v3241
    %v3290 = vadd.f32 %v3180, %v3242
    %v3291 = vadd.f32 %v3181, %v3243
    %v3292 = vadd.f32 %v3182, %v3244
    %v3293 = vadd.f32 %v3183, %v3245
    %v3294 = vadd.f32 %v3184, %v3246
    %v3295 = vadd.f32 %v3185, %v3247
    %v3296 = vadd.f32 %v3186, %v3248
    %v3297 = vadd.f32 %v3187, %v3249
    %v3298 = vadd.f32 %v3188, %v3250
    %v3299 = vadd.f32 %v3189, %v3251
    %v3300 = vadd.f32 %v3190, %v3252
    %v3301 = vadd.f32 %v3191, %v3253
    %v3302 = vadd.f32 %v3192, %v3254
    %v3303 = vadd.f32 %v3193, %v3255
    %v3304 = vadd.f32 %v3194, %v3256
    %v3305 = vadd.f32 %v3195, %v3257
    %v3306 = vadd.f32 %v3196, %v3258
    %v3307 = vadd.f32 %v3197, %v3259
    %v3308 = vadd.f32 %v3198, %v3260
    %v3309 = vadd.f32 %v3199, %v3261
    %v3310 = vadd.f32 %v3200, %v3262
    %v3311 = vadd.f32 %v3201, %v3263
    %v3312 = vadd.f32 %v3202, %v3264
    %v3313 = vadd.f32 %v3203, %v3265
    %v3314 = vadd.f32 %v3204, %v3266
    %v3315 = vadd.f32 %v3267, %v1968
    %v3316 = vadd.f32 %v3268, %v1968
    %v3317 = vadd.f32 %v3269, %v1968
    %v3318 = vadd.f32 %v3270, %v1968
    %v3319 = vadd.f32 %v3271, %v1968
    %v3320 = vadd.f32 %v3272, %v1968
    %v3321 = vadd.f32 %v3273, %v1968
    %v3322 = vadd.f32 %v3274, %v1968
    %v3323 = vadd.f32 %v3275, %v1968
    %v3324 = vadd.f32 %v3276, %v1968
    %v3325 = vadd.f32 %v3277, %v1968
    %v3326 = vadd.f32 %v3278, %v1968
    %v3327 = vadd.f32 %v3279, %v1968
    %v3328 = vadd.f32 %v3280, %v1968
    %v3329 = vadd.f32 %v3281, %v1968
    %v3330 = vadd.f32 %v3282, %v1968
    %v3331 = vadd.f32 %v3283, %v1968
    %v3332 = vadd.f32 %v3284, %v1968
    %v3333 = vadd.f32 %v3285, %v1968
    %v3334 = vadd.f32 %v3286, %v1968
    %v3335 = vadd.f32 %v3287, %v1968
    %v3336 = vadd.f32 %v3288, %v1968
    %v3337 = vadd.f32 %v3289, %v1968
    %v3338 = vadd.f32 %v3290, %v1968
    %v3339 = vadd.f32 %v3291, %v1972
    %v3340 = vadd.f32 %v3292, %v1972
    %v3341 = vadd.f32 %v3293, %v1972
    %v3342 = vadd.f32 %v3294, %v1972
    %v3343 = vadd.f32 %v3295, %v1972
    %v3344 = vadd.f32 %v3296, %v1972
    %v3345 = vadd.f32 %v3297, %v1972
    %v3346 = vadd.f32 %v3298, %v1972
    %v3347 = vadd.f32 %v3299, %v1972
    %v3348 = vadd.f32 %v3300, %v1972
    %v3349 = vadd.f32 %v3301, %v1972
    %v3350 = vadd.f32 %v3302, %v1972
    %v3351 = vadd.f32 %v3303, %v1972
    %v3352 = vadd.f32 %v3304, %v1972
    %v3353 = vadd.f32 %v3305, %v1972
    %v3354 = vadd.f32 %v3306, %v1972
    %v3355 = vadd.f32 %v3307, %v1972
    %v3356 = vadd.f32 %v3308, %v1972
    %v3357 = vadd.f32 %v3309, %v1972
    %v3358 = vadd.f32 %v3310, %v1972
    %v3359 = vadd.f32 %v3311, %v1972
    %v3360 = vadd.f32 %v3312, %v1972
    %v3361 = vadd.f32 %v3313, %v1972
    %v3362 = vadd.f32 %v3314, %v1972
    %v3363 = vmax.f32 %v3315, 0.0
    %v3364 = vmax.f32 %v3316, 0.0
    %v3365 = vmax.f32 %v3317, 0.0
    %v3366 = vmax.f32 %v3318, 0.0
    %v3367 = vmax.f32 %v3319, 0.0
    %v3368 = vmax.f32 %v3320, 0.0
    %v3369 = vmax.f32 %v3321, 0.0
    %v3370 = vmax.f32 %v3322, 0.0
    %v3371 = vmax.f32 %v3323, 0.0
    %v3372 = vmax.f32 %v3324, 0.0
    %v3373 = vmax.f32 %v3325, 0.0
    %v3374 = vmax.f32 %v3326, 0.0
    %v3375 = vmax.f32 %v3327, 0.0
    %v3376 = vmax.f32 %v3328, 0.0
    %v3377 = vmax.f32 %v3329, 0.0
    %v3378 = vmax.f32 %v3330, 0.0
    %v3379 = vmax.f32 %v3331, 0.0
    %v3380 = vmax.f32 %v3332, 0.0
    %v3381 = vmax.f32 %v3333, 0.0
    %v3382 = vmax.f32 %v3334, 0.0
    %v3383 = vmax.f32 %v3335, 0.0
    %v3384 = vmax.f32 %v3336, 0.0
    %v3385 = vmax.f32 %v3337, 0.0
    %v3386 = vmax.f32 %v3338, 0.0
    %v3387 = vmax.f32 %v3339, 0.0
    %v3388 = vmax.f32 %v3340, 0.0
    %v3389 = vmax.f32 %v3341, 0.0
    %v3390 = vmax.f32 %v3342, 0.0
    %v3391 = vmax.f32 %v3343, 0.0
    %v3392 = vmax.f32 %v3344, 0.0
    %v3393 = vmax.f32 %v3345, 0.0
    %v3394 = vmax.f32 %v3346, 0.0
    %v3395 = vmax.f32 %v3347, 0.0
    %v3396 = vmax.f32 %v3348, 0.0
    %v3397 = vmax.f32 %v3349, 0.0
    %v3398 = vmax.f32 %v3350, 0.0
    %v3399 = vmax.f32 %v3351, 0.0
    %v3400 = vmax.f32 %v3352, 0.0
    %v3401 = vmax.f32 %v3353, 0.0
    %v3402 = vmax.f32 %v3354, 0.0
    %v3403 = vmax.f32 %v3355, 0.0
    %v3404 = vmax.f32 %v3356, 0.0
    %v3405 = vmax.f32 %v3357, 0.0
    %v3406 = vmax.f32 %v3358, 0.0
    %v3407 = vmax.f32 %v3359, 0.0
    %v3408 = vmax.f32 %v3360, 0.0
    %v3409 = vmax.f32 %v3361, 0.0
    %v3410 = vmax.f32 %v3362, 0.0
    %v3411 = vmax.f32 %v3363, %v3375
    %v3412 = vmax.f32 %v3364, %v3376
    %v3413 = vmax.f32 %v3365, %v3377
    %v3414 = vmax.f32 %v3366, %v3378
    %v3415 = vmax.f32 %v3367, %v3379
    %v3416 = vmax.f32 %v3368, %v3380
    %v3417 = vmax.f32 %v3369, %v3381
    %v3418 = vmax.f32 %v3370, %v3382
    %v3419 = vmax.f32 %v3371, %v3383
    %v3420 = vmax.f32 %v3372, %v3384
    %v3421 = vmax.f32 %v3373, %v3385
    %v3422 = vmax.f32 %v3374, %v3386
    %v3423 = vmax.f32 %v3387, %v3399
    %v3424 = vmax.f32 %v3388, %v3400
    %v3425 = vmax.f32 %v3389, %v3401
    %v3426 = vmax.f32 %v3390, %v3402
    %v3427 = vmax.f32 %v3391, %v3403
    %v3428 = vmax.f32 %v3392, %v3404
    %v3429 = vmax.f32 %v3393, %v3405
    %v3430 = vmax.f32 %v3394, %v3406
    %v3431 = vmax.f32 %v3395, %v3407
    %v3432 = vmax.f32 %v3396, %v3408
    %v3433 = vmax.f32 %v3397, %v3409
    %v3434 = vmax.f32 %v3398, %v3410
    %v3435 = vmax.f32 %v3411, %v3412
    %v3436 = vmax.f32 %v3413, %v3414
    %v3437 = vmax.f32 %v3415, %v3416
    %v3438 = vmax.f32 %v3417, %v3418
    %v3439 = vmax.f32 %v3419, %v3420
    %v3440 = vmax.f32 %v3421, %v3422
    %v3441 = vmax.f32 %v3423, %v3424
    %v3442 = vmax.f32 %v3425, %v3426
    %v3443 = vmax.f32 %v3427, %v3428
    %v3444 = vmax.f32 %v3429, %v3430
    %v3445 = vmax.f32 %v3431, %v3432
    %v3446 = vmax.f32 %v3433, %v3434
    %v3447 = vmul.f32 %v2353, %v632
    %v3448 = vmul.f32 %v2360, %v632
    %v3449 = vmul.f32 %v2367, %v632
    %v3450 = vmul.f32 %v2374, %v632
    %v3451 = vmul.f32 %v2381, %v632
    %v3452 = vmul.f32 %v2388, %v632
    %v3453 = vmul.f32 %v2395, %v632
    %v3454 = vmul.f32 %v2402, %v632
    %v3455 = vmul.f32 %v2409, %v632
    %v3456 = vmul.f32 %v2416, %v632
    %v3457 = vmul.f32 %v2423, %v632
    %v3458 = vmul.f32 %v2430, %v632
    %v3459 = vmul.f32 %v2837, %v632
    %v3460 = vmul.f32 %v2844, %v632
    %v3461 = vmul.f32 %v2851, %v632
    %v3462 = vmul.f32 %v2858, %v632
    %v3463 = vmul.f32 %v2865, %v632
    %v3464 = vmul.f32 %v2872, %v632
    %v3465 = vmul.f32 %v2879, %v632
    %v3466 = vmul.f32 %v2886, %v632
    %v3467 = vmul.f32 %v2893, %v632
    %v3468 = vmul.f32 %v2900, %v632
    %v3469 = vmul.f32 %v2907, %v632
    %v3470 = vmul.f32 %v2914, %v632
    %v3471 = vmul.f32 %v2437, %v636
    %v3472 = vmul.f32 %v2444, %v636
    %v3473 = vmul.f32 %v2451, %v636
    %v3474 = vmul.f32 %v2458, %v636
    %v3475 = vmul.f32 %v2465, %v636
    %v3476 = vmul.f32 %v2472, %v636
    %v3477 = vmul.f32 %v2479, %v636
    %v3478 = vmul.f32 %v2486, %v636
    %v3479 = vmul.f32 %v2493, %v636
    %v3480 = vmul.f32 %v2500, %v636
    %v3481 = vmul.f32 %v2507, %v636
    %v3482 = vmul.f32 %v2514, %v636
    %v3483 = vmul.f32 %v2921, %v636
    %v3484 = vmul.f32 %v2928, %v636
    %v3485 = vmul.f32 %v2935, %v636
    %v3486 = vmul.f32 %v2942, %v636
    %v3487 = vmul.f32 %v2949, %v636
    %v3488 = vmul.f32 %v2956, %v636
    %v3489 = vmul.f32 %v2963, %v636
    %v3490 = vmul.f32 %v2970, %v636
    %v3491 = vmul.f32 %v2977, %v636
    %v3492 = vmul.f32 %v2984, %v636
    %v3493 = vmul.f32 %v2991, %v636
    %v3494 = vmul.f32 %v2998, %v636
    %v3495 = vmul.f32 %v2360, %v716
    %v3496 = vmul.f32 %v2367, %v716
    %v3497 = vmul.f32 %v2374, %v716
    %v3498 = vmul.f32 %v2381, %v716
    %v3499 = vmul.f32 %v2388, %v716
    %v3500 = vmul.f32 %v2395, %v716
    %v3501 = vmul.f32 %v2402, %v716
    %v3502 = vmul.f32 %v2409, %v716
    %v3503 = vmul.f32 %v2416, %v716
    %v3504 = vmul.f32 %v2423, %v716
    %v3505 = vmul.f32 %v2430, %v716
    %v3506 = vmul.f32 %v2617, %v716
    %v3507 = vmul.f32 %v2844, %v716
    %v3508 = vmul.f32 %v2851, %v716
    %v3509 = vmul.f32 %v2858, %v716
    %v3510 = vmul.f32 %v2865, %v716
    %v3511 = vmul.f32 %v2872, %v716
    %v3512 = vmul.f32 %v2879, %v716
    %v3513 = vmul.f32 %v2886, %v716
    %v3514 = vmul.f32 %v2893, %v716
    %v3515 = vmul.f32 %v2900, %v716
    %v3516 = vmul.f32 %v2907, %v716
    %v3517 = vmul.f32 %v2914, %v716
    %v3518 = vmul.f32 %v3101, %v716
    %v3519 = vmul.f32 %v2444, %v720
    %v3520 = vmul.f32 %v2451, %v720
    %v3521 = vmul.f32 %v2458, %v720
    %v3522 = vmul.f32 %v2465, %v720
    %v3523 = vmul.f32 %v2472, %v720
    %v3524 = vmul.f32 %v2479, %v720
    %v3525 = vmul.f32 %v2486, %v720
    %v3526 = vmul.f32 %v2493, %v720
    %v3527 = vmul.f32 %v2500, %v720
    %v3528 = vmul.f32 %v2507, %v720
    %v3529 = vmul.f32 %v2514, %v720
    %v3530 = vmul.f32 %v2624, %v720
    %v3531 = vmul.f32 %v2928, %v720
    %v3532 = vmul.f32 %v2935, %v720
    %v3533 = vmul.f32 %v2942, %v720
    %v3534 = vmul.f32 %v2949, %v720
    %v3535 = vmul.f32 %v2956, %v720
    %v3536 = vmul.f32 %v2963, %v720
    %v3537 = vmul.f32 %v2970, %v720
    %v3538 = vmul.f32 %v2977, %v720
    %v3539 = vmul.f32 %v2984, %v720
    %v3540 = vmul.f32 %v2991, %v720
    %v3541 = vmul.f32 %v2998, %v720
    %v3542 = vmul.f32 %v3108, %v720
    %v3543 = vadd.f32 %v3447, %v3495
    %v3544 = vadd.f32 %v3448, %v3496
    %v3545 = vadd.f32 %v3449, %v3497
    %v3546 = vadd.f32 %v3450, %v3498
    %v3547 = vadd.f32 %v3451, %v3499
    %v3548 = vadd.f32 %v3452, %v3500
    %v3549 = vadd.f32 %v3453, %v3501
    %v3550 = vadd.f32 %v3454, %v3502
    %v3551 = vadd.f32 %v3455, %v3503
    %v3552 = vadd.f32 %v3456, %v3504
    %v3553 = vadd.f32 %v3457, %v3505
    %v3554 = vadd.f32 %v3458, %v3506
    %v3555 = vadd.f32 %v3459, %v3507
    %v3556 = vadd.f32 %v3460, %v3508
    %v3557 = vadd.f32 %v3461, %v3509
    %v3558 = vadd.f32 %v3462, %v3510
    %v3559 = vadd.f32 %v3463, %v3511
    %v3560 = vadd.f32 %v3464, %v3512
    %v3561 = vadd.f32 %v3465, %v3513
    %v3562 = vadd.f32 %v3466, %v3514
    %v3563 = vadd.f32 %v3467, %v3515
    %v3564 = vadd.f32 %v3468, %v3516
    %v3565 = vadd.f32 %v3469, %v3517
    %v3566 = vadd.f32 %v3470, %v3518
    %v3567 = vadd.f32 %v3471, %v3519
    %v3568 = vadd.f32 %v3472, %v3520
    %v3569 = vadd.f32 %v3473, %v3521
    %v3570 = vadd.f32 %v3474, %v3522
    %v3571 = vadd.f32 %v3475, %v3523
    %v3572 = vadd.f32 %v3476, %v3524
    %v3573 = vadd.f32 %v3477, %v3525
    %v3574 = vadd.f32 %v3478, %v3526
    %v3575 = vadd.f32 %v3479, %v3527
    %v3576 = vadd.f32 %v3480, %v3528
    %v3577 = vadd.f32 %v3481, %v3529
    %v3578 = vadd.f32 %v3482, %v3530
    %v3579 = vadd.f32 %v3483, %v3531
    %v3580 = vadd.f32 %v3484, %v3532
    %v3581 = vadd.f32 %v3485, %v3533
    %v3582 = vadd.f32 %v3486, %v3534
    %v3583 = vadd.f32 %v3487, %v3535
    %v3584 = vadd.f32 %v3488, %v3536
    %v3585 = vadd.f32 %v3489, %v3537
    %v3586 = vadd.f32 %v3490, %v3538
    %v3587 = vadd.f32 %v3491, %v3539
    %v3588 = vadd.f32 %v3492, %v3540
    %v3589 = vadd.f32 %v3493, %v3541
    %v3590 = vadd.f32 %v3494, %v3542
    %v3591 = vmul.f32 %v2367, %v848
    %v3592 = vmul.f32 %v2374, %v848
    %v3593 = vmul.f32 %v2381, %v848
    %v3594 = vmul.f32 %v2388, %v848
    %v3595 = vmul.f32 %v2395, %v848
    %v3596 = vmul.f32 %v2402, %v848
    %v3597 = vmul.f32 %v2409, %v848
    %v3598 = vmul.f32 %v2416, %v848
    %v3599 = vmul.f32 %v2423, %v848
    %v3600 = vmul.f32 %v2430, %v848
    %v3601 = vmul.f32 %v2617, %v848
    %v3602 = vmul.f32 %v2727, %v848
    %v3603 = vmul.f32 %v2851, %v848
    %v3604 = vmul.f32 %v2858, %v848
    %v3605 = vmul.f32 %v2865, %v848
    %v3606 = vmul.f32 %v2872, %v848
    %v3607 = vmul.f32 %v2879, %v848
    %v3608 = vmul.f32 %v2886, %v848
    %v3609 = vmul.f32 %v2893, %v848
    %v3610 = vmul.f32 %v2900, %v848
    %v3611 = vmul.f32 %v2907, %v848
    %v3612 = vmul.f32 %v2914, %v848
    %v3613 = vmul.f32 %v3101, %v848
    %v3614 = vmul.f32 %v3211, %v848
    %v3615 = vmul.f32 %v2451, %v852
    %v3616 = vmul.f32 %v2458, %v852
    %v3617 = vmul.f32 %v2465, %v852
    %v3618 = vmul.f32 %v2472, %v852
    %v3619 = vmul.f32 %v2479, %v852
    %v3620 = vmul.f32 %v2486, %v852
    %v3621 = vmul.f32 %v2493, %v852
    %v3622 = vmul.f32 %v2500, %v852
    %v3623 = vmul.f32 %v2507, %v852
    %v3624 = vmul.f32 %v2514, %v852
    %v3625 = vmul.f32 %v2624, %v852
    %v3626 = vmul.f32 %v2734, %v852
    %v3627 = vmul.f32 %v2935, %v852
    %v3628 = vmul.f32 %v2942, %v852
    %v3629 = vmul.f32 %v2949, %v852
    %v3630 = vmul.f32 %v2956, %v852
    %v3631 = vmul.f32 %v2963, %v852
    %v3632 = vmul.f32 %v2970, %v852
    %v3633 = vmul.f32 %v2977, %v852
    %v3634 = vmul.f32 %v2984, %v852
    %v3635 = vmul.f32 %v2991, %v852
    %v3636 = vmul.f32 %v2998, %v852
    %v3637 = vmul.f32 %v3108, %v852
    %v3638 = vmul.f32 %v3218, %v852
    %v3639 = vadd.f32 %v3543, %v3591
    %v3640 = vadd.f32 %v3544, %v3592
    %v3641 = vadd.f32 %v3545, %v3593
    %v3642 = vadd.f32 %v3546, %v3594
    %v3643 = vadd.f32 %v3547, %v3595
    %v3644 = vadd.f32 %v3548, %v3596
    %v3645 = vadd.f32 %v3549, %v3597
    %v3646 = vadd.f32 %v3550, %v3598
    %v3647 = vadd.f32 %v3551, %v3599
    %v3648 = vadd.f32 %v3552, %v3600
    %v3649 = vadd.f32 %v3553, %v3601
    %v3650 = vadd.f32 %v3554, %v3602
    %v3651 = vadd.f32 %v3555, %v3603
    %v3652 = vadd.f32 %v3556, %v3604
    %v3653 = vadd.f32 %v3557, %v3605
    %v3654 = vadd.f32 %v3558, %v3606
    %v3655 = vadd.f32 %v3559, %v3607
    %v3656 = vadd.f32 %v3560, %v3608
    %v3657 = vadd.f32 %v3561, %v3609
    %v3658 = vadd.f32 %v3562, %v3610
    %v3659 = vadd.f32 %v3563, %v3611
    %v3660 = vadd.f32 %v3564, %v3612
    %v3661 = vadd.f32 %v3565, %v3613
    %v3662 = vadd.f32 %v3566, %v3614
    %v3663 = vadd.f32 %v3567, %v3615
    %v3664 = vadd.f32 %v3568, %v3616
    %v3665 = vadd.f32 %v3569, %v3617
    %v3666 = vadd.f32 %v3570, %v3618
    %v3667 = vadd.f32 %v3571, %v3619
    %v3668 = vadd.f32 %v3572, %v3620
    %v3669 = vadd.f32 %v3573, %v3621
    %v3670 = vadd.f32 %v3574, %v3622
    %v3671 = vadd.f32 %v3575, %v3623
    %v3672 = vadd.f32 %v3576, %v3624
    %v3673 = vadd.f32 %v3577, %v3625
    %v3674 = vadd.f32 %v3578, %v3626
    %v3675 = vadd.f32 %v3579, %v3627
    %v3676 = vadd.f32 %v3580, %v3628
    %v3677 = vadd.f32 %v3581, %v3629
    %v3678 = vadd.f32 %v3582, %v3630
    %v3679 = vadd.f32 %v3583, %v3631
    %v3680 = vadd.f32 %v3584, %v3632
    %v3681 = vadd.f32 %v3585, %v3633
    %v3682 = vadd.f32 %v3586, %v3634
    %v3683 = vadd.f32 %v3587, %v3635
    %v3684 = vadd.f32 %v3588, %v3636
    %v3685 = vadd.f32 %v3589, %v3637
    %v3686 = vadd.f32 %v3590, %v3638
    %v3687 = vlaneseq
    %v3688 = vshrl.u32 %v3687, 7
    %v3689 = vsub.s32 0, %v3688
    %v3690 = vrot.slane %v221, %v3689
    %3692 = vbcast.lane.b32.xlu0 %v3690, 256
    %v3693 = vpop.permute.xlu0 %3692
    %v3694 = vlaneseq
    %v3695 = vshrl.u32 %v3694, 7
    %v3696 = vsub.s32 1, %v3695
    %v3697 = vrot.slane %v221, %v3696
    %3699 = vbcast.lane.b32.xlu0 %v3697, 256
    %v3700 = vpop.permute.xlu0 %3699
    %v3701 = vlaneseq
    %v3702 = vshrl.u32 %v3701, 7
    %v3703 = vsub.s32 2, %v3702
    %v3704 = vrot.slane %v221, %v3703
    %3706 = vbcast.lane.b32.xlu0 %v3704, 256
    %v3707 = vpop.permute.xlu0 %3706
    %v3708 = vlaneseq
    %v3709 = vshrl.u32 %v3708, 7
    %v3710 = vsub.s32 3, %v3709
    %v3711 = vrot.slane %v221, %v3710
    %3713 = vbcast.lane.b32.xlu0 %v3711, 256
    %v3714 = vpop.permute.xlu0 %3713
    %v3715 = vlaneseq
    %v3716 = vshrl.u32 %v3715, 7
    %v3717 = vsub.s32 4, %v3716
    %v3718 = vrot.slane %v221, %v3717
    %3720 = vbcast.lane.b32.xlu0 %v3718, 256
    %v3721 = vpop.permute.xlu0 %3720
    %v3722 = vlaneseq
    %v3723 = vshrl.u32 %v3722, 7
    %v3724 = vsub.s32 5, %v3723
    %v3725 = vrot.slane %v221, %v3724
    %3727 = vbcast.lane.b32.xlu0 %v3725, 256
    %v3728 = vpop.permute.xlu0 %3727
    %v3729 = vlaneseq
    %v3730 = vshrl.u32 %v3729, 7
    %v3731 = vsub.s32 6, %v3730
    %v3732 = vrot.slane %v221, %v3731
    %3734 = vbcast.lane.b32.xlu0 %v3732, 256
    %v3735 = vpop.permute.xlu0 %3734
    %v3736 = vlaneseq
    %v3737 = vshrl.u32 %v3736, 7
    %v3738 = vsub.s32 7, %v3737
    %v3739 = vrot.slane %v221, %v3738
    %3741 = vbcast.lane.b32.xlu0 %v3739, 256
    %v3742 = vpop.permute.xlu0 %3741
    %v3743 = vlaneseq
    %v3744 = vshrl.u32 %v3743, 7
    %v3745 = vsub.s32 0, %v3744
    %v3746 = vrot.slane %v222, %v3745
    %3748 = vbcast.lane.b32.xlu0 %v3746, 256
    %v3749 = vpop.permute.xlu0 %3748
    %v3750 = vlaneseq
    %v3751 = vshrl.u32 %v3750, 7
    %v3752 = vsub.s32 1, %v3751
    %v3753 = vrot.slane %v222, %v3752
    %3755 = vbcast.lane.b32.xlu0 %v3753, 256
    %v3756 = vpop.permute.xlu0 %3755
    %v3757 = vlaneseq
    %v3758 = vshrl.u32 %v3757, 7
    %v3759 = vsub.s32 2, %v3758
    %v3760 = vrot.slane %v222, %v3759
    %3762 = vbcast.lane.b32.xlu0 %v3760, 256
    %v3763 = vpop.permute.xlu0 %3762
    %v3764 = vlaneseq
    %v3765 = vshrl.u32 %v3764, 7
    %v3766 = vsub.s32 3, %v3765
    %v3767 = vrot.slane %v222, %v3766
    %3769 = vbcast.lane.b32.xlu0 %v3767, 256
    %v3770 = vpop.permute.xlu0 %3769
    %v3771 = vlaneseq
    %v3772 = vshrl.u32 %v3771, 7
    %v3773 = vsub.s32 0, %v3772
    %v3774 = vrot.slane %v249, %v3773
    %3776 = vbcast.lane.b32.xlu0 %v3774, 256
    %v3777 = vpop.permute.xlu0 %3776
    %v3778 = vlaneseq
    %v3779 = vshrl.u32 %v3778, 7
    %v3780 = vsub.s32 1, %v3779
    %v3781 = vrot.slane %v249, %v3780
    %3783 = vbcast.lane.b32.xlu0 %v3781, 256
    %v3784 = vpop.permute.xlu0 %3783
    %v3785 = vlaneseq
    %v3786 = vshrl.u32 %v3785, 7
    %v3787 = vsub.s32 2, %v3786
    %v3788 = vrot.slane %v249, %v3787
    %3790 = vbcast.lane.b32.xlu0 %v3788, 256
    %v3791 = vpop.permute.xlu0 %3790
    %v3792 = vlaneseq
    %v3793 = vshrl.u32 %v3792, 7
    %v3794 = vsub.s32 3, %v3793
    %v3795 = vrot.slane %v249, %v3794
    %3797 = vbcast.lane.b32.xlu0 %v3795, 256
    %v3798 = vpop.permute.xlu0 %3797
    %v3799 = vlaneseq
    %v3800 = vshrl.u32 %v3799, 7
    %v3801 = vsub.s32 4, %v3800
    %v3802 = vrot.slane %v249, %v3801
    %3804 = vbcast.lane.b32.xlu0 %v3802, 256
    %v3805 = vpop.permute.xlu0 %3804
    %v3806 = vlaneseq
    %v3807 = vshrl.u32 %v3806, 7
    %v3808 = vsub.s32 5, %v3807
    %v3809 = vrot.slane %v249, %v3808
    %3811 = vbcast.lane.b32.xlu0 %v3809, 256
    %v3812 = vpop.permute.xlu0 %3811
    %v3813 = vlaneseq
    %v3814 = vshrl.u32 %v3813, 7
    %v3815 = vsub.s32 6, %v3814
    %v3816 = vrot.slane %v249, %v3815
    %3818 = vbcast.lane.b32.xlu0 %v3816, 256
    %v3819 = vpop.permute.xlu0 %3818
    %v3820 = vlaneseq
    %v3821 = vshrl.u32 %v3820, 7
    %v3822 = vsub.s32 7, %v3821
    %v3823 = vrot.slane %v249, %v3822
    %3825 = vbcast.lane.b32.xlu0 %v3823, 256
    %v3826 = vpop.permute.xlu0 %3825
    %v3827 = vlaneseq
    %v3828 = vshrl.u32 %v3827, 7
    %v3829 = vsub.s32 0, %v3828
    %v3830 = vrot.slane %v250, %v3829
    %3832 = vbcast.lane.b32.xlu0 %v3830, 256
    %v3833 = vpop.permute.xlu0 %3832
    %v3834 = vlaneseq
    %v3835 = vshrl.u32 %v3834, 7
    %v3836 = vsub.s32 1, %v3835
    %v3837 = vrot.slane %v250, %v3836
    %3839 = vbcast.lane.b32.xlu0 %v3837, 256
    %v3840 = vpop.permute.xlu0 %3839
    %v3841 = vlaneseq
    %v3842 = vshrl.u32 %v3841, 7
    %v3843 = vsub.s32 2, %v3842
    %v3844 = vrot.slane %v250, %v3843
    %3846 = vbcast.lane.b32.xlu0 %v3844, 256
    %v3847 = vpop.permute.xlu0 %3846
    %v3848 = vlaneseq
    %v3849 = vshrl.u32 %v3848, 7
    %v3850 = vsub.s32 3, %v3849
    %v3851 = vrot.slane %v250, %v3850
    %3853 = vbcast.lane.b32.xlu0 %v3851, 256
    %v3854 = vpop.permute.xlu0 %3853
    %v3855 = vmul.f32 %v2837, %v1120
    %v3856 = vmul.f32 %v2844, %v1120
    %v3857 = vmul.f32 %v2851, %v1120
    %v3858 = vmul.f32 %v2858, %v1120
    %v3859 = vmul.f32 %v2865, %v1120
    %v3860 = vmul.f32 %v2872, %v1120
    %v3861 = vmul.f32 %v2879, %v1120
    %v3862 = vmul.f32 %v2886, %v1120
    %v3863 = vmul.f32 %v2893, %v1120
    %v3864 = vmul.f32 %v2900, %v1120
    %v3865 = vmul.f32 %v2907, %v1120
    %v3866 = vmul.f32 %v2914, %v1120
    %v3867 = vmul.f32 %v3693, %v1120
    %v3868 = vmul.f32 %v3700, %v1120
    %v3869 = vmul.f32 %v3707, %v1120
    %v3870 = vmul.f32 %v3714, %v1120
    %v3871 = vmul.f32 %v3721, %v1120
    %v3872 = vmul.f32 %v3728, %v1120
    %v3873 = vmul.f32 %v3735, %v1120
    %v3874 = vmul.f32 %v3742, %v1120
    %v3875 = vmul.f32 %v3749, %v1120
    %v3876 = vmul.f32 %v3756, %v1120
    %v3877 = vmul.f32 %v3763, %v1120
    %v3878 = vmul.f32 %v3770, %v1120
    %v3879 = vmul.f32 %v2921, %v1124
    %v3880 = vmul.f32 %v2928, %v1124
    %v3881 = vmul.f32 %v2935, %v1124
    %v3882 = vmul.f32 %v2942, %v1124
    %v3883 = vmul.f32 %v2949, %v1124
    %v3884 = vmul.f32 %v2956, %v1124
    %v3885 = vmul.f32 %v2963, %v1124
    %v3886 = vmul.f32 %v2970, %v1124
    %v3887 = vmul.f32 %v2977, %v1124
    %v3888 = vmul.f32 %v2984, %v1124
    %v3889 = vmul.f32 %v2991, %v1124
    %v3890 = vmul.f32 %v2998, %v1124
    %v3891 = vmul.f32 %v3777, %v1124
    %v3892 = vmul.f32 %v3784, %v1124
    %v3893 = vmul.f32 %v3791, %v1124
    %v3894 = vmul.f32 %v3798, %v1124
    %v3895 = vmul.f32 %v3805, %v1124
    %v3896 = vmul.f32 %v3812, %v1124
    %v3897 = vmul.f32 %v3819, %v1124
    %v3898 = vmul.f32 %v3826, %v1124
    %v3899 = vmul.f32 %v3833, %v1124
    %v3900 = vmul.f32 %v3840, %v1124
    %v3901 = vmul.f32 %v3847, %v1124
    %v3902 = vmul.f32 %v3854, %v1124
    %v3903 = vadd.f32 %v3639, %v3855
    %v3904 = vadd.f32 %v3640, %v3856
    %v3905 = vadd.f32 %v3641, %v3857
    %v3906 = vadd.f32 %v3642, %v3858
    %v3907 = vadd.f32 %v3643, %v3859
    %v3908 = vadd.f32 %v3644, %v3860
    %v3909 = vadd.f32 %v3645, %v3861
    %v3910 = vadd.f32 %v3646, %v3862
    %v3911 = vadd.f32 %v3647, %v3863
    %v3912 = vadd.f32 %v3648, %v3864
    %v3913 = vadd.f32 %v3649, %v3865
    %v3914 = vadd.f32 %v3650, %v3866
    %v3915 = vadd.f32 %v3651, %v3867
    %v3916 = vadd.f32 %v3652, %v3868
    %v3917 = vadd.f32 %v3653, %v3869
    %v3918 = vadd.f32 %v3654, %v3870
    %v3919 = vadd.f32 %v3655, %v3871
    %v3920 = vadd.f32 %v3656, %v3872
    %v3921 = vadd.f32 %v3657, %v3873
    %v3922 = vadd.f32 %v3658, %v3874
    %v3923 = vadd.f32 %v3659, %v3875
    %v3924 = vadd.f32 %v3660, %v3876
    %v3925 = vadd.f32 %v3661, %v3877
    %v3926 = vadd.f32 %v3662, %v3878
    %v3927 = vadd.f32 %v3663, %v3879
    %v3928 = vadd.f32 %v3664, %v3880
    %v3929 = vadd.f32 %v3665, %v3881
    %v3930 = vadd.f32 %v3666, %v3882
    %v3931 = vadd.f32 %v3667, %v3883
    %v3932 = vadd.f32 %v3668, %v3884
    %v3933 = vadd.f32 %v3669, %v3885
    %v3934 = vadd.f32 %v3670, %v3886
    %v3935 = vadd.f32 %v3671, %v3887
    %v3936 = vadd.f32 %v3672, %v3888
    %v3937 = vadd.f32 %v3673, %v3889
    %v3938 = vadd.f32 %v3674, %v3890
    %v3939 = vadd.f32 %v3675, %v3891
    %v3940 = vadd.f32 %v3676, %v3892
    %v3941 = vadd.f32 %v3677, %v3893
    %v3942 = vadd.f32 %v3678, %v3894
    %v3943 = vadd.f32 %v3679, %v3895
    %v3944 = vadd.f32 %v3680, %v3896
    %v3945 = vadd.f32 %v3681, %v3897
    %v3946 = vadd.f32 %v3682, %v3898
    %v3947 = vadd.f32 %v3683, %v3899
    %v3948 = vadd.f32 %v3684, %v3900
    %v3949 = vadd.f32 %v3685, %v3901
    %v3950 = vadd.f32 %v3686, %v3902
    %v3951 = vlaneseq
    %v3952 = vshrl.u32 %v3951, 7
    %v3953 = vsub.s32 4, %v3952
    %v3954 = vrot.slane %v222, %v3953
    %3956 = vbcast.lane.b32.xlu0 %v3954, 256
    %v3957 = vpop.permute.xlu0 %3956
    %v3958 = vlaneseq
    %v3959 = vshrl.u32 %v3958, 7
    %v3960 = vsub.s32 4, %v3959
    %v3961 = vrot.slane %v250, %v3960
    %3963 = vbcast.lane.b32.xlu0 %v3961, 256
    %v3964 = vpop.permute.xlu0 %3963
    %v3965 = vmul.f32 %v2844, %v1238
    %v3966 = vmul.f32 %v2851, %v1238
    %v3967 = vmul.f32 %v2858, %v1238
    %v3968 = vmul.f32 %v2865, %v1238
    %v3969 = vmul.f32 %v2872, %v1238
    %v3970 = vmul.f32 %v2879, %v1238
    %v3971 = vmul.f32 %v2886, %v1238
    %v3972 = vmul.f32 %v2893, %v1238
    %v3973 = vmul.f32 %v2900, %v1238
    %v3974 = vmul.f32 %v2907, %v1238
    %v3975 = vmul.f32 %v2914, %v1238
    %v3976 = vmul.f32 %v3101, %v1238
    %v3977 = vmul.f32 %v3700, %v1238
    %v3978 = vmul.f32 %v3707, %v1238
    %v3979 = vmul.f32 %v3714, %v1238
    %v3980 = vmul.f32 %v3721, %v1238
    %v3981 = vmul.f32 %v3728, %v1238
    %v3982 = vmul.f32 %v3735, %v1238
    %v3983 = vmul.f32 %v3742, %v1238
    %v3984 = vmul.f32 %v3749, %v1238
    %v3985 = vmul.f32 %v3756, %v1238
    %v3986 = vmul.f32 %v3763, %v1238
    %v3987 = vmul.f32 %v3770, %v1238
    %v3988 = vmul.f32 %v3957, %v1238
    %v3989 = vmul.f32 %v2928, %v1242
    %v3990 = vmul.f32 %v2935, %v1242
    %v3991 = vmul.f32 %v2942, %v1242
    %v3992 = vmul.f32 %v2949, %v1242
    %v3993 = vmul.f32 %v2956, %v1242
    %v3994 = vmul.f32 %v2963, %v1242
    %v3995 = vmul.f32 %v2970, %v1242
    %v3996 = vmul.f32 %v2977, %v1242
    %v3997 = vmul.f32 %v2984, %v1242
    %v3998 = vmul.f32 %v2991, %v1242
    %v3999 = vmul.f32 %v2998, %v1242
    %v4000 = vmul.f32 %v3108, %v1242
    %v4001 = vmul.f32 %v3784, %v1242
    %v4002 = vmul.f32 %v3791, %v1242
    %v4003 = vmul.f32 %v3798, %v1242
    %v4004 = vmul.f32 %v3805, %v1242
    %v4005 = vmul.f32 %v3812, %v1242
    %v4006 = vmul.f32 %v3819, %v1242
    %v4007 = vmul.f32 %v3826, %v1242
    %v4008 = vmul.f32 %v3833, %v1242
    %v4009 = vmul.f32 %v3840, %v1242
    %v4010 = vmul.f32 %v3847, %v1242
    %v4011 = vmul.f32 %v3854, %v1242
    %v4012 = vmul.f32 %v3964, %v1242
    %v4013 = vadd.f32 %v3903, %v3965
    %v4014 = vadd.f32 %v3904, %v3966
    %v4015 = vadd.f32 %v3905, %v3967
    %v4016 = vadd.f32 %v3906, %v3968
    %v4017 = vadd.f32 %v3907, %v3969
    %v4018 = vadd.f32 %v3908, %v3970
    %v4019 = vadd.f32 %v3909, %v3971
    %v4020 = vadd.f32 %v3910, %v3972
    %v4021 = vadd.f32 %v3911, %v3973
    %v4022 = vadd.f32 %v3912, %v3974
    %v4023 = vadd.f32 %v3913, %v3975
    %v4024 = vadd.f32 %v3914, %v3976
    %v4025 = vadd.f32 %v3915, %v3977
    %v4026 = vadd.f32 %v3916, %v3978
    %v4027 = vadd.f32 %v3917, %v3979
    %v4028 = vadd.f32 %v3918, %v3980
    %v4029 = vadd.f32 %v3919, %v3981
    %v4030 = vadd.f32 %v3920, %v3982
    %v4031 = vadd.f32 %v3921, %v3983
    %v4032 = vadd.f32 %v3922, %v3984
    %v4033 = vadd.f32 %v3923, %v3985
    %v4034 = vadd.f32 %v3924, %v3986
    %v4035 = vadd.f32 %v3925, %v3987
    %v4036 = vadd.f32 %v3926, %v3988
    %v4037 = vadd.f32 %v3927, %v3989
    %v4038 = vadd.f32 %v3928, %v3990
    %v4039 = vadd.f32 %v3929, %v3991
    %v4040 = vadd.f32 %v3930, %v3992
    %v4041 = vadd.f32 %v3931, %v3993
    %v4042 = vadd.f32 %v3932, %v3994
    %v4043 = vadd.f32 %v3933, %v3995
    %v4044 = vadd.f32 %v3934, %v3996
    %v4045 = vadd.f32 %v3935, %v3997
    %v4046 = vadd.f32 %v3936, %v3998
    %v4047 = vadd.f32 %v3937, %v3999
    %v4048 = vadd.f32 %v3938, %v4000
    %v4049 = vadd.f32 %v3939, %v4001
    %v4050 = vadd.f32 %v3940, %v4002
    %v4051 = vadd.f32 %v3941, %v4003
    %v4052 = vadd.f32 %v3942, %v4004
    %v4053 = vadd.f32 %v3943, %v4005
    %v4054 = vadd.f32 %v3944, %v4006
    %v4055 = vadd.f32 %v3945, %v4007
    %v4056 = vadd.f32 %v3946, %v4008
    %v4057 = vadd.f32 %v3947, %v4009
    %v4058 = vadd.f32 %v3948, %v4010
    %v4059 = vadd.f32 %v3949, %v4011
    %v4060 = vadd.f32 %v3950, %v4012
    %v4061 = vlaneseq
    %v4062 = vshrl.u32 %v4061, 7
    %v4063 = vsub.s32 5, %v4062
    %v4064 = vrot.slane %v222, %v4063
    %4066 = vbcast.lane.b32.xlu0 %v4064, 256
    %v4067 = vpop.permute.xlu0 %4066
    %v4068 = vlaneseq
    %v4069 = vshrl.u32 %v4068, 7
    %v4070 = vsub.s32 5, %v4069
    %v4071 = vrot.slane %v250, %v4070
    %4073 = vbcast.lane.b32.xlu0 %v4071, 256
    %v4074 = vpop.permute.xlu0 %4073
    %v4075 = vmul.f32 %v2851, %v1356
    %v4076 = vmul.f32 %v2858, %v1356
    %v4077 = vmul.f32 %v2865, %v1356
    %v4078 = vmul.f32 %v2872, %v1356
    %v4079 = vmul.f32 %v2879, %v1356
    %v4080 = vmul.f32 %v2886, %v1356
    %v4081 = vmul.f32 %v2893, %v1356
    %v4082 = vmul.f32 %v2900, %v1356
    %v4083 = vmul.f32 %v2907, %v1356
    %v4084 = vmul.f32 %v2914, %v1356
    %v4085 = vmul.f32 %v3101, %v1356
    %v4086 = vmul.f32 %v3211, %v1356
    %v4087 = vmul.f32 %v3707, %v1356
    %v4088 = vmul.f32 %v3714, %v1356
    %v4089 = vmul.f32 %v3721, %v1356
    %v4090 = vmul.f32 %v3728, %v1356
    %v4091 = vmul.f32 %v3735, %v1356
    %v4092 = vmul.f32 %v3742, %v1356
    %v4093 = vmul.f32 %v3749, %v1356
    %v4094 = vmul.f32 %v3756, %v1356
    %v4095 = vmul.f32 %v3763, %v1356
    %v4096 = vmul.f32 %v3770, %v1356
    %v4097 = vmul.f32 %v3957, %v1356
    %v4098 = vmul.f32 %v4067, %v1356
    %v4099 = vmul.f32 %v2935, %v1360
    %v4100 = vmul.f32 %v2942, %v1360
    %v4101 = vmul.f32 %v2949, %v1360
    %v4102 = vmul.f32 %v2956, %v1360
    %v4103 = vmul.f32 %v2963, %v1360
    %v4104 = vmul.f32 %v2970, %v1360
    %v4105 = vmul.f32 %v2977, %v1360
    %v4106 = vmul.f32 %v2984, %v1360
    %v4107 = vmul.f32 %v2991, %v1360
    %v4108 = vmul.f32 %v2998, %v1360
    %v4109 = vmul.f32 %v3108, %v1360
    %v4110 = vmul.f32 %v3218, %v1360
    %v4111 = vmul.f32 %v3791, %v1360
    %v4112 = vmul.f32 %v3798, %v1360
    %v4113 = vmul.f32 %v3805, %v1360
    %v4114 = vmul.f32 %v3812, %v1360
    %v4115 = vmul.f32 %v3819, %v1360
    %v4116 = vmul.f32 %v3826, %v1360
    %v4117 = vmul.f32 %v3833, %v1360
    %v4118 = vmul.f32 %v3840, %v1360
    %v4119 = vmul.f32 %v3847, %v1360
    %v4120 = vmul.f32 %v3854, %v1360
    %v4121 = vmul.f32 %v3964, %v1360
    %v4122 = vmul.f32 %v4074, %v1360
    %v4123 = vadd.f32 %v4013, %v4075
    %v4124 = vadd.f32 %v4014, %v4076
    %v4125 = vadd.f32 %v4015, %v4077
    %v4126 = vadd.f32 %v4016, %v4078
    %v4127 = vadd.f32 %v4017, %v4079
    %v4128 = vadd.f32 %v4018, %v4080
    %v4129 = vadd.f32 %v4019, %v4081
    %v4130 = vadd.f32 %v4020, %v4082
    %v4131 = vadd.f32 %v4021, %v4083
    %v4132 = vadd.f32 %v4022, %v4084
    %v4133 = vadd.f32 %v4023, %v4085
    %v4134 = vadd.f32 %v4024, %v4086
    %v4135 = vadd.f32 %v4025, %v4087
    %v4136 = vadd.f32 %v4026, %v4088
    %v4137 = vadd.f32 %v4027, %v4089
    %v4138 = vadd.f32 %v4028, %v4090
    %v4139 = vadd.f32 %v4029, %v4091
    %v4140 = vadd.f32 %v4030, %v4092
    %v4141 = vadd.f32 %v4031, %v4093
    %v4142 = vadd.f32 %v4032, %v4094
    %v4143 = vadd.f32 %v4033, %v4095
    %v4144 = vadd.f32 %v4034, %v4096
    %v4145 = vadd.f32 %v4035, %v4097
    %v4146 = vadd.f32 %v4036, %v4098
    %v4147 = vadd.f32 %v4037, %v4099
    %v4148 = vadd.f32 %v4038, %v4100
    %v4149 = vadd.f32 %v4039, %v4101
    %v4150 = vadd.f32 %v4040, %v4102
    %v4151 = vadd.f32 %v4041, %v4103
    %v4152 = vadd.f32 %v4042, %v4104
    %v4153 = vadd.f32 %v4043, %v4105
    %v4154 = vadd.f32 %v4044, %v4106
    %v4155 = vadd.f32 %v4045, %v4107
    %v4156 = vadd.f32 %v4046, %v4108
    %v4157 = vadd.f32 %v4047, %v4109
    %v4158 = vadd.f32 %v4048, %v4110
    %v4159 = vadd.f32 %v4049, %v4111
    %v4160 = vadd.f32 %v4050, %v4112
    %v4161 = vadd.f32 %v4051, %v4113
    %v4162 = vadd.f32 %v4052, %v4114
    %v4163 = vadd.f32 %v4053, %v4115
    %v4164 = vadd.f32 %v4054, %v4116
    %v4165 = vadd.f32 %v4055, %v4117
    %v4166 = vadd.f32 %v4056, %v4118
    %v4167 = vadd.f32 %v4057, %v4119
    %v4168 = vadd.f32 %v4058, %v4120
    %v4169 = vadd.f32 %v4059, %v4121
    %v4170 = vadd.f32 %v4060, %v4122
    %v4171 = vlaneseq
    %v4172 = vshrl.u32 %v4171, 7
    %v4173 = vsub.s32 0, %v4172
    %v4174 = vrot.slane %v223, %v4173
    %4176 = vbcast.lane.b32.xlu0 %v4174, 256
    %v4177 = vpop.permute.xlu0 %4176
    %v4178 = vlaneseq
    %v4179 = vshrl.u32 %v4178, 7
    %v4180 = vsub.s32 1, %v4179
    %v4181 = vrot.slane %v223, %v4180
    %4183 = vbcast.lane.b32.xlu0 %v4181, 256
    %v4184 = vpop.permute.xlu0 %4183
    %v4185 = vlaneseq
    %v4186 = vshrl.u32 %v4185, 7
    %v4187 = vsub.s32 2, %v4186
    %v4188 = vrot.slane %v223, %v4187
    %4190 = vbcast.lane.b32.xlu0 %v4188, 256
    %v4191 = vpop.permute.xlu0 %4190
    %v4192 = vlaneseq
    %v4193 = vshrl.u32 %v4192, 7
    %v4194 = vsub.s32 3, %v4193
    %v4195 = vrot.slane %v223, %v4194
    %4197 = vbcast.lane.b32.xlu0 %v4195, 256
    %v4198 = vpop.permute.xlu0 %4197
    %v4199 = vlaneseq
    %v4200 = vshrl.u32 %v4199, 7
    %v4201 = vsub.s32 4, %v4200
    %v4202 = vrot.slane %v223, %v4201
    %4204 = vbcast.lane.b32.xlu0 %v4202, 256
    %v4205 = vpop.permute.xlu0 %4204
    %v4206 = vlaneseq
    %v4207 = vshrl.u32 %v4206, 7
    %v4208 = vsub.s32 5, %v4207
    %v4209 = vrot.slane %v223, %v4208
    %4211 = vbcast.lane.b32.xlu0 %v4209, 256
    %v4212 = vpop.permute.xlu0 %4211
    %v4213 = vlaneseq
    %v4214 = vshrl.u32 %v4213, 7
    %v4215 = vsub.s32 6, %v4214
    %v4216 = vrot.slane %v223, %v4215
    %4218 = vbcast.lane.b32.xlu0 %v4216, 256
    %v4219 = vpop.permute.xlu0 %4218
    %v4220 = vlaneseq
    %v4221 = vshrl.u32 %v4220, 7
    %v4222 = vsub.s32 7, %v4221
    %v4223 = vrot.slane %v223, %v4222
    %4225 = vbcast.lane.b32.xlu0 %v4223, 256
    %v4226 = vpop.permute.xlu0 %4225
    %v4227 = vlaneseq
    %v4228 = vshrl.u32 %v4227, 7
    %v4229 = vsub.s32 0, %v4228
    %v4230 = vrot.slane %v224, %v4229
    %4232 = vbcast.lane.b32.xlu0 %v4230, 256
    %v4233 = vpop.permute.xlu0 %4232
    %v4234 = vlaneseq
    %v4235 = vshrl.u32 %v4234, 7
    %v4236 = vsub.s32 1, %v4235
    %v4237 = vrot.slane %v224, %v4236
    %4239 = vbcast.lane.b32.xlu0 %v4237, 256
    %v4240 = vpop.permute.xlu0 %4239
    %v4241 = vlaneseq
    %v4242 = vshrl.u32 %v4241, 7
    %v4243 = vsub.s32 2, %v4242
    %v4244 = vrot.slane %v224, %v4243
    %4246 = vbcast.lane.b32.xlu0 %v4244, 256
    %v4247 = vpop.permute.xlu0 %4246
    %v4248 = vlaneseq
    %v4249 = vshrl.u32 %v4248, 7
    %v4250 = vsub.s32 3, %v4249
    %v4251 = vrot.slane %v224, %v4250
    %4253 = vbcast.lane.b32.xlu0 %v4251, 256
    %v4254 = vpop.permute.xlu0 %4253
    %v4255 = vlaneseq
    %v4256 = vshrl.u32 %v4255, 7
    %v4257 = vsub.s32 0, %v4256
    %v4258 = vrot.slane %v251, %v4257
    %4260 = vbcast.lane.b32.xlu0 %v4258, 256
    %v4261 = vpop.permute.xlu0 %4260
    %v4262 = vlaneseq
    %v4263 = vshrl.u32 %v4262, 7
    %v4264 = vsub.s32 1, %v4263
    %v4265 = vrot.slane %v251, %v4264
    %4267 = vbcast.lane.b32.xlu0 %v4265, 256
    %v4268 = vpop.permute.xlu0 %4267
    %v4269 = vlaneseq
    %v4270 = vshrl.u32 %v4269, 7
    %v4271 = vsub.s32 2, %v4270
    %v4272 = vrot.slane %v251, %v4271
    %4274 = vbcast.lane.b32.xlu0 %v4272, 256
    %v4275 = vpop.permute.xlu0 %4274
    %v4276 = vlaneseq
    %v4277 = vshrl.u32 %v4276, 7
    %v4278 = vsub.s32 3, %v4277
    %v4279 = vrot.slane %v251, %v4278
    %4281 = vbcast.lane.b32.xlu0 %v4279, 256
    %v4282 = vpop.permute.xlu0 %4281
    %v4283 = vlaneseq
    %v4284 = vshrl.u32 %v4283, 7
    %v4285 = vsub.s32 4, %v4284
    %v4286 = vrot.slane %v251, %v4285
    %4288 = vbcast.lane.b32.xlu0 %v4286, 256
    %v4289 = vpop.permute.xlu0 %4288
    %v4290 = vlaneseq
    %v4291 = vshrl.u32 %v4290, 7
    %v4292 = vsub.s32 5, %v4291
    %v4293 = vrot.slane %v251, %v4292
    %4295 = vbcast.lane.b32.xlu0 %v4293, 256
    %v4296 = vpop.permute.xlu0 %4295
    %v4297 = vlaneseq
    %v4298 = vshrl.u32 %v4297, 7
    %v4299 = vsub.s32 6, %v4298
    %v4300 = vrot.slane %v251, %v4299
    %4302 = vbcast.lane.b32.xlu0 %v4300, 256
    %v4303 = vpop.permute.xlu0 %4302
    %v4304 = vlaneseq
    %v4305 = vshrl.u32 %v4304, 7
    %v4306 = vsub.s32 7, %v4305
    %v4307 = vrot.slane %v251, %v4306
    %4309 = vbcast.lane.b32.xlu0 %v4307, 256
    %v4310 = vpop.permute.xlu0 %4309
    %v4311 = vlaneseq
    %v4312 = vshrl.u32 %v4311, 7
    %v4313 = vsub.s32 0, %v4312
    %v4314 = vrot.slane %v252, %v4313
    %4316 = vbcast.lane.b32.xlu0 %v4314, 256
    %v4317 = vpop.permute.xlu0 %4316
    %v4318 = vlaneseq
    %v4319 = vshrl.u32 %v4318, 7
    %v4320 = vsub.s32 1, %v4319
    %v4321 = vrot.slane %v252, %v4320
    %4323 = vbcast.lane.b32.xlu0 %v4321, 256
    %v4324 = vpop.permute.xlu0 %4323
    %v4325 = vlaneseq
    %v4326 = vshrl.u32 %v4325, 7
    %v4327 = vsub.s32 2, %v4326
    %v4328 = vrot.slane %v252, %v4327
    %4330 = vbcast.lane.b32.xlu0 %v4328, 256
    %v4331 = vpop.permute.xlu0 %4330
    %v4332 = vlaneseq
    %v4333 = vshrl.u32 %v4332, 7
    %v4334 = vsub.s32 3, %v4333
    %v4335 = vrot.slane %v252, %v4334
    %4337 = vbcast.lane.b32.xlu0 %v4335, 256
    %v4338 = vpop.permute.xlu0 %4337
    %v4339 = vmul.f32 %v3693, %v1628
    %v4340 = vmul.f32 %v3700, %v1628
    %v4341 = vmul.f32 %v3707, %v1628
    %v4342 = vmul.f32 %v3714, %v1628
    %v4343 = vmul.f32 %v3721, %v1628
    %v4344 = vmul.f32 %v3728, %v1628
    %v4345 = vmul.f32 %v3735, %v1628
    %v4346 = vmul.f32 %v3742, %v1628
    %v4347 = vmul.f32 %v3749, %v1628
    %v4348 = vmul.f32 %v3756, %v1628
    %v4349 = vmul.f32 %v3763, %v1628
    %v4350 = vmul.f32 %v3770, %v1628
    %v4351 = vmul.f32 %v4177, %v1628
    %v4352 = vmul.f32 %v4184, %v1628
    %v4353 = vmul.f32 %v4191, %v1628
    %v4354 = vmul.f32 %v4198, %v1628
    %v4355 = vmul.f32 %v4205, %v1628
    %v4356 = vmul.f32 %v4212, %v1628
    %v4357 = vmul.f32 %v4219, %v1628
    %v4358 = vmul.f32 %v4226, %v1628
    %v4359 = vmul.f32 %v4233, %v1628
    %v4360 = vmul.f32 %v4240, %v1628
    %v4361 = vmul.f32 %v4247, %v1628
    %v4362 = vmul.f32 %v4254, %v1628
    %v4363 = vmul.f32 %v3777, %v1632
    %v4364 = vmul.f32 %v3784, %v1632
    %v4365 = vmul.f32 %v3791, %v1632
    %v4366 = vmul.f32 %v3798, %v1632
    %v4367 = vmul.f32 %v3805, %v1632
    %v4368 = vmul.f32 %v3812, %v1632
    %v4369 = vmul.f32 %v3819, %v1632
    %v4370 = vmul.f32 %v3826, %v1632
    %v4371 = vmul.f32 %v3833, %v1632
    %v4372 = vmul.f32 %v3840, %v1632
    %v4373 = vmul.f32 %v3847, %v1632
    %v4374 = vmul.f32 %v3854, %v1632
    %v4375 = vmul.f32 %v4261, %v1632
    %v4376 = vmul.f32 %v4268, %v1632
    %v4377 = vmul.f32 %v4275, %v1632
    %v4378 = vmul.f32 %v4282, %v1632
    %v4379 = vmul.f32 %v4289, %v1632
    %v4380 = vmul.f32 %v4296, %v1632
    %v4381 = vmul.f32 %v4303, %v1632
    %v4382 = vmul.f32 %v4310, %v1632
    %v4383 = vmul.f32 %v4317, %v1632
    %v4384 = vmul.f32 %v4324, %v1632
    %v4385 = vmul.f32 %v4331, %v1632
    %v4386 = vmul.f32 %v4338, %v1632
    %v4387 = vadd.f32 %v4123, %v4339
    %v4388 = vadd.f32 %v4124, %v4340
    %v4389 = vadd.f32 %v4125, %v4341
    %v4390 = vadd.f32 %v4126, %v4342
    %v4391 = vadd.f32 %v4127, %v4343
    %v4392 = vadd.f32 %v4128, %v4344
    %v4393 = vadd.f32 %v4129, %v4345
    %v4394 = vadd.f32 %v4130, %v4346
    %v4395 = vadd.f32 %v4131, %v4347
    %v4396 = vadd.f32 %v4132, %v4348
    %v4397 = vadd.f32 %v4133, %v4349
    %v4398 = vadd.f32 %v4134, %v4350
    %v4399 = vadd.f32 %v4135, %v4351
    %v4400 = vadd.f32 %v4136, %v4352
    %v4401 = vadd.f32 %v4137, %v4353
    %v4402 = vadd.f32 %v4138, %v4354
    %v4403 = vadd.f32 %v4139, %v4355
    %v4404 = vadd.f32 %v4140, %v4356
    %v4405 = vadd.f32 %v4141, %v4357
    %v4406 = vadd.f32 %v4142, %v4358
    %v4407 = vadd.f32 %v4143, %v4359
    %v4408 = vadd.f32 %v4144, %v4360
    %v4409 = vadd.f32 %v4145, %v4361
    %v4410 = vadd.f32 %v4146, %v4362
    %v4411 = vadd.f32 %v4147, %v4363
    %v4412 = vadd.f32 %v4148, %v4364
    %v4413 = vadd.f32 %v4149, %v4365
    %v4414 = vadd.f32 %v4150, %v4366
    %v4415 = vadd.f32 %v4151, %v4367
    %v4416 = vadd.f32 %v4152, %v4368
    %v4417 = vadd.f32 %v4153, %v4369
    %v4418 = vadd.f32 %v4154, %v4370
    %v4419 = vadd.f32 %v4155, %v4371
    %v4420 = vadd.f32 %v4156, %v4372
    %v4421 = vadd.f32 %v4157, %v4373
    %v4422 = vadd.f32 %v4158, %v4374
    %v4423 = vadd.f32 %v4159, %v4375
    %v4424 = vadd.f32 %v4160, %v4376
    %v4425 = vadd.f32 %v4161, %v4377
    %v4426 = vadd.f32 %v4162, %v4378
    %v4427 = vadd.f32 %v4163, %v4379
    %v4428 = vadd.f32 %v4164, %v4380
    %v4429 = vadd.f32 %v4165, %v4381
    %v4430 = vadd.f32 %v4166, %v4382
    %v4431 = vadd.f32 %v4167, %v4383
    %v4432 = vadd.f32 %v4168, %v4384
    %v4433 = vadd.f32 %v4169, %v4385
    %v4434 = vadd.f32 %v4170, %v4386
    %v4435 = vlaneseq
    %v4436 = vshrl.u32 %v4435, 7
    %v4437 = vsub.s32 4, %v4436
    %v4438 = vrot.slane %v224, %v4437
    %4440 = vbcast.lane.b32.xlu0 %v4438, 256
    %v4441 = vpop.permute.xlu0 %4440
    %v4442 = vlaneseq
    %v4443 = vshrl.u32 %v4442, 7
    %v4444 = vsub.s32 4, %v4443
    %v4445 = vrot.slane %v252, %v4444
    %4447 = vbcast.lane.b32.xlu0 %v4445, 256
    %v4448 = vpop.permute.xlu0 %4447
    %v4449 = vmul.f32 %v3700, %v1746
    %v4450 = vmul.f32 %v3707, %v1746
    %v4451 = vmul.f32 %v3714, %v1746
    %v4452 = vmul.f32 %v3721, %v1746
    %v4453 = vmul.f32 %v3728, %v1746
    %v4454 = vmul.f32 %v3735, %v1746
    %v4455 = vmul.f32 %v3742, %v1746
    %v4456 = vmul.f32 %v3749, %v1746
    %v4457 = vmul.f32 %v3756, %v1746
    %v4458 = vmul.f32 %v3763, %v1746
    %v4459 = vmul.f32 %v3770, %v1746
    %v4460 = vmul.f32 %v3957, %v1746
    %v4461 = vmul.f32 %v4184, %v1746
    %v4462 = vmul.f32 %v4191, %v1746
    %v4463 = vmul.f32 %v4198, %v1746
    %v4464 = vmul.f32 %v4205, %v1746
    %v4465 = vmul.f32 %v4212, %v1746
    %v4466 = vmul.f32 %v4219, %v1746
    %v4467 = vmul.f32 %v4226, %v1746
    %v4468 = vmul.f32 %v4233, %v1746
    %v4469 = vmul.f32 %v4240, %v1746
    %v4470 = vmul.f32 %v4247, %v1746
    %v4471 = vmul.f32 %v4254, %v1746
    %v4472 = vmul.f32 %v4441, %v1746
    %v4473 = vmul.f32 %v3784, %v1750
    %v4474 = vmul.f32 %v3791, %v1750
    %v4475 = vmul.f32 %v3798, %v1750
    %v4476 = vmul.f32 %v3805, %v1750
    %v4477 = vmul.f32 %v3812, %v1750
    %v4478 = vmul.f32 %v3819, %v1750
    %v4479 = vmul.f32 %v3826, %v1750
    %v4480 = vmul.f32 %v3833, %v1750
    %v4481 = vmul.f32 %v3840, %v1750
    %v4482 = vmul.f32 %v3847, %v1750
    %v4483 = vmul.f32 %v3854, %v1750
    %v4484 = vmul.f32 %v3964, %v1750
    %v4485 = vmul.f32 %v4268, %v1750
    %v4486 = vmul.f32 %v4275, %v1750
    %v4487 = vmul.f32 %v4282, %v1750
    %v4488 = vmul.f32 %v4289, %v1750
    %v4489 = vmul.f32 %v4296, %v1750
    %v4490 = vmul.f32 %v4303, %v1750
    %v4491 = vmul.f32 %v4310, %v1750
    %v4492 = vmul.f32 %v4317, %v1750
    %v4493 = vmul.f32 %v4324, %v1750
    %v4494 = vmul.f32 %v4331, %v1750
    %v4495 = vmul.f32 %v4338, %v1750
    %v4496 = vmul.f32 %v4448, %v1750
    %v4497 = vadd.f32 %v4387, %v4449
    %v4498 = vadd.f32 %v4388, %v4450
    %v4499 = vadd.f32 %v4389, %v4451
    %v4500 = vadd.f32 %v4390, %v4452
    %v4501 = vadd.f32 %v4391, %v4453
    %v4502 = vadd.f32 %v4392, %v4454
    %v4503 = vadd.f32 %v4393, %v4455
    %v4504 = vadd.f32 %v4394, %v4456
    %v4505 = vadd.f32 %v4395, %v4457
    %v4506 = vadd.f32 %v4396, %v4458
    %v4507 = vadd.f32 %v4397, %v4459
    %v4508 = vadd.f32 %v4398, %v4460
    %v4509 = vadd.f32 %v4399, %v4461
    %v4510 = vadd.f32 %v4400, %v4462
    %v4511 = vadd.f32 %v4401, %v4463
    %v4512 = vadd.f32 %v4402, %v4464
    %v4513 = vadd.f32 %v4403, %v4465
    %v4514 = vadd.f32 %v4404, %v4466
    %v4515 = vadd.f32 %v4405, %v4467
    %v4516 = vadd.f32 %v4406, %v4468
    %v4517 = vadd.f32 %v4407, %v4469
    %v4518 = vadd.f32 %v4408, %v4470
    %v4519 = vadd.f32 %v4409, %v4471
    %v4520 = vadd.f32 %v4410, %v4472
    %v4521 = vadd.f32 %v4411, %v4473
    %v4522 = vadd.f32 %v4412, %v4474
    %v4523 = vadd.f32 %v4413, %v4475
    %v4524 = vadd.f32 %v4414, %v4476
    %v4525 = vadd.f32 %v4415, %v4477
    %v4526 = vadd.f32 %v4416, %v4478
    %v4527 = vadd.f32 %v4417, %v4479
    %v4528 = vadd.f32 %v4418, %v4480
    %v4529 = vadd.f32 %v4419, %v4481
    %v4530 = vadd.f32 %v4420, %v4482
    %v4531 = vadd.f32 %v4421, %v4483
    %v4532 = vadd.f32 %v4422, %v4484
    %v4533 = vadd.f32 %v4423, %v4485
    %v4534 = vadd.f32 %v4424, %v4486
    %v4535 = vadd.f32 %v4425, %v4487
    %v4536 = vadd.f32 %v4426, %v4488
    %v4537 = vadd.f32 %v4427, %v4489
    %v4538 = vadd.f32 %v4428, %v4490
    %v4539 = vadd.f32 %v4429, %v4491
    %v4540 = vadd.f32 %v4430, %v4492
    %v4541 = vadd.f32 %v4431, %v4493
    %v4542 = vadd.f32 %v4432, %v4494
    %v4543 = vadd.f32 %v4433, %v4495
    %v4544 = vadd.f32 %v4434, %v4496
    %v4545 = vlaneseq
    %v4546 = vshrl.u32 %v4545, 7
    %v4547 = vsub.s32 5, %v4546
    %v4548 = vrot.slane %v224, %v4547
    %4550 = vbcast.lane.b32.xlu0 %v4548, 256
    %v4551 = vpop.permute.xlu0 %4550
    %v4552 = vlaneseq
    %v4553 = vshrl.u32 %v4552, 7
    %v4554 = vsub.s32 5, %v4553
    %v4555 = vrot.slane %v252, %v4554
    %4557 = vbcast.lane.b32.xlu0 %v4555, 256
    %v4558 = vpop.permute.xlu0 %4557
    %v4559 = vmul.f32 %v3707, %v1864
    %v4560 = vmul.f32 %v3714, %v1864
    %v4561 = vmul.f32 %v3721, %v1864
    %v4562 = vmul.f32 %v3728, %v1864
    %v4563 = vmul.f32 %v3735, %v1864
    %v4564 = vmul.f32 %v3742, %v1864
    %v4565 = vmul.f32 %v3749, %v1864
    %v4566 = vmul.f32 %v3756, %v1864
    %v4567 = vmul.f32 %v3763, %v1864
    %v4568 = vmul.f32 %v3770, %v1864
    %v4569 = vmul.f32 %v3957, %v1864
    %v4570 = vmul.f32 %v4067, %v1864
    %v4571 = vmul.f32 %v4191, %v1864
    %v4572 = vmul.f32 %v4198, %v1864
    %v4573 = vmul.f32 %v4205, %v1864
    %v4574 = vmul.f32 %v4212, %v1864
    %v4575 = vmul.f32 %v4219, %v1864
    %v4576 = vmul.f32 %v4226, %v1864
    %v4577 = vmul.f32 %v4233, %v1864
    %v4578 = vmul.f32 %v4240, %v1864
    %v4579 = vmul.f32 %v4247, %v1864
    %v4580 = vmul.f32 %v4254, %v1864
    %v4581 = vmul.f32 %v4441, %v1864
    %v4582 = vmul.f32 %v4551, %v1864
    %v4583 = vmul.f32 %v3791, %v1868
    %v4584 = vmul.f32 %v3798, %v1868
    %v4585 = vmul.f32 %v3805, %v1868
    %v4586 = vmul.f32 %v3812, %v1868
    %v4587 = vmul.f32 %v3819, %v1868
    %v4588 = vmul.f32 %v3826, %v1868
    %v4589 = vmul.f32 %v3833, %v1868
    %v4590 = vmul.f32 %v3840, %v1868
    %v4591 = vmul.f32 %v3847, %v1868
    %v4592 = vmul.f32 %v3854, %v1868
    %v4593 = vmul.f32 %v3964, %v1868
    %v4594 = vmul.f32 %v4074, %v1868
    %v4595 = vmul.f32 %v4275, %v1868
    %v4596 = vmul.f32 %v4282, %v1868
    %v4597 = vmul.f32 %v4289, %v1868
    %v4598 = vmul.f32 %v4296, %v1868
    %v4599 = vmul.f32 %v4303, %v1868
    %v4600 = vmul.f32 %v4310, %v1868
    %v4601 = vmul.f32 %v4317, %v1868
    %v4602 = vmul.f32 %v4324, %v1868
    %v4603 = vmul.f32 %v4331, %v1868
    %v4604 = vmul.f32 %v4338, %v1868
    %v4605 = vmul.f32 %v4448, %v1868
    %v4606 = vmul.f32 %v4558, %v1868
    %v4607 = vadd.f32 %v4497, %v4559
    %v4608 = vadd.f32 %v4498, %v4560
    %v4609 = vadd.f32 %v4499, %v4561
    %v4610 = vadd.f32 %v4500, %v4562
    %v4611 = vadd.f32 %v4501, %v4563
    %v4612 = vadd.f32 %v4502, %v4564
    %v4613 = vadd.f32 %v4503, %v4565
    %v4614 = vadd.f32 %v4504, %v4566
    %v4615 = vadd.f32 %v4505, %v4567
    %v4616 = vadd.f32 %v4506, %v4568
    %v4617 = vadd.f32 %v4507, %v4569
    %v4618 = vadd.f32 %v4508, %v4570
    %v4619 = vadd.f32 %v4509, %v4571
    %v4620 = vadd.f32 %v4510, %v4572
    %v4621 = vadd.f32 %v4511, %v4573
    %v4622 = vadd.f32 %v4512, %v4574
    %v4623 = vadd.f32 %v4513, %v4575
    %v4624 = vadd.f32 %v4514, %v4576
    %v4625 = vadd.f32 %v4515, %v4577
    %v4626 = vadd.f32 %v4516, %v4578
    %v4627 = vadd.f32 %v4517, %v4579
    %v4628 = vadd.f32 %v4518, %v4580
    %v4629 = vadd.f32 %v4519, %v4581
    %v4630 = vadd.f32 %v4520, %v4582
    %v4631 = vadd.f32 %v4521, %v4583
    %v4632 = vadd.f32 %v4522, %v4584
    %v4633 = vadd.f32 %v4523, %v4585
    %v4634 = vadd.f32 %v4524, %v4586
    %v4635 = vadd.f32 %v4525, %v4587
    %v4636 = vadd.f32 %v4526, %v4588
    %v4637 = vadd.f32 %v4527, %v4589
    %v4638 = vadd.f32 %v4528, %v4590
    %v4639 = vadd.f32 %v4529, %v4591
    %v4640 = vadd.f32 %v4530, %v4592
    %v4641 = vadd.f32 %v4531, %v4593
    %v4642 = vadd.f32 %v4532, %v4594
    %v4643 = vadd.f32 %v4533, %v4595
    %v4644 = vadd.f32 %v4534, %v4596
    %v4645 = vadd.f32 %v4535, %v4597
    %v4646 = vadd.f32 %v4536, %v4598
    %v4647 = vadd.f32 %v4537, %v4599
    %v4648 = vadd.f32 %v4538, %v4600
    %v4649 = vadd.f32 %v4539, %v4601
    %v4650 = vadd.f32 %v4540, %v4602
    %v4651 = vadd.f32 %v4541, %v4603
    %v4652 = vadd.f32 %v4542, %v4604
    %v4653 = vadd.f32 %v4543, %v4605
    %v4654 = vadd.f32 %v4544, %v4606
    %v4655 = vadd.f32 %v4607, %v1968
    %v4656 = vadd.f32 %v4608, %v1968
    %v4657 = vadd.f32 %v4609, %v1968
    %v4658 = vadd.f32 %v4610, %v1968
    %v4659 = vadd.f32 %v4611, %v1968
    %v4660 = vadd.f32 %v4612, %v1968
    %v4661 = vadd.f32 %v4613, %v1968
    %v4662 = vadd.f32 %v4614, %v1968
    %v4663 = vadd.f32 %v4615, %v1968
    %v4664 = vadd.f32 %v4616, %v1968
    %v4665 = vadd.f32 %v4617, %v1968
    %v4666 = vadd.f32 %v4618, %v1968
    %v4667 = vadd.f32 %v4619, %v1968
    %v4668 = vadd.f32 %v4620, %v1968
    %v4669 = vadd.f32 %v4621, %v1968
    %v4670 = vadd.f32 %v4622, %v1968
    %v4671 = vadd.f32 %v4623, %v1968
    %v4672 = vadd.f32 %v4624, %v1968
    %v4673 = vadd.f32 %v4625, %v1968
    %v4674 = vadd.f32 %v4626, %v1968
    %v4675 = vadd.f32 %v4627, %v1968
    %v4676 = vadd.f32 %v4628, %v1968
    %v4677 = vadd.f32 %v4629, %v1968
    %v4678 = vadd.f32 %v4630, %v1968
    %v4679 = vadd.f32 %v4631, %v1972
    %v4680 = vadd.f32 %v4632, %v1972
    %v4681 = vadd.f32 %v4633, %v1972
    %v4682 = vadd.f32 %v4634, %v1972
    %v4683 = vadd.f32 %v4635, %v1972
    %v4684 = vadd.f32 %v4636, %v1972
    %v4685 = vadd.f32 %v4637, %v1972
    %v4686 = vadd.f32 %v4638, %v1972
    %v4687 = vadd.f32 %v4639, %v1972
    %v4688 = vadd.f32 %v4640, %v1972
    %v4689 = vadd.f32 %v4641, %v1972
    %v4690 = vadd.f32 %v4642, %v1972
    %v4691 = vadd.f32 %v4643, %v1972
    %v4692 = vadd.f32 %v4644, %v1972
    %v4693 = vadd.f32 %v4645, %v1972
    %v4694 = vadd.f32 %v4646, %v1972
    %v4695 = vadd.f32 %v4647, %v1972
    %v4696 = vadd.f32 %v4648, %v1972
    %v4697 = vadd.f32 %v4649, %v1972
    %v4698 = vadd.f32 %v4650, %v1972
    %v4699 = vadd.f32 %v4651, %v1972
    %v4700 = vadd.f32 %v4652, %v1972
    %v4701 = vadd.f32 %v4653, %v1972
    %v4702 = vadd.f32 %v4654, %v1972
    %v4703 = vmax.f32 %v4655, 0.0
    %v4704 = vmax.f32 %v4656, 0.0
    %v4705 = vmax.f32 %v4657, 0.0
    %v4706 = vmax.f32 %v4658, 0.0
    %v4707 = vmax.f32 %v4659, 0.0
    %v4708 = vmax.f32 %v4660, 0.0
    %v4709 = vmax.f32 %v4661, 0.0
    %v4710 = vmax.f32 %v4662, 0.0
    %v4711 = vmax.f32 %v4663, 0.0
    %v4712 = vmax.f32 %v4664, 0.0
    %v4713 = vmax.f32 %v4665, 0.0
    %v4714 = vmax.f32 %v4666, 0.0
    %v4715 = vmax.f32 %v4667, 0.0
    %v4716 = vmax.f32 %v4668, 0.0
    %v4717 = vmax.f32 %v4669, 0.0
    %v4718 = vmax.f32 %v4670, 0.0
    %v4719 = vmax.f32 %v4671, 0.0
    %v4720 = vmax.f32 %v4672, 0.0
    %v4721 = vmax.f32 %v4673, 0.0
    %v4722 = vmax.f32 %v4674, 0.0
    %v4723 = vmax.f32 %v4675, 0.0
    %v4724 = vmax.f32 %v4676, 0.0
    %v4725 = vmax.f32 %v4677, 0.0
    %v4726 = vmax.f32 %v4678, 0.0
    %v4727 = vmax.f32 %v4679, 0.0
    %v4728 = vmax.f32 %v4680, 0.0
    %v4729 = vmax.f32 %v4681, 0.0
    %v4730 = vmax.f32 %v4682, 0.0
    %v4731 = vmax.f32 %v4683, 0.0
    %v4732 = vmax.f32 %v4684, 0.0
    %v4733 = vmax.f32 %v4685, 0.0
    %v4734 = vmax.f32 %v4686, 0.0
    %v4735 = vmax.f32 %v4687, 0.0
    %v4736 = vmax.f32 %v4688, 0.0
    %v4737 = vmax.f32 %v4689, 0.0
    %v4738 = vmax.f32 %v4690, 0.0
    %v4739 = vmax.f32 %v4691, 0.0
    %v4740 = vmax.f32 %v4692, 0.0
    %v4741 = vmax.f32 %v4693, 0.0
    %v4742 = vmax.f32 %v4694, 0.0
    %v4743 = vmax.f32 %v4695, 0.0
    %v4744 = vmax.f32 %v4696, 0.0
    %v4745 = vmax.f32 %v4697, 0.0
    %v4746 = vmax.f32 %v4698, 0.0
    %v4747 = vmax.f32 %v4699, 0.0
    %v4748 = vmax.f32 %v4700, 0.0
    %v4749 = vmax.f32 %v4701, 0.0
    %v4750 = vmax.f32 %v4702, 0.0
    %v4751 = vmax.f32 %v4703, %v4715
    %v4752 = vmax.f32 %v4704, %v4716
    %v4753 = vmax.f32 %v4705, %v4717
    %v4754 = vmax.f32 %v4706, %v4718
    %v4755 = vmax.f32 %v4707, %v4719
    %v4756 = vmax.f32 %v4708, %v4720
    %v4757 = vmax.f32 %v4709, %v4721
    %v4758 = vmax.f32 %v4710, %v4722
    %v4759 = vmax.f32 %v4711, %v4723
    %v4760 = vmax.f32 %v4712, %v4724
    %v4761 = vmax.f32 %v4713, %v4725
    %v4762 = vmax.f32 %v4714, %v4726
    %v4763 = vmax.f32 %v4727, %v4739
    %v4764 = vmax.f32 %v4728, %v4740
    %v4765 = vmax.f32 %v4729, %v4741
    %v4766 = vmax.f32 %v4730, %v4742
    %v4767 = vmax.f32 %v4731, %v4743
    %v4768 = vmax.f32 %v4732, %v4744
    %v4769 = vmax.f32 %v4733, %v4745
    %v4770 = vmax.f32 %v4734, %v4746
    %v4771 = vmax.f32 %v4735, %v4747
    %v4772 = vmax.f32 %v4736, %v4748
    %v4773 = vmax.f32 %v4737, %v4749
    %v4774 = vmax.f32 %v4738, %v4750
    %v4775 = vmax.f32 %v4751, %v4752
    %v4776 = vmax.f32 %v4753, %v4754
    %v4777 = vmax.f32 %v4755, %v4756
    %v4778 = vmax.f32 %v4757, %v4758
    %v4779 = vmax.f32 %v4759, %v4760
    %v4780 = vmax.f32 %v4761, %v4762
    %v4781 = vmax.f32 %v4763, %v4764
    %v4782 = vmax.f32 %v4765, %v4766
    %v4783 = vmax.f32 %v4767, %v4768
    %v4784 = vmax.f32 %v4769, %v4770
    %v4785 = vmax.f32 %v4771, %v4772
    %v4786 = vmax.f32 %v4773, %v4774
    %v4787 = vmul.f32 %v3693, %v632
    %v4788 = vmul.f32 %v3700, %v632
    %v4789 = vmul.f32 %v3707, %v632
    %v4790 = vmul.f32 %v3714, %v632
    %v4791 = vmul.f32 %v3721, %v632
    %v4792 = vmul.f32 %v3728, %v632
    %v4793 = vmul.f32 %v3735, %v632
    %v4794 = vmul.f32 %v3742, %v632
    %v4795 = vmul.f32 %v3749, %v632
    %v4796 = vmul.f32 %v3756, %v632
    %v4797 = vmul.f32 %v3763, %v632
    %v4798 = vmul.f32 %v3770, %v632
    %v4799 = vmul.f32 %v4177, %v632
    %v4800 = vmul.f32 %v4184, %v632
    %v4801 = vmul.f32 %v4191, %v632
    %v4802 = vmul.f32 %v4198, %v632
    %v4803 = vmul.f32 %v4205, %v632
    %v4804 = vmul.f32 %v4212, %v632
    %v4805 = vmul.f32 %v4219, %v632
    %v4806 = vmul.f32 %v4226, %v632
    %v4807 = vmul.f32 %v4233, %v632
    %v4808 = vmul.f32 %v4240, %v632
    %v4809 = vmul.f32 %v4247, %v632
    %v4810 = vmul.f32 %v4254, %v632
    %v4811 = vmul.f32 %v3777, %v636
    %v4812 = vmul.f32 %v3784, %v636
    %v4813 = vmul.f32 %v3791, %v636
    %v4814 = vmul.f32 %v3798, %v636
    %v4815 = vmul.f32 %v3805, %v636
    %v4816 = vmul.f32 %v3812, %v636
    %v4817 = vmul.f32 %v3819, %v636
    %v4818 = vmul.f32 %v3826, %v636
    %v4819 = vmul.f32 %v3833, %v636
    %v4820 = vmul.f32 %v3840, %v636
    %v4821 = vmul.f32 %v3847, %v636
    %v4822 = vmul.f32 %v3854, %v636
    %v4823 = vmul.f32 %v4261, %v636
    %v4824 = vmul.f32 %v4268, %v636
    %v4825 = vmul.f32 %v4275, %v636
    %v4826 = vmul.f32 %v4282, %v636
    %v4827 = vmul.f32 %v4289, %v636
    %v4828 = vmul.f32 %v4296, %v636
    %v4829 = vmul.f32 %v4303, %v636
    %v4830 = vmul.f32 %v4310, %v636
    %v4831 = vmul.f32 %v4317, %v636
    %v4832 = vmul.f32 %v4324, %v636
    %v4833 = vmul.f32 %v4331, %v636
    %v4834 = vmul.f32 %v4338, %v636
    %v4835 = vmul.f32 %v3700, %v716
    %v4836 = vmul.f32 %v3707, %v716
    %v4837 = vmul.f32 %v3714, %v716
    %v4838 = vmul.f32 %v3721, %v716
    %v4839 = vmul.f32 %v3728, %v716
    %v4840 = vmul.f32 %v3735, %v716
    %v4841 = vmul.f32 %v3742, %v716
    %v4842 = vmul.f32 %v3749, %v716
    %v4843 = vmul.f32 %v3756, %v716
    %v4844 = vmul.f32 %v3763, %v716
    %v4845 = vmul.f32 %v3770, %v716
    %v4846 = vmul.f32 %v3957, %v716
    %v4847 = vmul.f32 %v4184, %v716
    %v4848 = vmul.f32 %v4191, %v716
    %v4849 = vmul.f32 %v4198, %v716
    %v4850 = vmul.f32 %v4205, %v716
    %v4851 = vmul.f32 %v4212, %v716
    %v4852 = vmul.f32 %v4219, %v716
    %v4853 = vmul.f32 %v4226, %v716
    %v4854 = vmul.f32 %v4233, %v716
    %v4855 = vmul.f32 %v4240, %v716
    %v4856 = vmul.f32 %v4247, %v716
    %v4857 = vmul.f32 %v4254, %v716
    %v4858 = vmul.f32 %v4441, %v716
    %v4859 = vmul.f32 %v3784, %v720
    %v4860 = vmul.f32 %v3791, %v720
    %v4861 = vmul.f32 %v3798, %v720
    %v4862 = vmul.f32 %v3805, %v720
    %v4863 = vmul.f32 %v3812, %v720
    %v4864 = vmul.f32 %v3819, %v720
    %v4865 = vmul.f32 %v3826, %v720
    %v4866 = vmul.f32 %v3833, %v720
    %v4867 = vmul.f32 %v3840, %v720
    %v4868 = vmul.f32 %v3847, %v720
    %v4869 = vmul.f32 %v3854, %v720
    %v4870 = vmul.f32 %v3964, %v720
    %v4871 = vmul.f32 %v4268, %v720
    %v4872 = vmul.f32 %v4275, %v720
    %v4873 = vmul.f32 %v4282, %v720
    %v4874 = vmul.f32 %v4289, %v720
    %v4875 = vmul.f32 %v4296, %v720
    %v4876 = vmul.f32 %v4303, %v720
    %v4877 = vmul.f32 %v4310, %v720
    %v4878 = vmul.f32 %v4317, %v720
    %v4879 = vmul.f32 %v4324, %v720
    %v4880 = vmul.f32 %v4331, %v720
    %v4881 = vmul.f32 %v4338, %v720
    %v4882 = vmul.f32 %v4448, %v720
    %v4883 = vadd.f32 %v4787, %v4835
    %v4884 = vadd.f32 %v4788, %v4836
    %v4885 = vadd.f32 %v4789, %v4837
    %v4886 = vadd.f32 %v4790, %v4838
    %v4887 = vadd.f32 %v4791, %v4839
    %v4888 = vadd.f32 %v4792, %v4840
    %v4889 = vadd.f32 %v4793, %v4841
    %v4890 = vadd.f32 %v4794, %v4842
    %v4891 = vadd.f32 %v4795, %v4843
    %v4892 = vadd.f32 %v4796, %v4844
    %v4893 = vadd.f32 %v4797, %v4845
    %v4894 = vadd.f32 %v4798, %v4846
    %v4895 = vadd.f32 %v4799, %v4847
    %v4896 = vadd.f32 %v4800, %v4848
    %v4897 = vadd.f32 %v4801, %v4849
    %v4898 = vadd.f32 %v4802, %v4850
    %v4899 = vadd.f32 %v4803, %v4851
    %v4900 = vadd.f32 %v4804, %v4852
    %v4901 = vadd.f32 %v4805, %v4853
    %v4902 = vadd.f32 %v4806, %v4854
    %v4903 = vadd.f32 %v4807, %v4855
    %v4904 = vadd.f32 %v4808, %v4856
    %v4905 = vadd.f32 %v4809, %v4857
    %v4906 = vadd.f32 %v4810, %v4858
    %v4907 = vadd.f32 %v4811, %v4859
    %v4908 = vadd.f32 %v4812, %v4860
    %v4909 = vadd.f32 %v4813, %v4861
    %v4910 = vadd.f32 %v4814, %v4862
    %v4911 = vadd.f32 %v4815, %v4863
    %v4912 = vadd.f32 %v4816, %v4864
    %v4913 = vadd.f32 %v4817, %v4865
    %v4914 = vadd.f32 %v4818, %v4866
    %v4915 = vadd.f32 %v4819, %v4867
    %v4916 = vadd.f32 %v4820, %v4868
    %v4917 = vadd.f32 %v4821, %v4869
    %v4918 = vadd.f32 %v4822, %v4870
    %v4919 = vadd.f32 %v4823, %v4871
    %v4920 = vadd.f32 %v4824, %v4872
    %v4921 = vadd.f32 %v4825, %v4873
    %v4922 = vadd.f32 %v4826, %v4874
    %v4923 = vadd.f32 %v4827, %v4875
    %v4924 = vadd.f32 %v4828, %v4876
    %v4925 = vadd.f32 %v4829, %v4877
    %v4926 = vadd.f32 %v4830, %v4878
    %v4927 = vadd.f32 %v4831, %v4879
    %v4928 = vadd.f32 %v4832, %v4880
    %v4929 = vadd.f32 %v4833, %v4881
    %v4930 = vadd.f32 %v4834, %v4882
    %v4931 = vmul.f32 %v3707, %v848
    %v4932 = vmul.f32 %v3714, %v848
    %v4933 = vmul.f32 %v3721, %v848
    %v4934 = vmul.f32 %v3728, %v848
    %v4935 = vmul.f32 %v3735, %v848
    %v4936 = vmul.f32 %v3742, %v848
    %v4937 = vmul.f32 %v3749, %v848
    %v4938 = vmul.f32 %v3756, %v848
    %v4939 = vmul.f32 %v3763, %v848
    %v4940 = vmul.f32 %v3770, %v848
    %v4941 = vmul.f32 %v3957, %v848
    %v4942 = vmul.f32 %v4067, %v848
    %v4943 = vmul.f32 %v4191, %v848
    %v4944 = vmul.f32 %v4198, %v848
    %v4945 = vmul.f32 %v4205, %v848
    %v4946 = vmul.f32 %v4212, %v848
    %v4947 = vmul.f32 %v4219, %v848
    %v4948 = vmul.f32 %v4226, %v848
    %v4949 = vmul.f32 %v4233, %v848
    %v4950 = vmul.f32 %v4240, %v848
    %v4951 = vmul.f32 %v4247, %v848
    %v4952 = vmul.f32 %v4254, %v848
    %v4953 = vmul.f32 %v4441, %v848
    %v4954 = vmul.f32 %v4551, %v848
    %v4955 = vmul.f32 %v3791, %v852
    %v4956 = vmul.f32 %v3798, %v852
    %v4957 = vmul.f32 %v3805, %v852
    %v4958 = vmul.f32 %v3812, %v852
    %v4959 = vmul.f32 %v3819, %v852
    %v4960 = vmul.f32 %v3826, %v852
    %v4961 = vmul.f32 %v3833, %v852
    %v4962 = vmul.f32 %v3840, %v852
    %v4963 = vmul.f32 %v3847, %v852
    %v4964 = vmul.f32 %v3854, %v852
    %v4965 = vmul.f32 %v3964, %v852
    %v4966 = vmul.f32 %v4074, %v852
    %v4967 = vmul.f32 %v4275, %v852
    %v4968 = vmul.f32 %v4282, %v852
    %v4969 = vmul.f32 %v4289, %v852
    %v4970 = vmul.f32 %v4296, %v852
    %v4971 = vmul.f32 %v4303, %v852
    %v4972 = vmul.f32 %v4310, %v852
    %v4973 = vmul.f32 %v4317, %v852
    %v4974 = vmul.f32 %v4324, %v852
    %v4975 = vmul.f32 %v4331, %v852
    %v4976 = vmul.f32 %v4338, %v852
    %v4977 = vmul.f32 %v4448, %v852
    %v4978 = vmul.f32 %v4558, %v852
    %v4979 = vadd.f32 %v4883, %v4931
    %v4980 = vadd.f32 %v4884, %v4932
    %v4981 = vadd.f32 %v4885, %v4933
    %v4982 = vadd.f32 %v4886, %v4934
    %v4983 = vadd.f32 %v4887, %v4935
    %v4984 = vadd.f32 %v4888, %v4936
    %v4985 = vadd.f32 %v4889, %v4937
    %v4986 = vadd.f32 %v4890, %v4938
    %v4987 = vadd.f32 %v4891, %v4939
    %v4988 = vadd.f32 %v4892, %v4940
    %v4989 = vadd.f32 %v4893, %v4941
    %v4990 = vadd.f32 %v4894, %v4942
    %v4991 = vadd.f32 %v4895, %v4943
    %v4992 = vadd.f32 %v4896, %v4944
    %v4993 = vadd.f32 %v4897, %v4945
    %v4994 = vadd.f32 %v4898, %v4946
    %v4995 = vadd.f32 %v4899, %v4947
    %v4996 = vadd.f32 %v4900, %v4948
    %v4997 = vadd.f32 %v4901, %v4949
    %v4998 = vadd.f32 %v4902, %v4950
    %v4999 = vadd.f32 %v4903, %v4951
    %v5000 = vadd.f32 %v4904, %v4952
    %v5001 = vadd.f32 %v4905, %v4953
    %v5002 = vadd.f32 %v4906, %v4954
    %v5003 = vadd.f32 %v4907, %v4955
    %v5004 = vadd.f32 %v4908, %v4956
    %v5005 = vadd.f32 %v4909, %v4957
    %v5006 = vadd.f32 %v4910, %v4958
    %v5007 = vadd.f32 %v4911, %v4959
    %v5008 = vadd.f32 %v4912, %v4960
    %v5009 = vadd.f32 %v4913, %v4961
    %v5010 = vadd.f32 %v4914, %v4962
    %v5011 = vadd.f32 %v4915, %v4963
    %v5012 = vadd.f32 %v4916, %v4964
    %v5013 = vadd.f32 %v4917, %v4965
    %v5014 = vadd.f32 %v4918, %v4966
    %v5015 = vadd.f32 %v4919, %v4967
    %v5016 = vadd.f32 %v4920, %v4968
    %v5017 = vadd.f32 %v4921, %v4969
    %v5018 = vadd.f32 %v4922, %v4970
    %v5019 = vadd.f32 %v4923, %v4971
    %v5020 = vadd.f32 %v4924, %v4972
    %v5021 = vadd.f32 %v4925, %v4973
    %v5022 = vadd.f32 %v4926, %v4974
    %v5023 = vadd.f32 %v4927, %v4975
    %v5024 = vadd.f32 %v4928, %v4976
    %v5025 = vadd.f32 %v4929, %v4977
    %v5026 = vadd.f32 %v4930, %v4978
    %v5027 = vlaneseq
    %v5028 = vshrl.u32 %v5027, 7
    %v5029 = vsub.s32 0, %v5028
    %v5030 = vrot.slane %v225, %v5029
    %5032 = vbcast.lane.b32.xlu0 %v5030, 256
    %v5033 = vpop.permute.xlu0 %5032
    %v5034 = vlaneseq
    %v5035 = vshrl.u32 %v5034, 7
    %v5036 = vsub.s32 1, %v5035
    %v5037 = vrot.slane %v225, %v5036
    %5039 = vbcast.lane.b32.xlu0 %v5037, 256
    %v5040 = vpop.permute.xlu0 %5039
    %v5041 = vlaneseq
    %v5042 = vshrl.u32 %v5041, 7
    %v5043 = vsub.s32 2, %v5042
    %v5044 = vrot.slane %v225, %v5043
    %5046 = vbcast.lane.b32.xlu0 %v5044, 256
    %v5047 = vpop.permute.xlu0 %5046
    %v5048 = vlaneseq
    %v5049 = vshrl.u32 %v5048, 7
    %v5050 = vsub.s32 3, %v5049
    %v5051 = vrot.slane %v225, %v5050
    %5053 = vbcast.lane.b32.xlu0 %v5051, 256
    %v5054 = vpop.permute.xlu0 %5053
    %v5055 = vlaneseq
    %v5056 = vshrl.u32 %v5055, 7
    %v5057 = vsub.s32 4, %v5056
    %v5058 = vrot.slane %v225, %v5057
    %5060 = vbcast.lane.b32.xlu0 %v5058, 256
    %v5061 = vpop.permute.xlu0 %5060
    %v5062 = vlaneseq
    %v5063 = vshrl.u32 %v5062, 7
    %v5064 = vsub.s32 5, %v5063
    %v5065 = vrot.slane %v225, %v5064
    %5067 = vbcast.lane.b32.xlu0 %v5065, 256
    %v5068 = vpop.permute.xlu0 %5067
    %v5069 = vlaneseq
    %v5070 = vshrl.u32 %v5069, 7
    %v5071 = vsub.s32 6, %v5070
    %v5072 = vrot.slane %v225, %v5071
    %5074 = vbcast.lane.b32.xlu0 %v5072, 256
    %v5075 = vpop.permute.xlu0 %5074
    %v5076 = vlaneseq
    %v5077 = vshrl.u32 %v5076, 7
    %v5078 = vsub.s32 7, %v5077
    %v5079 = vrot.slane %v225, %v5078
    %5081 = vbcast.lane.b32.xlu0 %v5079, 256
    %v5082 = vpop.permute.xlu0 %5081
    %v5083 = vlaneseq
    %v5084 = vshrl.u32 %v5083, 7
    %v5085 = vsub.s32 0, %v5084
    %v5086 = vrot.slane %v226, %v5085
    %5088 = vbcast.lane.b32.xlu0 %v5086, 256
    %v5089 = vpop.permute.xlu0 %5088
    %v5090 = vlaneseq
    %v5091 = vshrl.u32 %v5090, 7
    %v5092 = vsub.s32 1, %v5091
    %v5093 = vrot.slane %v226, %v5092
    %5095 = vbcast.lane.b32.xlu0 %v5093, 256
    %v5096 = vpop.permute.xlu0 %5095
    %v5097 = vlaneseq
    %v5098 = vshrl.u32 %v5097, 7
    %v5099 = vsub.s32 2, %v5098
    %v5100 = vrot.slane %v226, %v5099
    %5102 = vbcast.lane.b32.xlu0 %v5100, 256
    %v5103 = vpop.permute.xlu0 %5102
    %v5104 = vlaneseq
    %v5105 = vshrl.u32 %v5104, 7
    %v5106 = vsub.s32 3, %v5105
    %v5107 = vrot.slane %v226, %v5106
    %5109 = vbcast.lane.b32.xlu0 %v5107, 256
    %v5110 = vpop.permute.xlu0 %5109
    %v5111 = vlaneseq
    %v5112 = vshrl.u32 %v5111, 7
    %v5113 = vsub.s32 0, %v5112
    %v5114 = vrot.slane %v253, %v5113
    %5116 = vbcast.lane.b32.xlu0 %v5114, 256
    %v5117 = vpop.permute.xlu0 %5116
    %v5118 = vlaneseq
    %v5119 = vshrl.u32 %v5118, 7
    %v5120 = vsub.s32 1, %v5119
    %v5121 = vrot.slane %v253, %v5120
    %5123 = vbcast.lane.b32.xlu0 %v5121, 256
    %v5124 = vpop.permute.xlu0 %5123
    %v5125 = vlaneseq
    %v5126 = vshrl.u32 %v5125, 7
    %v5127 = vsub.s32 2, %v5126
    %v5128 = vrot.slane %v253, %v5127
    %5130 = vbcast.lane.b32.xlu0 %v5128, 256
    %v5131 = vpop.permute.xlu0 %5130
    %v5132 = vlaneseq
    %v5133 = vshrl.u32 %v5132, 7
    %v5134 = vsub.s32 3, %v5133
    %v5135 = vrot.slane %v253, %v5134
    %5137 = vbcast.lane.b32.xlu0 %v5135, 256
    %v5138 = vpop.permute.xlu0 %5137
    %v5139 = vlaneseq
    %v5140 = vshrl.u32 %v5139, 7
    %v5141 = vsub.s32 4, %v5140
    %v5142 = vrot.slane %v253, %v5141
    %5144 = vbcast.lane.b32.xlu0 %v5142, 256
    %v5145 = vpop.permute.xlu0 %5144
    %v5146 = vlaneseq
    %v5147 = vshrl.u32 %v5146, 7
    %v5148 = vsub.s32 5, %v5147
    %v5149 = vrot.slane %v253, %v5148
    %5151 = vbcast.lane.b32.xlu0 %v5149, 256
    %v5152 = vpop.permute.xlu0 %5151
    %v5153 = vlaneseq
    %v5154 = vshrl.u32 %v5153, 7
    %v5155 = vsub.s32 6, %v5154
    %v5156 = vrot.slane %v253, %v5155
    %5158 = vbcast.lane.b32.xlu0 %v5156, 256
    %v5159 = vpop.permute.xlu0 %5158
    %v5160 = vlaneseq
    %v5161 = vshrl.u32 %v5160, 7
    %v5162 = vsub.s32 7, %v5161
    %v5163 = vrot.slane %v253, %v5162
    %5165 = vbcast.lane.b32.xlu0 %v5163, 256
    %v5166 = vpop.permute.xlu0 %5165
    %v5167 = vlaneseq
    %v5168 = vshrl.u32 %v5167, 7
    %v5169 = vsub.s32 0, %v5168
    %v5170 = vrot.slane %v254, %v5169
    %5172 = vbcast.lane.b32.xlu0 %v5170, 256
    %v5173 = vpop.permute.xlu0 %5172
    %v5174 = vlaneseq
    %v5175 = vshrl.u32 %v5174, 7
    %v5176 = vsub.s32 1, %v5175
    %v5177 = vrot.slane %v254, %v5176
    %5179 = vbcast.lane.b32.xlu0 %v5177, 256
    %v5180 = vpop.permute.xlu0 %5179
    %v5181 = vlaneseq
    %v5182 = vshrl.u32 %v5181, 7
    %v5183 = vsub.s32 2, %v5182
    %v5184 = vrot.slane %v254, %v5183
    %5186 = vbcast.lane.b32.xlu0 %v5184, 256
    %v5187 = vpop.permute.xlu0 %5186
    %v5188 = vlaneseq
    %v5189 = vshrl.u32 %v5188, 7
    %v5190 = vsub.s32 3, %v5189
    %v5191 = vrot.slane %v254, %v5190
    %5193 = vbcast.lane.b32.xlu0 %v5191, 256
    %v5194 = vpop.permute.xlu0 %5193
    %v5195 = vmul.f32 %v4177, %v1120
    %v5196 = vmul.f32 %v4184, %v1120
    %v5197 = vmul.f32 %v4191, %v1120
    %v5198 = vmul.f32 %v4198, %v1120
    %v5199 = vmul.f32 %v4205, %v1120
    %v5200 = vmul.f32 %v4212, %v1120
    %v5201 = vmul.f32 %v4219, %v1120
    %v5202 = vmul.f32 %v4226, %v1120
    %v5203 = vmul.f32 %v4233, %v1120
    %v5204 = vmul.f32 %v4240, %v1120
    %v5205 = vmul.f32 %v4247, %v1120
    %v5206 = vmul.f32 %v4254, %v1120
    %v5207 = vmul.f32 %v5033, %v1120
    %v5208 = vmul.f32 %v5040, %v1120
    %v5209 = vmul.f32 %v5047, %v1120
    %v5210 = vmul.f32 %v5054, %v1120
    %v5211 = vmul.f32 %v5061, %v1120
    %v5212 = vmul.f32 %v5068, %v1120
    %v5213 = vmul.f32 %v5075, %v1120
    %v5214 = vmul.f32 %v5082, %v1120
    %v5215 = vmul.f32 %v5089, %v1120
    %v5216 = vmul.f32 %v5096, %v1120
    %v5217 = vmul.f32 %v5103, %v1120
    %v5218 = vmul.f32 %v5110, %v1120
    %v5219 = vmul.f32 %v4261, %v1124
    %v5220 = vmul.f32 %v4268, %v1124
    %v5221 = vmul.f32 %v4275, %v1124
    %v5222 = vmul.f32 %v4282, %v1124
    %v5223 = vmul.f32 %v4289, %v1124
    %v5224 = vmul.f32 %v4296, %v1124
    %v5225 = vmul.f32 %v4303, %v1124
    %v5226 = vmul.f32 %v4310, %v1124
    %v5227 = vmul.f32 %v4317, %v1124
    %v5228 = vmul.f32 %v4324, %v1124
    %v5229 = vmul.f32 %v4331, %v1124
    %v5230 = vmul.f32 %v4338, %v1124
    %v5231 = vmul.f32 %v5117, %v1124
    %v5232 = vmul.f32 %v5124, %v1124
    %v5233 = vmul.f32 %v5131, %v1124
    %v5234 = vmul.f32 %v5138, %v1124
    %v5235 = vmul.f32 %v5145, %v1124
    %v5236 = vmul.f32 %v5152, %v1124
    %v5237 = vmul.f32 %v5159, %v1124
    %v5238 = vmul.f32 %v5166, %v1124
    %v5239 = vmul.f32 %v5173, %v1124
    %v5240 = vmul.f32 %v5180, %v1124
    %v5241 = vmul.f32 %v5187, %v1124
    %v5242 = vmul.f32 %v5194, %v1124
    %v5243 = vadd.f32 %v4979, %v5195
    %v5244 = vadd.f32 %v4980, %v5196
    %v5245 = vadd.f32 %v4981, %v5197
    %v5246 = vadd.f32 %v4982, %v5198
    %v5247 = vadd.f32 %v4983, %v5199
    %v5248 = vadd.f32 %v4984, %v5200
    %v5249 = vadd.f32 %v4985, %v5201
    %v5250 = vadd.f32 %v4986, %v5202
    %v5251 = vadd.f32 %v4987, %v5203
    %v5252 = vadd.f32 %v4988, %v5204
    %v5253 = vadd.f32 %v4989, %v5205
    %v5254 = vadd.f32 %v4990, %v5206
    %v5255 = vadd.f32 %v4991, %v5207
    %v5256 = vadd.f32 %v4992, %v5208
    %v5257 = vadd.f32 %v4993, %v5209
    %v5258 = vadd.f32 %v4994, %v5210
    %v5259 = vadd.f32 %v4995, %v5211
    %v5260 = vadd.f32 %v4996, %v5212
    %v5261 = vadd.f32 %v4997, %v5213
    %v5262 = vadd.f32 %v4998, %v5214
    %v5263 = vadd.f32 %v4999, %v5215
    %v5264 = vadd.f32 %v5000, %v5216
    %v5265 = vadd.f32 %v5001, %v5217
    %v5266 = vadd.f32 %v5002, %v5218
    %v5267 = vadd.f32 %v5003, %v5219
    %v5268 = vadd.f32 %v5004, %v5220
    %v5269 = vadd.f32 %v5005, %v5221
    %v5270 = vadd.f32 %v5006, %v5222
    %v5271 = vadd.f32 %v5007, %v5223
    %v5272 = vadd.f32 %v5008, %v5224
    %v5273 = vadd.f32 %v5009, %v5225
    %v5274 = vadd.f32 %v5010, %v5226
    %v5275 = vadd.f32 %v5011, %v5227
    %v5276 = vadd.f32 %v5012, %v5228
    %v5277 = vadd.f32 %v5013, %v5229
    %v5278 = vadd.f32 %v5014, %v5230
    %v5279 = vadd.f32 %v5015, %v5231
    %v5280 = vadd.f32 %v5016, %v5232
    %v5281 = vadd.f32 %v5017, %v5233
    %v5282 = vadd.f32 %v5018, %v5234
    %v5283 = vadd.f32 %v5019, %v5235
    %v5284 = vadd.f32 %v5020, %v5236
    %v5285 = vadd.f32 %v5021, %v5237
    %v5286 = vadd.f32 %v5022, %v5238
    %v5287 = vadd.f32 %v5023, %v5239
    %v5288 = vadd.f32 %v5024, %v5240
    %v5289 = vadd.f32 %v5025, %v5241
    %v5290 = vadd.f32 %v5026, %v5242
    %v5291 = vlaneseq
    %v5292 = vshrl.u32 %v5291, 7
    %v5293 = vsub.s32 4, %v5292
    %v5294 = vrot.slane %v226, %v5293
    %5296 = vbcast.lane.b32.xlu0 %v5294, 256
    %v5297 = vpop.permute.xlu0 %5296
    %v5298 = vlaneseq
    %v5299 = vshrl.u32 %v5298, 7
    %v5300 = vsub.s32 4, %v5299
    %v5301 = vrot.slane %v254, %v5300
    %5303 = vbcast.lane.b32.xlu0 %v5301, 256
    %v5304 = vpop.permute.xlu0 %5303
    %v5305 = vmul.f32 %v4184, %v1238
    %v5306 = vmul.f32 %v4191, %v1238
    %v5307 = vmul.f32 %v4198, %v1238
    %v5308 = vmul.f32 %v4205, %v1238
    %v5309 = vmul.f32 %v4212, %v1238
    %v5310 = vmul.f32 %v4219, %v1238
    %v5311 = vmul.f32 %v4226, %v1238
    %v5312 = vmul.f32 %v4233, %v1238
    %v5313 = vmul.f32 %v4240, %v1238
    %v5314 = vmul.f32 %v4247, %v1238
    %v5315 = vmul.f32 %v4254, %v1238
    %v5316 = vmul.f32 %v4441, %v1238
    %v5317 = vmul.f32 %v5040, %v1238
    %v5318 = vmul.f32 %v5047, %v1238
    %v5319 = vmul.f32 %v5054, %v1238
    %v5320 = vmul.f32 %v5061, %v1238
    %v5321 = vmul.f32 %v5068, %v1238
    %v5322 = vmul.f32 %v5075, %v1238
    %v5323 = vmul.f32 %v5082, %v1238
    %v5324 = vmul.f32 %v5089, %v1238
    %v5325 = vmul.f32 %v5096, %v1238
    %v5326 = vmul.f32 %v5103, %v1238
    %v5327 = vmul.f32 %v5110, %v1238
    %v5328 = vmul.f32 %v5297, %v1238
    %v5329 = vmul.f32 %v4268, %v1242
    %v5330 = vmul.f32 %v4275, %v1242
    %v5331 = vmul.f32 %v4282, %v1242
    %v5332 = vmul.f32 %v4289, %v1242
    %v5333 = vmul.f32 %v4296, %v1242
    %v5334 = vmul.f32 %v4303, %v1242
    %v5335 = vmul.f32 %v4310, %v1242
    %v5336 = vmul.f32 %v4317, %v1242
    %v5337 = vmul.f32 %v4324, %v1242
    %v5338 = vmul.f32 %v4331, %v1242
    %v5339 = vmul.f32 %v4338, %v1242
    %v5340 = vmul.f32 %v4448, %v1242
    %v5341 = vmul.f32 %v5124, %v1242
    %v5342 = vmul.f32 %v5131, %v1242
    %v5343 = vmul.f32 %v5138, %v1242
    %v5344 = vmul.f32 %v5145, %v1242
    %v5345 = vmul.f32 %v5152, %v1242
    %v5346 = vmul.f32 %v5159, %v1242
    %v5347 = vmul.f32 %v5166, %v1242
    %v5348 = vmul.f32 %v5173, %v1242
    %v5349 = vmul.f32 %v5180, %v1242
    %v5350 = vmul.f32 %v5187, %v1242
    %v5351 = vmul.f32 %v5194, %v1242
    %v5352 = vmul.f32 %v5304, %v1242
    %v5353 = vadd.f32 %v5243, %v5305
    %v5354 = vadd.f32 %v5244, %v5306
    %v5355 = vadd.f32 %v5245, %v5307
    %v5356 = vadd.f32 %v5246, %v5308
    %v5357 = vadd.f32 %v5247, %v5309
    %v5358 = vadd.f32 %v5248, %v5310
    %v5359 = vadd.f32 %v5249, %v5311
    %v5360 = vadd.f32 %v5250, %v5312
    %v5361 = vadd.f32 %v5251, %v5313
    %v5362 = vadd.f32 %v5252, %v5314
    %v5363 = vadd.f32 %v5253, %v5315
    %v5364 = vadd.f32 %v5254, %v5316
    %v5365 = vadd.f32 %v5255, %v5317
    %v5366 = vadd.f32 %v5256, %v5318
    %v5367 = vadd.f32 %v5257, %v5319
    %v5368 = vadd.f32 %v5258, %v5320
    %v5369 = vadd.f32 %v5259, %v5321
    %v5370 = vadd.f32 %v5260, %v5322
    %v5371 = vadd.f32 %v5261, %v5323
    %v5372 = vadd.f32 %v5262, %v5324
    %v5373 = vadd.f32 %v5263, %v5325
    %v5374 = vadd.f32 %v5264, %v5326
    %v5375 = vadd.f32 %v5265, %v5327
    %v5376 = vadd.f32 %v5266, %v5328
    %v5377 = vadd.f32 %v5267, %v5329
    %v5378 = vadd.f32 %v5268, %v5330
    %v5379 = vadd.f32 %v5269, %v5331
    %v5380 = vadd.f32 %v5270, %v5332
    %v5381 = vadd.f32 %v5271, %v5333
    %v5382 = vadd.f32 %v5272, %v5334
    %v5383 = vadd.f32 %v5273, %v5335
    %v5384 = vadd.f32 %v5274, %v5336
    %v5385 = vadd.f32 %v5275, %v5337
    %v5386 = vadd.f32 %v5276, %v5338
    %v5387 = vadd.f32 %v5277, %v5339
    %v5388 = vadd.f32 %v5278, %v5340
    %v5389 = vadd.f32 %v5279, %v5341
    %v5390 = vadd.f32 %v5280, %v5342
    %v5391 = vadd.f32 %v5281, %v5343
    %v5392 = vadd.f32 %v5282, %v5344
    %v5393 = vadd.f32 %v5283, %v5345
    %v5394 = vadd.f32 %v5284, %v5346
    %v5395 = vadd.f32 %v5285, %v5347
    %v5396 = vadd.f32 %v5286, %v5348
    %v5397 = vadd.f32 %v5287, %v5349
    %v5398 = vadd.f32 %v5288, %v5350
    %v5399 = vadd.f32 %v5289, %v5351
    %v5400 = vadd.f32 %v5290, %v5352
    %v5401 = vlaneseq
    %v5402 = vshrl.u32 %v5401, 7
    %v5403 = vsub.s32 5, %v5402
    %v5404 = vrot.slane %v226, %v5403
    %5406 = vbcast.lane.b32.xlu0 %v5404, 256
    %v5407 = vpop.permute.xlu0 %5406
    %v5408 = vlaneseq
    %v5409 = vshrl.u32 %v5408, 7
    %v5410 = vsub.s32 5, %v5409
    %v5411 = vrot.slane %v254, %v5410
    %5413 = vbcast.lane.b32.xlu0 %v5411, 256
    %v5414 = vpop.permute.xlu0 %5413
    %v5415 = vmul.f32 %v4191, %v1356
    %v5416 = vmul.f32 %v4198, %v1356
    %v5417 = vmul.f32 %v4205, %v1356
    %v5418 = vmul.f32 %v4212, %v1356
    %v5419 = vmul.f32 %v4219, %v1356
    %v5420 = vmul.f32 %v4226, %v1356
    %v5421 = vmul.f32 %v4233, %v1356
    %v5422 = vmul.f32 %v4240, %v1356
    %v5423 = vmul.f32 %v4247, %v1356
    %v5424 = vmul.f32 %v4254, %v1356
    %v5425 = vmul.f32 %v4441, %v1356
    %v5426 = vmul.f32 %v4551, %v1356
    %v5427 = vmul.f32 %v5047, %v1356
    %v5428 = vmul.f32 %v5054, %v1356
    %v5429 = vmul.f32 %v5061, %v1356
    %v5430 = vmul.f32 %v5068, %v1356
    %v5431 = vmul.f32 %v5075, %v1356
    %v5432 = vmul.f32 %v5082, %v1356
    %v5433 = vmul.f32 %v5089, %v1356
    %v5434 = vmul.f32 %v5096, %v1356
    %v5435 = vmul.f32 %v5103, %v1356
    %v5436 = vmul.f32 %v5110, %v1356
    %v5437 = vmul.f32 %v5297, %v1356
    %v5438 = vmul.f32 %v5407, %v1356
    %v5439 = vmul.f32 %v4275, %v1360
    %v5440 = vmul.f32 %v4282, %v1360
    %v5441 = vmul.f32 %v4289, %v1360
    %v5442 = vmul.f32 %v4296, %v1360
    %v5443 = vmul.f32 %v4303, %v1360
    %v5444 = vmul.f32 %v4310, %v1360
    %v5445 = vmul.f32 %v4317, %v1360
    %v5446 = vmul.f32 %v4324, %v1360
    %v5447 = vmul.f32 %v4331, %v1360
    %v5448 = vmul.f32 %v4338, %v1360
    %v5449 = vmul.f32 %v4448, %v1360
    %v5450 = vmul.f32 %v4558, %v1360
    %v5451 = vmul.f32 %v5131, %v1360
    %v5452 = vmul.f32 %v5138, %v1360
    %v5453 = vmul.f32 %v5145, %v1360
    %v5454 = vmul.f32 %v5152, %v1360
    %v5455 = vmul.f32 %v5159, %v1360
    %v5456 = vmul.f32 %v5166, %v1360
    %v5457 = vmul.f32 %v5173, %v1360
    %v5458 = vmul.f32 %v5180, %v1360
    %v5459 = vmul.f32 %v5187, %v1360
    %v5460 = vmul.f32 %v5194, %v1360
    %v5461 = vmul.f32 %v5304, %v1360
    %v5462 = vmul.f32 %v5414, %v1360
    %v5463 = vadd.f32 %v5353, %v5415
    %v5464 = vadd.f32 %v5354, %v5416
    %v5465 = vadd.f32 %v5355, %v5417
    %v5466 = vadd.f32 %v5356, %v5418
    %v5467 = vadd.f32 %v5357, %v5419
    %v5468 = vadd.f32 %v5358, %v5420
    %v5469 = vadd.f32 %v5359, %v5421
    %v5470 = vadd.f32 %v5360, %v5422
    %v5471 = vadd.f32 %v5361, %v5423
    %v5472 = vadd.f32 %v5362, %v5424
    %v5473 = vadd.f32 %v5363, %v5425
    %v5474 = vadd.f32 %v5364, %v5426
    %v5475 = vadd.f32 %v5365, %v5427
    %v5476 = vadd.f32 %v5366, %v5428
    %v5477 = vadd.f32 %v5367, %v5429
    %v5478 = vadd.f32 %v5368, %v5430
    %v5479 = vadd.f32 %v5369, %v5431
    %v5480 = vadd.f32 %v5370, %v5432
    %v5481 = vadd.f32 %v5371, %v5433
    %v5482 = vadd.f32 %v5372, %v5434
    %v5483 = vadd.f32 %v5373, %v5435
    %v5484 = vadd.f32 %v5374, %v5436
    %v5485 = vadd.f32 %v5375, %v5437
    %v5486 = vadd.f32 %v5376, %v5438
    %v5487 = vadd.f32 %v5377, %v5439
    %v5488 = vadd.f32 %v5378, %v5440
    %v5489 = vadd.f32 %v5379, %v5441
    %v5490 = vadd.f32 %v5380, %v5442
    %v5491 = vadd.f32 %v5381, %v5443
    %v5492 = vadd.f32 %v5382, %v5444
    %v5493 = vadd.f32 %v5383, %v5445
    %v5494 = vadd.f32 %v5384, %v5446
    %v5495 = vadd.f32 %v5385, %v5447
    %v5496 = vadd.f32 %v5386, %v5448
    %v5497 = vadd.f32 %v5387, %v5449
    %v5498 = vadd.f32 %v5388, %v5450
    %v5499 = vadd.f32 %v5389, %v5451
    %v5500 = vadd.f32 %v5390, %v5452
    %v5501 = vadd.f32 %v5391, %v5453
    %v5502 = vadd.f32 %v5392, %v5454
    %v5503 = vadd.f32 %v5393, %v5455
    %v5504 = vadd.f32 %v5394, %v5456
    %v5505 = vadd.f32 %v5395, %v5457
    %v5506 = vadd.f32 %v5396, %v5458
    %v5507 = vadd.f32 %v5397, %v5459
    %v5508 = vadd.f32 %v5398, %v5460
    %v5509 = vadd.f32 %v5399, %v5461
    %v5510 = vadd.f32 %v5400, %v5462
    %v5511 = vlaneseq
    %v5512 = vshrl.u32 %v5511, 7
    %v5513 = vsub.s32 0, %v5512
    %v5514 = vrot.slane %v227, %v5513
    %5516 = vbcast.lane.b32.xlu0 %v5514, 256
    %v5517 = vpop.permute.xlu0 %5516
    %v5518 = vlaneseq
    %v5519 = vshrl.u32 %v5518, 7
    %v5520 = vsub.s32 1, %v5519
    %v5521 = vrot.slane %v227, %v5520
    %5523 = vbcast.lane.b32.xlu0 %v5521, 256
    %v5524 = vpop.permute.xlu0 %5523
    %v5525 = vlaneseq
    %v5526 = vshrl.u32 %v5525, 7
    %v5527 = vsub.s32 2, %v5526
    %v5528 = vrot.slane %v227, %v5527
    %5530 = vbcast.lane.b32.xlu0 %v5528, 256
    %v5531 = vpop.permute.xlu0 %5530
    %v5532 = vlaneseq
    %v5533 = vshrl.u32 %v5532, 7
    %v5534 = vsub.s32 3, %v5533
    %v5535 = vrot.slane %v227, %v5534
    %5537 = vbcast.lane.b32.xlu0 %v5535, 256
    %v5538 = vpop.permute.xlu0 %5537
    %v5539 = vlaneseq
    %v5540 = vshrl.u32 %v5539, 7
    %v5541 = vsub.s32 4, %v5540
    %v5542 = vrot.slane %v227, %v5541
    %5544 = vbcast.lane.b32.xlu0 %v5542, 256
    %v5545 = vpop.permute.xlu0 %5544
    %v5546 = vlaneseq
    %v5547 = vshrl.u32 %v5546, 7
    %v5548 = vsub.s32 5, %v5547
    %v5549 = vrot.slane %v227, %v5548
    %5551 = vbcast.lane.b32.xlu0 %v5549, 256
    %v5552 = vpop.permute.xlu0 %5551
    %v5553 = vlaneseq
    %v5554 = vshrl.u32 %v5553, 7
    %v5555 = vsub.s32 6, %v5554
    %v5556 = vrot.slane %v227, %v5555
    %5558 = vbcast.lane.b32.xlu0 %v5556, 256
    %v5559 = vpop.permute.xlu0 %5558
    %v5560 = vlaneseq
    %v5561 = vshrl.u32 %v5560, 7
    %v5562 = vsub.s32 7, %v5561
    %v5563 = vrot.slane %v227, %v5562
    %5565 = vbcast.lane.b32.xlu0 %v5563, 256
    %v5566 = vpop.permute.xlu0 %5565
    %v5567 = vlaneseq
    %v5568 = vshrl.u32 %v5567, 7
    %v5569 = vsub.s32 0, %v5568
    %v5570 = vrot.slane %v228, %v5569
    %5572 = vbcast.lane.b32.xlu0 %v5570, 256
    %v5573 = vpop.permute.xlu0 %5572
    %v5574 = vlaneseq
    %v5575 = vshrl.u32 %v5574, 7
    %v5576 = vsub.s32 1, %v5575
    %v5577 = vrot.slane %v228, %v5576
    %5579 = vbcast.lane.b32.xlu0 %v5577, 256
    %v5580 = vpop.permute.xlu0 %5579
    %v5581 = vlaneseq
    %v5582 = vshrl.u32 %v5581, 7
    %v5583 = vsub.s32 2, %v5582
    %v5584 = vrot.slane %v228, %v5583
    %5586 = vbcast.lane.b32.xlu0 %v5584, 256
    %v5587 = vpop.permute.xlu0 %5586
    %v5588 = vlaneseq
    %v5589 = vshrl.u32 %v5588, 7
    %v5590 = vsub.s32 3, %v5589
    %v5591 = vrot.slane %v228, %v5590
    %5593 = vbcast.lane.b32.xlu0 %v5591, 256
    %v5594 = vpop.permute.xlu0 %5593
    %v5595 = vlaneseq
    %v5596 = vshrl.u32 %v5595, 7
    %v5597 = vsub.s32 0, %v5596
    %v5598 = vrot.slane %v255, %v5597
    %5600 = vbcast.lane.b32.xlu0 %v5598, 256
    %v5601 = vpop.permute.xlu0 %5600
    %v5602 = vlaneseq
    %v5603 = vshrl.u32 %v5602, 7
    %v5604 = vsub.s32 1, %v5603
    %v5605 = vrot.slane %v255, %v5604
    %5607 = vbcast.lane.b32.xlu0 %v5605, 256
    %v5608 = vpop.permute.xlu0 %5607
    %v5609 = vlaneseq
    %v5610 = vshrl.u32 %v5609, 7
    %v5611 = vsub.s32 2, %v5610
    %v5612 = vrot.slane %v255, %v5611
    %5614 = vbcast.lane.b32.xlu0 %v5612, 256
    %v5615 = vpop.permute.xlu0 %5614
    %v5616 = vlaneseq
    %v5617 = vshrl.u32 %v5616, 7
    %v5618 = vsub.s32 3, %v5617
    %v5619 = vrot.slane %v255, %v5618
    %5621 = vbcast.lane.b32.xlu0 %v5619, 256
    %v5622 = vpop.permute.xlu0 %5621
    %v5623 = vlaneseq
    %v5624 = vshrl.u32 %v5623, 7
    %v5625 = vsub.s32 4, %v5624
    %v5626 = vrot.slane %v255, %v5625
    %5628 = vbcast.lane.b32.xlu0 %v5626, 256
    %v5629 = vpop.permute.xlu0 %5628
    %v5630 = vlaneseq
    %v5631 = vshrl.u32 %v5630, 7
    %v5632 = vsub.s32 5, %v5631
    %v5633 = vrot.slane %v255, %v5632
    %5635 = vbcast.lane.b32.xlu0 %v5633, 256
    %v5636 = vpop.permute.xlu0 %5635
    %v5637 = vlaneseq
    %v5638 = vshrl.u32 %v5637, 7
    %v5639 = vsub.s32 6, %v5638
    %v5640 = vrot.slane %v255, %v5639
    %5642 = vbcast.lane.b32.xlu0 %v5640, 256
    %v5643 = vpop.permute.xlu0 %5642
    %v5644 = vlaneseq
    %v5645 = vshrl.u32 %v5644, 7
    %v5646 = vsub.s32 7, %v5645
    %v5647 = vrot.slane %v255, %v5646
    %5649 = vbcast.lane.b32.xlu0 %v5647, 256
    %v5650 = vpop.permute.xlu0 %5649
    %v5651 = vlaneseq
    %v5652 = vshrl.u32 %v5651, 7
    %v5653 = vsub.s32 0, %v5652
    %v5654 = vrot.slane %v256, %v5653
    %5656 = vbcast.lane.b32.xlu0 %v5654, 256
    %v5657 = vpop.permute.xlu0 %5656
    %v5658 = vlaneseq
    %v5659 = vshrl.u32 %v5658, 7
    %v5660 = vsub.s32 1, %v5659
    %v5661 = vrot.slane %v256, %v5660
    %5663 = vbcast.lane.b32.xlu0 %v5661, 256
    %v5664 = vpop.permute.xlu0 %5663
    %v5665 = vlaneseq
    %v5666 = vshrl.u32 %v5665, 7
    %v5667 = vsub.s32 2, %v5666
    %v5668 = vrot.slane %v256, %v5667
    %5670 = vbcast.lane.b32.xlu0 %v5668, 256
    %v5671 = vpop.permute.xlu0 %5670
    %v5672 = vlaneseq
    %v5673 = vshrl.u32 %v5672, 7
    %v5674 = vsub.s32 3, %v5673
    %v5675 = vrot.slane %v256, %v5674
    %5677 = vbcast.lane.b32.xlu0 %v5675, 256
    %v5678 = vpop.permute.xlu0 %5677
    %v5679 = vmul.f32 %v5033, %v1628
    %v5680 = vmul.f32 %v5040, %v1628
    %v5681 = vmul.f32 %v5047, %v1628
    %v5682 = vmul.f32 %v5054, %v1628
    %v5683 = vmul.f32 %v5061, %v1628
    %v5684 = vmul.f32 %v5068, %v1628
    %v5685 = vmul.f32 %v5075, %v1628
    %v5686 = vmul.f32 %v5082, %v1628
    %v5687 = vmul.f32 %v5089, %v1628
    %v5688 = vmul.f32 %v5096, %v1628
    %v5689 = vmul.f32 %v5103, %v1628
    %v5690 = vmul.f32 %v5110, %v1628
    %v5691 = vmul.f32 %v5517, %v1628
    %v5692 = vmul.f32 %v5524, %v1628
    %v5693 = vmul.f32 %v5531, %v1628
    %v5694 = vmul.f32 %v5538, %v1628
    %v5695 = vmul.f32 %v5545, %v1628
    %v5696 = vmul.f32 %v5552, %v1628
    %v5697 = vmul.f32 %v5559, %v1628
    %v5698 = vmul.f32 %v5566, %v1628
    %v5699 = vmul.f32 %v5573, %v1628
    %v5700 = vmul.f32 %v5580, %v1628
    %v5701 = vmul.f32 %v5587, %v1628
    %v5702 = vmul.f32 %v5594, %v1628
    %v5703 = vmul.f32 %v5117, %v1632
    %v5704 = vmul.f32 %v5124, %v1632
    %v5705 = vmul.f32 %v5131, %v1632
    %v5706 = vmul.f32 %v5138, %v1632
    %v5707 = vmul.f32 %v5145, %v1632
    %v5708 = vmul.f32 %v5152, %v1632
    %v5709 = vmul.f32 %v5159, %v1632
    %v5710 = vmul.f32 %v5166, %v1632
    %v5711 = vmul.f32 %v5173, %v1632
    %v5712 = vmul.f32 %v5180, %v1632
    %v5713 = vmul.f32 %v5187, %v1632
    %v5714 = vmul.f32 %v5194, %v1632
    %v5715 = vmul.f32 %v5601, %v1632
    %v5716 = vmul.f32 %v5608, %v1632
    %v5717 = vmul.f32 %v5615, %v1632
    %v5718 = vmul.f32 %v5622, %v1632
    %v5719 = vmul.f32 %v5629, %v1632
    %v5720 = vmul.f32 %v5636, %v1632
    %v5721 = vmul.f32 %v5643, %v1632
    %v5722 = vmul.f32 %v5650, %v1632
    %v5723 = vmul.f32 %v5657, %v1632
    %v5724 = vmul.f32 %v5664, %v1632
    %v5725 = vmul.f32 %v5671, %v1632
    %v5726 = vmul.f32 %v5678, %v1632
    %v5727 = vadd.f32 %v5463, %v5679
    %v5728 = vadd.f32 %v5464, %v5680
    %v5729 = vadd.f32 %v5465, %v5681
    %v5730 = vadd.f32 %v5466, %v5682
    %v5731 = vadd.f32 %v5467, %v5683
    %v5732 = vadd.f32 %v5468, %v5684
    %v5733 = vadd.f32 %v5469, %v5685
    %v5734 = vadd.f32 %v5470, %v5686
    %v5735 = vadd.f32 %v5471, %v5687
    %v5736 = vadd.f32 %v5472, %v5688
    %v5737 = vadd.f32 %v5473, %v5689
    %v5738 = vadd.f32 %v5474, %v5690
    %v5739 = vadd.f32 %v5475, %v5691
    %v5740 = vadd.f32 %v5476, %v5692
    %v5741 = vadd.f32 %v5477, %v5693
    %v5742 = vadd.f32 %v5478, %v5694
    %v5743 = vadd.f32 %v5479, %v5695
    %v5744 = vadd.f32 %v5480, %v5696
    %v5745 = vadd.f32 %v5481, %v5697
    %v5746 = vadd.f32 %v5482, %v5698
    %v5747 = vadd.f32 %v5483, %v5699
    %v5748 = vadd.f32 %v5484, %v5700
    %v5749 = vadd.f32 %v5485, %v5701
    %v5750 = vadd.f32 %v5486, %v5702
    %v5751 = vadd.f32 %v5487, %v5703
    %v5752 = vadd.f32 %v5488, %v5704
    %v5753 = vadd.f32 %v5489, %v5705
    %v5754 = vadd.f32 %v5490, %v5706
    %v5755 = vadd.f32 %v5491, %v5707
    %v5756 = vadd.f32 %v5492, %v5708
    %v5757 = vadd.f32 %v5493, %v5709
    %v5758 = vadd.f32 %v5494, %v5710
    %v5759 = vadd.f32 %v5495, %v5711
    %v5760 = vadd.f32 %v5496, %v5712
    %v5761 = vadd.f32 %v5497, %v5713
    %v5762 = vadd.f32 %v5498, %v5714
    %v5763 = vadd.f32 %v5499, %v5715
    %v5764 = vadd.f32 %v5500, %v5716
    %v5765 = vadd.f32 %v5501, %v5717
    %v5766 = vadd.f32 %v5502, %v5718
    %v5767 = vadd.f32 %v5503, %v5719
    %v5768 = vadd.f32 %v5504, %v5720
    %v5769 = vadd.f32 %v5505, %v5721
    %v5770 = vadd.f32 %v5506, %v5722
    %v5771 = vadd.f32 %v5507, %v5723
    %v5772 = vadd.f32 %v5508, %v5724
    %v5773 = vadd.f32 %v5509, %v5725
    %v5774 = vadd.f32 %v5510, %v5726
    %v5775 = vlaneseq
    %v5776 = vshrl.u32 %v5775, 7
    %v5777 = vsub.s32 4, %v5776
    %v5778 = vrot.slane %v228, %v5777
    %5780 = vbcast.lane.b32.xlu0 %v5778, 256
    %v5781 = vpop.permute.xlu0 %5780
    %v5782 = vlaneseq
    %v5783 = vshrl.u32 %v5782, 7
    %v5784 = vsub.s32 4, %v5783
    %v5785 = vrot.slane %v256, %v5784
    %5787 = vbcast.lane.b32.xlu0 %v5785, 256
    %v5788 = vpop.permute.xlu0 %5787
    %v5789 = vmul.f32 %v5040, %v1746
    %v5790 = vmul.f32 %v5047, %v1746
    %v5791 = vmul.f32 %v5054, %v1746
    %v5792 = vmul.f32 %v5061, %v1746
    %v5793 = vmul.f32 %v5068, %v1746
    %v5794 = vmul.f32 %v5075, %v1746
    %v5795 = vmul.f32 %v5082, %v1746
    %v5796 = vmul.f32 %v5089, %v1746
    %v5797 = vmul.f32 %v5096, %v1746
    %v5798 = vmul.f32 %v5103, %v1746
    %v5799 = vmul.f32 %v5110, %v1746
    %v5800 = vmul.f32 %v5297, %v1746
    %v5801 = vmul.f32 %v5524, %v1746
    %v5802 = vmul.f32 %v5531, %v1746
    %v5803 = vmul.f32 %v5538, %v1746
    %v5804 = vmul.f32 %v5545, %v1746
    %v5805 = vmul.f32 %v5552, %v1746
    %v5806 = vmul.f32 %v5559, %v1746
    %v5807 = vmul.f32 %v5566, %v1746
    %v5808 = vmul.f32 %v5573, %v1746
    %v5809 = vmul.f32 %v5580, %v1746
    %v5810 = vmul.f32 %v5587, %v1746
    %v5811 = vmul.f32 %v5594, %v1746
    %v5812 = vmul.f32 %v5781, %v1746
    %v5813 = vmul.f32 %v5124, %v1750
    %v5814 = vmul.f32 %v5131, %v1750
    %v5815 = vmul.f32 %v5138, %v1750
    %v5816 = vmul.f32 %v5145, %v1750
    %v5817 = vmul.f32 %v5152, %v1750
    %v5818 = vmul.f32 %v5159, %v1750
    %v5819 = vmul.f32 %v5166, %v1750
    %v5820 = vmul.f32 %v5173, %v1750
    %v5821 = vmul.f32 %v5180, %v1750
    %v5822 = vmul.f32 %v5187, %v1750
    %v5823 = vmul.f32 %v5194, %v1750
    %v5824 = vmul.f32 %v5304, %v1750
    %v5825 = vmul.f32 %v5608, %v1750
    %v5826 = vmul.f32 %v5615, %v1750
    %v5827 = vmul.f32 %v5622, %v1750
    %v5828 = vmul.f32 %v5629, %v1750
    %v5829 = vmul.f32 %v5636, %v1750
    %v5830 = vmul.f32 %v5643, %v1750
    %v5831 = vmul.f32 %v5650, %v1750
    %v5832 = vmul.f32 %v5657, %v1750
    %v5833 = vmul.f32 %v5664, %v1750
    %v5834 = vmul.f32 %v5671, %v1750
    %v5835 = vmul.f32 %v5678, %v1750
    %v5836 = vmul.f32 %v5788, %v1750
    %v5837 = vadd.f32 %v5727, %v5789
    %v5838 = vadd.f32 %v5728, %v5790
    %v5839 = vadd.f32 %v5729, %v5791
    %v5840 = vadd.f32 %v5730, %v5792
    %v5841 = vadd.f32 %v5731, %v5793
    %v5842 = vadd.f32 %v5732, %v5794
    %v5843 = vadd.f32 %v5733, %v5795
    %v5844 = vadd.f32 %v5734, %v5796
    %v5845 = vadd.f32 %v5735, %v5797
    %v5846 = vadd.f32 %v5736, %v5798
    %v5847 = vadd.f32 %v5737, %v5799
    %v5848 = vadd.f32 %v5738, %v5800
    %v5849 = vadd.f32 %v5739, %v5801
    %v5850 = vadd.f32 %v5740, %v5802
    %v5851 = vadd.f32 %v5741, %v5803
    %v5852 = vadd.f32 %v5742, %v5804
    %v5853 = vadd.f32 %v5743, %v5805
    %v5854 = vadd.f32 %v5744, %v5806
    %v5855 = vadd.f32 %v5745, %v5807
    %v5856 = vadd.f32 %v5746, %v5808
    %v5857 = vadd.f32 %v5747, %v5809
    %v5858 = vadd.f32 %v5748, %v5810
    %v5859 = vadd.f32 %v5749, %v5811
    %v5860 = vadd.f32 %v5750, %v5812
    %v5861 = vadd.f32 %v5751, %v5813
    %v5862 = vadd.f32 %v5752, %v5814
    %v5863 = vadd.f32 %v5753, %v5815
    %v5864 = vadd.f32 %v5754, %v5816
    %v5865 = vadd.f32 %v5755, %v5817
    %v5866 = vadd.f32 %v5756, %v5818
    %v5867 = vadd.f32 %v5757, %v5819
    %v5868 = vadd.f32 %v5758, %v5820
    %v5869 = vadd.f32 %v5759, %v5821
    %v5870 = vadd.f32 %v5760, %v5822
    %v5871 = vadd.f32 %v5761, %v5823
    %v5872 = vadd.f32 %v5762, %v5824
    %v5873 = vadd.f32 %v5763, %v5825
    %v5874 = vadd.f32 %v5764, %v5826
    %v5875 = vadd.f32 %v5765, %v5827
    %v5876 = vadd.f32 %v5766, %v5828
    %v5877 = vadd.f32 %v5767, %v5829
    %v5878 = vadd.f32 %v5768, %v5830
    %v5879 = vadd.f32 %v5769, %v5831
    %v5880 = vadd.f32 %v5770, %v5832
    %v5881 = vadd.f32 %v5771, %v5833
    %v5882 = vadd.f32 %v5772, %v5834
    %v5883 = vadd.f32 %v5773, %v5835
    %v5884 = vadd.f32 %v5774, %v5836
    %v5885 = vlaneseq
    %v5886 = vshrl.u32 %v5885, 7
    %v5887 = vsub.s32 5, %v5886
    %v5888 = vrot.slane %v228, %v5887
    %5890 = vbcast.lane.b32.xlu0 %v5888, 256
    %v5891 = vpop.permute.xlu0 %5890
    %v5892 = vlaneseq
    %v5893 = vshrl.u32 %v5892, 7
    %v5894 = vsub.s32 5, %v5893
    %v5895 = vrot.slane %v256, %v5894
    %5897 = vbcast.lane.b32.xlu0 %v5895, 256
    %v5898 = vpop.permute.xlu0 %5897
    %v5899 = vmul.f32 %v5047, %v1864
    %v5900 = vmul.f32 %v5054, %v1864
    %v5901 = vmul.f32 %v5061, %v1864
    %v5902 = vmul.f32 %v5068, %v1864
    %v5903 = vmul.f32 %v5075, %v1864
    %v5904 = vmul.f32 %v5082, %v1864
    %v5905 = vmul.f32 %v5089, %v1864
    %v5906 = vmul.f32 %v5096, %v1864
    %v5907 = vmul.f32 %v5103, %v1864
    %v5908 = vmul.f32 %v5110, %v1864
    %v5909 = vmul.f32 %v5297, %v1864
    %v5910 = vmul.f32 %v5407, %v1864
    %v5911 = vmul.f32 %v5531, %v1864
    %v5912 = vmul.f32 %v5538, %v1864
    %v5913 = vmul.f32 %v5545, %v1864
    %v5914 = vmul.f32 %v5552, %v1864
    %v5915 = vmul.f32 %v5559, %v1864
    %v5916 = vmul.f32 %v5566, %v1864
    %v5917 = vmul.f32 %v5573, %v1864
    %v5918 = vmul.f32 %v5580, %v1864
    %v5919 = vmul.f32 %v5587, %v1864
    %v5920 = vmul.f32 %v5594, %v1864
    %v5921 = vmul.f32 %v5781, %v1864
    %v5922 = vmul.f32 %v5891, %v1864
    %v5923 = vmul.f32 %v5131, %v1868
    %v5924 = vmul.f32 %v5138, %v1868
    %v5925 = vmul.f32 %v5145, %v1868
    %v5926 = vmul.f32 %v5152, %v1868
    %v5927 = vmul.f32 %v5159, %v1868
    %v5928 = vmul.f32 %v5166, %v1868
    %v5929 = vmul.f32 %v5173, %v1868
    %v5930 = vmul.f32 %v5180, %v1868
    %v5931 = vmul.f32 %v5187, %v1868
    %v5932 = vmul.f32 %v5194, %v1868
    %v5933 = vmul.f32 %v5304, %v1868
    %v5934 = vmul.f32 %v5414, %v1868
    %v5935 = vmul.f32 %v5615, %v1868
    %v5936 = vmul.f32 %v5622, %v1868
    %v5937 = vmul.f32 %v5629, %v1868
    %v5938 = vmul.f32 %v5636, %v1868
    %v5939 = vmul.f32 %v5643, %v1868
    %v5940 = vmul.f32 %v5650, %v1868
    %v5941 = vmul.f32 %v5657, %v1868
    %v5942 = vmul.f32 %v5664, %v1868
    %v5943 = vmul.f32 %v5671, %v1868
    %v5944 = vmul.f32 %v5678, %v1868
    %v5945 = vmul.f32 %v5788, %v1868
    %v5946 = vmul.f32 %v5898, %v1868
    %v5947 = vadd.f32 %v5837, %v5899
    %v5948 = vadd.f32 %v5838, %v5900
    %v5949 = vadd.f32 %v5839, %v5901
    %v5950 = vadd.f32 %v5840, %v5902
    %v5951 = vadd.f32 %v5841, %v5903
    %v5952 = vadd.f32 %v5842, %v5904
    %v5953 = vadd.f32 %v5843, %v5905
    %v5954 = vadd.f32 %v5844, %v5906
    %v5955 = vadd.f32 %v5845, %v5907
    %v5956 = vadd.f32 %v5846, %v5908
    %v5957 = vadd.f32 %v5847, %v5909
    %v5958 = vadd.f32 %v5848, %v5910
    %v5959 = vadd.f32 %v5849, %v5911
    %v5960 = vadd.f32 %v5850, %v5912
    %v5961 = vadd.f32 %v5851, %v5913
    %v5962 = vadd.f32 %v5852, %v5914
    %v5963 = vadd.f32 %v5853, %v5915
    %v5964 = vadd.f32 %v5854, %v5916
    %v5965 = vadd.f32 %v5855, %v5917
    %v5966 = vadd.f32 %v5856, %v5918
    %v5967 = vadd.f32 %v5857, %v5919
    %v5968 = vadd.f32 %v5858, %v5920
    %v5969 = vadd.f32 %v5859, %v5921
    %v5970 = vadd.f32 %v5860, %v5922
    %v5971 = vadd.f32 %v5861, %v5923
    %v5972 = vadd.f32 %v5862, %v5924
    %v5973 = vadd.f32 %v5863, %v5925
    %v5974 = vadd.f32 %v5864, %v5926
    %v5975 = vadd.f32 %v5865, %v5927
    %v5976 = vadd.f32 %v5866, %v5928
    %v5977 = vadd.f32 %v5867, %v5929
    %v5978 = vadd.f32 %v5868, %v5930
    %v5979 = vadd.f32 %v5869, %v5931
    %v5980 = vadd.f32 %v5870, %v5932
    %v5981 = vadd.f32 %v5871, %v5933
    %v5982 = vadd.f32 %v5872, %v5934
    %v5983 = vadd.f32 %v5873, %v5935
    %v5984 = vadd.f32 %v5874, %v5936
    %v5985 = vadd.f32 %v5875, %v5937
    %v5986 = vadd.f32 %v5876, %v5938
    %v5987 = vadd.f32 %v5877, %v5939
    %v5988 = vadd.f32 %v5878, %v5940
    %v5989 = vadd.f32 %v5879, %v5941
    %v5990 = vadd.f32 %v5880, %v5942
    %v5991 = vadd.f32 %v5881, %v5943
    %v5992 = vadd.f32 %v5882, %v5944
    %v5993 = vadd.f32 %v5883, %v5945
    %v5994 = vadd.f32 %v5884, %v5946
    %v5995 = vadd.f32 %v5947, %v1968
    %v5996 = vadd.f32 %v5948, %v1968
    %v5997 = vadd.f32 %v5949, %v1968
    %v5998 = vadd.f32 %v5950, %v1968
    %v5999 = vadd.f32 %v5951, %v1968
    %v6000 = vadd.f32 %v5952, %v1968
    %v6001 = vadd.f32 %v5953, %v1968
    %v6002 = vadd.f32 %v5954, %v1968
    %v6003 = vadd.f32 %v5955, %v1968
    %v6004 = vadd.f32 %v5956, %v1968
    %v6005 = vadd.f32 %v5957, %v1968
    %v6006 = vadd.f32 %v5958, %v1968
    %v6007 = vadd.f32 %v5959, %v1968
    %v6008 = vadd.f32 %v5960, %v1968
    %v6009 = vadd.f32 %v5961, %v1968
    %v6010 = vadd.f32 %v5962, %v1968
    %v6011 = vadd.f32 %v5963, %v1968
    %v6012 = vadd.f32 %v5964, %v1968
    %v6013 = vadd.f32 %v5965, %v1968
    %v6014 = vadd.f32 %v5966, %v1968
    %v6015 = vadd.f32 %v5967, %v1968
    %v6016 = vadd.f32 %v5968, %v1968
    %v6017 = vadd.f32 %v5969, %v1968
    %v6018 = vadd.f32 %v5970, %v1968
    %v6019 = vadd.f32 %v5971, %v1972
    %v6020 = vadd.f32 %v5972, %v1972
    %v6021 = vadd.f32 %v5973, %v1972
    %v6022 = vadd.f32 %v5974, %v1972
    %v6023 = vadd.f32 %v5975, %v1972
    %v6024 = vadd.f32 %v5976, %v1972
    %v6025 = vadd.f32 %v5977, %v1972
    %v6026 = vadd.f32 %v5978, %v1972
    %v6027 = vadd.f32 %v5979, %v1972
    %v6028 = vadd.f32 %v5980, %v1972
    %v6029 = vadd.f32 %v5981, %v1972
    %v6030 = vadd.f32 %v5982, %v1972
    %v6031 = vadd.f32 %v5983, %v1972
    %v6032 = vadd.f32 %v5984, %v1972
    %v6033 = vadd.f32 %v5985, %v1972
    %v6034 = vadd.f32 %v5986, %v1972
    %v6035 = vadd.f32 %v5987, %v1972
    %v6036 = vadd.f32 %v5988, %v1972
    %v6037 = vadd.f32 %v5989, %v1972
    %v6038 = vadd.f32 %v5990, %v1972
    %v6039 = vadd.f32 %v5991, %v1972
    %v6040 = vadd.f32 %v5992, %v1972
    %v6041 = vadd.f32 %v5993, %v1972
    %v6042 = vadd.f32 %v5994, %v1972
    %v6043 = vmax.f32 %v5995, 0.0
    %v6044 = vmax.f32 %v5996, 0.0
    %v6045 = vmax.f32 %v5997, 0.0
    %v6046 = vmax.f32 %v5998, 0.0
    %v6047 = vmax.f32 %v5999, 0.0
    %v6048 = vmax.f32 %v6000, 0.0
    %v6049 = vmax.f32 %v6001, 0.0
    %v6050 = vmax.f32 %v6002, 0.0
    %v6051 = vmax.f32 %v6003, 0.0
    %v6052 = vmax.f32 %v6004, 0.0
    %v6053 = vmax.f32 %v6005, 0.0
    %v6054 = vmax.f32 %v6006, 0.0
    %v6055 = vmax.f32 %v6007, 0.0
    %v6056 = vmax.f32 %v6008, 0.0
    %v6057 = vmax.f32 %v6009, 0.0
    %v6058 = vmax.f32 %v6010, 0.0
    %v6059 = vmax.f32 %v6011, 0.0
    %v6060 = vmax.f32 %v6012, 0.0
    %v6061 = vmax.f32 %v6013, 0.0
    %v6062 = vmax.f32 %v6014, 0.0
    %v6063 = vmax.f32 %v6015, 0.0
    %v6064 = vmax.f32 %v6016, 0.0
    %v6065 = vmax.f32 %v6017, 0.0
    %v6066 = vmax.f32 %v6018, 0.0
    %v6067 = vmax.f32 %v6019, 0.0
    %v6068 = vmax.f32 %v6020, 0.0
    %v6069 = vmax.f32 %v6021, 0.0
    %v6070 = vmax.f32 %v6022, 0.0
    %v6071 = vmax.f32 %v6023, 0.0
    %v6072 = vmax.f32 %v6024, 0.0
    %v6073 = vmax.f32 %v6025, 0.0
    %v6074 = vmax.f32 %v6026, 0.0
    %v6075 = vmax.f32 %v6027, 0.0
    %v6076 = vmax.f32 %v6028, 0.0
    %v6077 = vmax.f32 %v6029, 0.0
    %v6078 = vmax.f32 %v6030, 0.0
    %v6079 = vmax.f32 %v6031, 0.0
    %v6080 = vmax.f32 %v6032, 0.0
    %v6081 = vmax.f32 %v6033, 0.0
    %v6082 = vmax.f32 %v6034, 0.0
    %v6083 = vmax.f32 %v6035, 0.0
    %v6084 = vmax.f32 %v6036, 0.0
    %v6085 = vmax.f32 %v6037, 0.0
    %v6086 = vmax.f32 %v6038, 0.0
    %v6087 = vmax.f32 %v6039, 0.0
    %v6088 = vmax.f32 %v6040, 0.0
    %v6089 = vmax.f32 %v6041, 0.0
    %v6090 = vmax.f32 %v6042, 0.0
    %v6091 = vmax.f32 %v6043, %v6055
    %v6092 = vmax.f32 %v6044, %v6056
    %v6093 = vmax.f32 %v6045, %v6057
    %v6094 = vmax.f32 %v6046, %v6058
    %v6095 = vmax.f32 %v6047, %v6059
    %v6096 = vmax.f32 %v6048, %v6060
    %v6097 = vmax.f32 %v6049, %v6061
    %v6098 = vmax.f32 %v6050, %v6062
    %v6099 = vmax.f32 %v6051, %v6063
    %v6100 = vmax.f32 %v6052, %v6064
    %v6101 = vmax.f32 %v6053, %v6065
    %v6102 = vmax.f32 %v6054, %v6066
    %v6103 = vmax.f32 %v6067, %v6079
    %v6104 = vmax.f32 %v6068, %v6080
    %v6105 = vmax.f32 %v6069, %v6081
    %v6106 = vmax.f32 %v6070, %v6082
    %v6107 = vmax.f32 %v6071, %v6083
    %v6108 = vmax.f32 %v6072, %v6084
    %v6109 = vmax.f32 %v6073, %v6085
    %v6110 = vmax.f32 %v6074, %v6086
    %v6111 = vmax.f32 %v6075, %v6087
    %v6112 = vmax.f32 %v6076, %v6088
    %v6113 = vmax.f32 %v6077, %v6089
    %v6114 = vmax.f32 %v6078, %v6090
    %v6115 = vmax.f32 %v6091, %v6092
    %v6116 = vmax.f32 %v6093, %v6094
    %v6117 = vmax.f32 %v6095, %v6096
    %v6118 = vmax.f32 %v6097, %v6098
    %v6119 = vmax.f32 %v6099, %v6100
    %v6120 = vmax.f32 %v6101, %v6102
    %v6121 = vmax.f32 %v6103, %v6104
    %v6122 = vmax.f32 %v6105, %v6106
    %v6123 = vmax.f32 %v6107, %v6108
    %v6124 = vmax.f32 %v6109, %v6110
    %v6125 = vmax.f32 %v6111, %v6112
    %v6126 = vmax.f32 %v6113, %v6114
    %v6127 = vmul.f32 %v5033, %v632
    %v6128 = vmul.f32 %v5040, %v632
    %v6129 = vmul.f32 %v5047, %v632
    %v6130 = vmul.f32 %v5054, %v632
    %v6131 = vmul.f32 %v5061, %v632
    %v6132 = vmul.f32 %v5068, %v632
    %v6133 = vmul.f32 %v5075, %v632
    %v6134 = vmul.f32 %v5082, %v632
    %v6135 = vmul.f32 %v5089, %v632
    %v6136 = vmul.f32 %v5096, %v632
    %v6137 = vmul.f32 %v5103, %v632
    %v6138 = vmul.f32 %v5110, %v632
    %v6139 = vmul.f32 %v5517, %v632
    %v6140 = vmul.f32 %v5524, %v632
    %v6141 = vmul.f32 %v5531, %v632
    %v6142 = vmul.f32 %v5538, %v632
    %v6143 = vmul.f32 %v5545, %v632
    %v6144 = vmul.f32 %v5552, %v632
    %v6145 = vmul.f32 %v5559, %v632
    %v6146 = vmul.f32 %v5566, %v632
    %v6147 = vmul.f32 %v5573, %v632
    %v6148 = vmul.f32 %v5580, %v632
    %v6149 = vmul.f32 %v5587, %v632
    %v6150 = vmul.f32 %v5594, %v632
    %v6151 = vmul.f32 %v5117, %v636
    %v6152 = vmul.f32 %v5124, %v636
    %v6153 = vmul.f32 %v5131, %v636
    %v6154 = vmul.f32 %v5138, %v636
    %v6155 = vmul.f32 %v5145, %v636
    %v6156 = vmul.f32 %v5152, %v636
    %v6157 = vmul.f32 %v5159, %v636
    %v6158 = vmul.f32 %v5166, %v636
    %v6159 = vmul.f32 %v5173, %v636
    %v6160 = vmul.f32 %v5180, %v636
    %v6161 = vmul.f32 %v5187, %v636
    %v6162 = vmul.f32 %v5194, %v636
    %v6163 = vmul.f32 %v5601, %v636
    %v6164 = vmul.f32 %v5608, %v636
    %v6165 = vmul.f32 %v5615, %v636
    %v6166 = vmul.f32 %v5622, %v636
    %v6167 = vmul.f32 %v5629, %v636
    %v6168 = vmul.f32 %v5636, %v636
    %v6169 = vmul.f32 %v5643, %v636
    %v6170 = vmul.f32 %v5650, %v636
    %v6171 = vmul.f32 %v5657, %v636
    %v6172 = vmul.f32 %v5664, %v636
    %v6173 = vmul.f32 %v5671, %v636
    %v6174 = vmul.f32 %v5678, %v636
    %v6175 = vmul.f32 %v5040, %v716
    %v6176 = vmul.f32 %v5047, %v716
    %v6177 = vmul.f32 %v5054, %v716
    %v6178 = vmul.f32 %v5061, %v716
    %v6179 = vmul.f32 %v5068, %v716
    %v6180 = vmul.f32 %v5075, %v716
    %v6181 = vmul.f32 %v5082, %v716
    %v6182 = vmul.f32 %v5089, %v716
    %v6183 = vmul.f32 %v5096, %v716
    %v6184 = vmul.f32 %v5103, %v716
    %v6185 = vmul.f32 %v5110, %v716
    %v6186 = vmul.f32 %v5297, %v716
    %v6187 = vmul.f32 %v5524, %v716
    %v6188 = vmul.f32 %v5531, %v716
    %v6189 = vmul.f32 %v5538, %v716
    %v6190 = vmul.f32 %v5545, %v716
    %v6191 = vmul.f32 %v5552, %v716
    %v6192 = vmul.f32 %v5559, %v716
    %v6193 = vmul.f32 %v5566, %v716
    %v6194 = vmul.f32 %v5573, %v716
    %v6195 = vmul.f32 %v5580, %v716
    %v6196 = vmul.f32 %v5587, %v716
    %v6197 = vmul.f32 %v5594, %v716
    %v6198 = vmul.f32 %v5781, %v716
    %v6199 = vmul.f32 %v5124, %v720
    %v6200 = vmul.f32 %v5131, %v720
    %v6201 = vmul.f32 %v5138, %v720
    %v6202 = vmul.f32 %v5145, %v720
    %v6203 = vmul.f32 %v5152, %v720
    %v6204 = vmul.f32 %v5159, %v720
    %v6205 = vmul.f32 %v5166, %v720
    %v6206 = vmul.f32 %v5173, %v720
    %v6207 = vmul.f32 %v5180, %v720
    %v6208 = vmul.f32 %v5187, %v720
    %v6209 = vmul.f32 %v5194, %v720
    %v6210 = vmul.f32 %v5304, %v720
    %v6211 = vmul.f32 %v5608, %v720
    %v6212 = vmul.f32 %v5615, %v720
    %v6213 = vmul.f32 %v5622, %v720
    %v6214 = vmul.f32 %v5629, %v720
    %v6215 = vmul.f32 %v5636, %v720
    %v6216 = vmul.f32 %v5643, %v720
    %v6217 = vmul.f32 %v5650, %v720
    %v6218 = vmul.f32 %v5657, %v720
    %v6219 = vmul.f32 %v5664, %v720
    %v6220 = vmul.f32 %v5671, %v720
    %v6221 = vmul.f32 %v5678, %v720
    %v6222 = vmul.f32 %v5788, %v720
    %v6223 = vadd.f32 %v6127, %v6175
    %v6224 = vadd.f32 %v6128, %v6176
    %v6225 = vadd.f32 %v6129, %v6177
    %v6226 = vadd.f32 %v6130, %v6178
    %v6227 = vadd.f32 %v6131, %v6179
    %v6228 = vadd.f32 %v6132, %v6180
    %v6229 = vadd.f32 %v6133, %v6181
    %v6230 = vadd.f32 %v6134, %v6182
    %v6231 = vadd.f32 %v6135, %v6183
    %v6232 = vadd.f32 %v6136, %v6184
    %v6233 = vadd.f32 %v6137, %v6185
    %v6234 = vadd.f32 %v6138, %v6186
    %v6235 = vadd.f32 %v6139, %v6187
    %v6236 = vadd.f32 %v6140, %v6188
    %v6237 = vadd.f32 %v6141, %v6189
    %v6238 = vadd.f32 %v6142, %v6190
    %v6239 = vadd.f32 %v6143, %v6191
    %v6240 = vadd.f32 %v6144, %v6192
    %v6241 = vadd.f32 %v6145, %v6193
    %v6242 = vadd.f32 %v6146, %v6194
    %v6243 = vadd.f32 %v6147, %v6195
    %v6244 = vadd.f32 %v6148, %v6196
    %v6245 = vadd.f32 %v6149, %v6197
    %v6246 = vadd.f32 %v6150, %v6198
    %v6247 = vadd.f32 %v6151, %v6199
    %v6248 = vadd.f32 %v6152, %v6200
    %v6249 = vadd.f32 %v6153, %v6201
    %v6250 = vadd.f32 %v6154, %v6202
    %v6251 = vadd.f32 %v6155, %v6203
    %v6252 = vadd.f32 %v6156, %v6204
    %v6253 = vadd.f32 %v6157, %v6205
    %v6254 = vadd.f32 %v6158, %v6206
    %v6255 = vadd.f32 %v6159, %v6207
    %v6256 = vadd.f32 %v6160, %v6208
    %v6257 = vadd.f32 %v6161, %v6209
    %v6258 = vadd.f32 %v6162, %v6210
    %v6259 = vadd.f32 %v6163, %v6211
    %v6260 = vadd.f32 %v6164, %v6212
    %v6261 = vadd.f32 %v6165, %v6213
    %v6262 = vadd.f32 %v6166, %v6214
    %v6263 = vadd.f32 %v6167, %v6215
    %v6264 = vadd.f32 %v6168, %v6216
    %v6265 = vadd.f32 %v6169, %v6217
    %v6266 = vadd.f32 %v6170, %v6218
    %v6267 = vadd.f32 %v6171, %v6219
    %v6268 = vadd.f32 %v6172, %v6220
    %v6269 = vadd.f32 %v6173, %v6221
    %v6270 = vadd.f32 %v6174, %v6222
    %v6271 = vmul.f32 %v5047, %v848
    %v6272 = vmul.f32 %v5054, %v848
    %v6273 = vmul.f32 %v5061, %v848
    %v6274 = vmul.f32 %v5068, %v848
    %v6275 = vmul.f32 %v5075, %v848
    %v6276 = vmul.f32 %v5082, %v848
    %v6277 = vmul.f32 %v5089, %v848
    %v6278 = vmul.f32 %v5096, %v848
    %v6279 = vmul.f32 %v5103, %v848
    %v6280 = vmul.f32 %v5110, %v848
    %v6281 = vmul.f32 %v5297, %v848
    %v6282 = vmul.f32 %v5407, %v848
    %v6283 = vmul.f32 %v5531, %v848
    %v6284 = vmul.f32 %v5538, %v848
    %v6285 = vmul.f32 %v5545, %v848
    %v6286 = vmul.f32 %v5552, %v848
    %v6287 = vmul.f32 %v5559, %v848
    %v6288 = vmul.f32 %v5566, %v848
    %v6289 = vmul.f32 %v5573, %v848
    %v6290 = vmul.f32 %v5580, %v848
    %v6291 = vmul.f32 %v5587, %v848
    %v6292 = vmul.f32 %v5594, %v848
    %v6293 = vmul.f32 %v5781, %v848
    %v6294 = vmul.f32 %v5891, %v848
    %v6295 = vmul.f32 %v5131, %v852
    %v6296 = vmul.f32 %v5138, %v852
    %v6297 = vmul.f32 %v5145, %v852
    %v6298 = vmul.f32 %v5152, %v852
    %v6299 = vmul.f32 %v5159, %v852
    %v6300 = vmul.f32 %v5166, %v852
    %v6301 = vmul.f32 %v5173, %v852
    %v6302 = vmul.f32 %v5180, %v852
    %v6303 = vmul.f32 %v5187, %v852
    %v6304 = vmul.f32 %v5194, %v852
    %v6305 = vmul.f32 %v5304, %v852
    %v6306 = vmul.f32 %v5414, %v852
    %v6307 = vmul.f32 %v5615, %v852
    %v6308 = vmul.f32 %v5622, %v852
    %v6309 = vmul.f32 %v5629, %v852
    %v6310 = vmul.f32 %v5636, %v852
    %v6311 = vmul.f32 %v5643, %v852
    %v6312 = vmul.f32 %v5650, %v852
    %v6313 = vmul.f32 %v5657, %v852
    %v6314 = vmul.f32 %v5664, %v852
    %v6315 = vmul.f32 %v5671, %v852
    %v6316 = vmul.f32 %v5678, %v852
    %v6317 = vmul.f32 %v5788, %v852
    %v6318 = vmul.f32 %v5898, %v852
    %v6319 = vadd.f32 %v6223, %v6271
    %v6320 = vadd.f32 %v6224, %v6272
    %v6321 = vadd.f32 %v6225, %v6273
    %v6322 = vadd.f32 %v6226, %v6274
    %v6323 = vadd.f32 %v6227, %v6275
    %v6324 = vadd.f32 %v6228, %v6276
    %v6325 = vadd.f32 %v6229, %v6277
    %v6326 = vadd.f32 %v6230, %v6278
    %v6327 = vadd.f32 %v6231, %v6279
    %v6328 = vadd.f32 %v6232, %v6280
    %v6329 = vadd.f32 %v6233, %v6281
    %v6330 = vadd.f32 %v6234, %v6282
    %v6331 = vadd.f32 %v6235, %v6283
    %v6332 = vadd.f32 %v6236, %v6284
    %v6333 = vadd.f32 %v6237, %v6285
    %v6334 = vadd.f32 %v6238, %v6286
    %v6335 = vadd.f32 %v6239, %v6287
    %v6336 = vadd.f32 %v6240, %v6288
    %v6337 = vadd.f32 %v6241, %v6289
    %v6338 = vadd.f32 %v6242, %v6290
    %v6339 = vadd.f32 %v6243, %v6291
    %v6340 = vadd.f32 %v6244, %v6292
    %v6341 = vadd.f32 %v6245, %v6293
    %v6342 = vadd.f32 %v6246, %v6294
    %v6343 = vadd.f32 %v6247, %v6295
    %v6344 = vadd.f32 %v6248, %v6296
    %v6345 = vadd.f32 %v6249, %v6297
    %v6346 = vadd.f32 %v6250, %v6298
    %v6347 = vadd.f32 %v6251, %v6299
    %v6348 = vadd.f32 %v6252, %v6300
    %v6349 = vadd.f32 %v6253, %v6301
    %v6350 = vadd.f32 %v6254, %v6302
    %v6351 = vadd.f32 %v6255, %v6303
    %v6352 = vadd.f32 %v6256, %v6304
    %v6353 = vadd.f32 %v6257, %v6305
    %v6354 = vadd.f32 %v6258, %v6306
    %v6355 = vadd.f32 %v6259, %v6307
    %v6356 = vadd.f32 %v6260, %v6308
    %v6357 = vadd.f32 %v6261, %v6309
    %v6358 = vadd.f32 %v6262, %v6310
    %v6359 = vadd.f32 %v6263, %v6311
    %v6360 = vadd.f32 %v6264, %v6312
    %v6361 = vadd.f32 %v6265, %v6313
    %v6362 = vadd.f32 %v6266, %v6314
    %v6363 = vadd.f32 %v6267, %v6315
    %v6364 = vadd.f32 %v6268, %v6316
    %v6365 = vadd.f32 %v6269, %v6317
    %v6366 = vadd.f32 %v6270, %v6318
    %v6367 = vlaneseq
    %v6368 = vshrl.u32 %v6367, 7
    %v6369 = vsub.s32 0, %v6368
    %v6370 = vrot.slane %v229, %v6369
    %6372 = vbcast.lane.b32.xlu0 %v6370, 256
    %v6373 = vpop.permute.xlu0 %6372
    %v6374 = vlaneseq
    %v6375 = vshrl.u32 %v6374, 7
    %v6376 = vsub.s32 1, %v6375
    %v6377 = vrot.slane %v229, %v6376
    %6379 = vbcast.lane.b32.xlu0 %v6377, 256
    %v6380 = vpop.permute.xlu0 %6379
    %v6381 = vlaneseq
    %v6382 = vshrl.u32 %v6381, 7
    %v6383 = vsub.s32 2, %v6382
    %v6384 = vrot.slane %v229, %v6383
    %6386 = vbcast.lane.b32.xlu0 %v6384, 256
    %v6387 = vpop.permute.xlu0 %6386
    %v6388 = vlaneseq
    %v6389 = vshrl.u32 %v6388, 7
    %v6390 = vsub.s32 3, %v6389
    %v6391 = vrot.slane %v229, %v6390
    %6393 = vbcast.lane.b32.xlu0 %v6391, 256
    %v6394 = vpop.permute.xlu0 %6393
    %v6395 = vlaneseq
    %v6396 = vshrl.u32 %v6395, 7
    %v6397 = vsub.s32 4, %v6396
    %v6398 = vrot.slane %v229, %v6397
    %6400 = vbcast.lane.b32.xlu0 %v6398, 256
    %v6401 = vpop.permute.xlu0 %6400
    %v6402 = vlaneseq
    %v6403 = vshrl.u32 %v6402, 7
    %v6404 = vsub.s32 5, %v6403
    %v6405 = vrot.slane %v229, %v6404
    %6407 = vbcast.lane.b32.xlu0 %v6405, 256
    %v6408 = vpop.permute.xlu0 %6407
    %v6409 = vlaneseq
    %v6410 = vshrl.u32 %v6409, 7
    %v6411 = vsub.s32 6, %v6410
    %v6412 = vrot.slane %v229, %v6411
    %6414 = vbcast.lane.b32.xlu0 %v6412, 256
    %v6415 = vpop.permute.xlu0 %6414
    %v6416 = vlaneseq
    %v6417 = vshrl.u32 %v6416, 7
    %v6418 = vsub.s32 7, %v6417
    %v6419 = vrot.slane %v229, %v6418
    %6421 = vbcast.lane.b32.xlu0 %v6419, 256
    %v6422 = vpop.permute.xlu0 %6421
    %v6423 = vlaneseq
    %v6424 = vshrl.u32 %v6423, 7
    %v6425 = vsub.s32 0, %v6424
    %v6426 = vrot.slane %v230, %v6425
    %6428 = vbcast.lane.b32.xlu0 %v6426, 256
    %v6429 = vpop.permute.xlu0 %6428
    %v6430 = vlaneseq
    %v6431 = vshrl.u32 %v6430, 7
    %v6432 = vsub.s32 1, %v6431
    %v6433 = vrot.slane %v230, %v6432
    %6435 = vbcast.lane.b32.xlu0 %v6433, 256
    %v6436 = vpop.permute.xlu0 %6435
    %v6437 = vlaneseq
    %v6438 = vshrl.u32 %v6437, 7
    %v6439 = vsub.s32 2, %v6438
    %v6440 = vrot.slane %v230, %v6439
    %6442 = vbcast.lane.b32.xlu0 %v6440, 256
    %v6443 = vpop.permute.xlu0 %6442
    %v6444 = vlaneseq
    %v6445 = vshrl.u32 %v6444, 7
    %v6446 = vsub.s32 3, %v6445
    %v6447 = vrot.slane %v230, %v6446
    %6449 = vbcast.lane.b32.xlu0 %v6447, 256
    %v6450 = vpop.permute.xlu0 %6449
    %v6451 = vlaneseq
    %v6452 = vshrl.u32 %v6451, 7
    %v6453 = vsub.s32 0, %v6452
    %v6454 = vrot.slane %v257, %v6453
    %6456 = vbcast.lane.b32.xlu0 %v6454, 256
    %v6457 = vpop.permute.xlu0 %6456
    %v6458 = vlaneseq
    %v6459 = vshrl.u32 %v6458, 7
    %v6460 = vsub.s32 1, %v6459
    %v6461 = vrot.slane %v257, %v6460
    %6463 = vbcast.lane.b32.xlu0 %v6461, 256
    %v6464 = vpop.permute.xlu0 %6463
    %v6465 = vlaneseq
    %v6466 = vshrl.u32 %v6465, 7
    %v6467 = vsub.s32 2, %v6466
    %v6468 = vrot.slane %v257, %v6467
    %6470 = vbcast.lane.b32.xlu0 %v6468, 256
    %v6471 = vpop.permute.xlu0 %6470
    %v6472 = vlaneseq
    %v6473 = vshrl.u32 %v6472, 7
    %v6474 = vsub.s32 3, %v6473
    %v6475 = vrot.slane %v257, %v6474
    %6477 = vbcast.lane.b32.xlu0 %v6475, 256
    %v6478 = vpop.permute.xlu0 %6477
    %v6479 = vlaneseq
    %v6480 = vshrl.u32 %v6479, 7
    %v6481 = vsub.s32 4, %v6480
    %v6482 = vrot.slane %v257, %v6481
    %6484 = vbcast.lane.b32.xlu0 %v6482, 256
    %v6485 = vpop.permute.xlu0 %6484
    %v6486 = vlaneseq
    %v6487 = vshrl.u32 %v6486, 7
    %v6488 = vsub.s32 5, %v6487
    %v6489 = vrot.slane %v257, %v6488
    %6491 = vbcast.lane.b32.xlu0 %v6489, 256
    %v6492 = vpop.permute.xlu0 %6491
    %v6493 = vlaneseq
    %v6494 = vshrl.u32 %v6493, 7
    %v6495 = vsub.s32 6, %v6494
    %v6496 = vrot.slane %v257, %v6495
    %6498 = vbcast.lane.b32.xlu0 %v6496, 256
    %v6499 = vpop.permute.xlu0 %6498
    %v6500 = vlaneseq
    %v6501 = vshrl.u32 %v6500, 7
    %v6502 = vsub.s32 7, %v6501
    %v6503 = vrot.slane %v257, %v6502
    %6505 = vbcast.lane.b32.xlu0 %v6503, 256
    %v6506 = vpop.permute.xlu0 %6505
    %v6507 = vlaneseq
    %v6508 = vshrl.u32 %v6507, 7
    %v6509 = vsub.s32 0, %v6508
    %v6510 = vrot.slane %v258, %v6509
    %6512 = vbcast.lane.b32.xlu0 %v6510, 256
    %v6513 = vpop.permute.xlu0 %6512
    %v6514 = vlaneseq
    %v6515 = vshrl.u32 %v6514, 7
    %v6516 = vsub.s32 1, %v6515
    %v6517 = vrot.slane %v258, %v6516
    %6519 = vbcast.lane.b32.xlu0 %v6517, 256
    %v6520 = vpop.permute.xlu0 %6519
    %v6521 = vlaneseq
    %v6522 = vshrl.u32 %v6521, 7
    %v6523 = vsub.s32 2, %v6522
    %v6524 = vrot.slane %v258, %v6523
    %6526 = vbcast.lane.b32.xlu0 %v6524, 256
    %v6527 = vpop.permute.xlu0 %6526
    %v6528 = vlaneseq
    %v6529 = vshrl.u32 %v6528, 7
    %v6530 = vsub.s32 3, %v6529
    %v6531 = vrot.slane %v258, %v6530
    %6533 = vbcast.lane.b32.xlu0 %v6531, 256
    %v6534 = vpop.permute.xlu0 %6533
    %v6535 = vmul.f32 %v5517, %v1120
    %v6536 = vmul.f32 %v5524, %v1120
    %v6537 = vmul.f32 %v5531, %v1120
    %v6538 = vmul.f32 %v5538, %v1120
    %v6539 = vmul.f32 %v5545, %v1120
    %v6540 = vmul.f32 %v5552, %v1120
    %v6541 = vmul.f32 %v5559, %v1120
    %v6542 = vmul.f32 %v5566, %v1120
    %v6543 = vmul.f32 %v5573, %v1120
    %v6544 = vmul.f32 %v5580, %v1120
    %v6545 = vmul.f32 %v5587, %v1120
    %v6546 = vmul.f32 %v5594, %v1120
    %v6547 = vmul.f32 %v6373, %v1120
    %v6548 = vmul.f32 %v6380, %v1120
    %v6549 = vmul.f32 %v6387, %v1120
    %v6550 = vmul.f32 %v6394, %v1120
    %v6551 = vmul.f32 %v6401, %v1120
    %v6552 = vmul.f32 %v6408, %v1120
    %v6553 = vmul.f32 %v6415, %v1120
    %v6554 = vmul.f32 %v6422, %v1120
    %v6555 = vmul.f32 %v6429, %v1120
    %v6556 = vmul.f32 %v6436, %v1120
    %v6557 = vmul.f32 %v6443, %v1120
    %v6558 = vmul.f32 %v6450, %v1120
    %v6559 = vmul.f32 %v5601, %v1124
    %v6560 = vmul.f32 %v5608, %v1124
    %v6561 = vmul.f32 %v5615, %v1124
    %v6562 = vmul.f32 %v5622, %v1124
    %v6563 = vmul.f32 %v5629, %v1124
    %v6564 = vmul.f32 %v5636, %v1124
    %v6565 = vmul.f32 %v5643, %v1124
    %v6566 = vmul.f32 %v5650, %v1124
    %v6567 = vmul.f32 %v5657, %v1124
    %v6568 = vmul.f32 %v5664, %v1124
    %v6569 = vmul.f32 %v5671, %v1124
    %v6570 = vmul.f32 %v5678, %v1124
    %v6571 = vmul.f32 %v6457, %v1124
    %v6572 = vmul.f32 %v6464, %v1124
    %v6573 = vmul.f32 %v6471, %v1124
    %v6574 = vmul.f32 %v6478, %v1124
    %v6575 = vmul.f32 %v6485, %v1124
    %v6576 = vmul.f32 %v6492, %v1124
    %v6577 = vmul.f32 %v6499, %v1124
    %v6578 = vmul.f32 %v6506, %v1124
    %v6579 = vmul.f32 %v6513, %v1124
    %v6580 = vmul.f32 %v6520, %v1124
    %v6581 = vmul.f32 %v6527, %v1124
    %v6582 = vmul.f32 %v6534, %v1124
    %v6583 = vadd.f32 %v6319, %v6535
    %v6584 = vadd.f32 %v6320, %v6536
    %v6585 = vadd.f32 %v6321, %v6537
    %v6586 = vadd.f32 %v6322, %v6538
    %v6587 = vadd.f32 %v6323, %v6539
    %v6588 = vadd.f32 %v6324, %v6540
    %v6589 = vadd.f32 %v6325, %v6541
    %v6590 = vadd.f32 %v6326, %v6542
    %v6591 = vadd.f32 %v6327, %v6543
    %v6592 = vadd.f32 %v6328, %v6544
    %v6593 = vadd.f32 %v6329, %v6545
    %v6594 = vadd.f32 %v6330, %v6546
    %v6595 = vadd.f32 %v6331, %v6547
    %v6596 = vadd.f32 %v6332, %v6548
    %v6597 = vadd.f32 %v6333, %v6549
    %v6598 = vadd.f32 %v6334, %v6550
    %v6599 = vadd.f32 %v6335, %v6551
    %v6600 = vadd.f32 %v6336, %v6552
    %v6601 = vadd.f32 %v6337, %v6553
    %v6602 = vadd.f32 %v6338, %v6554
    %v6603 = vadd.f32 %v6339, %v6555
    %v6604 = vadd.f32 %v6340, %v6556
    %v6605 = vadd.f32 %v6341, %v6557
    %v6606 = vadd.f32 %v6342, %v6558
    %v6607 = vadd.f32 %v6343, %v6559
    %v6608 = vadd.f32 %v6344, %v6560
    %v6609 = vadd.f32 %v6345, %v6561
    %v6610 = vadd.f32 %v6346, %v6562
    %v6611 = vadd.f32 %v6347, %v6563
    %v6612 = vadd.f32 %v6348, %v6564
    %v6613 = vadd.f32 %v6349, %v6565
    %v6614 = vadd.f32 %v6350, %v6566
    %v6615 = vadd.f32 %v6351, %v6567
    %v6616 = vadd.f32 %v6352, %v6568
    %v6617 = vadd.f32 %v6353, %v6569
    %v6618 = vadd.f32 %v6354, %v6570
    %v6619 = vadd.f32 %v6355, %v6571
    %v6620 = vadd.f32 %v6356, %v6572
    %v6621 = vadd.f32 %v6357, %v6573
    %v6622 = vadd.f32 %v6358, %v6574
    %v6623 = vadd.f32 %v6359, %v6575
    %v6624 = vadd.f32 %v6360, %v6576
    %v6625 = vadd.f32 %v6361, %v6577
    %v6626 = vadd.f32 %v6362, %v6578
    %v6627 = vadd.f32 %v6363, %v6579
    %v6628 = vadd.f32 %v6364, %v6580
    %v6629 = vadd.f32 %v6365, %v6581
    %v6630 = vadd.f32 %v6366, %v6582
    %v6631 = vlaneseq
    %v6632 = vshrl.u32 %v6631, 7
    %v6633 = vsub.s32 4, %v6632
    %v6634 = vrot.slane %v230, %v6633
    %6636 = vbcast.lane.b32.xlu0 %v6634, 256
    %v6637 = vpop.permute.xlu0 %6636
    %v6638 = vlaneseq
    %v6639 = vshrl.u32 %v6638, 7
    %v6640 = vsub.s32 4, %v6639
    %v6641 = vrot.slane %v258, %v6640
    %6643 = vbcast.lane.b32.xlu0 %v6641, 256
    %v6644 = vpop.permute.xlu0 %6643
    %v6645 = vmul.f32 %v5524, %v1238
    %v6646 = vmul.f32 %v5531, %v1238
    %v6647 = vmul.f32 %v5538, %v1238
    %v6648 = vmul.f32 %v5545, %v1238
    %v6649 = vmul.f32 %v5552, %v1238
    %v6650 = vmul.f32 %v5559, %v1238
    %v6651 = vmul.f32 %v5566, %v1238
    %v6652 = vmul.f32 %v5573, %v1238
    %v6653 = vmul.f32 %v5580, %v1238
    %v6654 = vmul.f32 %v5587, %v1238
    %v6655 = vmul.f32 %v5594, %v1238
    %v6656 = vmul.f32 %v5781, %v1238
    %v6657 = vmul.f32 %v6380, %v1238
    %v6658 = vmul.f32 %v6387, %v1238
    %v6659 = vmul.f32 %v6394, %v1238
    %v6660 = vmul.f32 %v6401, %v1238
    %v6661 = vmul.f32 %v6408, %v1238
    %v6662 = vmul.f32 %v6415, %v1238
    %v6663 = vmul.f32 %v6422, %v1238
    %v6664 = vmul.f32 %v6429, %v1238
    %v6665 = vmul.f32 %v6436, %v1238
    %v6666 = vmul.f32 %v6443, %v1238
    %v6667 = vmul.f32 %v6450, %v1238
    %v6668 = vmul.f32 %v6637, %v1238
    %v6669 = vmul.f32 %v5608, %v1242
    %v6670 = vmul.f32 %v5615, %v1242
    %v6671 = vmul.f32 %v5622, %v1242
    %v6672 = vmul.f32 %v5629, %v1242
    %v6673 = vmul.f32 %v5636, %v1242
    %v6674 = vmul.f32 %v5643, %v1242
    %v6675 = vmul.f32 %v5650, %v1242
    %v6676 = vmul.f32 %v5657, %v1242
    %v6677 = vmul.f32 %v5664, %v1242
    %v6678 = vmul.f32 %v5671, %v1242
    %v6679 = vmul.f32 %v5678, %v1242
    %v6680 = vmul.f32 %v5788, %v1242
    %v6681 = vmul.f32 %v6464, %v1242
    %v6682 = vmul.f32 %v6471, %v1242
    %v6683 = vmul.f32 %v6478, %v1242
    %v6684 = vmul.f32 %v6485, %v1242
    %v6685 = vmul.f32 %v6492, %v1242
    %v6686 = vmul.f32 %v6499, %v1242
    %v6687 = vmul.f32 %v6506, %v1242
    %v6688 = vmul.f32 %v6513, %v1242
    %v6689 = vmul.f32 %v6520, %v1242
    %v6690 = vmul.f32 %v6527, %v1242
    %v6691 = vmul.f32 %v6534, %v1242
    %v6692 = vmul.f32 %v6644, %v1242
    %v6693 = vadd.f32 %v6583, %v6645
    %v6694 = vadd.f32 %v6584, %v6646
    %v6695 = vadd.f32 %v6585, %v6647
    %v6696 = vadd.f32 %v6586, %v6648
    %v6697 = vadd.f32 %v6587, %v6649
    %v6698 = vadd.f32 %v6588, %v6650
    %v6699 = vadd.f32 %v6589, %v6651
    %v6700 = vadd.f32 %v6590, %v6652
    %v6701 = vadd.f32 %v6591, %v6653
    %v6702 = vadd.f32 %v6592, %v6654
    %v6703 = vadd.f32 %v6593, %v6655
    %v6704 = vadd.f32 %v6594, %v6656
    %v6705 = vadd.f32 %v6595, %v6657
    %v6706 = vadd.f32 %v6596, %v6658
    %v6707 = vadd.f32 %v6597, %v6659
    %v6708 = vadd.f32 %v6598, %v6660
    %v6709 = vadd.f32 %v6599, %v6661
    %v6710 = vadd.f32 %v6600, %v6662
    %v6711 = vadd.f32 %v6601, %v6663
    %v6712 = vadd.f32 %v6602, %v6664
    %v6713 = vadd.f32 %v6603, %v6665
    %v6714 = vadd.f32 %v6604, %v6666
    %v6715 = vadd.f32 %v6605, %v6667
    %v6716 = vadd.f32 %v6606, %v6668
    %v6717 = vadd.f32 %v6607, %v6669
    %v6718 = vadd.f32 %v6608, %v6670
    %v6719 = vadd.f32 %v6609, %v6671
    %v6720 = vadd.f32 %v6610, %v6672
    %v6721 = vadd.f32 %v6611, %v6673
    %v6722 = vadd.f32 %v6612, %v6674
    %v6723 = vadd.f32 %v6613, %v6675
    %v6724 = vadd.f32 %v6614, %v6676
    %v6725 = vadd.f32 %v6615, %v6677
    %v6726 = vadd.f32 %v6616, %v6678
    %v6727 = vadd.f32 %v6617, %v6679
    %v6728 = vadd.f32 %v6618, %v6680
    %v6729 = vadd.f32 %v6619, %v6681
    %v6730 = vadd.f32 %v6620, %v6682
    %v6731 = vadd.f32 %v6621, %v6683
    %v6732 = vadd.f32 %v6622, %v6684
    %v6733 = vadd.f32 %v6623, %v6685
    %v6734 = vadd.f32 %v6624, %v6686
    %v6735 = vadd.f32 %v6625, %v6687
    %v6736 = vadd.f32 %v6626, %v6688
    %v6737 = vadd.f32 %v6627, %v6689
    %v6738 = vadd.f32 %v6628, %v6690
    %v6739 = vadd.f32 %v6629, %v6691
    %v6740 = vadd.f32 %v6630, %v6692
    %v6741 = vlaneseq
    %v6742 = vshrl.u32 %v6741, 7
    %v6743 = vsub.s32 5, %v6742
    %v6744 = vrot.slane %v230, %v6743
    %6746 = vbcast.lane.b32.xlu0 %v6744, 256
    %v6747 = vpop.permute.xlu0 %6746
    %v6748 = vlaneseq
    %v6749 = vshrl.u32 %v6748, 7
    %v6750 = vsub.s32 5, %v6749
    %v6751 = vrot.slane %v258, %v6750
    %6753 = vbcast.lane.b32.xlu0 %v6751, 256
    %v6754 = vpop.permute.xlu0 %6753
    %v6755 = vmul.f32 %v5531, %v1356
    %v6756 = vmul.f32 %v5538, %v1356
    %v6757 = vmul.f32 %v5545, %v1356
    %v6758 = vmul.f32 %v5552, %v1356
    %v6759 = vmul.f32 %v5559, %v1356
    %v6760 = vmul.f32 %v5566, %v1356
    %v6761 = vmul.f32 %v5573, %v1356
    %v6762 = vmul.f32 %v5580, %v1356
    %v6763 = vmul.f32 %v5587, %v1356
    %v6764 = vmul.f32 %v5594, %v1356
    %v6765 = vmul.f32 %v5781, %v1356
    %v6766 = vmul.f32 %v5891, %v1356
    %v6767 = vmul.f32 %v6387, %v1356
    %v6768 = vmul.f32 %v6394, %v1356
    %v6769 = vmul.f32 %v6401, %v1356
    %v6770 = vmul.f32 %v6408, %v1356
    %v6771 = vmul.f32 %v6415, %v1356
    %v6772 = vmul.f32 %v6422, %v1356
    %v6773 = vmul.f32 %v6429, %v1356
    %v6774 = vmul.f32 %v6436, %v1356
    %v6775 = vmul.f32 %v6443, %v1356
    %v6776 = vmul.f32 %v6450, %v1356
    %v6777 = vmul.f32 %v6637, %v1356
    %v6778 = vmul.f32 %v6747, %v1356
    %v6779 = vmul.f32 %v5615, %v1360
    %v6780 = vmul.f32 %v5622, %v1360
    %v6781 = vmul.f32 %v5629, %v1360
    %v6782 = vmul.f32 %v5636, %v1360
    %v6783 = vmul.f32 %v5643, %v1360
    %v6784 = vmul.f32 %v5650, %v1360
    %v6785 = vmul.f32 %v5657, %v1360
    %v6786 = vmul.f32 %v5664, %v1360
    %v6787 = vmul.f32 %v5671, %v1360
    %v6788 = vmul.f32 %v5678, %v1360
    %v6789 = vmul.f32 %v5788, %v1360
    %v6790 = vmul.f32 %v5898, %v1360
    %v6791 = vmul.f32 %v6471, %v1360
    %v6792 = vmul.f32 %v6478, %v1360
    %v6793 = vmul.f32 %v6485, %v1360
    %v6794 = vmul.f32 %v6492, %v1360
    %v6795 = vmul.f32 %v6499, %v1360
    %v6796 = vmul.f32 %v6506, %v1360
    %v6797 = vmul.f32 %v6513, %v1360
    %v6798 = vmul.f32 %v6520, %v1360
    %v6799 = vmul.f32 %v6527, %v1360
    %v6800 = vmul.f32 %v6534, %v1360
    %v6801 = vmul.f32 %v6644, %v1360
    %v6802 = vmul.f32 %v6754, %v1360
    %v6803 = vadd.f32 %v6693, %v6755
    %v6804 = vadd.f32 %v6694, %v6756
    %v6805 = vadd.f32 %v6695, %v6757
    %v6806 = vadd.f32 %v6696, %v6758
    %v6807 = vadd.f32 %v6697, %v6759
    %v6808 = vadd.f32 %v6698, %v6760
    %v6809 = vadd.f32 %v6699, %v6761
    %v6810 = vadd.f32 %v6700, %v6762
    %v6811 = vadd.f32 %v6701, %v6763
    %v6812 = vadd.f32 %v6702, %v6764
    %v6813 = vadd.f32 %v6703, %v6765
    %v6814 = vadd.f32 %v6704, %v6766
    %v6815 = vadd.f32 %v6705, %v6767
    %v6816 = vadd.f32 %v6706, %v6768
    %v6817 = vadd.f32 %v6707, %v6769
    %v6818 = vadd.f32 %v6708, %v6770
    %v6819 = vadd.f32 %v6709, %v6771
    %v6820 = vadd.f32 %v6710, %v6772
    %v6821 = vadd.f32 %v6711, %v6773
    %v6822 = vadd.f32 %v6712, %v6774
    %v6823 = vadd.f32 %v6713, %v6775
    %v6824 = vadd.f32 %v6714, %v6776
    %v6825 = vadd.f32 %v6715, %v6777
    %v6826 = vadd.f32 %v6716, %v6778
    %v6827 = vadd.f32 %v6717, %v6779
    %v6828 = vadd.f32 %v6718, %v6780
    %v6829 = vadd.f32 %v6719, %v6781
    %v6830 = vadd.f32 %v6720, %v6782
    %v6831 = vadd.f32 %v6721, %v6783
    %v6832 = vadd.f32 %v6722, %v6784
    %v6833 = vadd.f32 %v6723, %v6785
    %v6834 = vadd.f32 %v6724, %v6786
    %v6835 = vadd.f32 %v6725, %v6787
    %v6836 = vadd.f32 %v6726, %v6788
    %v6837 = vadd.f32 %v6727, %v6789
    %v6838 = vadd.f32 %v6728, %v6790
    %v6839 = vadd.f32 %v6729, %v6791
    %v6840 = vadd.f32 %v6730, %v6792
    %v6841 = vadd.f32 %v6731, %v6793
    %v6842 = vadd.f32 %v6732, %v6794
    %v6843 = vadd.f32 %v6733, %v6795
    %v6844 = vadd.f32 %v6734, %v6796
    %v6845 = vadd.f32 %v6735, %v6797
    %v6846 = vadd.f32 %v6736, %v6798
    %v6847 = vadd.f32 %v6737, %v6799
    %v6848 = vadd.f32 %v6738, %v6800
    %v6849 = vadd.f32 %v6739, %v6801
    %v6850 = vadd.f32 %v6740, %v6802
    %v6851 = vlaneseq
    %v6852 = vshrl.u32 %v6851, 7
    %v6853 = vsub.s32 0, %v6852
    %v6854 = vrot.slane %v231, %v6853
    %6856 = vbcast.lane.b32.xlu0 %v6854, 256
    %v6857 = vpop.permute.xlu0 %6856
    %v6858 = vlaneseq
    %v6859 = vshrl.u32 %v6858, 7
    %v6860 = vsub.s32 1, %v6859
    %v6861 = vrot.slane %v231, %v6860
    %6863 = vbcast.lane.b32.xlu0 %v6861, 256
    %v6864 = vpop.permute.xlu0 %6863
    %v6865 = vlaneseq
    %v6866 = vshrl.u32 %v6865, 7
    %v6867 = vsub.s32 2, %v6866
    %v6868 = vrot.slane %v231, %v6867
    %6870 = vbcast.lane.b32.xlu0 %v6868, 256
    %v6871 = vpop.permute.xlu0 %6870
    %v6872 = vlaneseq
    %v6873 = vshrl.u32 %v6872, 7
    %v6874 = vsub.s32 3, %v6873
    %v6875 = vrot.slane %v231, %v6874
    %6877 = vbcast.lane.b32.xlu0 %v6875, 256
    %v6878 = vpop.permute.xlu0 %6877
    %v6879 = vlaneseq
    %v6880 = vshrl.u32 %v6879, 7
    %v6881 = vsub.s32 4, %v6880
    %v6882 = vrot.slane %v231, %v6881
    %6884 = vbcast.lane.b32.xlu0 %v6882, 256
    %v6885 = vpop.permute.xlu0 %6884
    %v6886 = vlaneseq
    %v6887 = vshrl.u32 %v6886, 7
    %v6888 = vsub.s32 5, %v6887
    %v6889 = vrot.slane %v231, %v6888
    %6891 = vbcast.lane.b32.xlu0 %v6889, 256
    %v6892 = vpop.permute.xlu0 %6891
    %v6893 = vlaneseq
    %v6894 = vshrl.u32 %v6893, 7
    %v6895 = vsub.s32 6, %v6894
    %v6896 = vrot.slane %v231, %v6895
    %6898 = vbcast.lane.b32.xlu0 %v6896, 256
    %v6899 = vpop.permute.xlu0 %6898
    %v6900 = vlaneseq
    %v6901 = vshrl.u32 %v6900, 7
    %v6902 = vsub.s32 7, %v6901
    %v6903 = vrot.slane %v231, %v6902
    %6905 = vbcast.lane.b32.xlu0 %v6903, 256
    %v6906 = vpop.permute.xlu0 %6905
    %v6907 = vlaneseq
    %v6908 = vshrl.u32 %v6907, 7
    %v6909 = vsub.s32 0, %v6908
    %v6910 = vrot.slane %v232, %v6909
    %6912 = vbcast.lane.b32.xlu0 %v6910, 256
    %v6913 = vpop.permute.xlu0 %6912
    %v6914 = vlaneseq
    %v6915 = vshrl.u32 %v6914, 7
    %v6916 = vsub.s32 1, %v6915
    %v6917 = vrot.slane %v232, %v6916
    %6919 = vbcast.lane.b32.xlu0 %v6917, 256
    %v6920 = vpop.permute.xlu0 %6919
    %v6921 = vlaneseq
    %v6922 = vshrl.u32 %v6921, 7
    %v6923 = vsub.s32 2, %v6922
    %v6924 = vrot.slane %v232, %v6923
    %6926 = vbcast.lane.b32.xlu0 %v6924, 256
    %v6927 = vpop.permute.xlu0 %6926
    %v6928 = vlaneseq
    %v6929 = vshrl.u32 %v6928, 7
    %v6930 = vsub.s32 3, %v6929
    %v6931 = vrot.slane %v232, %v6930
    %6933 = vbcast.lane.b32.xlu0 %v6931, 256
    %v6934 = vpop.permute.xlu0 %6933
    %v6935 = vlaneseq
    %v6936 = vshrl.u32 %v6935, 7
    %v6937 = vsub.s32 0, %v6936
    %v6938 = vrot.slane %v259, %v6937
    %6940 = vbcast.lane.b32.xlu0 %v6938, 256
    %v6941 = vpop.permute.xlu0 %6940
    %v6942 = vlaneseq
    %v6943 = vshrl.u32 %v6942, 7
    %v6944 = vsub.s32 1, %v6943
    %v6945 = vrot.slane %v259, %v6944
    %6947 = vbcast.lane.b32.xlu0 %v6945, 256
    %v6948 = vpop.permute.xlu0 %6947
    %v6949 = vlaneseq
    %v6950 = vshrl.u32 %v6949, 7
    %v6951 = vsub.s32 2, %v6950
    %v6952 = vrot.slane %v259, %v6951
    %6954 = vbcast.lane.b32.xlu0 %v6952, 256
    %v6955 = vpop.permute.xlu0 %6954
    %v6956 = vlaneseq
    %v6957 = vshrl.u32 %v6956, 7
    %v6958 = vsub.s32 3, %v6957
    %v6959 = vrot.slane %v259, %v6958
    %6961 = vbcast.lane.b32.xlu0 %v6959, 256
    %v6962 = vpop.permute.xlu0 %6961
    %v6963 = vlaneseq
    %v6964 = vshrl.u32 %v6963, 7
    %v6965 = vsub.s32 4, %v6964
    %v6966 = vrot.slane %v259, %v6965
    %6968 = vbcast.lane.b32.xlu0 %v6966, 256
    %v6969 = vpop.permute.xlu0 %6968
    %v6970 = vlaneseq
    %v6971 = vshrl.u32 %v6970, 7
    %v6972 = vsub.s32 5, %v6971
    %v6973 = vrot.slane %v259, %v6972
    %6975 = vbcast.lane.b32.xlu0 %v6973, 256
    %v6976 = vpop.permute.xlu0 %6975
    %v6977 = vlaneseq
    %v6978 = vshrl.u32 %v6977, 7
    %v6979 = vsub.s32 6, %v6978
    %v6980 = vrot.slane %v259, %v6979
    %6982 = vbcast.lane.b32.xlu0 %v6980, 256
    %v6983 = vpop.permute.xlu0 %6982
    %v6984 = vlaneseq
    %v6985 = vshrl.u32 %v6984, 7
    %v6986 = vsub.s32 7, %v6985
    %v6987 = vrot.slane %v259, %v6986
    %6989 = vbcast.lane.b32.xlu0 %v6987, 256
    %v6990 = vpop.permute.xlu0 %6989
    %v6991 = vlaneseq
    %v6992 = vshrl.u32 %v6991, 7
    %v6993 = vsub.s32 0, %v6992
    %v6994 = vrot.slane %v260, %v6993
    %6996 = vbcast.lane.b32.xlu0 %v6994, 256
    %v6997 = vpop.permute.xlu0 %6996
    %v6998 = vlaneseq
    %v6999 = vshrl.u32 %v6998, 7
    %v7000 = vsub.s32 1, %v6999
    %v7001 = vrot.slane %v260, %v7000
    %7003 = vbcast.lane.b32.xlu0 %v7001, 256
    %v7004 = vpop.permute.xlu0 %7003
    %v7005 = vlaneseq
    %v7006 = vshrl.u32 %v7005, 7
    %v7007 = vsub.s32 2, %v7006
    %v7008 = vrot.slane %v260, %v7007
    %7010 = vbcast.lane.b32.xlu0 %v7008, 256
    %v7011 = vpop.permute.xlu0 %7010
    %v7012 = vlaneseq
    %v7013 = vshrl.u32 %v7012, 7
    %v7014 = vsub.s32 3, %v7013
    %v7015 = vrot.slane %v260, %v7014
    %7017 = vbcast.lane.b32.xlu0 %v7015, 256
    %v7018 = vpop.permute.xlu0 %7017
    %v7019 = vmul.f32 %v6373, %v1628
    %v7020 = vmul.f32 %v6380, %v1628
    %v7021 = vmul.f32 %v6387, %v1628
    %v7022 = vmul.f32 %v6394, %v1628
    %v7023 = vmul.f32 %v6401, %v1628
    %v7024 = vmul.f32 %v6408, %v1628
    %v7025 = vmul.f32 %v6415, %v1628
    %v7026 = vmul.f32 %v6422, %v1628
    %v7027 = vmul.f32 %v6429, %v1628
    %v7028 = vmul.f32 %v6436, %v1628
    %v7029 = vmul.f32 %v6443, %v1628
    %v7030 = vmul.f32 %v6450, %v1628
    %v7031 = vmul.f32 %v6857, %v1628
    %v7032 = vmul.f32 %v6864, %v1628
    %v7033 = vmul.f32 %v6871, %v1628
    %v7034 = vmul.f32 %v6878, %v1628
    %v7035 = vmul.f32 %v6885, %v1628
    %v7036 = vmul.f32 %v6892, %v1628
    %v7037 = vmul.f32 %v6899, %v1628
    %v7038 = vmul.f32 %v6906, %v1628
    %v7039 = vmul.f32 %v6913, %v1628
    %v7040 = vmul.f32 %v6920, %v1628
    %v7041 = vmul.f32 %v6927, %v1628
    %v7042 = vmul.f32 %v6934, %v1628
    %v7043 = vmul.f32 %v6457, %v1632
    %v7044 = vmul.f32 %v6464, %v1632
    %v7045 = vmul.f32 %v6471, %v1632
    %v7046 = vmul.f32 %v6478, %v1632
    %v7047 = vmul.f32 %v6485, %v1632
    %v7048 = vmul.f32 %v6492, %v1632
    %v7049 = vmul.f32 %v6499, %v1632
    %v7050 = vmul.f32 %v6506, %v1632
    %v7051 = vmul.f32 %v6513, %v1632
    %v7052 = vmul.f32 %v6520, %v1632
    %v7053 = vmul.f32 %v6527, %v1632
    %v7054 = vmul.f32 %v6534, %v1632
    %v7055 = vmul.f32 %v6941, %v1632
    %v7056 = vmul.f32 %v6948, %v1632
    %v7057 = vmul.f32 %v6955, %v1632
    %v7058 = vmul.f32 %v6962, %v1632
    %v7059 = vmul.f32 %v6969, %v1632
    %v7060 = vmul.f32 %v6976, %v1632
    %v7061 = vmul.f32 %v6983, %v1632
    %v7062 = vmul.f32 %v6990, %v1632
    %v7063 = vmul.f32 %v6997, %v1632
    %v7064 = vmul.f32 %v7004, %v1632
    %v7065 = vmul.f32 %v7011, %v1632
    %v7066 = vmul.f32 %v7018, %v1632
    %v7067 = vadd.f32 %v6803, %v7019
    %v7068 = vadd.f32 %v6804, %v7020
    %v7069 = vadd.f32 %v6805, %v7021
    %v7070 = vadd.f32 %v6806, %v7022
    %v7071 = vadd.f32 %v6807, %v7023
    %v7072 = vadd.f32 %v6808, %v7024
    %v7073 = vadd.f32 %v6809, %v7025
    %v7074 = vadd.f32 %v6810, %v7026
    %v7075 = vadd.f32 %v6811, %v7027
    %v7076 = vadd.f32 %v6812, %v7028
    %v7077 = vadd.f32 %v6813, %v7029
    %v7078 = vadd.f32 %v6814, %v7030
    %v7079 = vadd.f32 %v6815, %v7031
    %v7080 = vadd.f32 %v6816, %v7032
    %v7081 = vadd.f32 %v6817, %v7033
    %v7082 = vadd.f32 %v6818, %v7034
    %v7083 = vadd.f32 %v6819, %v7035
    %v7084 = vadd.f32 %v6820, %v7036
    %v7085 = vadd.f32 %v6821, %v7037
    %v7086 = vadd.f32 %v6822, %v7038
    %v7087 = vadd.f32 %v6823, %v7039
    %v7088 = vadd.f32 %v6824, %v7040
    %v7089 = vadd.f32 %v6825, %v7041
    %v7090 = vadd.f32 %v6826, %v7042
    %v7091 = vadd.f32 %v6827, %v7043
    %v7092 = vadd.f32 %v6828, %v7044
    %v7093 = vadd.f32 %v6829, %v7045
    %v7094 = vadd.f32 %v6830, %v7046
    %v7095 = vadd.f32 %v6831, %v7047
    %v7096 = vadd.f32 %v6832, %v7048
    %v7097 = vadd.f32 %v6833, %v7049
    %v7098 = vadd.f32 %v6834, %v7050
    %v7099 = vadd.f32 %v6835, %v7051
    %v7100 = vadd.f32 %v6836, %v7052
    %v7101 = vadd.f32 %v6837, %v7053
    %v7102 = vadd.f32 %v6838, %v7054
    %v7103 = vadd.f32 %v6839, %v7055
    %v7104 = vadd.f32 %v6840, %v7056
    %v7105 = vadd.f32 %v6841, %v7057
    %v7106 = vadd.f32 %v6842, %v7058
    %v7107 = vadd.f32 %v6843, %v7059
    %v7108 = vadd.f32 %v6844, %v7060
    %v7109 = vadd.f32 %v6845, %v7061
    %v7110 = vadd.f32 %v6846, %v7062
    %v7111 = vadd.f32 %v6847, %v7063
    %v7112 = vadd.f32 %v6848, %v7064
    %v7113 = vadd.f32 %v6849, %v7065
    %v7114 = vadd.f32 %v6850, %v7066
    %v7115 = vlaneseq
    %v7116 = vshrl.u32 %v7115, 7
    %v7117 = vsub.s32 4, %v7116
    %v7118 = vrot.slane %v232, %v7117
    %7120 = vbcast.lane.b32.xlu0 %v7118, 256
    %v7121 = vpop.permute.xlu0 %7120
    %v7122 = vlaneseq
    %v7123 = vshrl.u32 %v7122, 7
    %v7124 = vsub.s32 4, %v7123
    %v7125 = vrot.slane %v260, %v7124
    %7127 = vbcast.lane.b32.xlu0 %v7125, 256
    %v7128 = vpop.permute.xlu0 %7127
    %v7129 = vmul.f32 %v6380, %v1746
    %v7130 = vmul.f32 %v6387, %v1746
    %v7131 = vmul.f32 %v6394, %v1746
    %v7132 = vmul.f32 %v6401, %v1746
    %v7133 = vmul.f32 %v6408, %v1746
    %v7134 = vmul.f32 %v6415, %v1746
    %v7135 = vmul.f32 %v6422, %v1746
    %v7136 = vmul.f32 %v6429, %v1746
    %v7137 = vmul.f32 %v6436, %v1746
    %v7138 = vmul.f32 %v6443, %v1746
    %v7139 = vmul.f32 %v6450, %v1746
    %v7140 = vmul.f32 %v6637, %v1746
    %v7141 = vmul.f32 %v6864, %v1746
    %v7142 = vmul.f32 %v6871, %v1746
    %v7143 = vmul.f32 %v6878, %v1746
    %v7144 = vmul.f32 %v6885, %v1746
    %v7145 = vmul.f32 %v6892, %v1746
    %v7146 = vmul.f32 %v6899, %v1746
    %v7147 = vmul.f32 %v6906, %v1746
    %v7148 = vmul.f32 %v6913, %v1746
    %v7149 = vmul.f32 %v6920, %v1746
    %v7150 = vmul.f32 %v6927, %v1746
    %v7151 = vmul.f32 %v6934, %v1746
    %v7152 = vmul.f32 %v7121, %v1746
    %v7153 = vmul.f32 %v6464, %v1750
    %v7154 = vmul.f32 %v6471, %v1750
    %v7155 = vmul.f32 %v6478, %v1750
    %v7156 = vmul.f32 %v6485, %v1750
    %v7157 = vmul.f32 %v6492, %v1750
    %v7158 = vmul.f32 %v6499, %v1750
    %v7159 = vmul.f32 %v6506, %v1750
    %v7160 = vmul.f32 %v6513, %v1750
    %v7161 = vmul.f32 %v6520, %v1750
    %v7162 = vmul.f32 %v6527, %v1750
    %v7163 = vmul.f32 %v6534, %v1750
    %v7164 = vmul.f32 %v6644, %v1750
    %v7165 = vmul.f32 %v6948, %v1750
    %v7166 = vmul.f32 %v6955, %v1750
    %v7167 = vmul.f32 %v6962, %v1750
    %v7168 = vmul.f32 %v6969, %v1750
    %v7169 = vmul.f32 %v6976, %v1750
    %v7170 = vmul.f32 %v6983, %v1750
    %v7171 = vmul.f32 %v6990, %v1750
    %v7172 = vmul.f32 %v6997, %v1750
    %v7173 = vmul.f32 %v7004, %v1750
    %v7174 = vmul.f32 %v7011, %v1750
    %v7175 = vmul.f32 %v7018, %v1750
    %v7176 = vmul.f32 %v7128, %v1750
    %v7177 = vadd.f32 %v7067, %v7129
    %v7178 = vadd.f32 %v7068, %v7130
    %v7179 = vadd.f32 %v7069, %v7131
    %v7180 = vadd.f32 %v7070, %v7132
    %v7181 = vadd.f32 %v7071, %v7133
    %v7182 = vadd.f32 %v7072, %v7134
    %v7183 = vadd.f32 %v7073, %v7135
    %v7184 = vadd.f32 %v7074, %v7136
    %v7185 = vadd.f32 %v7075, %v7137
    %v7186 = vadd.f32 %v7076, %v7138
    %v7187 = vadd.f32 %v7077, %v7139
    %v7188 = vadd.f32 %v7078, %v7140
    %v7189 = vadd.f32 %v7079, %v7141
    %v7190 = vadd.f32 %v7080, %v7142
    %v7191 = vadd.f32 %v7081, %v7143
    %v7192 = vadd.f32 %v7082, %v7144
    %v7193 = vadd.f32 %v7083, %v7145
    %v7194 = vadd.f32 %v7084, %v7146
    %v7195 = vadd.f32 %v7085, %v7147
    %v7196 = vadd.f32 %v7086, %v7148
    %v7197 = vadd.f32 %v7087, %v7149
    %v7198 = vadd.f32 %v7088, %v7150
    %v7199 = vadd.f32 %v7089, %v7151
    %v7200 = vadd.f32 %v7090, %v7152
    %v7201 = vadd.f32 %v7091, %v7153
    %v7202 = vadd.f32 %v7092, %v7154
    %v7203 = vadd.f32 %v7093, %v7155
    %v7204 = vadd.f32 %v7094, %v7156
    %v7205 = vadd.f32 %v7095, %v7157
    %v7206 = vadd.f32 %v7096, %v7158
    %v7207 = vadd.f32 %v7097, %v7159
    %v7208 = vadd.f32 %v7098, %v7160
    %v7209 = vadd.f32 %v7099, %v7161
    %v7210 = vadd.f32 %v7100, %v7162
    %v7211 = vadd.f32 %v7101, %v7163
    %v7212 = vadd.f32 %v7102, %v7164
    %v7213 = vadd.f32 %v7103, %v7165
    %v7214 = vadd.f32 %v7104, %v7166
    %v7215 = vadd.f32 %v7105, %v7167
    %v7216 = vadd.f32 %v7106, %v7168
    %v7217 = vadd.f32 %v7107, %v7169
    %v7218 = vadd.f32 %v7108, %v7170
    %v7219 = vadd.f32 %v7109, %v7171
    %v7220 = vadd.f32 %v7110, %v7172
    %v7221 = vadd.f32 %v7111, %v7173
    %v7222 = vadd.f32 %v7112, %v7174
    %v7223 = vadd.f32 %v7113, %v7175
    %v7224 = vadd.f32 %v7114, %v7176
    %v7225 = vlaneseq
    %v7226 = vshrl.u32 %v7225, 7
    %v7227 = vsub.s32 5, %v7226
    %v7228 = vrot.slane %v232, %v7227
    %7230 = vbcast.lane.b32.xlu0 %v7228, 256
    %v7231 = vpop.permute.xlu0 %7230
    %v7232 = vlaneseq
    %v7233 = vshrl.u32 %v7232, 7
    %v7234 = vsub.s32 5, %v7233
    %v7235 = vrot.slane %v260, %v7234
    %7237 = vbcast.lane.b32.xlu0 %v7235, 256
    %v7238 = vpop.permute.xlu0 %7237
    %v7239 = vmul.f32 %v6387, %v1864
    %v7240 = vmul.f32 %v6394, %v1864
    %v7241 = vmul.f32 %v6401, %v1864
    %v7242 = vmul.f32 %v6408, %v1864
    %v7243 = vmul.f32 %v6415, %v1864
    %v7244 = vmul.f32 %v6422, %v1864
    %v7245 = vmul.f32 %v6429, %v1864
    %v7246 = vmul.f32 %v6436, %v1864
    %v7247 = vmul.f32 %v6443, %v1864
    %v7248 = vmul.f32 %v6450, %v1864
    %v7249 = vmul.f32 %v6637, %v1864
    %v7250 = vmul.f32 %v6747, %v1864
    %v7251 = vmul.f32 %v6871, %v1864
    %v7252 = vmul.f32 %v6878, %v1864
    %v7253 = vmul.f32 %v6885, %v1864
    %v7254 = vmul.f32 %v6892, %v1864
    %v7255 = vmul.f32 %v6899, %v1864
    %v7256 = vmul.f32 %v6906, %v1864
    %v7257 = vmul.f32 %v6913, %v1864
    %v7258 = vmul.f32 %v6920, %v1864
    %v7259 = vmul.f32 %v6927, %v1864
    %v7260 = vmul.f32 %v6934, %v1864
    %v7261 = vmul.f32 %v7121, %v1864
    %v7262 = vmul.f32 %v7231, %v1864
    %v7263 = vmul.f32 %v6471, %v1868
    %v7264 = vmul.f32 %v6478, %v1868
    %v7265 = vmul.f32 %v6485, %v1868
    %v7266 = vmul.f32 %v6492, %v1868
    %v7267 = vmul.f32 %v6499, %v1868
    %v7268 = vmul.f32 %v6506, %v1868
    %v7269 = vmul.f32 %v6513, %v1868
    %v7270 = vmul.f32 %v6520, %v1868
    %v7271 = vmul.f32 %v6527, %v1868
    %v7272 = vmul.f32 %v6534, %v1868
    %v7273 = vmul.f32 %v6644, %v1868
    %v7274 = vmul.f32 %v6754, %v1868
    %v7275 = vmul.f32 %v6955, %v1868
    %v7276 = vmul.f32 %v6962, %v1868
    %v7277 = vmul.f32 %v6969, %v1868
    %v7278 = vmul.f32 %v6976, %v1868
    %v7279 = vmul.f32 %v6983, %v1868
    %v7280 = vmul.f32 %v6990, %v1868
    %v7281 = vmul.f32 %v6997, %v1868
    %v7282 = vmul.f32 %v7004, %v1868
    %v7283 = vmul.f32 %v7011, %v1868
    %v7284 = vmul.f32 %v7018, %v1868
    %v7285 = vmul.f32 %v7128, %v1868
    %v7286 = vmul.f32 %v7238, %v1868
    %v7287 = vadd.f32 %v7177, %v7239
    %v7288 = vadd.f32 %v7178, %v7240
    %v7289 = vadd.f32 %v7179, %v7241
    %v7290 = vadd.f32 %v7180, %v7242
    %v7291 = vadd.f32 %v7181, %v7243
    %v7292 = vadd.f32 %v7182, %v7244
    %v7293 = vadd.f32 %v7183, %v7245
    %v7294 = vadd.f32 %v7184, %v7246
    %v7295 = vadd.f32 %v7185, %v7247
    %v7296 = vadd.f32 %v7186, %v7248
    %v7297 = vadd.f32 %v7187, %v7249
    %v7298 = vadd.f32 %v7188, %v7250
    %v7299 = vadd.f32 %v7189, %v7251
    %v7300 = vadd.f32 %v7190, %v7252
    %v7301 = vadd.f32 %v7191, %v7253
    %v7302 = vadd.f32 %v7192, %v7254
    %v7303 = vadd.f32 %v7193, %v7255
    %v7304 = vadd.f32 %v7194, %v7256
    %v7305 = vadd.f32 %v7195, %v7257
    %v7306 = vadd.f32 %v7196, %v7258
    %v7307 = vadd.f32 %v7197, %v7259
    %v7308 = vadd.f32 %v7198, %v7260
    %v7309 = vadd.f32 %v7199, %v7261
    %v7310 = vadd.f32 %v7200, %v7262
    %v7311 = vadd.f32 %v7201, %v7263
    %v7312 = vadd.f32 %v7202, %v7264
    %v7313 = vadd.f32 %v7203, %v7265
    %v7314 = vadd.f32 %v7204, %v7266
    %v7315 = vadd.f32 %v7205, %v7267
    %v7316 = vadd.f32 %v7206, %v7268
    %v7317 = vadd.f32 %v7207, %v7269
    %v7318 = vadd.f32 %v7208, %v7270
    %v7319 = vadd.f32 %v7209, %v7271
    %v7320 = vadd.f32 %v7210, %v7272
    %v7321 = vadd.f32 %v7211, %v7273
    %v7322 = vadd.f32 %v7212, %v7274
    %v7323 = vadd.f32 %v7213, %v7275
    %v7324 = vadd.f32 %v7214, %v7276
    %v7325 = vadd.f32 %v7215, %v7277
    %v7326 = vadd.f32 %v7216, %v7278
    %v7327 = vadd.f32 %v7217, %v7279
    %v7328 = vadd.f32 %v7218, %v7280
    %v7329 = vadd.f32 %v7219, %v7281
    %v7330 = vadd.f32 %v7220, %v7282
    %v7331 = vadd.f32 %v7221, %v7283
    %v7332 = vadd.f32 %v7222, %v7284
    %v7333 = vadd.f32 %v7223, %v7285
    %v7334 = vadd.f32 %v7224, %v7286
    %v7335 = vadd.f32 %v7287, %v1968
    %v7336 = vadd.f32 %v7288, %v1968
    %v7337 = vadd.f32 %v7289, %v1968
    %v7338 = vadd.f32 %v7290, %v1968
    %v7339 = vadd.f32 %v7291, %v1968
    %v7340 = vadd.f32 %v7292, %v1968
    %v7341 = vadd.f32 %v7293, %v1968
    %v7342 = vadd.f32 %v7294, %v1968
    %v7343 = vadd.f32 %v7295, %v1968
    %v7344 = vadd.f32 %v7296, %v1968
    %v7345 = vadd.f32 %v7297, %v1968
    %v7346 = vadd.f32 %v7298, %v1968
    %v7347 = vadd.f32 %v7299, %v1968
    %v7348 = vadd.f32 %v7300, %v1968
    %v7349 = vadd.f32 %v7301, %v1968
    %v7350 = vadd.f32 %v7302, %v1968
    %v7351 = vadd.f32 %v7303, %v1968
    %v7352 = vadd.f32 %v7304, %v1968
    %v7353 = vadd.f32 %v7305, %v1968
    %v7354 = vadd.f32 %v7306, %v1968
    %v7355 = vadd.f32 %v7307, %v1968
    %v7356 = vadd.f32 %v7308, %v1968
    %v7357 = vadd.f32 %v7309, %v1968
    %v7358 = vadd.f32 %v7310, %v1968
    %v7359 = vadd.f32 %v7311, %v1972
    %v7360 = vadd.f32 %v7312, %v1972
    %v7361 = vadd.f32 %v7313, %v1972
    %v7362 = vadd.f32 %v7314, %v1972
    %v7363 = vadd.f32 %v7315, %v1972
    %v7364 = vadd.f32 %v7316, %v1972
    %v7365 = vadd.f32 %v7317, %v1972
    %v7366 = vadd.f32 %v7318, %v1972
    %v7367 = vadd.f32 %v7319, %v1972
    %v7368 = vadd.f32 %v7320, %v1972
    %v7369 = vadd.f32 %v7321, %v1972
    %v7370 = vadd.f32 %v7322, %v1972
    %v7371 = vadd.f32 %v7323, %v1972
    %v7372 = vadd.f32 %v7324, %v1972
    %v7373 = vadd.f32 %v7325, %v1972
    %v7374 = vadd.f32 %v7326, %v1972
    %v7375 = vadd.f32 %v7327, %v1972
    %v7376 = vadd.f32 %v7328, %v1972
    %v7377 = vadd.f32 %v7329, %v1972
    %v7378 = vadd.f32 %v7330, %v1972
    %v7379 = vadd.f32 %v7331, %v1972
    %v7380 = vadd.f32 %v7332, %v1972
    %v7381 = vadd.f32 %v7333, %v1972
    %v7382 = vadd.f32 %v7334, %v1972
    %v7383 = vmax.f32 %v7335, 0.0
    %v7384 = vmax.f32 %v7336, 0.0
    %v7385 = vmax.f32 %v7337, 0.0
    %v7386 = vmax.f32 %v7338, 0.0
    %v7387 = vmax.f32 %v7339, 0.0
    %v7388 = vmax.f32 %v7340, 0.0
    %v7389 = vmax.f32 %v7341, 0.0
    %v7390 = vmax.f32 %v7342, 0.0
    %v7391 = vmax.f32 %v7343, 0.0
    %v7392 = vmax.f32 %v7344, 0.0
    %v7393 = vmax.f32 %v7345, 0.0
    %v7394 = vmax.f32 %v7346, 0.0
    %v7395 = vmax.f32 %v7347, 0.0
    %v7396 = vmax.f32 %v7348, 0.0
    %v7397 = vmax.f32 %v7349, 0.0
    %v7398 = vmax.f32 %v7350, 0.0
    %v7399 = vmax.f32 %v7351, 0.0
    %v7400 = vmax.f32 %v7352, 0.0
    %v7401 = vmax.f32 %v7353, 0.0
    %v7402 = vmax.f32 %v7354, 0.0
    %v7403 = vmax.f32 %v7355, 0.0
    %v7404 = vmax.f32 %v7356, 0.0
    %v7405 = vmax.f32 %v7357, 0.0
    %v7406 = vmax.f32 %v7358, 0.0
    %v7407 = vmax.f32 %v7359, 0.0
    %v7408 = vmax.f32 %v7360, 0.0
    %v7409 = vmax.f32 %v7361, 0.0
    %v7410 = vmax.f32 %v7362, 0.0
    %v7411 = vmax.f32 %v7363, 0.0
    %v7412 = vmax.f32 %v7364, 0.0
    %v7413 = vmax.f32 %v7365, 0.0
    %v7414 = vmax.f32 %v7366, 0.0
    %v7415 = vmax.f32 %v7367, 0.0
    %v7416 = vmax.f32 %v7368, 0.0
    %v7417 = vmax.f32 %v7369, 0.0
    %v7418 = vmax.f32 %v7370, 0.0
    %v7419 = vmax.f32 %v7371, 0.0
    %v7420 = vmax.f32 %v7372, 0.0
    %v7421 = vmax.f32 %v7373, 0.0
    %v7422 = vmax.f32 %v7374, 0.0
    %v7423 = vmax.f32 %v7375, 0.0
    %v7424 = vmax.f32 %v7376, 0.0
    %v7425 = vmax.f32 %v7377, 0.0
    %v7426 = vmax.f32 %v7378, 0.0
    %v7427 = vmax.f32 %v7379, 0.0
    %v7428 = vmax.f32 %v7380, 0.0
    %v7429 = vmax.f32 %v7381, 0.0
    %v7430 = vmax.f32 %v7382, 0.0
    %v7431 = vmax.f32 %v7383, %v7395
    %v7432 = vmax.f32 %v7384, %v7396
    %v7433 = vmax.f32 %v7385, %v7397
    %v7434 = vmax.f32 %v7386, %v7398
    %v7435 = vmax.f32 %v7387, %v7399
    %v7436 = vmax.f32 %v7388, %v7400
    %v7437 = vmax.f32 %v7389, %v7401
    %v7438 = vmax.f32 %v7390, %v7402
    %v7439 = vmax.f32 %v7391, %v7403
    %v7440 = vmax.f32 %v7392, %v7404
    %v7441 = vmax.f32 %v7393, %v7405
    %v7442 = vmax.f32 %v7394, %v7406
    %v7443 = vmax.f32 %v7407, %v7419
    %v7444 = vmax.f32 %v7408, %v7420
    %v7445 = vmax.f32 %v7409, %v7421
    %v7446 = vmax.f32 %v7410, %v7422
    %v7447 = vmax.f32 %v7411, %v7423
    %v7448 = vmax.f32 %v7412, %v7424
    %v7449 = vmax.f32 %v7413, %v7425
    %v7450 = vmax.f32 %v7414, %v7426
    %v7451 = vmax.f32 %v7415, %v7427
    %v7452 = vmax.f32 %v7416, %v7428
    %v7453 = vmax.f32 %v7417, %v7429
    %v7454 = vmax.f32 %v7418, %v7430
    %v7455 = vmax.f32 %v7431, %v7432
    %v7456 = vmax.f32 %v7433, %v7434
    %v7457 = vmax.f32 %v7435, %v7436
    %v7458 = vmax.f32 %v7437, %v7438
    %v7459 = vmax.f32 %v7439, %v7440
    %v7460 = vmax.f32 %v7441, %v7442
    %v7461 = vmax.f32 %v7443, %v7444
    %v7462 = vmax.f32 %v7445, %v7446
    %v7463 = vmax.f32 %v7447, %v7448
    %v7464 = vmax.f32 %v7449, %v7450
    %v7465 = vmax.f32 %v7451, %v7452
    %v7466 = vmax.f32 %v7453, %v7454
    %v7467 = vmul.f32 %v6373, %v632
    %v7468 = vmul.f32 %v6380, %v632
    %v7469 = vmul.f32 %v6387, %v632
    %v7470 = vmul.f32 %v6394, %v632
    %v7471 = vmul.f32 %v6401, %v632
    %v7472 = vmul.f32 %v6408, %v632
    %v7473 = vmul.f32 %v6415, %v632
    %v7474 = vmul.f32 %v6422, %v632
    %v7475 = vmul.f32 %v6429, %v632
    %v7476 = vmul.f32 %v6436, %v632
    %v7477 = vmul.f32 %v6443, %v632
    %v7478 = vmul.f32 %v6450, %v632
    %v7479 = vmul.f32 %v6857, %v632
    %v7480 = vmul.f32 %v6864, %v632
    %v7481 = vmul.f32 %v6871, %v632
    %v7482 = vmul.f32 %v6878, %v632
    %v7483 = vmul.f32 %v6885, %v632
    %v7484 = vmul.f32 %v6892, %v632
    %v7485 = vmul.f32 %v6899, %v632
    %v7486 = vmul.f32 %v6906, %v632
    %v7487 = vmul.f32 %v6913, %v632
    %v7488 = vmul.f32 %v6920, %v632
    %v7489 = vmul.f32 %v6927, %v632
    %v7490 = vmul.f32 %v6934, %v632
    %v7491 = vmul.f32 %v6457, %v636
    %v7492 = vmul.f32 %v6464, %v636
    %v7493 = vmul.f32 %v6471, %v636
    %v7494 = vmul.f32 %v6478, %v636
    %v7495 = vmul.f32 %v6485, %v636
    %v7496 = vmul.f32 %v6492, %v636
    %v7497 = vmul.f32 %v6499, %v636
    %v7498 = vmul.f32 %v6506, %v636
    %v7499 = vmul.f32 %v6513, %v636
    %v7500 = vmul.f32 %v6520, %v636
    %v7501 = vmul.f32 %v6527, %v636
    %v7502 = vmul.f32 %v6534, %v636
    %v7503 = vmul.f32 %v6941, %v636
    %v7504 = vmul.f32 %v6948, %v636
    %v7505 = vmul.f32 %v6955, %v636
    %v7506 = vmul.f32 %v6962, %v636
    %v7507 = vmul.f32 %v6969, %v636
    %v7508 = vmul.f32 %v6976, %v636
    %v7509 = vmul.f32 %v6983, %v636
    %v7510 = vmul.f32 %v6990, %v636
    %v7511 = vmul.f32 %v6997, %v636
    %v7512 = vmul.f32 %v7004, %v636
    %v7513 = vmul.f32 %v7011, %v636
    %v7514 = vmul.f32 %v7018, %v636
    %v7515 = vmul.f32 %v6380, %v716
    %v7516 = vmul.f32 %v6387, %v716
    %v7517 = vmul.f32 %v6394, %v716
    %v7518 = vmul.f32 %v6401, %v716
    %v7519 = vmul.f32 %v6408, %v716
    %v7520 = vmul.f32 %v6415, %v716
    %v7521 = vmul.f32 %v6422, %v716
    %v7522 = vmul.f32 %v6429, %v716
    %v7523 = vmul.f32 %v6436, %v716
    %v7524 = vmul.f32 %v6443, %v716
    %v7525 = vmul.f32 %v6450, %v716
    %v7526 = vmul.f32 %v6637, %v716
    %v7527 = vmul.f32 %v6864, %v716
    %v7528 = vmul.f32 %v6871, %v716
    %v7529 = vmul.f32 %v6878, %v716
    %v7530 = vmul.f32 %v6885, %v716
    %v7531 = vmul.f32 %v6892, %v716
    %v7532 = vmul.f32 %v6899, %v716
    %v7533 = vmul.f32 %v6906, %v716
    %v7534 = vmul.f32 %v6913, %v716
    %v7535 = vmul.f32 %v6920, %v716
    %v7536 = vmul.f32 %v6927, %v716
    %v7537 = vmul.f32 %v6934, %v716
    %v7538 = vmul.f32 %v7121, %v716
    %v7539 = vmul.f32 %v6464, %v720
    %v7540 = vmul.f32 %v6471, %v720
    %v7541 = vmul.f32 %v6478, %v720
    %v7542 = vmul.f32 %v6485, %v720
    %v7543 = vmul.f32 %v6492, %v720
    %v7544 = vmul.f32 %v6499, %v720
    %v7545 = vmul.f32 %v6506, %v720
    %v7546 = vmul.f32 %v6513, %v720
    %v7547 = vmul.f32 %v6520, %v720
    %v7548 = vmul.f32 %v6527, %v720
    %v7549 = vmul.f32 %v6534, %v720
    %v7550 = vmul.f32 %v6644, %v720
    %v7551 = vmul.f32 %v6948, %v720
    %v7552 = vmul.f32 %v6955, %v720
    %v7553 = vmul.f32 %v6962, %v720
    %v7554 = vmul.f32 %v6969, %v720
    %v7555 = vmul.f32 %v6976, %v720
    %v7556 = vmul.f32 %v6983, %v720
    %v7557 = vmul.f32 %v6990, %v720
    %v7558 = vmul.f32 %v6997, %v720
    %v7559 = vmul.f32 %v7004, %v720
    %v7560 = vmul.f32 %v7011, %v720
    %v7561 = vmul.f32 %v7018, %v720
    %v7562 = vmul.f32 %v7128, %v720
    %v7563 = vadd.f32 %v7467, %v7515
    %v7564 = vadd.f32 %v7468, %v7516
    %v7565 = vadd.f32 %v7469, %v7517
    %v7566 = vadd.f32 %v7470, %v7518
    %v7567 = vadd.f32 %v7471, %v7519
    %v7568 = vadd.f32 %v7472, %v7520
    %v7569 = vadd.f32 %v7473, %v7521
    %v7570 = vadd.f32 %v7474, %v7522
    %v7571 = vadd.f32 %v7475, %v7523
    %v7572 = vadd.f32 %v7476, %v7524
    %v7573 = vadd.f32 %v7477, %v7525
    %v7574 = vadd.f32 %v7478, %v7526
    %v7575 = vadd.f32 %v7479, %v7527
    %v7576 = vadd.f32 %v7480, %v7528
    %v7577 = vadd.f32 %v7481, %v7529
    %v7578 = vadd.f32 %v7482, %v7530
    %v7579 = vadd.f32 %v7483, %v7531
    %v7580 = vadd.f32 %v7484, %v7532
    %v7581 = vadd.f32 %v7485, %v7533
    %v7582 = vadd.f32 %v7486, %v7534
    %v7583 = vadd.f32 %v7487, %v7535
    %v7584 = vadd.f32 %v7488, %v7536
    %v7585 = vadd.f32 %v7489, %v7537
    %v7586 = vadd.f32 %v7490, %v7538
    %v7587 = vadd.f32 %v7491, %v7539
    %v7588 = vadd.f32 %v7492, %v7540
    %v7589 = vadd.f32 %v7493, %v7541
    %v7590 = vadd.f32 %v7494, %v7542
    %v7591 = vadd.f32 %v7495, %v7543
    %v7592 = vadd.f32 %v7496, %v7544
    %v7593 = vadd.f32 %v7497, %v7545
    %v7594 = vadd.f32 %v7498, %v7546
    %v7595 = vadd.f32 %v7499, %v7547
    %v7596 = vadd.f32 %v7500, %v7548
    %v7597 = vadd.f32 %v7501, %v7549
    %v7598 = vadd.f32 %v7502, %v7550
    %v7599 = vadd.f32 %v7503, %v7551
    %v7600 = vadd.f32 %v7504, %v7552
    %v7601 = vadd.f32 %v7505, %v7553
    %v7602 = vadd.f32 %v7506, %v7554
    %v7603 = vadd.f32 %v7507, %v7555
    %v7604 = vadd.f32 %v7508, %v7556
    %v7605 = vadd.f32 %v7509, %v7557
    %v7606 = vadd.f32 %v7510, %v7558
    %v7607 = vadd.f32 %v7511, %v7559
    %v7608 = vadd.f32 %v7512, %v7560
    %v7609 = vadd.f32 %v7513, %v7561
    %v7610 = vadd.f32 %v7514, %v7562
    %v7611 = vmul.f32 %v6387, %v848
    %v7612 = vmul.f32 %v6394, %v848
    %v7613 = vmul.f32 %v6401, %v848
    %v7614 = vmul.f32 %v6408, %v848
    %v7615 = vmul.f32 %v6415, %v848
    %v7616 = vmul.f32 %v6422, %v848
    %v7617 = vmul.f32 %v6429, %v848
    %v7618 = vmul.f32 %v6436, %v848
    %v7619 = vmul.f32 %v6443, %v848
    %v7620 = vmul.f32 %v6450, %v848
    %v7621 = vmul.f32 %v6637, %v848
    %v7622 = vmul.f32 %v6747, %v848
    %v7623 = vmul.f32 %v6871, %v848
    %v7624 = vmul.f32 %v6878, %v848
    %v7625 = vmul.f32 %v6885, %v848
    %v7626 = vmul.f32 %v6892, %v848
    %v7627 = vmul.f32 %v6899, %v848
    %v7628 = vmul.f32 %v6906, %v848
    %v7629 = vmul.f32 %v6913, %v848
    %v7630 = vmul.f32 %v6920, %v848
    %v7631 = vmul.f32 %v6927, %v848
    %v7632 = vmul.f32 %v6934, %v848
    %v7633 = vmul.f32 %v7121, %v848
    %v7634 = vmul.f32 %v7231, %v848
    %v7635 = vmul.f32 %v6471, %v852
    %v7636 = vmul.f32 %v6478, %v852
    %v7637 = vmul.f32 %v6485, %v852
    %v7638 = vmul.f32 %v6492, %v852
    %v7639 = vmul.f32 %v6499, %v852
    %v7640 = vmul.f32 %v6506, %v852
    %v7641 = vmul.f32 %v6513, %v852
    %v7642 = vmul.f32 %v6520, %v852
    %v7643 = vmul.f32 %v6527, %v852
    %v7644 = vmul.f32 %v6534, %v852
    %v7645 = vmul.f32 %v6644, %v852
    %v7646 = vmul.f32 %v6754, %v852
    %v7647 = vmul.f32 %v6955, %v852
    %v7648 = vmul.f32 %v6962, %v852
    %v7649 = vmul.f32 %v6969, %v852
    %v7650 = vmul.f32 %v6976, %v852
    %v7651 = vmul.f32 %v6983, %v852
    %v7652 = vmul.f32 %v6990, %v852
    %v7653 = vmul.f32 %v6997, %v852
    %v7654 = vmul.f32 %v7004, %v852
    %v7655 = vmul.f32 %v7011, %v852
    %v7656 = vmul.f32 %v7018, %v852
    %v7657 = vmul.f32 %v7128, %v852
    %v7658 = vmul.f32 %v7238, %v852
    %v7659 = vadd.f32 %v7563, %v7611
    %v7660 = vadd.f32 %v7564, %v7612
    %v7661 = vadd.f32 %v7565, %v7613
    %v7662 = vadd.f32 %v7566, %v7614
    %v7663 = vadd.f32 %v7567, %v7615
    %v7664 = vadd.f32 %v7568, %v7616
    %v7665 = vadd.f32 %v7569, %v7617
    %v7666 = vadd.f32 %v7570, %v7618
    %v7667 = vadd.f32 %v7571, %v7619
    %v7668 = vadd.f32 %v7572, %v7620
    %v7669 = vadd.f32 %v7573, %v7621
    %v7670 = vadd.f32 %v7574, %v7622
    %v7671 = vadd.f32 %v7575, %v7623
    %v7672 = vadd.f32 %v7576, %v7624
    %v7673 = vadd.f32 %v7577, %v7625
    %v7674 = vadd.f32 %v7578, %v7626
    %v7675 = vadd.f32 %v7579, %v7627
    %v7676 = vadd.f32 %v7580, %v7628
    %v7677 = vadd.f32 %v7581, %v7629
    %v7678 = vadd.f32 %v7582, %v7630
    %v7679 = vadd.f32 %v7583, %v7631
    %v7680 = vadd.f32 %v7584, %v7632
    %v7681 = vadd.f32 %v7585, %v7633
    %v7682 = vadd.f32 %v7586, %v7634
    %v7683 = vadd.f32 %v7587, %v7635
    %v7684 = vadd.f32 %v7588, %v7636
    %v7685 = vadd.f32 %v7589, %v7637
    %v7686 = vadd.f32 %v7590, %v7638
    %v7687 = vadd.f32 %v7591, %v7639
    %v7688 = vadd.f32 %v7592, %v7640
    %v7689 = vadd.f32 %v7593, %v7641
    %v7690 = vadd.f32 %v7594, %v7642
    %v7691 = vadd.f32 %v7595, %v7643
    %v7692 = vadd.f32 %v7596, %v7644
    %v7693 = vadd.f32 %v7597, %v7645
    %v7694 = vadd.f32 %v7598, %v7646
    %v7695 = vadd.f32 %v7599, %v7647
    %v7696 = vadd.f32 %v7600, %v7648
    %v7697 = vadd.f32 %v7601, %v7649
    %v7698 = vadd.f32 %v7602, %v7650
    %v7699 = vadd.f32 %v7603, %v7651
    %v7700 = vadd.f32 %v7604, %v7652
    %v7701 = vadd.f32 %v7605, %v7653
    %v7702 = vadd.f32 %v7606, %v7654
    %v7703 = vadd.f32 %v7607, %v7655
    %v7704 = vadd.f32 %v7608, %v7656
    %v7705 = vadd.f32 %v7609, %v7657
    %v7706 = vadd.f32 %v7610, %v7658
    %v7707 = vlaneseq
    %v7708 = vshrl.u32 %v7707, 7
    %v7709 = vsub.s32 0, %v7708
    %v7710 = vrot.slane %v233, %v7709
    %7712 = vbcast.lane.b32.xlu0 %v7710, 256
    %v7713 = vpop.permute.xlu0 %7712
    %v7714 = vlaneseq
    %v7715 = vshrl.u32 %v7714, 7
    %v7716 = vsub.s32 1, %v7715
    %v7717 = vrot.slane %v233, %v7716
    %7719 = vbcast.lane.b32.xlu0 %v7717, 256
    %v7720 = vpop.permute.xlu0 %7719
    %v7721 = vlaneseq
    %v7722 = vshrl.u32 %v7721, 7
    %v7723 = vsub.s32 2, %v7722
    %v7724 = vrot.slane %v233, %v7723
    %7726 = vbcast.lane.b32.xlu0 %v7724, 256
    %v7727 = vpop.permute.xlu0 %7726
    %v7728 = vlaneseq
    %v7729 = vshrl.u32 %v7728, 7
    %v7730 = vsub.s32 3, %v7729
    %v7731 = vrot.slane %v233, %v7730
    %7733 = vbcast.lane.b32.xlu0 %v7731, 256
    %v7734 = vpop.permute.xlu0 %7733
    %v7735 = vlaneseq
    %v7736 = vshrl.u32 %v7735, 7
    %v7737 = vsub.s32 4, %v7736
    %v7738 = vrot.slane %v233, %v7737
    %7740 = vbcast.lane.b32.xlu0 %v7738, 256
    %v7741 = vpop.permute.xlu0 %7740
    %v7742 = vlaneseq
    %v7743 = vshrl.u32 %v7742, 7
    %v7744 = vsub.s32 5, %v7743
    %v7745 = vrot.slane %v233, %v7744
    %7747 = vbcast.lane.b32.xlu0 %v7745, 256
    %v7748 = vpop.permute.xlu0 %7747
    %v7749 = vlaneseq
    %v7750 = vshrl.u32 %v7749, 7
    %v7751 = vsub.s32 6, %v7750
    %v7752 = vrot.slane %v233, %v7751
    %7754 = vbcast.lane.b32.xlu0 %v7752, 256
    %v7755 = vpop.permute.xlu0 %7754
    %v7756 = vlaneseq
    %v7757 = vshrl.u32 %v7756, 7
    %v7758 = vsub.s32 7, %v7757
    %v7759 = vrot.slane %v233, %v7758
    %7761 = vbcast.lane.b32.xlu0 %v7759, 256
    %v7762 = vpop.permute.xlu0 %7761
    %v7763 = vlaneseq
    %v7764 = vshrl.u32 %v7763, 7
    %v7765 = vsub.s32 0, %v7764
    %v7766 = vrot.slane %v234, %v7765
    %7768 = vbcast.lane.b32.xlu0 %v7766, 256
    %v7769 = vpop.permute.xlu0 %7768
    %v7770 = vlaneseq
    %v7771 = vshrl.u32 %v7770, 7
    %v7772 = vsub.s32 1, %v7771
    %v7773 = vrot.slane %v234, %v7772
    %7775 = vbcast.lane.b32.xlu0 %v7773, 256
    %v7776 = vpop.permute.xlu0 %7775
    %v7777 = vlaneseq
    %v7778 = vshrl.u32 %v7777, 7
    %v7779 = vsub.s32 2, %v7778
    %v7780 = vrot.slane %v234, %v7779
    %7782 = vbcast.lane.b32.xlu0 %v7780, 256
    %v7783 = vpop.permute.xlu0 %7782
    %v7784 = vlaneseq
    %v7785 = vshrl.u32 %v7784, 7
    %v7786 = vsub.s32 3, %v7785
    %v7787 = vrot.slane %v234, %v7786
    %7789 = vbcast.lane.b32.xlu0 %v7787, 256
    %v7790 = vpop.permute.xlu0 %7789
    %v7791 = vlaneseq
    %v7792 = vshrl.u32 %v7791, 7
    %v7793 = vsub.s32 0, %v7792
    %v7794 = vrot.slane %v261, %v7793
    %7796 = vbcast.lane.b32.xlu0 %v7794, 256
    %v7797 = vpop.permute.xlu0 %7796
    %v7798 = vlaneseq
    %v7799 = vshrl.u32 %v7798, 7
    %v7800 = vsub.s32 1, %v7799
    %v7801 = vrot.slane %v261, %v7800
    %7803 = vbcast.lane.b32.xlu0 %v7801, 256
    %v7804 = vpop.permute.xlu0 %7803
    %v7805 = vlaneseq
    %v7806 = vshrl.u32 %v7805, 7
    %v7807 = vsub.s32 2, %v7806
    %v7808 = vrot.slane %v261, %v7807
    %7810 = vbcast.lane.b32.xlu0 %v7808, 256
    %v7811 = vpop.permute.xlu0 %7810
    %v7812 = vlaneseq
    %v7813 = vshrl.u32 %v7812, 7
    %v7814 = vsub.s32 3, %v7813
    %v7815 = vrot.slane %v261, %v7814
    %7817 = vbcast.lane.b32.xlu0 %v7815, 256
    %v7818 = vpop.permute.xlu0 %7817
    %v7819 = vlaneseq
    %v7820 = vshrl.u32 %v7819, 7
    %v7821 = vsub.s32 4, %v7820
    %v7822 = vrot.slane %v261, %v7821
    %7824 = vbcast.lane.b32.xlu0 %v7822, 256
    %v7825 = vpop.permute.xlu0 %7824
    %v7826 = vlaneseq
    %v7827 = vshrl.u32 %v7826, 7
    %v7828 = vsub.s32 5, %v7827
    %v7829 = vrot.slane %v261, %v7828
    %7831 = vbcast.lane.b32.xlu0 %v7829, 256
    %v7832 = vpop.permute.xlu0 %7831
    %v7833 = vlaneseq
    %v7834 = vshrl.u32 %v7833, 7
    %v7835 = vsub.s32 6, %v7834
    %v7836 = vrot.slane %v261, %v7835
    %7838 = vbcast.lane.b32.xlu0 %v7836, 256
    %v7839 = vpop.permute.xlu0 %7838
    %v7840 = vlaneseq
    %v7841 = vshrl.u32 %v7840, 7
    %v7842 = vsub.s32 7, %v7841
    %v7843 = vrot.slane %v261, %v7842
    %7845 = vbcast.lane.b32.xlu0 %v7843, 256
    %v7846 = vpop.permute.xlu0 %7845
    %v7847 = vlaneseq
    %v7848 = vshrl.u32 %v7847, 7
    %v7849 = vsub.s32 0, %v7848
    %v7850 = vrot.slane %v262, %v7849
    %7852 = vbcast.lane.b32.xlu0 %v7850, 256
    %v7853 = vpop.permute.xlu0 %7852
    %v7854 = vlaneseq
    %v7855 = vshrl.u32 %v7854, 7
    %v7856 = vsub.s32 1, %v7855
    %v7857 = vrot.slane %v262, %v7856
    %7859 = vbcast.lane.b32.xlu0 %v7857, 256
    %v7860 = vpop.permute.xlu0 %7859
    %v7861 = vlaneseq
    %v7862 = vshrl.u32 %v7861, 7
    %v7863 = vsub.s32 2, %v7862
    %v7864 = vrot.slane %v262, %v7863
    %7866 = vbcast.lane.b32.xlu0 %v7864, 256
    %v7867 = vpop.permute.xlu0 %7866
    %v7868 = vlaneseq
    %v7869 = vshrl.u32 %v7868, 7
    %v7870 = vsub.s32 3, %v7869
    %v7871 = vrot.slane %v262, %v7870
    %7873 = vbcast.lane.b32.xlu0 %v7871, 256
    %v7874 = vpop.permute.xlu0 %7873
    %v7875 = vmul.f32 %v6857, %v1120
    %v7876 = vmul.f32 %v6864, %v1120
    %v7877 = vmul.f32 %v6871, %v1120
    %v7878 = vmul.f32 %v6878, %v1120
    %v7879 = vmul.f32 %v6885, %v1120
    %v7880 = vmul.f32 %v6892, %v1120
    %v7881 = vmul.f32 %v6899, %v1120
    %v7882 = vmul.f32 %v6906, %v1120
    %v7883 = vmul.f32 %v6913, %v1120
    %v7884 = vmul.f32 %v6920, %v1120
    %v7885 = vmul.f32 %v6927, %v1120
    %v7886 = vmul.f32 %v6934, %v1120
    %v7887 = vmul.f32 %v7713, %v1120
    %v7888 = vmul.f32 %v7720, %v1120
    %v7889 = vmul.f32 %v7727, %v1120
    %v7890 = vmul.f32 %v7734, %v1120
    %v7891 = vmul.f32 %v7741, %v1120
    %v7892 = vmul.f32 %v7748, %v1120
    %v7893 = vmul.f32 %v7755, %v1120
    %v7894 = vmul.f32 %v7762, %v1120
    %v7895 = vmul.f32 %v7769, %v1120
    %v7896 = vmul.f32 %v7776, %v1120
    %v7897 = vmul.f32 %v7783, %v1120
    %v7898 = vmul.f32 %v7790, %v1120
    %v7899 = vmul.f32 %v6941, %v1124
    %v7900 = vmul.f32 %v6948, %v1124
    %v7901 = vmul.f32 %v6955, %v1124
    %v7902 = vmul.f32 %v6962, %v1124
    %v7903 = vmul.f32 %v6969, %v1124
    %v7904 = vmul.f32 %v6976, %v1124
    %v7905 = vmul.f32 %v6983, %v1124
    %v7906 = vmul.f32 %v6990, %v1124
    %v7907 = vmul.f32 %v6997, %v1124
    %v7908 = vmul.f32 %v7004, %v1124
    %v7909 = vmul.f32 %v7011, %v1124
    %v7910 = vmul.f32 %v7018, %v1124
    %v7911 = vmul.f32 %v7797, %v1124
    %v7912 = vmul.f32 %v7804, %v1124
    %v7913 = vmul.f32 %v7811, %v1124
    %v7914 = vmul.f32 %v7818, %v1124
    %v7915 = vmul.f32 %v7825, %v1124
    %v7916 = vmul.f32 %v7832, %v1124
    %v7917 = vmul.f32 %v7839, %v1124
    %v7918 = vmul.f32 %v7846, %v1124
    %v7919 = vmul.f32 %v7853, %v1124
    %v7920 = vmul.f32 %v7860, %v1124
    %v7921 = vmul.f32 %v7867, %v1124
    %v7922 = vmul.f32 %v7874, %v1124
    %v7923 = vadd.f32 %v7659, %v7875
    %v7924 = vadd.f32 %v7660, %v7876
    %v7925 = vadd.f32 %v7661, %v7877
    %v7926 = vadd.f32 %v7662, %v7878
    %v7927 = vadd.f32 %v7663, %v7879
    %v7928 = vadd.f32 %v7664, %v7880
    %v7929 = vadd.f32 %v7665, %v7881
    %v7930 = vadd.f32 %v7666, %v7882
    %v7931 = vadd.f32 %v7667, %v7883
    %v7932 = vadd.f32 %v7668, %v7884
    %v7933 = vadd.f32 %v7669, %v7885
    %v7934 = vadd.f32 %v7670, %v7886
    %v7935 = vadd.f32 %v7671, %v7887
    %v7936 = vadd.f32 %v7672, %v7888
    %v7937 = vadd.f32 %v7673, %v7889
    %v7938 = vadd.f32 %v7674, %v7890
    %v7939 = vadd.f32 %v7675, %v7891
    %v7940 = vadd.f32 %v7676, %v7892
    %v7941 = vadd.f32 %v7677, %v7893
    %v7942 = vadd.f32 %v7678, %v7894
    %v7943 = vadd.f32 %v7679, %v7895
    %v7944 = vadd.f32 %v7680, %v7896
    %v7945 = vadd.f32 %v7681, %v7897
    %v7946 = vadd.f32 %v7682, %v7898
    %v7947 = vadd.f32 %v7683, %v7899
    %v7948 = vadd.f32 %v7684, %v7900
    %v7949 = vadd.f32 %v7685, %v7901
    %v7950 = vadd.f32 %v7686, %v7902
    %v7951 = vadd.f32 %v7687, %v7903
    %v7952 = vadd.f32 %v7688, %v7904
    %v7953 = vadd.f32 %v7689, %v7905
    %v7954 = vadd.f32 %v7690, %v7906
    %v7955 = vadd.f32 %v7691, %v7907
    %v7956 = vadd.f32 %v7692, %v7908
    %v7957 = vadd.f32 %v7693, %v7909
    %v7958 = vadd.f32 %v7694, %v7910
    %v7959 = vadd.f32 %v7695, %v7911
    %v7960 = vadd.f32 %v7696, %v7912
    %v7961 = vadd.f32 %v7697, %v7913
    %v7962 = vadd.f32 %v7698, %v7914
    %v7963 = vadd.f32 %v7699, %v7915
    %v7964 = vadd.f32 %v7700, %v7916
    %v7965 = vadd.f32 %v7701, %v7917
    %v7966 = vadd.f32 %v7702, %v7918
    %v7967 = vadd.f32 %v7703, %v7919
    %v7968 = vadd.f32 %v7704, %v7920
    %v7969 = vadd.f32 %v7705, %v7921
    %v7970 = vadd.f32 %v7706, %v7922
    %v7971 = vlaneseq
    %v7972 = vshrl.u32 %v7971, 7
    %v7973 = vsub.s32 4, %v7972
    %v7974 = vrot.slane %v234, %v7973
    %7976 = vbcast.lane.b32.xlu0 %v7974, 256
    %v7977 = vpop.permute.xlu0 %7976
    %v7978 = vlaneseq
    %v7979 = vshrl.u32 %v7978, 7
    %v7980 = vsub.s32 4, %v7979
    %v7981 = vrot.slane %v262, %v7980
    %7983 = vbcast.lane.b32.xlu0 %v7981, 256
    %v7984 = vpop.permute.xlu0 %7983
    %v7985 = vmul.f32 %v6864, %v1238
    %v7986 = vmul.f32 %v6871, %v1238
    %v7987 = vmul.f32 %v6878, %v1238
    %v7988 = vmul.f32 %v6885, %v1238
    %v7989 = vmul.f32 %v6892, %v1238
    %v7990 = vmul.f32 %v6899, %v1238
    %v7991 = vmul.f32 %v6906, %v1238
    %v7992 = vmul.f32 %v6913, %v1238
    %v7993 = vmul.f32 %v6920, %v1238
    %v7994 = vmul.f32 %v6927, %v1238
    %v7995 = vmul.f32 %v6934, %v1238
    %v7996 = vmul.f32 %v7121, %v1238
    %v7997 = vmul.f32 %v7720, %v1238
    %v7998 = vmul.f32 %v7727, %v1238
    %v7999 = vmul.f32 %v7734, %v1238
    %v8000 = vmul.f32 %v7741, %v1238
    %v8001 = vmul.f32 %v7748, %v1238
    %v8002 = vmul.f32 %v7755, %v1238
    %v8003 = vmul.f32 %v7762, %v1238
    %v8004 = vmul.f32 %v7769, %v1238
    %v8005 = vmul.f32 %v7776, %v1238
    %v8006 = vmul.f32 %v7783, %v1238
    %v8007 = vmul.f32 %v7790, %v1238
    %v8008 = vmul.f32 %v7977, %v1238
    %v8009 = vmul.f32 %v6948, %v1242
    %v8010 = vmul.f32 %v6955, %v1242
    %v8011 = vmul.f32 %v6962, %v1242
    %v8012 = vmul.f32 %v6969, %v1242
    %v8013 = vmul.f32 %v6976, %v1242
    %v8014 = vmul.f32 %v6983, %v1242
    %v8015 = vmul.f32 %v6990, %v1242
    %v8016 = vmul.f32 %v6997, %v1242
    %v8017 = vmul.f32 %v7004, %v1242
    %v8018 = vmul.f32 %v7011, %v1242
    %v8019 = vmul.f32 %v7018, %v1242
    %v8020 = vmul.f32 %v7128, %v1242
    %v8021 = vmul.f32 %v7804, %v1242
    %v8022 = vmul.f32 %v7811, %v1242
    %v8023 = vmul.f32 %v7818, %v1242
    %v8024 = vmul.f32 %v7825, %v1242
    %v8025 = vmul.f32 %v7832, %v1242
    %v8026 = vmul.f32 %v7839, %v1242
    %v8027 = vmul.f32 %v7846, %v1242
    %v8028 = vmul.f32 %v7853, %v1242
    %v8029 = vmul.f32 %v7860, %v1242
    %v8030 = vmul.f32 %v7867, %v1242
    %v8031 = vmul.f32 %v7874, %v1242
    %v8032 = vmul.f32 %v7984, %v1242
    %v8033 = vadd.f32 %v7923, %v7985
    %v8034 = vadd.f32 %v7924, %v7986
    %v8035 = vadd.f32 %v7925, %v7987
    %v8036 = vadd.f32 %v7926, %v7988
    %v8037 = vadd.f32 %v7927, %v7989
    %v8038 = vadd.f32 %v7928, %v7990
    %v8039 = vadd.f32 %v7929, %v7991
    %v8040 = vadd.f32 %v7930, %v7992
    %v8041 = vadd.f32 %v7931, %v7993
    %v8042 = vadd.f32 %v7932, %v7994
    %v8043 = vadd.f32 %v7933, %v7995
    %v8044 = vadd.f32 %v7934, %v7996
    %v8045 = vadd.f32 %v7935, %v7997
    %v8046 = vadd.f32 %v7936, %v7998
    %v8047 = vadd.f32 %v7937, %v7999
    %v8048 = vadd.f32 %v7938, %v8000
    %v8049 = vadd.f32 %v7939, %v8001
    %v8050 = vadd.f32 %v7940, %v8002
    %v8051 = vadd.f32 %v7941, %v8003
    %v8052 = vadd.f32 %v7942, %v8004
    %v8053 = vadd.f32 %v7943, %v8005
    %v8054 = vadd.f32 %v7944, %v8006
    %v8055 = vadd.f32 %v7945, %v8007
    %v8056 = vadd.f32 %v7946, %v8008
    %v8057 = vadd.f32 %v7947, %v8009
    %v8058 = vadd.f32 %v7948, %v8010
    %v8059 = vadd.f32 %v7949, %v8011
    %v8060 = vadd.f32 %v7950, %v8012
    %v8061 = vadd.f32 %v7951, %v8013
    %v8062 = vadd.f32 %v7952, %v8014
    %v8063 = vadd.f32 %v7953, %v8015
    %v8064 = vadd.f32 %v7954, %v8016
    %v8065 = vadd.f32 %v7955, %v8017
    %v8066 = vadd.f32 %v7956, %v8018
    %v8067 = vadd.f32 %v7957, %v8019
    %v8068 = vadd.f32 %v7958, %v8020
    %v8069 = vadd.f32 %v7959, %v8021
    %v8070 = vadd.f32 %v7960, %v8022
    %v8071 = vadd.f32 %v7961, %v8023
    %v8072 = vadd.f32 %v7962, %v8024
    %v8073 = vadd.f32 %v7963, %v8025
    %v8074 = vadd.f32 %v7964, %v8026
    %v8075 = vadd.f32 %v7965, %v8027
    %v8076 = vadd.f32 %v7966, %v8028
    %v8077 = vadd.f32 %v7967, %v8029
    %v8078 = vadd.f32 %v7968, %v8030
    %v8079 = vadd.f32 %v7969, %v8031
    %v8080 = vadd.f32 %v7970, %v8032
    %v8081 = vlaneseq
    %v8082 = vshrl.u32 %v8081, 7
    %v8083 = vsub.s32 5, %v8082
    %v8084 = vrot.slane %v234, %v8083
    %8086 = vbcast.lane.b32.xlu0 %v8084, 256
    %v8087 = vpop.permute.xlu0 %8086
    %v8088 = vlaneseq
    %v8089 = vshrl.u32 %v8088, 7
    %v8090 = vsub.s32 5, %v8089
    %v8091 = vrot.slane %v262, %v8090
    %8093 = vbcast.lane.b32.xlu0 %v8091, 256
    %v8094 = vpop.permute.xlu0 %8093
    %v8095 = vmul.f32 %v6871, %v1356
    %v8096 = vmul.f32 %v6878, %v1356
    %v8097 = vmul.f32 %v6885, %v1356
    %v8098 = vmul.f32 %v6892, %v1356
    %v8099 = vmul.f32 %v6899, %v1356
    %v8100 = vmul.f32 %v6906, %v1356
    %v8101 = vmul.f32 %v6913, %v1356
    %v8102 = vmul.f32 %v6920, %v1356
    %v8103 = vmul.f32 %v6927, %v1356
    %v8104 = vmul.f32 %v6934, %v1356
    %v8105 = vmul.f32 %v7121, %v1356
    %v8106 = vmul.f32 %v7231, %v1356
    %v8107 = vmul.f32 %v7727, %v1356
    %v8108 = vmul.f32 %v7734, %v1356
    %v8109 = vmul.f32 %v7741, %v1356
    %v8110 = vmul.f32 %v7748, %v1356
    %v8111 = vmul.f32 %v7755, %v1356
    %v8112 = vmul.f32 %v7762, %v1356
    %v8113 = vmul.f32 %v7769, %v1356
    %v8114 = vmul.f32 %v7776, %v1356
    %v8115 = vmul.f32 %v7783, %v1356
    %v8116 = vmul.f32 %v7790, %v1356
    %v8117 = vmul.f32 %v7977, %v1356
    %v8118 = vmul.f32 %v8087, %v1356
    %v8119 = vmul.f32 %v6955, %v1360
    %v8120 = vmul.f32 %v6962, %v1360
    %v8121 = vmul.f32 %v6969, %v1360
    %v8122 = vmul.f32 %v6976, %v1360
    %v8123 = vmul.f32 %v6983, %v1360
    %v8124 = vmul.f32 %v6990, %v1360
    %v8125 = vmul.f32 %v6997, %v1360
    %v8126 = vmul.f32 %v7004, %v1360
    %v8127 = vmul.f32 %v7011, %v1360
    %v8128 = vmul.f32 %v7018, %v1360
    %v8129 = vmul.f32 %v7128, %v1360
    %v8130 = vmul.f32 %v7238, %v1360
    %v8131 = vmul.f32 %v7811, %v1360
    %v8132 = vmul.f32 %v7818, %v1360
    %v8133 = vmul.f32 %v7825, %v1360
    %v8134 = vmul.f32 %v7832, %v1360
    %v8135 = vmul.f32 %v7839, %v1360
    %v8136 = vmul.f32 %v7846, %v1360
    %v8137 = vmul.f32 %v7853, %v1360
    %v8138 = vmul.f32 %v7860, %v1360
    %v8139 = vmul.f32 %v7867, %v1360
    %v8140 = vmul.f32 %v7874, %v1360
    %v8141 = vmul.f32 %v7984, %v1360
    %v8142 = vmul.f32 %v8094, %v1360
    %v8143 = vadd.f32 %v8033, %v8095
    %v8144 = vadd.f32 %v8034, %v8096
    %v8145 = vadd.f32 %v8035, %v8097
    %v8146 = vadd.f32 %v8036, %v8098
    %v8147 = vadd.f32 %v8037, %v8099
    %v8148 = vadd.f32 %v8038, %v8100
    %v8149 = vadd.f32 %v8039, %v8101
    %v8150 = vadd.f32 %v8040, %v8102
    %v8151 = vadd.f32 %v8041, %v8103
    %v8152 = vadd.f32 %v8042, %v8104
    %v8153 = vadd.f32 %v8043, %v8105
    %v8154 = vadd.f32 %v8044, %v8106
    %v8155 = vadd.f32 %v8045, %v8107
    %v8156 = vadd.f32 %v8046, %v8108
    %v8157 = vadd.f32 %v8047, %v8109
    %v8158 = vadd.f32 %v8048, %v8110
    %v8159 = vadd.f32 %v8049, %v8111
    %v8160 = vadd.f32 %v8050, %v8112
    %v8161 = vadd.f32 %v8051, %v8113
    %v8162 = vadd.f32 %v8052, %v8114
    %v8163 = vadd.f32 %v8053, %v8115
    %v8164 = vadd.f32 %v8054, %v8116
    %v8165 = vadd.f32 %v8055, %v8117
    %v8166 = vadd.f32 %v8056, %v8118
    %v8167 = vadd.f32 %v8057, %v8119
    %v8168 = vadd.f32 %v8058, %v8120
    %v8169 = vadd.f32 %v8059, %v8121
    %v8170 = vadd.f32 %v8060, %v8122
    %v8171 = vadd.f32 %v8061, %v8123
    %v8172 = vadd.f32 %v8062, %v8124
    %v8173 = vadd.f32 %v8063, %v8125
    %v8174 = vadd.f32 %v8064, %v8126
    %v8175 = vadd.f32 %v8065, %v8127
    %v8176 = vadd.f32 %v8066, %v8128
    %v8177 = vadd.f32 %v8067, %v8129
    %v8178 = vadd.f32 %v8068, %v8130
    %v8179 = vadd.f32 %v8069, %v8131
    %v8180 = vadd.f32 %v8070, %v8132
    %v8181 = vadd.f32 %v8071, %v8133
    %v8182 = vadd.f32 %v8072, %v8134
    %v8183 = vadd.f32 %v8073, %v8135
    %v8184 = vadd.f32 %v8074, %v8136
    %v8185 = vadd.f32 %v8075, %v8137
    %v8186 = vadd.f32 %v8076, %v8138
    %v8187 = vadd.f32 %v8077, %v8139
    %v8188 = vadd.f32 %v8078, %v8140
    %v8189 = vadd.f32 %v8079, %v8141
    %v8190 = vadd.f32 %v8080, %v8142
    %v8191 = vlaneseq
    %v8192 = vshrl.u32 %v8191, 7
    %v8193 = vsub.s32 0, %v8192
    %v8194 = vrot.slane %v235, %v8193
    %8196 = vbcast.lane.b32.xlu0 %v8194, 256
    %v8197 = vpop.permute.xlu0 %8196
    %v8198 = vlaneseq
    %v8199 = vshrl.u32 %v8198, 7
    %v8200 = vsub.s32 1, %v8199
    %v8201 = vrot.slane %v235, %v8200
    %8203 = vbcast.lane.b32.xlu0 %v8201, 256
    %v8204 = vpop.permute.xlu0 %8203
    %v8205 = vlaneseq
    %v8206 = vshrl.u32 %v8205, 7
    %v8207 = vsub.s32 2, %v8206
    %v8208 = vrot.slane %v235, %v8207
    %8210 = vbcast.lane.b32.xlu0 %v8208, 256
    %v8211 = vpop.permute.xlu0 %8210
    %v8212 = vlaneseq
    %v8213 = vshrl.u32 %v8212, 7
    %v8214 = vsub.s32 3, %v8213
    %v8215 = vrot.slane %v235, %v8214
    %8217 = vbcast.lane.b32.xlu0 %v8215, 256
    %v8218 = vpop.permute.xlu0 %8217
    %v8219 = vlaneseq
    %v8220 = vshrl.u32 %v8219, 7
    %v8221 = vsub.s32 4, %v8220
    %v8222 = vrot.slane %v235, %v8221
    %8224 = vbcast.lane.b32.xlu0 %v8222, 256
    %v8225 = vpop.permute.xlu0 %8224
    %v8226 = vlaneseq
    %v8227 = vshrl.u32 %v8226, 7
    %v8228 = vsub.s32 5, %v8227
    %v8229 = vrot.slane %v235, %v8228
    %8231 = vbcast.lane.b32.xlu0 %v8229, 256
    %v8232 = vpop.permute.xlu0 %8231
    %v8233 = vlaneseq
    %v8234 = vshrl.u32 %v8233, 7
    %v8235 = vsub.s32 6, %v8234
    %v8236 = vrot.slane %v235, %v8235
    %8238 = vbcast.lane.b32.xlu0 %v8236, 256
    %v8239 = vpop.permute.xlu0 %8238
    %v8240 = vlaneseq
    %v8241 = vshrl.u32 %v8240, 7
    %v8242 = vsub.s32 7, %v8241
    %v8243 = vrot.slane %v235, %v8242
    %8245 = vbcast.lane.b32.xlu0 %v8243, 256
    %v8246 = vpop.permute.xlu0 %8245
    %v8247 = vlaneseq
    %v8248 = vshrl.u32 %v8247, 7
    %v8249 = vsub.s32 0, %v8248
    %v8250 = vrot.slane %v236, %v8249
    %8252 = vbcast.lane.b32.xlu0 %v8250, 256
    %v8253 = vpop.permute.xlu0 %8252
    %v8254 = vlaneseq
    %v8255 = vshrl.u32 %v8254, 7
    %v8256 = vsub.s32 1, %v8255
    %v8257 = vrot.slane %v236, %v8256
    %8259 = vbcast.lane.b32.xlu0 %v8257, 256
    %v8260 = vpop.permute.xlu0 %8259
    %v8261 = vlaneseq
    %v8262 = vshrl.u32 %v8261, 7
    %v8263 = vsub.s32 2, %v8262
    %v8264 = vrot.slane %v236, %v8263
    %8266 = vbcast.lane.b32.xlu0 %v8264, 256
    %v8267 = vpop.permute.xlu0 %8266
    %v8268 = vlaneseq
    %v8269 = vshrl.u32 %v8268, 7
    %v8270 = vsub.s32 3, %v8269
    %v8271 = vrot.slane %v236, %v8270
    %8273 = vbcast.lane.b32.xlu0 %v8271, 256
    %v8274 = vpop.permute.xlu0 %8273
    %v8275 = vlaneseq
    %v8276 = vshrl.u32 %v8275, 7
    %v8277 = vsub.s32 0, %v8276
    %v8278 = vrot.slane %v263, %v8277
    %8280 = vbcast.lane.b32.xlu0 %v8278, 256
    %v8281 = vpop.permute.xlu0 %8280
    %v8282 = vlaneseq
    %v8283 = vshrl.u32 %v8282, 7
    %v8284 = vsub.s32 1, %v8283
    %v8285 = vrot.slane %v263, %v8284
    %8287 = vbcast.lane.b32.xlu0 %v8285, 256
    %v8288 = vpop.permute.xlu0 %8287
    %v8289 = vlaneseq
    %v8290 = vshrl.u32 %v8289, 7
    %v8291 = vsub.s32 2, %v8290
    %v8292 = vrot.slane %v263, %v8291
    %8294 = vbcast.lane.b32.xlu0 %v8292, 256
    %v8295 = vpop.permute.xlu0 %8294
    %v8296 = vlaneseq
    %v8297 = vshrl.u32 %v8296, 7
    %v8298 = vsub.s32 3, %v8297
    %v8299 = vrot.slane %v263, %v8298
    %8301 = vbcast.lane.b32.xlu0 %v8299, 256
    %v8302 = vpop.permute.xlu0 %8301
    %v8303 = vlaneseq
    %v8304 = vshrl.u32 %v8303, 7
    %v8305 = vsub.s32 4, %v8304
    %v8306 = vrot.slane %v263, %v8305
    %8308 = vbcast.lane.b32.xlu0 %v8306, 256
    %v8309 = vpop.permute.xlu0 %8308
    %v8310 = vlaneseq
    %v8311 = vshrl.u32 %v8310, 7
    %v8312 = vsub.s32 5, %v8311
    %v8313 = vrot.slane %v263, %v8312
    %8315 = vbcast.lane.b32.xlu0 %v8313, 256
    %v8316 = vpop.permute.xlu0 %8315
    %v8317 = vlaneseq
    %v8318 = vshrl.u32 %v8317, 7
    %v8319 = vsub.s32 6, %v8318
    %v8320 = vrot.slane %v263, %v8319
    %8322 = vbcast.lane.b32.xlu0 %v8320, 256
    %v8323 = vpop.permute.xlu0 %8322
    %v8324 = vlaneseq
    %v8325 = vshrl.u32 %v8324, 7
    %v8326 = vsub.s32 7, %v8325
    %v8327 = vrot.slane %v263, %v8326
    %8329 = vbcast.lane.b32.xlu0 %v8327, 256
    %v8330 = vpop.permute.xlu0 %8329
    %v8331 = vlaneseq
    %v8332 = vshrl.u32 %v8331, 7
    %v8333 = vsub.s32 0, %v8332
    %v8334 = vrot.slane %v264, %v8333
    %8336 = vbcast.lane.b32.xlu0 %v8334, 256
    %v8337 = vpop.permute.xlu0 %8336
    %v8338 = vlaneseq
    %v8339 = vshrl.u32 %v8338, 7
    %v8340 = vsub.s32 1, %v8339
    %v8341 = vrot.slane %v264, %v8340
    %8343 = vbcast.lane.b32.xlu0 %v8341, 256
    %v8344 = vpop.permute.xlu0 %8343
    %v8345 = vlaneseq
    %v8346 = vshrl.u32 %v8345, 7
    %v8347 = vsub.s32 2, %v8346
    %v8348 = vrot.slane %v264, %v8347
    %8350 = vbcast.lane.b32.xlu0 %v8348, 256
    %v8351 = vpop.permute.xlu0 %8350
    %v8352 = vlaneseq
    %v8353 = vshrl.u32 %v8352, 7
    %v8354 = vsub.s32 3, %v8353
    %v8355 = vrot.slane %v264, %v8354
    %8357 = vbcast.lane.b32.xlu0 %v8355, 256
    %v8358 = vpop.permute.xlu0 %8357
    %v8359 = vmul.f32 %v7713, %v1628
    %v8360 = vmul.f32 %v7720, %v1628
    %v8361 = vmul.f32 %v7727, %v1628
    %v8362 = vmul.f32 %v7734, %v1628
    %v8363 = vmul.f32 %v7741, %v1628
    %v8364 = vmul.f32 %v7748, %v1628
    %v8365 = vmul.f32 %v7755, %v1628
    %v8366 = vmul.f32 %v7762, %v1628
    %v8367 = vmul.f32 %v7769, %v1628
    %v8368 = vmul.f32 %v7776, %v1628
    %v8369 = vmul.f32 %v7783, %v1628
    %v8370 = vmul.f32 %v7790, %v1628
    %v8371 = vmul.f32 %v8197, %v1628
    %v8372 = vmul.f32 %v8204, %v1628
    %v8373 = vmul.f32 %v8211, %v1628
    %v8374 = vmul.f32 %v8218, %v1628
    %v8375 = vmul.f32 %v8225, %v1628
    %v8376 = vmul.f32 %v8232, %v1628
    %v8377 = vmul.f32 %v8239, %v1628
    %v8378 = vmul.f32 %v8246, %v1628
    %v8379 = vmul.f32 %v8253, %v1628
    %v8380 = vmul.f32 %v8260, %v1628
    %v8381 = vmul.f32 %v8267, %v1628
    %v8382 = vmul.f32 %v8274, %v1628
    %v8383 = vmul.f32 %v7797, %v1632
    %v8384 = vmul.f32 %v7804, %v1632
    %v8385 = vmul.f32 %v7811, %v1632
    %v8386 = vmul.f32 %v7818, %v1632
    %v8387 = vmul.f32 %v7825, %v1632
    %v8388 = vmul.f32 %v7832, %v1632
    %v8389 = vmul.f32 %v7839, %v1632
    %v8390 = vmul.f32 %v7846, %v1632
    %v8391 = vmul.f32 %v7853, %v1632
    %v8392 = vmul.f32 %v7860, %v1632
    %v8393 = vmul.f32 %v7867, %v1632
    %v8394 = vmul.f32 %v7874, %v1632
    %v8395 = vmul.f32 %v8281, %v1632
    %v8396 = vmul.f32 %v8288, %v1632
    %v8397 = vmul.f32 %v8295, %v1632
    %v8398 = vmul.f32 %v8302, %v1632
    %v8399 = vmul.f32 %v8309, %v1632
    %v8400 = vmul.f32 %v8316, %v1632
    %v8401 = vmul.f32 %v8323, %v1632
    %v8402 = vmul.f32 %v8330, %v1632
    %v8403 = vmul.f32 %v8337, %v1632
    %v8404 = vmul.f32 %v8344, %v1632
    %v8405 = vmul.f32 %v8351, %v1632
    %v8406 = vmul.f32 %v8358, %v1632
    %v8407 = vadd.f32 %v8143, %v8359
    %v8408 = vadd.f32 %v8144, %v8360
    %v8409 = vadd.f32 %v8145, %v8361
    %v8410 = vadd.f32 %v8146, %v8362
    %v8411 = vadd.f32 %v8147, %v8363
    %v8412 = vadd.f32 %v8148, %v8364
    %v8413 = vadd.f32 %v8149, %v8365
    %v8414 = vadd.f32 %v8150, %v8366
    %v8415 = vadd.f32 %v8151, %v8367
    %v8416 = vadd.f32 %v8152, %v8368
    %v8417 = vadd.f32 %v8153, %v8369
    %v8418 = vadd.f32 %v8154, %v8370
    %v8419 = vadd.f32 %v8155, %v8371
    %v8420 = vadd.f32 %v8156, %v8372
    %v8421 = vadd.f32 %v8157, %v8373
    %v8422 = vadd.f32 %v8158, %v8374
    %v8423 = vadd.f32 %v8159, %v8375
    %v8424 = vadd.f32 %v8160, %v8376
    %v8425 = vadd.f32 %v8161, %v8377
    %v8426 = vadd.f32 %v8162, %v8378
    %v8427 = vadd.f32 %v8163, %v8379
    %v8428 = vadd.f32 %v8164, %v8380
    %v8429 = vadd.f32 %v8165, %v8381
    %v8430 = vadd.f32 %v8166, %v8382
    %v8431 = vadd.f32 %v8167, %v8383
    %v8432 = vadd.f32 %v8168, %v8384
    %v8433 = vadd.f32 %v8169, %v8385
    %v8434 = vadd.f32 %v8170, %v8386
    %v8435 = vadd.f32 %v8171, %v8387
    %v8436 = vadd.f32 %v8172, %v8388
    %v8437 = vadd.f32 %v8173, %v8389
    %v8438 = vadd.f32 %v8174, %v8390
    %v8439 = vadd.f32 %v8175, %v8391
    %v8440 = vadd.f32 %v8176, %v8392
    %v8441 = vadd.f32 %v8177, %v8393
    %v8442 = vadd.f32 %v8178, %v8394
    %v8443 = vadd.f32 %v8179, %v8395
    %v8444 = vadd.f32 %v8180, %v8396
    %v8445 = vadd.f32 %v8181, %v8397
    %v8446 = vadd.f32 %v8182, %v8398
    %v8447 = vadd.f32 %v8183, %v8399
    %v8448 = vadd.f32 %v8184, %v8400
    %v8449 = vadd.f32 %v8185, %v8401
    %v8450 = vadd.f32 %v8186, %v8402
    %v8451 = vadd.f32 %v8187, %v8403
    %v8452 = vadd.f32 %v8188, %v8404
    %v8453 = vadd.f32 %v8189, %v8405
    %v8454 = vadd.f32 %v8190, %v8406
    %v8455 = vlaneseq
    %v8456 = vshrl.u32 %v8455, 7
    %v8457 = vsub.s32 4, %v8456
    %v8458 = vrot.slane %v236, %v8457
    %8460 = vbcast.lane.b32.xlu0 %v8458, 256
    %v8461 = vpop.permute.xlu0 %8460
    %v8462 = vlaneseq
    %v8463 = vshrl.u32 %v8462, 7
    %v8464 = vsub.s32 4, %v8463
    %v8465 = vrot.slane %v264, %v8464
    %8467 = vbcast.lane.b32.xlu0 %v8465, 256
    %v8468 = vpop.permute.xlu0 %8467
    %v8469 = vmul.f32 %v7720, %v1746
    %v8470 = vmul.f32 %v7727, %v1746
    %v8471 = vmul.f32 %v7734, %v1746
    %v8472 = vmul.f32 %v7741, %v1746
    %v8473 = vmul.f32 %v7748, %v1746
    %v8474 = vmul.f32 %v7755, %v1746
    %v8475 = vmul.f32 %v7762, %v1746
    %v8476 = vmul.f32 %v7769, %v1746
    %v8477 = vmul.f32 %v7776, %v1746
    %v8478 = vmul.f32 %v7783, %v1746
    %v8479 = vmul.f32 %v7790, %v1746
    %v8480 = vmul.f32 %v7977, %v1746
    %v8481 = vmul.f32 %v8204, %v1746
    %v8482 = vmul.f32 %v8211, %v1746
    %v8483 = vmul.f32 %v8218, %v1746
    %v8484 = vmul.f32 %v8225, %v1746
    %v8485 = vmul.f32 %v8232, %v1746
    %v8486 = vmul.f32 %v8239, %v1746
    %v8487 = vmul.f32 %v8246, %v1746
    %v8488 = vmul.f32 %v8253, %v1746
    %v8489 = vmul.f32 %v8260, %v1746
    %v8490 = vmul.f32 %v8267, %v1746
    %v8491 = vmul.f32 %v8274, %v1746
    %v8492 = vmul.f32 %v8461, %v1746
    %v8493 = vmul.f32 %v7804, %v1750
    %v8494 = vmul.f32 %v7811, %v1750
    %v8495 = vmul.f32 %v7818, %v1750
    %v8496 = vmul.f32 %v7825, %v1750
    %v8497 = vmul.f32 %v7832, %v1750
    %v8498 = vmul.f32 %v7839, %v1750
    %v8499 = vmul.f32 %v7846, %v1750
    %v8500 = vmul.f32 %v7853, %v1750
    %v8501 = vmul.f32 %v7860, %v1750
    %v8502 = vmul.f32 %v7867, %v1750
    %v8503 = vmul.f32 %v7874, %v1750
    %v8504 = vmul.f32 %v7984, %v1750
    %v8505 = vmul.f32 %v8288, %v1750
    %v8506 = vmul.f32 %v8295, %v1750
    %v8507 = vmul.f32 %v8302, %v1750
    %v8508 = vmul.f32 %v8309, %v1750
    %v8509 = vmul.f32 %v8316, %v1750
    %v8510 = vmul.f32 %v8323, %v1750
    %v8511 = vmul.f32 %v8330, %v1750
    %v8512 = vmul.f32 %v8337, %v1750
    %v8513 = vmul.f32 %v8344, %v1750
    %v8514 = vmul.f32 %v8351, %v1750
    %v8515 = vmul.f32 %v8358, %v1750
    %v8516 = vmul.f32 %v8468, %v1750
    %v8517 = vadd.f32 %v8407, %v8469
    %v8518 = vadd.f32 %v8408, %v8470
    %v8519 = vadd.f32 %v8409, %v8471
    %v8520 = vadd.f32 %v8410, %v8472
    %v8521 = vadd.f32 %v8411, %v8473
    %v8522 = vadd.f32 %v8412, %v8474
    %v8523 = vadd.f32 %v8413, %v8475
    %v8524 = vadd.f32 %v8414, %v8476
    %v8525 = vadd.f32 %v8415, %v8477
    %v8526 = vadd.f32 %v8416, %v8478
    %v8527 = vadd.f32 %v8417, %v8479
    %v8528 = vadd.f32 %v8418, %v8480
    %v8529 = vadd.f32 %v8419, %v8481
    %v8530 = vadd.f32 %v8420, %v8482
    %v8531 = vadd.f32 %v8421, %v8483
    %v8532 = vadd.f32 %v8422, %v8484
    %v8533 = vadd.f32 %v8423, %v8485
    %v8534 = vadd.f32 %v8424, %v8486
    %v8535 = vadd.f32 %v8425, %v8487
    %v8536 = vadd.f32 %v8426, %v8488
    %v8537 = vadd.f32 %v8427, %v8489
    %v8538 = vadd.f32 %v8428, %v8490
    %v8539 = vadd.f32 %v8429, %v8491
    %v8540 = vadd.f32 %v8430, %v8492
    %v8541 = vadd.f32 %v8431, %v8493
    %v8542 = vadd.f32 %v8432, %v8494
    %v8543 = vadd.f32 %v8433, %v8495
    %v8544 = vadd.f32 %v8434, %v8496
    %v8545 = vadd.f32 %v8435, %v8497
    %v8546 = vadd.f32 %v8436, %v8498
    %v8547 = vadd.f32 %v8437, %v8499
    %v8548 = vadd.f32 %v8438, %v8500
    %v8549 = vadd.f32 %v8439, %v8501
    %v8550 = vadd.f32 %v8440, %v8502
    %v8551 = vadd.f32 %v8441, %v8503
    %v8552 = vadd.f32 %v8442, %v8504
    %v8553 = vadd.f32 %v8443, %v8505
    %v8554 = vadd.f32 %v8444, %v8506
    %v8555 = vadd.f32 %v8445, %v8507
    %v8556 = vadd.f32 %v8446, %v8508
    %v8557 = vadd.f32 %v8447, %v8509
    %v8558 = vadd.f32 %v8448, %v8510
    %v8559 = vadd.f32 %v8449, %v8511
    %v8560 = vadd.f32 %v8450, %v8512
    %v8561 = vadd.f32 %v8451, %v8513
    %v8562 = vadd.f32 %v8452, %v8514
    %v8563 = vadd.f32 %v8453, %v8515
    %v8564 = vadd.f32 %v8454, %v8516
    %v8565 = vlaneseq
    %v8566 = vshrl.u32 %v8565, 7
    %v8567 = vsub.s32 5, %v8566
    %v8568 = vrot.slane %v236, %v8567
    %8570 = vbcast.lane.b32.xlu0 %v8568, 256
    %v8571 = vpop.permute.xlu0 %8570
    %v8572 = vlaneseq
    %v8573 = vshrl.u32 %v8572, 7
    %v8574 = vsub.s32 5, %v8573
    %v8575 = vrot.slane %v264, %v8574
    %8577 = vbcast.lane.b32.xlu0 %v8575, 256
    %v8578 = vpop.permute.xlu0 %8577
    %v8579 = vmul.f32 %v7727, %v1864
    %v8580 = vmul.f32 %v7734, %v1864
    %v8581 = vmul.f32 %v7741, %v1864
    %v8582 = vmul.f32 %v7748, %v1864
    %v8583 = vmul.f32 %v7755, %v1864
    %v8584 = vmul.f32 %v7762, %v1864
    %v8585 = vmul.f32 %v7769, %v1864
    %v8586 = vmul.f32 %v7776, %v1864
    %v8587 = vmul.f32 %v7783, %v1864
    %v8588 = vmul.f32 %v7790, %v1864
    %v8589 = vmul.f32 %v7977, %v1864
    %v8590 = vmul.f32 %v8087, %v1864
    %v8591 = vmul.f32 %v8211, %v1864
    %v8592 = vmul.f32 %v8218, %v1864
    %v8593 = vmul.f32 %v8225, %v1864
    %v8594 = vmul.f32 %v8232, %v1864
    %v8595 = vmul.f32 %v8239, %v1864
    %v8596 = vmul.f32 %v8246, %v1864
    %v8597 = vmul.f32 %v8253, %v1864
    %v8598 = vmul.f32 %v8260, %v1864
    %v8599 = vmul.f32 %v8267, %v1864
    %v8600 = vmul.f32 %v8274, %v1864
    %v8601 = vmul.f32 %v8461, %v1864
    %v8602 = vmul.f32 %v8571, %v1864
    %v8603 = vmul.f32 %v7811, %v1868
    %v8604 = vmul.f32 %v7818, %v1868
    %v8605 = vmul.f32 %v7825, %v1868
    %v8606 = vmul.f32 %v7832, %v1868
    %v8607 = vmul.f32 %v7839, %v1868
    %v8608 = vmul.f32 %v7846, %v1868
    %v8609 = vmul.f32 %v7853, %v1868
    %v8610 = vmul.f32 %v7860, %v1868
    %v8611 = vmul.f32 %v7867, %v1868
    %v8612 = vmul.f32 %v7874, %v1868
    %v8613 = vmul.f32 %v7984, %v1868
    %v8614 = vmul.f32 %v8094, %v1868
    %v8615 = vmul.f32 %v8295, %v1868
    %v8616 = vmul.f32 %v8302, %v1868
    %v8617 = vmul.f32 %v8309, %v1868
    %v8618 = vmul.f32 %v8316, %v1868
    %v8619 = vmul.f32 %v8323, %v1868
    %v8620 = vmul.f32 %v8330, %v1868
    %v8621 = vmul.f32 %v8337, %v1868
    %v8622 = vmul.f32 %v8344, %v1868
    %v8623 = vmul.f32 %v8351, %v1868
    %v8624 = vmul.f32 %v8358, %v1868
    %v8625 = vmul.f32 %v8468, %v1868
    %v8626 = vmul.f32 %v8578, %v1868
    %v8627 = vadd.f32 %v8517, %v8579
    %v8628 = vadd.f32 %v8518, %v8580
    %v8629 = vadd.f32 %v8519, %v8581
    %v8630 = vadd.f32 %v8520, %v8582
    %v8631 = vadd.f32 %v8521, %v8583
    %v8632 = vadd.f32 %v8522, %v8584
    %v8633 = vadd.f32 %v8523, %v8585
    %v8634 = vadd.f32 %v8524, %v8586
    %v8635 = vadd.f32 %v8525, %v8587
    %v8636 = vadd.f32 %v8526, %v8588
    %v8637 = vadd.f32 %v8527, %v8589
    %v8638 = vadd.f32 %v8528, %v8590
    %v8639 = vadd.f32 %v8529, %v8591
    %v8640 = vadd.f32 %v8530, %v8592
    %v8641 = vadd.f32 %v8531, %v8593
    %v8642 = vadd.f32 %v8532, %v8594
    %v8643 = vadd.f32 %v8533, %v8595
    %v8644 = vadd.f32 %v8534, %v8596
    %v8645 = vadd.f32 %v8535, %v8597
    %v8646 = vadd.f32 %v8536, %v8598
    %v8647 = vadd.f32 %v8537, %v8599
    %v8648 = vadd.f32 %v8538, %v8600
    %v8649 = vadd.f32 %v8539, %v8601
    %v8650 = vadd.f32 %v8540, %v8602
    %v8651 = vadd.f32 %v8541, %v8603
    %v8652 = vadd.f32 %v8542, %v8604
    %v8653 = vadd.f32 %v8543, %v8605
    %v8654 = vadd.f32 %v8544, %v8606
    %v8655 = vadd.f32 %v8545, %v8607
    %v8656 = vadd.f32 %v8546, %v8608
    %v8657 = vadd.f32 %v8547, %v8609
    %v8658 = vadd.f32 %v8548, %v8610
    %v8659 = vadd.f32 %v8549, %v8611
    %v8660 = vadd.f32 %v8550, %v8612
    %v8661 = vadd.f32 %v8551, %v8613
    %v8662 = vadd.f32 %v8552, %v8614
    %v8663 = vadd.f32 %v8553, %v8615
    %v8664 = vadd.f32 %v8554, %v8616
    %v8665 = vadd.f32 %v8555, %v8617
    %v8666 = vadd.f32 %v8556, %v8618
    %v8667 = vadd.f32 %v8557, %v8619
    %v8668 = vadd.f32 %v8558, %v8620
    %v8669 = vadd.f32 %v8559, %v8621
    %v8670 = vadd.f32 %v8560, %v8622
    %v8671 = vadd.f32 %v8561, %v8623
    %v8672 = vadd.f32 %v8562, %v8624
    %v8673 = vadd.f32 %v8563, %v8625
    %v8674 = vadd.f32 %v8564, %v8626
    %v8675 = vadd.f32 %v8627, %v1968
    %v8676 = vadd.f32 %v8628, %v1968
    %v8677 = vadd.f32 %v8629, %v1968
    %v8678 = vadd.f32 %v8630, %v1968
    %v8679 = vadd.f32 %v8631, %v1968
    %v8680 = vadd.f32 %v8632, %v1968
    %v8681 = vadd.f32 %v8633, %v1968
    %v8682 = vadd.f32 %v8634, %v1968
    %v8683 = vadd.f32 %v8635, %v1968
    %v8684 = vadd.f32 %v8636, %v1968
    %v8685 = vadd.f32 %v8637, %v1968
    %v8686 = vadd.f32 %v8638, %v1968
    %v8687 = vadd.f32 %v8639, %v1968
    %v8688 = vadd.f32 %v8640, %v1968
    %v8689 = vadd.f32 %v8641, %v1968
    %v8690 = vadd.f32 %v8642, %v1968
    %v8691 = vadd.f32 %v8643, %v1968
    %v8692 = vadd.f32 %v8644, %v1968
    %v8693 = vadd.f32 %v8645, %v1968
    %v8694 = vadd.f32 %v8646, %v1968
    %v8695 = vadd.f32 %v8647, %v1968
    %v8696 = vadd.f32 %v8648, %v1968
    %v8697 = vadd.f32 %v8649, %v1968
    %v8698 = vadd.f32 %v8650, %v1968
    %v8699 = vadd.f32 %v8651, %v1972
    %v8700 = vadd.f32 %v8652, %v1972
    %v8701 = vadd.f32 %v8653, %v1972
    %v8702 = vadd.f32 %v8654, %v1972
    %v8703 = vadd.f32 %v8655, %v1972
    %v8704 = vadd.f32 %v8656, %v1972
    %v8705 = vadd.f32 %v8657, %v1972
    %v8706 = vadd.f32 %v8658, %v1972
    %v8707 = vadd.f32 %v8659, %v1972
    %v8708 = vadd.f32 %v8660, %v1972
    %v8709 = vadd.f32 %v8661, %v1972
    %v8710 = vadd.f32 %v8662, %v1972
    %v8711 = vadd.f32 %v8663, %v1972
    %v8712 = vadd.f32 %v8664, %v1972
    %v8713 = vadd.f32 %v8665, %v1972
    %v8714 = vadd.f32 %v8666, %v1972
    %v8715 = vadd.f32 %v8667, %v1972
    %v8716 = vadd.f32 %v8668, %v1972
    %v8717 = vadd.f32 %v8669, %v1972
    %v8718 = vadd.f32 %v8670, %v1972
    %v8719 = vadd.f32 %v8671, %v1972
    %v8720 = vadd.f32 %v8672, %v1972
    %v8721 = vadd.f32 %v8673, %v1972
    %v8722 = vadd.f32 %v8674, %v1972
    %v8723 = vmax.f32 %v8675, 0.0
    %v8724 = vmax.f32 %v8676, 0.0
    %v8725 = vmax.f32 %v8677, 0.0
    %v8726 = vmax.f32 %v8678, 0.0
    %v8727 = vmax.f32 %v8679, 0.0
    %v8728 = vmax.f32 %v8680, 0.0
    %v8729 = vmax.f32 %v8681, 0.0
    %v8730 = vmax.f32 %v8682, 0.0
    %v8731 = vmax.f32 %v8683, 0.0
    %v8732 = vmax.f32 %v8684, 0.0
    %v8733 = vmax.f32 %v8685, 0.0
    %v8734 = vmax.f32 %v8686, 0.0
    %v8735 = vmax.f32 %v8687, 0.0
    %v8736 = vmax.f32 %v8688, 0.0
    %v8737 = vmax.f32 %v8689, 0.0
    %v8738 = vmax.f32 %v8690, 0.0
    %v8739 = vmax.f32 %v8691, 0.0
    %v8740 = vmax.f32 %v8692, 0.0
    %v8741 = vmax.f32 %v8693, 0.0
    %v8742 = vmax.f32 %v8694, 0.0
    %v8743 = vmax.f32 %v8695, 0.0
    %v8744 = vmax.f32 %v8696, 0.0
    %v8745 = vmax.f32 %v8697, 0.0
    %v8746 = vmax.f32 %v8698, 0.0
    %v8747 = vmax.f32 %v8699, 0.0
    %v8748 = vmax.f32 %v8700, 0.0
    %v8749 = vmax.f32 %v8701, 0.0
    %v8750 = vmax.f32 %v8702, 0.0
    %v8751 = vmax.f32 %v8703, 0.0
    %v8752 = vmax.f32 %v8704, 0.0
    %v8753 = vmax.f32 %v8705, 0.0
    %v8754 = vmax.f32 %v8706, 0.0
    %v8755 = vmax.f32 %v8707, 0.0
    %v8756 = vmax.f32 %v8708, 0.0
    %v8757 = vmax.f32 %v8709, 0.0
    %v8758 = vmax.f32 %v8710, 0.0
    %v8759 = vmax.f32 %v8711, 0.0
    %v8760 = vmax.f32 %v8712, 0.0
    %v8761 = vmax.f32 %v8713, 0.0
    %v8762 = vmax.f32 %v8714, 0.0
    %v8763 = vmax.f32 %v8715, 0.0
    %v8764 = vmax.f32 %v8716, 0.0
    %v8765 = vmax.f32 %v8717, 0.0
    %v8766 = vmax.f32 %v8718, 0.0
    %v8767 = vmax.f32 %v8719, 0.0
    %v8768 = vmax.f32 %v8720, 0.0
    %v8769 = vmax.f32 %v8721, 0.0
    %v8770 = vmax.f32 %v8722, 0.0
    %v8771 = vmax.f32 %v8723, %v8735
    %v8772 = vmax.f32 %v8724, %v8736
    %v8773 = vmax.f32 %v8725, %v8737
    %v8774 = vmax.f32 %v8726, %v8738
    %v8775 = vmax.f32 %v8727, %v8739
    %v8776 = vmax.f32 %v8728, %v8740
    %v8777 = vmax.f32 %v8729, %v8741
    %v8778 = vmax.f32 %v8730, %v8742
    %v8779 = vmax.f32 %v8731, %v8743
    %v8780 = vmax.f32 %v8732, %v8744
    %v8781 = vmax.f32 %v8733, %v8745
    %v8782 = vmax.f32 %v8734, %v8746
    %v8783 = vmax.f32 %v8747, %v8759
    %v8784 = vmax.f32 %v8748, %v8760
    %v8785 = vmax.f32 %v8749, %v8761
    %v8786 = vmax.f32 %v8750, %v8762
    %v8787 = vmax.f32 %v8751, %v8763
    %v8788 = vmax.f32 %v8752, %v8764
    %v8789 = vmax.f32 %v8753, %v8765
    %v8790 = vmax.f32 %v8754, %v8766
    %v8791 = vmax.f32 %v8755, %v8767
    %v8792 = vmax.f32 %v8756, %v8768
    %v8793 = vmax.f32 %v8757, %v8769
    %v8794 = vmax.f32 %v8758, %v8770
    %v8795 = vmax.f32 %v8771, %v8772
    %v8796 = vmax.f32 %v8773, %v8774
    %v8797 = vmax.f32 %v8775, %v8776
    %v8798 = vmax.f32 %v8777, %v8778
    %v8799 = vmax.f32 %v8779, %v8780
    %v8800 = vmax.f32 %v8781, %v8782
    %v8801 = vmax.f32 %v8783, %v8784
    %v8802 = vmax.f32 %v8785, %v8786
    %v8803 = vmax.f32 %v8787, %v8788
    %v8804 = vmax.f32 %v8789, %v8790
    %v8805 = vmax.f32 %v8791, %v8792
    %v8806 = vmax.f32 %v8793, %v8794
    %8839 = vrot.lane.b32.xlu0 %v2096, 32
    %v8840 = vpop.permute.xlu0 %8839
    %8841 = vrot.lane.b32.xlu0 %v2097, 32
    %v8842 = vpop.permute.xlu0 %8841
    %8843 = vrot.lane.b32.xlu0 %v2098, 32
    %v8844 = vpop.permute.xlu0 %8843
    %8845 = vrot.lane.b32.xlu0 %v2099, 32
    %v8846 = vpop.permute.xlu0 %8845
    %8847 = vrot.lane.b32.xlu0 %v3436, 32
    %v8848 = vpop.permute.xlu0 %8847
    %8849 = vrot.lane.b32.xlu0 %v3437, 32
    %v8850 = vpop.permute.xlu0 %8849
    %8851 = vrot.lane.b32.xlu0 %v3438, 32
    %v8852 = vpop.permute.xlu0 %8851
    %8853 = vrot.lane.b32.xlu0 %v3439, 32
    %v8854 = vpop.permute.xlu0 %8853
    %8855 = vrot.lane.b32.xlu0 %v4776, 32
    %v8856 = vpop.permute.xlu0 %8855
    %8857 = vrot.lane.b32.xlu0 %v4777, 32
    %v8858 = vpop.permute.xlu0 %8857
    %8859 = vrot.lane.b32.xlu0 %v4778, 32
    %v8860 = vpop.permute.xlu0 %8859
    %8861 = vrot.lane.b32.xlu0 %v4779, 32
    %v8862 = vpop.permute.xlu0 %8861
    %8863 = vrot.lane.b32.xlu0 %v6116, 32
    %v8864 = vpop.permute.xlu0 %8863
    %8865 = vrot.lane.b32.xlu0 %v6117, 32
    %v8866 = vpop.permute.xlu0 %8865
    %8867 = vrot.lane.b32.xlu0 %v6118, 32
    %v8868 = vpop.permute.xlu0 %8867
    %8869 = vrot.lane.b32.xlu0 %v6119, 32
    %v8870 = vpop.permute.xlu0 %8869
    %8871 = vrot.lane.b32.xlu0 %v2102, 32
    %v8872 = vpop.permute.xlu0 %8871
    %8873 = vrot.lane.b32.xlu0 %v2103, 32
    %v8874 = vpop.permute.xlu0 %8873
    %8875 = vrot.lane.b32.xlu0 %v2104, 32
    %v8876 = vpop.permute.xlu0 %8875
    %8877 = vrot.lane.b32.xlu0 %v2105, 32
    %v8878 = vpop.permute.xlu0 %8877
    %8879 = vrot.lane.b32.xlu0 %v3442, 32
    %v8880 = vpop.permute.xlu0 %8879
    %8881 = vrot.lane.b32.xlu0 %v3443, 32
    %v8882 = vpop.permute.xlu0 %8881
    %8883 = vrot.lane.b32.xlu0 %v3444, 32
    %v8884 = vpop.permute.xlu0 %8883
    %8885 = vrot.lane.b32.xlu0 %v3445, 32
    %v8886 = vpop.permute.xlu0 %8885
    %8887 = vrot.lane.b32.xlu0 %v4782, 32
    %v8888 = vpop.permute.xlu0 %8887
    %8889 = vrot.lane.b32.xlu0 %v4783, 32
    %v8890 = vpop.permute.xlu0 %8889
    %8891 = vrot.lane.b32.xlu0 %v4784, 32
    %v8892 = vpop.permute.xlu0 %8891
    %8893 = vrot.lane.b32.xlu0 %v4785, 32
    %v8894 = vpop.permute.xlu0 %8893
    %8895 = vrot.lane.b32.xlu0 %v6122, 32
    %v8896 = vpop.permute.xlu0 %8895
    %8897 = vrot.lane.b32.xlu0 %v6123, 32
    %v8898 = vpop.permute.xlu0 %8897
    %8899 = vrot.lane.b32.xlu0 %v6124, 32
    %v8900 = vpop.permute.xlu0 %8899
    %8901 = vrot.lane.b32.xlu0 %v6125, 32
    %v8902 = vpop.permute.xlu0 %8901
    %8943 = vrot.lane.b32.xlu0 %v2097, 64
    %v8944 = vpop.permute.xlu0 %8943
    %8945 = vrot.lane.b32.xlu0 %v2098, 64
    %v8946 = vpop.permute.xlu0 %8945
    %8947 = vrot.lane.b32.xlu0 %v2099, 64
    %v8948 = vpop.permute.xlu0 %8947
    %8949 = vrot.lane.b32.xlu0 %v2100, 64
    %v8950 = vpop.permute.xlu0 %8949
    %8951 = vrot.lane.b32.xlu0 %v3437, 64
    %v8952 = vpop.permute.xlu0 %8951
    %8953 = vrot.lane.b32.xlu0 %v3438, 64
    %v8954 = vpop.permute.xlu0 %8953
    %8955 = vrot.lane.b32.xlu0 %v3439, 64
    %v8956 = vpop.permute.xlu0 %8955
    %8957 = vrot.lane.b32.xlu0 %v3440, 64
    %v8958 = vpop.permute.xlu0 %8957
    %8959 = vrot.lane.b32.xlu0 %v4777, 64
    %v8960 = vpop.permute.xlu0 %8959
    %8961 = vrot.lane.b32.xlu0 %v4778, 64
    %v8962 = vpop.permute.xlu0 %8961
    %8963 = vrot.lane.b32.xlu0 %v4779, 64
    %v8964 = vpop.permute.xlu0 %8963
    %8965 = vrot.lane.b32.xlu0 %v4780, 64
    %v8966 = vpop.permute.xlu0 %8965
    %8967 = vrot.lane.b32.xlu0 %v6117, 64
    %v8968 = vpop.permute.xlu0 %8967
    %8969 = vrot.lane.b32.xlu0 %v6118, 64
    %v8970 = vpop.permute.xlu0 %8969
    %8971 = vrot.lane.b32.xlu0 %v6119, 64
    %v8972 = vpop.permute.xlu0 %8971
    %8973 = vrot.lane.b32.xlu0 %v6120, 64
    %v8974 = vpop.permute.xlu0 %8973
    %8975 = vrot.lane.b32.xlu0 %v2103, 64
    %v8976 = vpop.permute.xlu0 %8975
    %8977 = vrot.lane.b32.xlu0 %v2104, 64
    %v8978 = vpop.permute.xlu0 %8977
    %8979 = vrot.lane.b32.xlu0 %v2105, 64
    %v8980 = vpop.permute.xlu0 %8979
    %8981 = vrot.lane.b32.xlu0 %v2106, 64
    %v8982 = vpop.permute.xlu0 %8981
    %8983 = vrot.lane.b32.xlu0 %v3443, 64
    %v8984 = vpop.permute.xlu0 %8983
    %8985 = vrot.lane.b32.xlu0 %v3444, 64
    %v8986 = vpop.permute.xlu0 %8985
    %8987 = vrot.lane.b32.xlu0 %v3445, 64
    %v8988 = vpop.permute.xlu0 %8987
    %8989 = vrot.lane.b32.xlu0 %v3446, 64
    %v8990 = vpop.permute.xlu0 %8989
    %8991 = vrot.lane.b32.xlu0 %v4783, 64
    %v8992 = vpop.permute.xlu0 %8991
    %8993 = vrot.lane.b32.xlu0 %v4784, 64
    %v8994 = vpop.permute.xlu0 %8993
    %8995 = vrot.lane.b32.xlu0 %v4785, 64
    %v8996 = vpop.permute.xlu0 %8995
    %8997 = vrot.lane.b32.xlu0 %v4786, 64
    %v8998 = vpop.permute.xlu0 %8997
    %8999 = vrot.lane.b32.xlu0 %v6123, 64
    %v9000 = vpop.permute.xlu0 %8999
    %9001 = vrot.lane.b32.xlu0 %v6124, 64
    %v9002 = vpop.permute.xlu0 %9001
    %9003 = vrot.lane.b32.xlu0 %v6125, 64
    %v9004 = vpop.permute.xlu0 %9003
    %9005 = vrot.lane.b32.xlu0 %v6126, 64
    %v9006 = vpop.permute.xlu0 %9005
    %9053 = vrot.lane.b32.xlu0 %v3435, 96
    %v9054 = vpop.permute.xlu0 %9053
    %9055 = vrot.lane.b32.xlu0 %v3436, 96
    %v9056 = vpop.permute.xlu0 %9055
    %9057 = vrot.lane.b32.xlu0 %v3437, 96
    %v9058 = vpop.permute.xlu0 %9057
    %9059 = vrot.lane.b32.xlu0 %v3438, 96
    %v9060 = vpop.permute.xlu0 %9059
    %9061 = vrot.lane.b32.xlu0 %v4775, 96
    %v9062 = vpop.permute.xlu0 %9061
    %9063 = vrot.lane.b32.xlu0 %v4776, 96
    %v9064 = vpop.permute.xlu0 %9063
    %9065 = vrot.lane.b32.xlu0 %v4777, 96
    %v9066 = vpop.permute.xlu0 %9065
    %9067 = vrot.lane.b32.xlu0 %v4778, 96
    %v9068 = vpop.permute.xlu0 %9067
    %9069 = vrot.lane.b32.xlu0 %v6115, 96
    %v9070 = vpop.permute.xlu0 %9069
    %9071 = vrot.lane.b32.xlu0 %v6116, 96
    %v9072 = vpop.permute.xlu0 %9071
    %9073 = vrot.lane.b32.xlu0 %v6117, 96
    %v9074 = vpop.permute.xlu0 %9073
    %9075 = vrot.lane.b32.xlu0 %v6118, 96
    %v9076 = vpop.permute.xlu0 %9075
    %9077 = vrot.lane.b32.xlu0 %v7455, 96
    %v9078 = vpop.permute.xlu0 %9077
    %9079 = vrot.lane.b32.xlu0 %v7456, 96
    %v9080 = vpop.permute.xlu0 %9079
    %9081 = vrot.lane.b32.xlu0 %v7457, 96
    %v9082 = vpop.permute.xlu0 %9081
    %9083 = vrot.lane.b32.xlu0 %v7458, 96
    %v9084 = vpop.permute.xlu0 %9083
    %9085 = vrot.lane.b32.xlu0 %v3441, 96
    %v9086 = vpop.permute.xlu0 %9085
    %9087 = vrot.lane.b32.xlu0 %v3442, 96
    %v9088 = vpop.permute.xlu0 %9087
    %9089 = vrot.lane.b32.xlu0 %v3443, 96
    %v9090 = vpop.permute.xlu0 %9089
    %9091 = vrot.lane.b32.xlu0 %v3444, 96
    %v9092 = vpop.permute.xlu0 %9091
    %9093 = vrot.lane.b32.xlu0 %v4781, 96
    %v9094 = vpop.permute.xlu0 %9093
    %9095 = vrot.lane.b32.xlu0 %v4782, 96
    %v9096 = vpop.permute.xlu0 %9095
    %9097 = vrot.lane.b32.xlu0 %v4783, 96
    %v9098 = vpop.permute.xlu0 %9097
    %9099 = vrot.lane.b32.xlu0 %v4784, 96
    %v9100 = vpop.permute.xlu0 %9099
    %9101 = vrot.lane.b32.xlu0 %v6121, 96
    %v9102 = vpop.permute.xlu0 %9101
    %9103 = vrot.lane.b32.xlu0 %v6122, 96
    %v9104 = vpop.permute.xlu0 %9103
    %9105 = vrot.lane.b32.xlu0 %v6123, 96
    %v9106 = vpop.permute.xlu0 %9105
    %9107 = vrot.lane.b32.xlu0 %v6124, 96
    %v9108 = vpop.permute.xlu0 %9107
    %9109 = vrot.lane.b32.xlu0 %v7461, 96
    %v9110 = vpop.permute.xlu0 %9109
    %9111 = vrot.lane.b32.xlu0 %v7462, 96
    %v9112 = vpop.permute.xlu0 %9111
    %9113 = vrot.lane.b32.xlu0 %v7463, 96
    %v9114 = vpop.permute.xlu0 %9113
    %9115 = vrot.lane.b32.xlu0 %v7464, 96
    %v9116 = vpop.permute.xlu0 %9115
    %9153 = vrot.lane.b32.xlu0 %v3440, 32
    %v9154 = vpop.permute.xlu0 %9153
    %9155 = vrot.lane.b32.xlu0 %v4780, 32
    %v9156 = vpop.permute.xlu0 %9155
    %9157 = vrot.lane.b32.xlu0 %v6120, 32
    %v9158 = vpop.permute.xlu0 %9157
    %9159 = vrot.lane.b32.xlu0 %v7457, 32
    %v9160 = vpop.permute.xlu0 %9159
    %9161 = vrot.lane.b32.xlu0 %v7458, 32
    %v9162 = vpop.permute.xlu0 %9161
    %9163 = vrot.lane.b32.xlu0 %v7459, 32
    %v9164 = vpop.permute.xlu0 %9163
    %9165 = vrot.lane.b32.xlu0 %v7460, 32
    %v9166 = vpop.permute.xlu0 %9165
    %9167 = vrot.lane.b32.xlu0 %v3446, 32
    %v9168 = vpop.permute.xlu0 %9167
    %9169 = vrot.lane.b32.xlu0 %v4786, 32
    %v9170 = vpop.permute.xlu0 %9169
    %9171 = vrot.lane.b32.xlu0 %v6126, 32
    %v9172 = vpop.permute.xlu0 %9171
    %9173 = vrot.lane.b32.xlu0 %v7463, 32
    %v9174 = vpop.permute.xlu0 %9173
    %9175 = vrot.lane.b32.xlu0 %v7464, 32
    %v9176 = vpop.permute.xlu0 %9175
    %9177 = vrot.lane.b32.xlu0 %v7465, 32
    %v9178 = vpop.permute.xlu0 %9177
    %9179 = vrot.lane.b32.xlu0 %v7466, 32
    %v9180 = vpop.permute.xlu0 %9179
    %9203 = vrot.lane.b32.xlu0 %v4775, 64
    %v9204 = vpop.permute.xlu0 %9203
    %9205 = vrot.lane.b32.xlu0 %v4776, 64
    %v9206 = vpop.permute.xlu0 %9205
    %9207 = vrot.lane.b32.xlu0 %v6115, 64
    %v9208 = vpop.permute.xlu0 %9207
    %9209 = vrot.lane.b32.xlu0 %v6116, 64
    %v9210 = vpop.permute.xlu0 %9209
    %9211 = vrot.lane.b32.xlu0 %v7455, 64
    %v9212 = vpop.permute.xlu0 %9211
    %9213 = vrot.lane.b32.xlu0 %v7456, 64
    %v9214 = vpop.permute.xlu0 %9213
    %9215 = vrot.lane.b32.xlu0 %v7457, 64
    %v9216 = vpop.permute.xlu0 %9215
    %9217 = vrot.lane.b32.xlu0 %v7458, 64
    %v9218 = vpop.permute.xlu0 %9217
    %9219 = vrot.lane.b32.xlu0 %v8795, 64
    %v9220 = vpop.permute.xlu0 %9219
    %9221 = vrot.lane.b32.xlu0 %v8796, 64
    %v9222 = vpop.permute.xlu0 %9221
    %9223 = vrot.lane.b32.xlu0 %v8797, 64
    %v9224 = vpop.permute.xlu0 %9223
    %9225 = vrot.lane.b32.xlu0 %v8798, 64
    %v9226 = vpop.permute.xlu0 %9225
    %9227 = vrot.lane.b32.xlu0 %v4781, 64
    %v9228 = vpop.permute.xlu0 %9227
    %9229 = vrot.lane.b32.xlu0 %v4782, 64
    %v9230 = vpop.permute.xlu0 %9229
    %9231 = vrot.lane.b32.xlu0 %v6121, 64
    %v9232 = vpop.permute.xlu0 %9231
    %9233 = vrot.lane.b32.xlu0 %v6122, 64
    %v9234 = vpop.permute.xlu0 %9233
    %9235 = vrot.lane.b32.xlu0 %v7461, 64
    %v9236 = vpop.permute.xlu0 %9235
    %9237 = vrot.lane.b32.xlu0 %v7462, 64
    %v9238 = vpop.permute.xlu0 %9237
    %9239 = vrot.lane.b32.xlu0 %v7463, 64
    %v9240 = vpop.permute.xlu0 %9239
    %9241 = vrot.lane.b32.xlu0 %v7464, 64
    %v9242 = vpop.permute.xlu0 %9241
    %9243 = vrot.lane.b32.xlu0 %v8801, 64
    %v9244 = vpop.permute.xlu0 %9243
    %9245 = vrot.lane.b32.xlu0 %v8802, 64
    %v9246 = vpop.permute.xlu0 %9245
    %9247 = vrot.lane.b32.xlu0 %v8803, 64
    %v9248 = vpop.permute.xlu0 %9247
    %9249 = vrot.lane.b32.xlu0 %v8804, 64
    %v9250 = vpop.permute.xlu0 %9249
    %9277 = vrot.lane.b32.xlu0 %v4779, 96
    %v9278 = vpop.permute.xlu0 %9277
    %9279 = vrot.lane.b32.xlu0 %v6119, 96
    %v9280 = vpop.permute.xlu0 %9279
    %9281 = vrot.lane.b32.xlu0 %v7459, 96
    %v9282 = vpop.permute.xlu0 %9281
    %9283 = vrot.lane.b32.xlu0 %v8796, 96
    %v9284 = vpop.permute.xlu0 %9283
    %9285 = vrot.lane.b32.xlu0 %v8797, 96
    %v9286 = vpop.permute.xlu0 %9285
    %9287 = vrot.lane.b32.xlu0 %v8798, 96
    %v9288 = vpop.permute.xlu0 %9287
    %9289 = vrot.lane.b32.xlu0 %v8799, 96
    %v9290 = vpop.permute.xlu0 %9289
    %9291 = vrot.lane.b32.xlu0 %v4785, 96
    %v9292 = vpop.permute.xlu0 %9291
    %9293 = vrot.lane.b32.xlu0 %v6125, 96
    %v9294 = vpop.permute.xlu0 %9293
    %9295 = vrot.lane.b32.xlu0 %v7465, 96
    %v9296 = vpop.permute.xlu0 %9295
    %9297 = vrot.lane.b32.xlu0 %v8802, 96
    %v9298 = vpop.permute.xlu0 %9297
    %9299 = vrot.lane.b32.xlu0 %v8803, 96
    %v9300 = vpop.permute.xlu0 %9299
    %9301 = vrot.lane.b32.xlu0 %v8804, 96
    %v9302 = vpop.permute.xlu0 %9301
    %9303 = vrot.lane.b32.xlu0 %v8805, 96
    %v9304 = vpop.permute.xlu0 %9303
    %vm9319 = vcmask 261120
    %v9320 = vsel %vm9319, %v2095, %v8840
    %v9321 = vsel %vm9319, %v2096, %v8842
    %v9322 = vsel %vm9319, %v2097, %v8844
    %v9323 = vsel %vm9319, %v2098, %v8846
    %v9324 = vsel %vm9319, %v3435, %v8848
    %v9325 = vsel %vm9319, %v3436, %v8850
    %v9326 = vsel %vm9319, %v3437, %v8852
    %v9327 = vsel %vm9319, %v3438, %v8854
    %v9328 = vsel %vm9319, %v4775, %v8856
    %v9329 = vsel %vm9319, %v4776, %v8858
    %v9330 = vsel %vm9319, %v4777, %v8860
    %v9331 = vsel %vm9319, %v4778, %v8862
    %v9332 = vsel %vm9319, %v6115, %v8864
    %v9333 = vsel %vm9319, %v6116, %v8866
    %v9334 = vsel %vm9319, %v6117, %v8868
    %v9335 = vsel %vm9319, %v6118, %v8870
    %v9336 = vsel %vm9319, %v2101, %v8872
    %v9337 = vsel %vm9319, %v2102, %v8874
    %v9338 = vsel %vm9319, %v2103, %v8876
    %v9339 = vsel %vm9319, %v2104, %v8878
    %v9340 = vsel %vm9319, %v3441, %v8880
    %v9341 = vsel %vm9319, %v3442, %v8882
    %v9342 = vsel %vm9319, %v3443, %v8884
    %v9343 = vsel %vm9319, %v3444, %v8886
    %v9344 = vsel %vm9319, %v4781, %v8888
    %v9345 = vsel %vm9319, %v4782, %v8890
    %v9346 = vsel %vm9319, %v4783, %v8892
    %v9347 = vsel %vm9319, %v4784, %v8894
    %v9348 = vsel %vm9319, %v6121, %v8896
    %v9349 = vsel %vm9319, %v6122, %v8898
    %v9350 = vsel %vm9319, %v6123, %v8900
    %v9351 = vsel %vm9319, %v6124, %v8902
    %vm9352 = vcmask 523264
    %v9353 = vsel %vm9352, %v9320, %v8944
    %v9354 = vsel %vm9352, %v9321, %v8946
    %v9355 = vsel %vm9352, %v9322, %v8948
    %v9356 = vsel %vm9352, %v9323, %v8950
    %v9357 = vsel %vm9352, %v9324, %v8952
    %v9358 = vsel %vm9352, %v9325, %v8954
    %v9359 = vsel %vm9352, %v9326, %v8956
    %v9360 = vsel %vm9352, %v9327, %v8958
    %v9361 = vsel %vm9352, %v9328, %v8960
    %v9362 = vsel %vm9352, %v9329, %v8962
    %v9363 = vsel %vm9352, %v9330, %v8964
    %v9364 = vsel %vm9352, %v9331, %v8966
    %v9365 = vsel %vm9352, %v9332, %v8968
    %v9366 = vsel %vm9352, %v9333, %v8970
    %v9367 = vsel %vm9352, %v9334, %v8972
    %v9368 = vsel %vm9352, %v9335, %v8974
    %v9369 = vsel %vm9352, %v9336, %v8976
    %v9370 = vsel %vm9352, %v9337, %v8978
    %v9371 = vsel %vm9352, %v9338, %v8980
    %v9372 = vsel %vm9352, %v9339, %v8982
    %v9373 = vsel %vm9352, %v9340, %v8984
    %v9374 = vsel %vm9352, %v9341, %v8986
    %v9375 = vsel %vm9352, %v9342, %v8988
    %v9376 = vsel %vm9352, %v9343, %v8990
    %v9377 = vsel %vm9352, %v9344, %v8992
    %v9378 = vsel %vm9352, %v9345, %v8994
    %v9379 = vsel %vm9352, %v9346, %v8996
    %v9380 = vsel %vm9352, %v9347, %v8998
    %v9381 = vsel %vm9352, %v9348, %v9000
    %v9382 = vsel %vm9352, %v9349, %v9002
    %v9383 = vsel %vm9352, %v9350, %v9004
    %v9384 = vsel %vm9352, %v9351, %v9006
    %vm9385 = vcmask 785408
    %v9386 = vsel %vm9385, %v9353, %v9054
    %v9387 = vsel %vm9385, %v9354, %v9056
    %v9388 = vsel %vm9385, %v9355, %v9058
    %v9389 = vsel %vm9385, %v9356, %v9060
    %v9390 = vsel %vm9385, %v9357, %v9062
    %v9391 = vsel %vm9385, %v9358, %v9064
    %v9392 = vsel %vm9385, %v9359, %v9066
    %v9393 = vsel %vm9385, %v9360, %v9068
    %v9394 = vsel %vm9385, %v9361, %v9070
    %v9395 = vsel %vm9385, %v9362, %v9072
    %v9396 = vsel %vm9385, %v9363, %v9074
    %v9397 = vsel %vm9385, %v9364, %v9076
    %v9398 = vsel %vm9385, %v9365, %v9078
    %v9399 = vsel %vm9385, %v9366, %v9080
    %v9400 = vsel %vm9385, %v9367, %v9082
    %v9401 = vsel %vm9385, %v9368, %v9084
    %v9402 = vsel %vm9385, %v9369, %v9086
    %v9403 = vsel %vm9385, %v9370, %v9088
    %v9404 = vsel %vm9385, %v9371, %v9090
    %v9405 = vsel %vm9385, %v9372, %v9092
    %v9406 = vsel %vm9385, %v9373, %v9094
    %v9407 = vsel %vm9385, %v9374, %v9096
    %v9408 = vsel %vm9385, %v9375, %v9098
    %v9409 = vsel %vm9385, %v9376, %v9100
    %v9410 = vsel %vm9385, %v9377, %v9102
    %v9411 = vsel %vm9385, %v9378, %v9104
    %v9412 = vsel %vm9385, %v9379, %v9106
    %v9413 = vsel %vm9385, %v9380, %v9108
    %v9414 = vsel %vm9385, %v9381, %v9110
    %v9415 = vsel %vm9385, %v9382, %v9112
    %v9416 = vsel %vm9385, %v9383, %v9114
    %v9417 = vsel %vm9385, %v9384, %v9116
    %v9418 = vsel %vm9319, %v3439, %v9154
    %v9419 = vsel %vm9319, %v4779, %v9156
    %v9420 = vsel %vm9319, %v6119, %v9158
    %v9421 = vsel %vm9319, %v7456, %v9160
    %v9422 = vsel %vm9319, %v7457, %v9162
    %v9423 = vsel %vm9319, %v7458, %v9164
    %v9424 = vsel %vm9319, %v7459, %v9166
    %v9425 = vsel %vm9319, %v3445, %v9168
    %v9426 = vsel %vm9319, %v4785, %v9170
    %v9427 = vsel %vm9319, %v6125, %v9172
    %v9428 = vsel %vm9319, %v7462, %v9174
    %v9429 = vsel %vm9319, %v7463, %v9176
    %v9430 = vsel %vm9319, %v7464, %v9178
    %v9431 = vsel %vm9319, %v7465, %v9180
    %v9432 = vsel %vm9352, %v9325, %v9204
    %v9433 = vsel %vm9352, %v9326, %v9206
    %v9434 = vsel %vm9352, %v9327, %v8960
    %v9435 = vsel %vm9352, %v9418, %v8962
    %v9436 = vsel %vm9352, %v9329, %v9208
    %v9437 = vsel %vm9352, %v9330, %v9210
    %v9438 = vsel %vm9352, %v9331, %v8968
    %v9439 = vsel %vm9352, %v9419, %v8970
    %v9440 = vsel %vm9352, %v9333, %v9212
    %v9441 = vsel %vm9352, %v9334, %v9214
    %v9442 = vsel %vm9352, %v9335, %v9216
    %v9443 = vsel %vm9352, %v9420, %v9218
    %v9444 = vsel %vm9352, %v9421, %v9220
    %v9445 = vsel %vm9352, %v9422, %v9222
    %v9446 = vsel %vm9352, %v9423, %v9224
    %v9447 = vsel %vm9352, %v9424, %v9226
    %v9448 = vsel %vm9352, %v9341, %v9228
    %v9449 = vsel %vm9352, %v9342, %v9230
    %v9450 = vsel %vm9352, %v9343, %v8992
    %v9451 = vsel %vm9352, %v9425, %v8994
    %v9452 = vsel %vm9352, %v9345, %v9232
    %v9453 = vsel %vm9352, %v9346, %v9234
    %v9454 = vsel %vm9352, %v9347, %v9000
    %v9455 = vsel %vm9352, %v9426, %v9002
    %v9456 = vsel %vm9352, %v9349, %v9236
    %v9457 = vsel %vm9352, %v9350, %v9238
    %v9458 = vsel %vm9352, %v9351, %v9240
    %v9459 = vsel %vm9352, %v9427, %v9242
    %v9460 = vsel %vm9352, %v9428, %v9244
    %v9461 = vsel %vm9352, %v9429, %v9246
    %v9462 = vsel %vm9352, %v9430, %v9248
    %v9463 = vsel %vm9352, %v9431, %v9250
    %v9464 = vsel %vm9385, %v9432, %v9064
    %v9465 = vsel %vm9385, %v9433, %v9066
    %v9466 = vsel %vm9385, %v9434, %v9068
    %v9467 = vsel %vm9385, %v9435, %v9278
    %v9468 = vsel %vm9385, %v9436, %v9072
    %v9469 = vsel %vm9385, %v9437, %v9074
    %v9470 = vsel %vm9385, %v9438, %v9076
    %v9471 = vsel %vm9385, %v9439, %v9280
    %v9472 = vsel %vm9385, %v9440, %v9080
    %v9473 = vsel %vm9385, %v9441, %v9082
    %v9474 = vsel %vm9385, %v9442, %v9084
    %v9475 = vsel %vm9385, %v9443, %v9282
    %v9476 = vsel %vm9385, %v9444, %v9284
    %v9477 = vsel %vm9385, %v9445, %v9286
    %v9478 = vsel %vm9385, %v9446, %v9288
    %v9479 = vsel %vm9385, %v9447, %v9290
    %v9480 = vsel %vm9385, %v9448, %v9096
    %v9481 = vsel %vm9385, %v9449, %v9098
    %v9482 = vsel %vm9385, %v9450, %v9100
    %v9483 = vsel %vm9385, %v9451, %v9292
    %v9484 = vsel %vm9385, %v9452, %v9104
    %v9485 = vsel %vm9385, %v9453, %v9106
    %v9486 = vsel %vm9385, %v9454, %v9108
    %v9487 = vsel %vm9385, %v9455, %v9294
    %v9488 = vsel %vm9385, %v9456, %v9112
    %v9489 = vsel %vm9385, %v9457, %v9114
    %v9490 = vsel %vm9385, %v9458, %v9116
    %v9491 = vsel %vm9385, %v9459, %v9296
    %v9492 = vsel %vm9385, %v9460, %v9298
    %v9493 = vsel %vm9385, %v9461, %v9300
    %v9494 = vsel %vm9385, %v9462, %v9302
    %v9495 = vsel %vm9385, %v9463, %v9304
    %v9496 = vld [vmem:[#allocation8] sm:$0xff]
    %v9497 = vld [vmem:[#allocation8 + $0x8] sm:$0xff]
    %v9498 = vld [vmem:[#allocation8 + $0x10] sm:$0xff]
    %v9499 = vld [vmem:[#allocation8 + $0x18] sm:$0xff]
    %v9500 = vld [vmem:[#allocation8 + $0x20] sm:$0xff]
    %v9501 = vld [vmem:[#allocation8 + $0x28] sm:$0xff]
    %v9502 = vld [vmem:[#allocation8 + $0x30] sm:$0xff]
    %v9503 = vld [vmem:[#allocation8 + $0x38] sm:$0xff]
    %v9504 = vld [vmem:[#allocation8 + $0x40] sm:$0xff]
    %v9505 = vld [vmem:[#allocation8 + $0x48] sm:$0xff]
    %v9506 = vld [vmem:[#allocation8 + $0x50] sm:$0xff]
    %v9507 = vld [vmem:[#allocation8 + $0x58] sm:$0xff]
    %v9508 = vld [vmem:[#allocation8 + $0x60] sm:$0xff]
    %v9509 = vld [vmem:[#allocation8 + $0x68] sm:$0xff]
    %v9510 = vld [vmem:[#allocation8 + $0x70] sm:$0xff]
    %v9511 = vld [vmem:[#allocation8 + $0x78] sm:$0xff]
    %v9512 = vld [vmem:[#allocation8 + $0x80] sm:$0xff]
    %v9513 = vld [vmem:[#allocation8 + $0x88] sm:$0xff]
    %v9514 = vld [vmem:[#allocation8 + $0x90] sm:$0xff]
    %v9515 = vld [vmem:[#allocation8 + $0x98] sm:$0xff]
    %v9516 = vld [vmem:[#allocation8 + $0xa0] sm:$0xff]
    %v9517 = vld [vmem:[#allocation8 + $0xa8] sm:$0xff]
    %v9518 = vld [vmem:[#allocation8 + $0xb0] sm:$0xff]
    %v9519 = vld [vmem:[#allocation8 + $0xb8] sm:$0xff]
    %v9520 = vld [vmem:[#allocation8 + $0xc0] sm:$0xff]
    %v9521 = vld [vmem:[#allocation8 + $0xc8] sm:$0xff]
    %v9522 = vld [vmem:[#allocation8 + $0xd0] sm:$0xff]
    %v9523 = vld [vmem:[#allocation8 + $0xd8] sm:$0xff]
    %v9524 = vld [vmem:[#allocation8 + $0xe0] sm:$0xff]
    %v9525 = vld [vmem:[#allocation8 + $0xe8] sm:$0xff]
    %v9526 = vld [vmem:[#allocation8 + $0xf0] sm:$0xff]
    %v9527 = vld [vmem:[#allocation8 + $0xf8] sm:$0xff]
    %v9528 = vld [vmem:[#allocation8 + $0x100] sm:$0xff]
    %v9529 = vld [vmem:[#allocation8 + $0x108] sm:$0xff]
    %v9530 = vld [vmem:[#allocation8 + $0x110] sm:$0xff]
    %v9531 = vld [vmem:[#allocation8 + $0x118] sm:$0xff]
    %v9532 = vld [vmem:[#allocation11] sm:$0xff]
    %v9533 = vld [vmem:[#allocation11 + $0x8] sm:$0xff]
    %v9534 = vld [vmem:[#allocation11 + $0x10] sm:$0xff]
    %v9535 = vld [vmem:[#allocation11 + $0x18] sm:$0xff]
    %v9536 = vld [vmem:[#allocation11 + $0x20] sm:$0xff]
    %v9537 = vld [vmem:[#allocation11 + $0x28] sm:$0xff]
    %v9538 = vld [vmem:[#allocation11 + $0x30] sm:$0xff]
    %v9539 = vld [vmem:[#allocation11 + $0x38] sm:$0xff]
    %v9540 = vld [vmem:[#allocation11 + $0x40] sm:$0xff]
    %v9541 = vld [vmem:[#allocation11 + $0x48] sm:$0xff]
    %v9542 = vld [vmem:[#allocation11 + $0x50] sm:$0xff]
    %v9543 = vld [vmem:[#allocation11 + $0x58] sm:$0xff]
    %v9544 = vld [vmem:[#allocation11 + $0x60] sm:$0xff]
    %v9545 = vld [vmem:[#allocation11 + $0x68] sm:$0xff]
    %v9546 = vld [vmem:[#allocation11 + $0x70] sm:$0xff]
    %v9547 = vld [vmem:[#allocation11 + $0x78] sm:$0xff]
    %v9548 = vld [vmem:[#allocation11 + $0x80] sm:$0xff]
    %v9549 = vld [vmem:[#allocation11 + $0x88] sm:$0xff]
    %v9550 = vld [vmem:[#allocation11 + $0x90] sm:$0xff]
    %v9551 = vld [vmem:[#allocation11 + $0x98] sm:$0xff]
    %v9552 = vld [vmem:[#allocation11 + $0xa0] sm:$0xff]
    %v9553 = vld [vmem:[#allocation11 + $0xa8] sm:$0xff]
    %v9554 = vld [vmem:[#allocation11 + $0xb0] sm:$0xff]
    %v9555 = vld [vmem:[#allocation11 + $0xb8] sm:$0xff]
    %v9556 = vld [vmem:[#allocation11 + $0xc0] sm:$0xff]
    %v9557 = vld [vmem:[#allocation11 + $0xc8] sm:$0xff]
    %v9558 = vld [vmem:[#allocation11 + $0xd0] sm:$0xff]
    %v9559 = vld [vmem:[#allocation11 + $0xd8] sm:$0xff]
    %v9560 = vld [vmem:[#allocation11 + $0xe0] sm:$0xff]
    %v9561 = vld [vmem:[#allocation11 + $0xe8] sm:$0xff]
    %v9562 = vld [vmem:[#allocation11 + $0xf0] sm:$0xff]
    %v9563 = vld [vmem:[#allocation11 + $0xf8] sm:$0xff]
    %v9564 = vld [vmem:[#allocation11 + $0x100] sm:$0xff]
    %v9565 = vld [vmem:[#allocation11 + $0x108] sm:$0xff]
    %v9566 = vld [vmem:[#allocation11 + $0x110] sm:$0xff]
    %v9567 = vld [vmem:[#allocation11 + $0x118] sm:$0xff]
    %v9568 = vld [vmem:[#allocation10] sm:$0x1]
    %v9570 = vlaneseq
    %v9571 = vshrl.u32 %v9570, 7
    %v9572 = vsub.s32 0, %v9571
    %v9573 = vrot.slane %v9568, %v9572
    %v9575 = vsel %vm9319, %v4777, 0
    %v9577 = vsel %vm9319, %v4778, 0
    %v9579 = vsel %vm9319, %v4779, 0
    %v9581 = vsel %vm9319, %v4780, 0
    %v9583 = vsel %vm9319, %v6117, 0
    %v9585 = vsel %vm9319, %v6118, 0
    %v9587 = vsel %vm9319, %v6119, 0
    %v9589 = vsel %vm9319, %v6120, 0
    %v9591 = vsel %vm9319, %v7457, 0
    %v9593 = vsel %vm9319, %v7458, 0
    %v9595 = vsel %vm9319, %v7459, 0
    %v9597 = vsel %vm9319, %v7460, 0
    %v9599 = vsel %vm9319, %v8797, 0
    %v9601 = vsel %vm9319, %v8798, 0
    %v9603 = vsel %vm9319, %v8799, 0
    %v9606 = vsel %vm9319, %v8800, 0
    %9608 = vmatprep.subr.mxu0 0.0
    %9609 = vmatpush1.msra.mxu0 %v9496
    %9610 = vmatprep.subr.mxu0 0.0
    %9611 = vmatpush1.msra.mxu0 %v9497
    %9612 = vmatprep.subr.mxu0 0.0
    %9613 = vmatpush1.msra.mxu0 %v9498
    %9614 = vmatprep.subr.mxu0 0.0
    %9615 = vmatpush1.msra.mxu0 %v9499
    %9616 = vmatprep.subr.mxu0 0.0
    %9617 = vmatpush1.msra.mxu0 %v9500
    %9618 = vmatprep.subr.mxu0 0.0
    %9619 = vmatpush1.msra.mxu0 %v9501
    %9620 = vmatprep.subr.mxu0 0.0
    %9621 = vmatpush1.msra.mxu0 %v9502
    %9622 = vmatprep.subr.mxu0 0.0
    %9623 = vmatpush1.msra.mxu0 %v9503
    %9624 = vmatprep.subr.mxu0 0.0
    %9625 = vmatpush1.msra.mxu0 %v9504
    %9626 = vmatprep.subr.mxu0 0.0
    %9627 = vmatpush1.msra.mxu0 %v9505
    %9628 = vmatprep.subr.mxu0 0.0
    %9629 = vmatpush1.msra.mxu0 %v9506
    %9630 = vmatprep.subr.mxu0 0.0
    %9631 = vmatpush1.msra.mxu0 %v9507
    %9632 = vmatprep.subr.mxu0 0.0
    %9633 = vmatpush1.msra.mxu0 %v9508
    %9634 = vmatprep.subr.mxu0 0.0
    %9635 = vmatpush1.msra.mxu0 %v9509
    %9636 = vmatprep.subr.mxu0 0.0
    %9637 = vmatpush1.msra.mxu0 %v9510
    %9638 = vmatprep.subr.mxu0 0.0
    %9639 = vmatpush1.msra.mxu0 %v9511
    %9640 = vmatprep.subr.mxu0 0.0
    %9641 = vmatpush1.msra.mxu0 %v9512
    %9642 = vmatprep.subr.mxu0 0.0
    %9643 = vmatpush1.msra.mxu0 %v9513
    %9644 = vmatprep.subr.mxu0 0.0
    %9645 = vmatpush1.msra.mxu0 %v9514
    %9646 = vmatprep.subr.mxu0 0.0
    %9647 = vmatpush1.msra.mxu0 %v9515
    %9648 = vmatprep.subr.mxu0 0.0
    %9649 = vmatpush1.msra.mxu0 %v9516
    %9650 = vmatprep.subr.mxu0 0.0
    %9651 = vmatpush1.msra.mxu0 %v9517
    %9652 = vmatprep.subr.mxu0 0.0
    %9653 = vmatpush1.msra.mxu0 %v9518
    %9654 = vmatprep.subr.mxu0 0.0
    %9655 = vmatpush1.msra.mxu0 %v9519
    %9656 = vmatprep.subr.mxu0 0.0
    %9657 = vmatpush1.msra.mxu0 %v9520
    %9658 = vmatprep.subr.mxu0 0.0
    %9659 = vmatpush1.msra.mxu0 %v9521
    %9660 = vmatprep.subr.mxu0 0.0
    %9661 = vmatpush1.msra.mxu0 %v9522
    %9662 = vmatprep.subr.mxu0 0.0
    %9663 = vmatpush1.msra.mxu0 %v9523
    %9664 = vmatprep.subr.mxu0 0.0
    %9665 = vmatpush1.msra.mxu0 %v9524
    %9666 = vmatprep.subr.mxu0 0.0
    %9667 = vmatpush1.msra.mxu0 %v9525
    %9668 = vmatprep.subr.mxu0 0.0
    %9669 = vmatpush1.msra.mxu0 %v9526
    %9670 = vmatprep.subr.mxu0 0.0
    %9671 = vmatpush1.msra.mxu0 %v9527
    %9672 = vmatprep.mubr.f32.mxu0 %v9464
    %9673 = vmatmul.mubr.f32.gmra.mrb[0].mxu0 %v9386
    %v9674 = vpop.f32.mrb[0].mxu0
    %v9675 = vadd.f32 %v9573, %v9674
    %v9676 = vpop.f32.mrb[0].mxu0
    %9677 = vmatprep.mubr.f32.mxu0 %v9465
    %9678 = vmatmul.mubr.f32.gmra.mrb[0].mxu0 %v9387
    %v9679 = vpop.f32.mrb[0].mxu0
    %v9680 = vadd.f32 %v9573, %v9679
    %v9681 = vpop.f32.mrb[0].mxu0
    %9682 = vmatprep.mubr.f32.mxu0 %v9466
    %9683 = vmatmul.mubr.f32.gmra.mrb[0].mxu0 %v9388
    %v9684 = vpop.f32.mrb[0].mxu0
    %v9685 = vadd.f32 %v9573, %v9684
    %v9686 = vpop.f32.mrb[0].mxu0
    %9687 = vmatprep.mubr.f32.mxu0 %v9467
    %9688 = vmatmul.mubr.f32.gmra.mrb[0].mxu0 %v9389
    %v9689 = vpop.f32.mrb[0].mxu0
    %v9690 = vadd.f32 %v9573, %v9689
    %v9691 = vpop.f32.mrb[0].mxu0
    %9692 = vmatprep.mubr.f32.mxu0 %v9468
    %9693 = vmatmul.mubr.f32.gmra.mrb[0].mxu0 %v9390
    %v9694 = vpop.f32.mrb[0].mxu0
    %v9695 = vadd.f32 %v9573, %v9694
    %v9696 = vpop.f32.mrb[0].mxu0
    %9697 = vmatprep.mubr.f32.mxu0 %v9469
    %9698 = vmatmul.mubr.f32.gmra.mrb[0].mxu0 %v9391
    %v9699 = vpop.f32.mrb[0].mxu0
    %v9700 = vadd.f32 %v9573, %v9699
    %v9701 = vpop.f32.mrb[0].mxu0
    %9702 = vmatprep.mubr.f32.mxu0 %v9470
    %9703 = vmatmul.mubr.f32.gmra.mrb[0].mxu0 %v9392
    %v9704 = vpop.f32.mrb[0].mxu0
    %v9705 = vadd.f32 %v9573, %v9704
    %v9706 = vpop.f32.mrb[0].mxu0
    %9707 = vmatprep.mubr.f32.mxu0 %v9471
    %9708 = vmatmul.mubr.f32.gmra.mrb[0].mxu0 %v9393
    %v9709 = vpop.f32.mrb[0].mxu0
    %v9710 = vadd.f32 %v9573, %v9709
    %v9711 = vpop.f32.mrb[0].mxu0
    %9712 = vmatprep.mubr.f32.mxu0 %v9472
    %9713 = vmatmul.mubr.f32.gmra.mrb[0].mxu0 %v9394
    %v9714 = vpop.f32.mrb[0].mxu0
    %v9715 = vadd.f32 %v9573, %v9714
    %v9716 = vpop.f32.mrb[0].mxu0
    %9717 = vmatprep.mubr.f32.mxu0 %v9473
    %9718 = vmatmul.mubr.f32.gmra.mrb[0].mxu0 %v9395
    %v9719 = vpop.f32.mrb[0].mxu0
    %v9720 = vadd.f32 %v9573, %v9719
    %v9721 = vpop.f32.mrb[0].mxu0
    %9722 = vmatprep.mubr.f32.mxu0 %v9474
    %9723 = vmatmul.mubr.f32.gmra.mrb[0].mxu0 %v9396
    %v9724 = vpop.f32.mrb[0].mxu0
    %v9725 = vadd.f32 %v9573, %v9724
    %v9726 = vpop.f32.mrb[0].mxu0
    %9727 = vmatprep.mubr.f32.mxu0 %v9475
    %9728 = vmatmul.mubr.f32.gmra.mrb[0].mxu0 %v9397
    %v9729 = vpop.f32.mrb[0].mxu0
    %v9730 = vadd.f32 %v9573, %v9729
    %v9731 = vpop.f32.mrb[0].mxu0
    %9732 = vmatprep.mubr.f32.mxu0 %v9476
    %9733 = vmatmul.mubr.f32.gmra.mrb[0].mxu0 %v9398
    %v9734 = vpop.f32.mrb[0].mxu0
    %v9735 = vadd.f32 %v9573, %v9734
    %v9736 = vpop.f32.mrb[0].mxu0
    %9737 = vmatprep.mubr.f32.mxu0 %v9477
    %9738 = vmatmul.mubr.f32.gmra.mrb[0].mxu0 %v9399
    %v9739 = vpop.f32.mrb[0].mxu0
    %v9740 = vadd.f32 %v9573, %v9739
    %v9741 = vpop.f32.mrb[0].mxu0
    %9742 = vmatprep.mubr.f32.mxu0 %v9478
    %9743 = vmatmul.mubr.f32.gmra.mrb[0].mxu0 %v9400
    %v9744 = vpop.f32.mrb[0].mxu0
    %v9745 = vadd.f32 %v9573, %v9744
    %v9746 = vpop.f32.mrb[0].mxu0
    %9747 = vmatprep.mubr.f32.mxu0 %v9479
    %9748 = vmatmul.mubr.f32.gmra.mrb[0].mxu0 %v9401
    %v9749 = vpop.f32.mrb[0].mxu0
    %v9750 = vadd.f32 %v9573, %v9749
    %v9751 = vpop.f32.mrb[0].mxu0
    %9752 = vdwg.mxu0
    %9753 = vmatprep.subr.mxu0 0.0
    %9754 = vmatpush1.msra.mxu0 %v9528
    %9755 = vmatprep.subr.mxu0 0.0
    %9756 = vmatpush1.msra.mxu0 %v9529
    %9757 = vmatprep.subr.mxu0 0.0
    %9758 = vmatpush1.msra.mxu0 %v9530
    %9759 = vmatprep.subr.mxu0 0.0
    %9760 = vmatpush1.msra.mxu0 %v9531
    %9761 = vmatprep.subr.mxu0 0.0
    %9762 = vmatpush1.msra.mxu0 0.0
    %9763 = vmatprep.subr.mxu0 0.0
    %9764 = vmatpush1.msra.mxu0 0.0
    %9765 = vmatprep.subr.mxu0 0.0
    %9766 = vmatpush1.msra.mxu0 0.0
    %9767 = vmatprep.subr.mxu0 0.0
    %9768 = vmatpush1.msra.mxu0 0.0
    %9769 = vmatprep.subr.mxu0 0.0
    %9770 = vmatpush1.msra.mxu0 0.0
    %9771 = vmatprep.subr.mxu0 0.0
    %9772 = vmatpush1.msra.mxu0 0.0
    %9773 = vmatprep.subr.mxu0 0.0
    %9774 = vmatpush1.msra.mxu0 0.0
    %9775 = vmatprep.subr.mxu0 0.0
    %9776 = vmatpush1.msra.mxu0 0.0
    %9777 = vmatprep.subr.mxu0 0.0
    %9778 = vmatpush1.msra.mxu0 0.0
    %9779 = vmatprep.subr.mxu0 0.0
    %9780 = vmatpush1.msra.mxu0 0.0
    %9781 = vmatprep.subr.mxu0 0.0
    %9782 = vmatpush1.msra.mxu0 0.0
    %9783 = vmatprep.subr.mxu0 0.0
    %9784 = vmatpush1.msra.mxu0 0.0
    %9785 = vmatprep.subr.mxu0 0.0
    %9786 = vmatpush1.msra.mxu0 0.0
    %9787 = vmatprep.subr.mxu0 0.0
    %9788 = vmatpush1.msra.mxu0 0.0
    %9789 = vmatprep.subr.mxu0 0.0
    %9790 = vmatpush1.msra.mxu0 0.0
    %9791 = vmatprep.subr.mxu0 0.0
    %9792 = vmatpush1.msra.mxu0 0.0
    %9793 = vmatprep.subr.mxu0 0.0
    %9794 = vmatpush1.msra.mxu0 0.0
    %9795 = vmatprep.subr.mxu0 0.0
    %9796 = vmatpush1.msra.mxu0 0.0
    %9797 = vmatprep.subr.mxu0 0.0
    %9798 = vmatpush1.msra.mxu0 0.0
    %9799 = vmatprep.subr.mxu0 0.0
    %9800 = vmatpush1.msra.mxu0 0.0
    %9801 = vmatprep.subr.mxu0 0.0
    %9802 = vmatpush1.msra.mxu0 0.0
    %9803 = vmatprep.subr.mxu0 0.0
    %9804 = vmatpush1.msra.mxu0 0.0
    %9805 = vmatprep.subr.mxu0 0.0
    %9806 = vmatpush1.msra.mxu0 0.0
    %9807 = vmatprep.subr.mxu0 0.0
    %9808 = vmatpush1.msra.mxu0 0.0
    %9809 = vmatprep.subr.mxu0 0.0
    %9810 = vmatpush1.msra.mxu0 0.0
    %9811 = vmatprep.subr.mxu0 0.0
    %9812 = vmatpush1.msra.mxu0 0.0
    %9813 = vmatprep.subr.mxu0 0.0
    %9814 = vmatpush1.msra.mxu0 0.0
    %9815 = vmatprep.subr.mxu0 0.0
    %9816 = vmatpush1.msra.mxu0 0.0
    %9817 = vmatprep.mubr.f32.mxu0 0.0
    %9818 = vmatmul.mubr.f32.gmra.mrb[0].mxu0 %v9575
    %v9819 = vpop.f32.mrb[0].mxu0
    %v9820 = vadd.f32 %v9675, %v9819
    %v9821 = vpop.f32.mrb[0].mxu0
    %9822 = vmatprep.mubr.f32.mxu0 0.0
    %9823 = vmatmul.mubr.f32.gmra.mrb[0].mxu0 %v9577
    %v9824 = vpop.f32.mrb[0].mxu0
    %v9825 = vadd.f32 %v9680, %v9824
    %v9826 = vpop.f32.mrb[0].mxu0
    %9827 = vmatprep.mubr.f32.mxu0 0.0
    %9828 = vmatmul.mubr.f32.gmra.mrb[0].mxu0 %v9579
    %v9829 = vpop.f32.mrb[0].mxu0
    %v9830 = vadd.f32 %v9685, %v9829
    %v9831 = vpop.f32.mrb[0].mxu0
    %9832 = vmatprep.mubr.f32.mxu0 0.0
    %9833 = vmatmul.mubr.f32.gmra.mrb[0].mxu0 %v9581
    %v9834 = vpop.f32.mrb[0].mxu0
    %v9835 = vadd.f32 %v9690, %v9834
    %v9836 = vpop.f32.mrb[0].mxu0
    %9837 = vmatprep.mubr.f32.mxu0 0.0
    %9838 = vmatmul.mubr.f32.gmra.mrb[0].mxu0 %v9583
    %v9839 = vpop.f32.mrb[0].mxu0
    %v9840 = vadd.f32 %v9695, %v9839
    %v9841 = vpop.f32.mrb[0].mxu0
    %9842 = vmatprep.mubr.f32.mxu0 0.0
    %9843 = vmatmul.mubr.f32.gmra.mrb[0].mxu0 %v9585
    %v9844 = vpop.f32.mrb[0].mxu0
    %v9845 = vadd.f32 %v9700, %v9844
    %v9846 = vpop.f32.mrb[0].mxu0
    %9847 = vmatprep.mubr.f32.mxu0 0.0
    %9848 = vmatmul.mubr.f32.gmra.mrb[0].mxu0 %v9587
    %v9849 = vpop.f32.mrb[0].mxu0
    %v9850 = vadd.f32 %v9705, %v9849
    %v9851 = vpop.f32.mrb[0].mxu0
    %9852 = vmatprep.mubr.f32.mxu0 0.0
    %9853 = vmatmul.mubr.f32.gmra.mrb[0].mxu0 %v9589
    %v9854 = vpop.f32.mrb[0].mxu0
    %v9855 = vadd.f32 %v9710, %v9854
    %v9856 = vpop.f32.mrb[0].mxu0
    %9857 = vmatprep.mubr.f32.mxu0 0.0
    %9858 = vmatmul.mubr.f32.gmra.mrb[0].mxu0 %v9591
    %v9859 = vpop.f32.mrb[0].mxu0
    %v9860 = vadd.f32 %v9715, %v9859
    %v9861 = vpop.f32.mrb[0].mxu0
    %9862 = vmatprep.mubr.f32.mxu0 0.0
    %9863 = vmatmul.mubr.f32.gmra.mrb[0].mxu0 %v9593
    %v9864 = vpop.f32.mrb[0].mxu0
    %v9865 = vadd.f32 %v9720, %v9864
    %v9866 = vpop.f32.mrb[0].mxu0
    %9867 = vmatprep.mubr.f32.mxu0 0.0
    %9868 = vmatmul.mubr.f32.gmra.mrb[0].mxu0 %v9595
    %v9869 = vpop.f32.mrb[0].mxu0
    %v9870 = vadd.f32 %v9725, %v9869
    %v9871 = vpop.f32.mrb[0].mxu0
    %9872 = vmatprep.mubr.f32.mxu0 0.0
    %9873 = vmatmul.mubr.f32.gmra.mrb[0].mxu0 %v9597
    %v9874 = vpop.f32.mrb[0].mxu0
    %v9875 = vadd.f32 %v9730, %v9874
    %v9876 = vpop.f32.mrb[0].mxu0
    %9877 = vmatprep.mubr.f32.mxu0 0.0
    %9878 = vmatmul.mubr.f32.gmra.mrb[0].mxu0 %v9599
    %v9879 = vpop.f32.mrb[0].mxu0
    %v9880 = vadd.f32 %v9735, %v9879
    %v9881 = vpop.f32.mrb[0].mxu0
    %9882 = vmatprep.mubr.f32.mxu0 0.0
    %9883 = vmatmul.mubr.f32.gmra.mrb[0].mxu0 %v9601
    %v9884 = vpop.f32.mrb[0].mxu0
    %v9885 = vadd.f32 %v9740, %v9884
    %v9886 = vpop.f32.mrb[0].mxu0
    %9887 = vmatprep.mubr.f32.mxu0 0.0
    %9888 = vmatmul.mubr.f32.gmra.mrb[0].mxu0 %v9603
    %v9889 = vpop.f32.mrb[0].mxu0
    %v9890 = vadd.f32 %v9745, %v9889
    %v9891 = vpop.f32.mrb[0].mxu0
    %9892 = vmatprep.mubr.f32.mxu0 0.0
    %9893 = vmatmul.mubr.f32.gmra.mrb[0].mxu0 %v9606
    %v9894 = vpop.f32.mrb[0].mxu0
    %v9895 = vadd.f32 %v9750, %v9894
    %v9896 = vpop.f32.mrb[0].mxu0
    %9897 = vdwg.mxu0
    %v9898 = vmax.f32 %v9820, 0.0
    %v9899 = vmax.f32 %v9825, 0.0
    %v9900 = vmax.f32 %v9830, 0.0
    %v9901 = vmax.f32 %v9835, 0.0
    %v9902 = vmax.f32 %v9840, 0.0
    %v9903 = vmax.f32 %v9845, 0.0
    %v9904 = vmax.f32 %v9850, 0.0
    %v9905 = vmax.f32 %v9855, 0.0
    %v9906 = vmax.f32 %v9860, 0.0
    %v9907 = vmax.f32 %v9865, 0.0
    %v9908 = vmax.f32 %v9870, 0.0
    %v9909 = vmax.f32 %v9875, 0.0
    %v9910 = vmax.f32 %v9880, 0.0
    %v9911 = vmax.f32 %v9885, 0.0
    %v9912 = vmax.f32 %v9890, 0.0
    %v9913 = vmax.f32 %v9895, 0.0
    %v9914 = vld [vmem:[#allocation13] sm:$0x1]
    %v9916 = vlaneseq
    %v9917 = vshrl.u32 %v9916, 7
    %v9918 = vsub.s32 0, %v9917
    %v9919 = vrot.slane %v9914, %v9918
    %v9921 = vsel %vm9319, %v4783, 0
    %v9923 = vsel %vm9319, %v4784, 0
    %v9925 = vsel %vm9319, %v4785, 0
    %v9927 = vsel %vm9319, %v4786, 0
    %v9929 = vsel %vm9319, %v6123, 0
    %v9931 = vsel %vm9319, %v6124, 0
    %v9933 = vsel %vm9319, %v6125, 0
    %v9935 = vsel %vm9319, %v6126, 0
    %v9937 = vsel %vm9319, %v7463, 0
    %v9939 = vsel %vm9319, %v7464, 0
    %v9941 = vsel %vm9319, %v7465, 0
    %v9943 = vsel %vm9319, %v7466, 0
    %v9945 = vsel %vm9319, %v8803, 0
    %v9947 = vsel %vm9319, %v8804, 0
    %v9949 = vsel %vm9319, %v8805, 0
    %v9952 = vsel %vm9319, %v8806, 0
    %9954 = vmatprep.subr.mxu0 0.0
    %9955 = vmatpush1.msra.mxu0 %v9532
    %9956 = vmatprep.subr.mxu0 0.0
    %9957 = vmatpush1.msra.mxu0 %v9533
    %9958 = vmatprep.subr.mxu0 0.0
    %9959 = vmatpush1.msra.mxu0 %v9534
    %9960 = vmatprep.subr.mxu0 0.0
    %9961 = vmatpush1.msra.mxu0 %v9535
    %9962 = vmatprep.subr.mxu0 0.0
    %9963 = vmatpush1.msra.mxu0 %v9536
    %9964 = vmatprep.subr.mxu0 0.0
    %9965 = vmatpush1.msra.mxu0 %v9537
    %9966 = vmatprep.subr.mxu0 0.0
    %9967 = vmatpush1.msra.mxu0 %v9538
    %9968 = vmatprep.subr.mxu0 0.0
    %9969 = vmatpush1.msra.mxu0 %v9539
    %9970 = vmatprep.subr.mxu0 0.0
    %9971 = vmatpush1.msra.mxu0 %v9540
    %9972 = vmatprep.subr.mxu0 0.0
    %9973 = vmatpush1.msra.mxu0 %v9541
    %9974 = vmatprep.subr.mxu0 0.0
    %9975 = vmatpush1.msra.mxu0 %v9542
    %9976 = vmatprep.subr.mxu0 0.0
    %9977 = vmatpush1.msra.mxu0 %v9543
    %9978 = vmatprep.subr.mxu0 0.0
    %9979 = vmatpush1.msra.mxu0 %v9544
    %9980 = vmatprep.subr.mxu0 0.0
    %9981 = vmatpush1.msra.mxu0 %v9545
    %9982 = vmatprep.subr.mxu0 0.0
    %9983 = vmatpush1.msra.mxu0 %v9546
    %9984 = vmatprep.subr.mxu0 0.0
    %9985 = vmatpush1.msra.mxu0 %v9547
    %9986 = vmatprep.subr.mxu0 0.0
    %9987 = vmatpush1.msra.mxu0 %v9548
    %9988 = vmatprep.subr.mxu0 0.0
    %9989 = vmatpush1.msra.mxu0 %v9549
    %9990 = vmatprep.subr.mxu0 0.0
    %9991 = vmatpush1.msra.mxu0 %v9550
    %9992 = vmatprep.subr.mxu0 0.0
    %9993 = vmatpush1.msra.mxu0 %v9551
    %9994 = vmatprep.subr.mxu0 0.0
    %9995 = vmatpush1.msra.mxu0 %v9552
    %9996 = vmatprep.subr.mxu0 0.0
    %9997 = vmatpush1.msra.mxu0 %v9553
    %9998 = vmatprep.subr.mxu0 0.0
    %9999 = vmatpush1.msra.mxu0 %v9554
    %10000 = vmatprep.subr.mxu0 0.0
    %10001 = vmatpush1.msra.mxu0 %v9555
    %10002 = vmatprep.subr.mxu0 0.0
    %10003 = vmatpush1.msra.mxu0 %v9556
    %10004 = vmatprep.subr.mxu0 0.0
    %10005 = vmatpush1.msra.mxu0 %v9557
    %10006 = vmatprep.subr.mxu0 0.0
    %10007 = vmatpush1.msra.mxu0 %v9558
    %10008 = vmatprep.subr.mxu0 0.0
    %10009 = vmatpush1.msra.mxu0 %v9559
    %10010 = vmatprep.subr.mxu0 0.0
    %10011 = vmatpush1.msra.mxu0 %v9560
    %10012 = vmatprep.subr.mxu0 0.0
    %10013 = vmatpush1.msra.mxu0 %v9561
    %10014 = vmatprep.subr.mxu0 0.0
    %10015 = vmatpush1.msra.mxu0 %v9562
    %10016 = vmatprep.subr.mxu0 0.0
    %10017 = vmatpush1.msra.mxu0 %v9563
    %10018 = vmatprep.mubr.f32.mxu0 %v9480
    %10019 = vmatmul.mubr.f32.gmra.mrb[0].mxu0 %v9402
    %v10020 = vpop.f32.mrb[0].mxu0
    %v10021 = vadd.f32 %v9919, %v10020
    %v10022 = vpop.f32.mrb[0].mxu0
    %10023 = vmatprep.mubr.f32.mxu0 %v9481
    %10024 = vmatmul.mubr.f32.gmra.mrb[0].mxu0 %v9403
    %v10025 = vpop.f32.mrb[0].mxu0
    %v10026 = vadd.f32 %v9919, %v10025
    %v10027 = vpop.f32.mrb[0].mxu0
    %10028 = vmatprep.mubr.f32.mxu0 %v9482
    %10029 = vmatmul.mubr.f32.gmra.mrb[0].mxu0 %v9404
    %v10030 = vpop.f32.mrb[0].mxu0
    %v10031 = vadd.f32 %v9919, %v10030
    %v10032 = vpop.f32.mrb[0].mxu0
    %10033 = vmatprep.mubr.f32.mxu0 %v9483
    %10034 = vmatmul.mubr.f32.gmra.mrb[0].mxu0 %v9405
    %v10035 = vpop.f32.mrb[0].mxu0
    %v10036 = vadd.f32 %v9919, %v10035
    %v10037 = vpop.f32.mrb[0].mxu0
    %10038 = vmatprep.mubr.f32.mxu0 %v9484
    %10039 = vmatmul.mubr.f32.gmra.mrb[0].mxu0 %v9406
    %v10040 = vpop.f32.mrb[0].mxu0
    %v10041 = vadd.f32 %v9919, %v10040
    %v10042 = vpop.f32.mrb[0].mxu0
    %10043 = vmatprep.mubr.f32.mxu0 %v9485
    %10044 = vmatmul.mubr.f32.gmra.mrb[0].mxu0 %v9407
    %v10045 = vpop.f32.mrb[0].mxu0
    %v10046 = vadd.f32 %v9919, %v10045
    %v10047 = vpop.f32.mrb[0].mxu0
    %10048 = vmatprep.mubr.f32.mxu0 %v9486
    %10049 = vmatmul.mubr.f32.gmra.mrb[0].mxu0 %v9408
    %v10050 = vpop.f32.mrb[0].mxu0
    %v10051 = vadd.f32 %v9919, %v10050
    %v10052 = vpop.f32.mrb[0].mxu0
    %10053 = vmatprep.mubr.f32.mxu0 %v9487
    %10054 = vmatmul.mubr.f32.gmra.mrb[0].mxu0 %v9409
    %v10055 = vpop.f32.mrb[0].mxu0
    %v10056 = vadd.f32 %v9919, %v10055
    %v10057 = vpop.f32.mrb[0].mxu0
    %10058 = vmatprep.mubr.f32.mxu0 %v9488
    %10059 = vmatmul.mubr.f32.gmra.mrb[0].mxu0 %v9410
    %v10060 = vpop.f32.mrb[0].mxu0
    %v10061 = vadd.f32 %v9919, %v10060
    %v10062 = vpop.f32.mrb[0].mxu0
    %10063 = vmatprep.mubr.f32.mxu0 %v9489
    %10064 = vmatmul.mubr.f32.gmra.mrb[0].mxu0 %v9411
    %v10065 = vpop.f32.mrb[0].mxu0
    %v10066 = vadd.f32 %v9919, %v10065
    %v10067 = vpop.f32.mrb[0].mxu0
    %10068 = vmatprep.mubr.f32.mxu0 %v9490
    %10069 = vmatmul.mubr.f32.gmra.mrb[0].mxu0 %v9412
    %v10070 = vpop.f32.mrb[0].mxu0
    %v10071 = vadd.f32 %v9919, %v10070
    %v10072 = vpop.f32.mrb[0].mxu0
    %10073 = vmatprep.mubr.f32.mxu0 %v9491
    %10074 = vmatmul.mubr.f32.gmra.mrb[0].mxu0 %v9413
    %v10075 = vpop.f32.mrb[0].mxu0
    %v10076 = vadd.f32 %v9919, %v10075
    %v10077 = vpop.f32.mrb[0].mxu0
    %10078 = vmatprep.mubr.f32.mxu0 %v9492
    %10079 = vmatmul.mubr.f32.gmra.mrb[0].mxu0 %v9414
    %v10080 = vpop.f32.mrb[0].mxu0
    %v10081 = vadd.f32 %v9919, %v10080
    %v10082 = vpop.f32.mrb[0].mxu0
    %10083 = vmatprep.mubr.f32.mxu0 %v9493
    %10084 = vmatmul.mubr.f32.gmra.mrb[0].mxu0 %v9415
    %v10085 = vpop.f32.mrb[0].mxu0
    %v10086 = vadd.f32 %v9919, %v10085
    %v10087 = vpop.f32.mrb[0].mxu0
    %10088 = vmatprep.mubr.f32.mxu0 %v9494
    %10089 = vmatmul.mubr.f32.gmra.mrb[0].mxu0 %v9416
    %v10090 = vpop.f32.mrb[0].mxu0
    %v10091 = vadd.f32 %v9919, %v10090
    %v10092 = vpop.f32.mrb[0].mxu0
    %10093 = vmatprep.mubr.f32.mxu0 %v9495
    %10094 = vmatmul.mubr.f32.gmra.mrb[0].mxu0 %v9417
    %v10095 = vpop.f32.mrb[0].mxu0
    %v10096 = vadd.f32 %v9919, %v10095
    %v10097 = vpop.f32.mrb[0].mxu0
    %10098 = vdwg.mxu0
    %10099 = vmatprep.subr.mxu0 0.0
    %10100 = vmatpush1.msra.mxu0 %v9564
    %10101 = vmatprep.subr.mxu0 0.0
    %10102 = vmatpush1.msra.mxu0 %v9565
    %10103 = vmatprep.subr.mxu0 0.0
    %10104 = vmatpush1.msra.mxu0 %v9566
    %10105 = vmatprep.subr.mxu0 0.0
    %10106 = vmatpush1.msra.mxu0 %v9567
    %10107 = vmatprep.subr.mxu0 0.0
    %10108 = vmatpush1.msra.mxu0 0.0
    %10109 = vmatprep.subr.mxu0 0.0
    %10110 = vmatpush1.msra.mxu0 0.0
    %10111 = vmatprep.subr.mxu0 0.0
    %10112 = vmatpush1.msra.mxu0 0.0
    %10113 = vmatprep.subr.mxu0 0.0
    %10114 = vmatpush1.msra.mxu0 0.0
    %10115 = vmatprep.subr.mxu0 0.0
    %10116 = vmatpush1.msra.mxu0 0.0
    %10117 = vmatprep.subr.mxu0 0.0
    %10118 = vmatpush1.msra.mxu0 0.0
    %10119 = vmatprep.subr.mxu0 0.0
    %10120 = vmatpush1.msra.mxu0 0.0
    %10121 = vmatprep.subr.mxu0 0.0
    %10122 = vmatpush1.msra.mxu0 0.0
    %10123 = vmatprep.subr.mxu0 0.0
    %10124 = vmatpush1.msra.mxu0 0.0
    %10125 = vmatprep.subr.mxu0 0.0
    %10126 = vmatpush1.msra.mxu0 0.0
    %10127 = vmatprep.subr.mxu0 0.0
    %10128 = vmatpush1.msra.mxu0 0.0
    %10129 = vmatprep.subr.mxu0 0.0
    %10130 = vmatpush1.msra.mxu0 0.0
    %10131 = vmatprep.subr.mxu0 0.0
    %10132 = vmatpush1.msra.mxu0 0.0
    %10133 = vmatprep.subr.mxu0 0.0
    %10134 = vmatpush1.msra.mxu0 0.0
    %10135 = vmatprep.subr.mxu0 0.0
    %10136 = vmatpush1.msra.mxu0 0.0
    %10137 = vmatprep.subr.mxu0 0.0
    %10138 = vmatpush1.msra.mxu0 0.0
    %10139 = vmatprep.subr.mxu0 0.0
    %10140 = vmatpush1.msra.mxu0 0.0
    %10141 = vmatprep.subr.mxu0 0.0
    %10142 = vmatpush1.msra.mxu0 0.0
    %10143 = vmatprep.subr.mxu0 0.0
    %10144 = vmatpush1.msra.mxu0 0.0
    %10145 = vmatprep.subr.mxu0 0.0
    %10146 = vmatpush1.msra.mxu0 0.0
    %10147 = vmatprep.subr.mxu0 0.0
    %10148 = vmatpush1.msra.mxu0 0.0
    %10149 = vmatprep.subr.mxu0 0.0
    %10150 = vmatpush1.msra.mxu0 0.0
    %10151 = vmatprep.subr.mxu0 0.0
    %10152 = vmatpush1.msra.mxu0 0.0
    %10153 = vmatprep.subr.mxu0 0.0
    %10154 = vmatpush1.msra.mxu0 0.0
    %10155 = vmatprep.subr.mxu0 0.0
    %10156 = vmatpush1.msra.mxu0 0.0
    %10157 = vmatprep.subr.mxu0 0.0
    %10158 = vmatpush1.msra.mxu0 0.0
    %10159 = vmatprep.subr.mxu0 0.0
    %10160 = vmatpush1.msra.mxu0 0.0
    %10161 = vmatprep.subr.mxu0 0.0
    %10162 = vmatpush1.msra.mxu0 0.0
    %10163 = vmatprep.mubr.f32.mxu0 0.0
    %10164 = vmatmul.mubr.f32.gmra.mrb[0].mxu0 %v9921
    %v10165 = vpop.f32.mrb[0].mxu0
    %v10166 = vadd.f32 %v10021, %v10165
    %v10167 = vpop.f32.mrb[0].mxu0
    %10168 = vmatprep.mubr.f32.mxu0 0.0
    %10169 = vmatmul.mubr.f32.gmra.mrb[0].mxu0 %v9923
    %v10170 = vpop.f32.mrb[0].mxu0
    %v10171 = vadd.f32 %v10026, %v10170
    %v10172 = vpop.f32.mrb[0].mxu0
    %10173 = vmatprep.mubr.f32.mxu0 0.0
    %10174 = vmatmul.mubr.f32.gmra.mrb[0].mxu0 %v9925
    %v10175 = vpop.f32.mrb[0].mxu0
    %v10176 = vadd.f32 %v10031, %v10175
    %v10177 = vpop.f32.mrb[0].mxu0
    %10178 = vmatprep.mubr.f32.mxu0 0.0
    %10179 = vmatmul.mubr.f32.gmra.mrb[0].mxu0 %v9927
    %v10180 = vpop.f32.mrb[0].mxu0
    %v10181 = vadd.f32 %v10036, %v10180
    %v10182 = vpop.f32.mrb[0].mxu0
    %10183 = vmatprep.mubr.f32.mxu0 0.0
    %10184 = vmatmul.mubr.f32.gmra.mrb[0].mxu0 %v9929
    %v10185 = vpop.f32.mrb[0].mxu0
    %v10186 = vadd.f32 %v10041, %v10185
    %v10187 = vpop.f32.mrb[0].mxu0
    %10188 = vmatprep.mubr.f32.mxu0 0.0
    %10189 = vmatmul.mubr.f32.gmra.mrb[0].mxu0 %v9931
    %v10190 = vpop.f32.mrb[0].mxu0
    %v10191 = vadd.f32 %v10046, %v10190
    %v10192 = vpop.f32.mrb[0].mxu0
    %10193 = vmatprep.mubr.f32.mxu0 0.0
    %10194 = vmatmul.mubr.f32.gmra.mrb[0].mxu0 %v9933
    %v10195 = vpop.f32.mrb[0].mxu0
    %v10196 = vadd.f32 %v10051, %v10195
    %v10197 = vpop.f32.mrb[0].mxu0
    %10198 = vmatprep.mubr.f32.mxu0 0.0
    %10199 = vmatmul.mubr.f32.gmra.mrb[0].mxu0 %v9935
    %v10200 = vpop.f32.mrb[0].mxu0
    %v10201 = vadd.f32 %v10056, %v10200
    %v10202 = vpop.f32.mrb[0].mxu0
    %10203 = vmatprep.mubr.f32.mxu0 0.0
    %10204 = vmatmul.mubr.f32.gmra.mrb[0].mxu0 %v9937
    %v10205 = vpop.f32.mrb[0].mxu0
    %v10206 = vadd.f32 %v10061, %v10205
    %v10207 = vpop.f32.mrb[0].mxu0
    %10208 = vmatprep.mubr.f32.mxu0 0.0
    %10209 = vmatmul.mubr.f32.gmra.mrb[0].mxu0 %v9939
    %v10210 = vpop.f32.mrb[0].mxu0
    %v10211 = vadd.f32 %v10066, %v10210
    %v10212 = vpop.f32.mrb[0].mxu0
    %10213 = vmatprep.mubr.f32.mxu0 0.0
    %10214 = vmatmul.mubr.f32.gmra.mrb[0].mxu0 %v9941
    %v10215 = vpop.f32.mrb[0].mxu0
    %v10216 = vadd.f32 %v10071, %v10215
    %v10217 = vpop.f32.mrb[0].mxu0
    %10218 = vmatprep.mubr.f32.mxu0 0.0
    %10219 = vmatmul.mubr.f32.gmra.mrb[0].mxu0 %v9943
    %v10220 = vpop.f32.mrb[0].mxu0
    %v10221 = vadd.f32 %v10076, %v10220
    %v10222 = vpop.f32.mrb[0].mxu0
    %10223 = vmatprep.mubr.f32.mxu0 0.0
    %10224 = vmatmul.mubr.f32.gmra.mrb[0].mxu0 %v9945
    %v10225 = vpop.f32.mrb[0].mxu0
    %v10226 = vadd.f32 %v10081, %v10225
    %v10227 = vpop.f32.mrb[0].mxu0
    %10228 = vmatprep.mubr.f32.mxu0 0.0
    %10229 = vmatmul.mubr.f32.gmra.mrb[0].mxu0 %v9947
    %v10230 = vpop.f32.mrb[0].mxu0
    %v10231 = vadd.f32 %v10086, %v10230
    %v10232 = vpop.f32.mrb[0].mxu0
    %10233 = vmatprep.mubr.f32.mxu0 0.0
    %10234 = vmatmul.mubr.f32.gmra.mrb[0].mxu0 %v9949
    %v10235 = vpop.f32.mrb[0].mxu0
    %v10236 = vadd.f32 %v10091, %v10235
    %v10237 = vpop.f32.mrb[0].mxu0
    %10238 = vmatprep.mubr.f32.mxu0 0.0
    %10239 = vmatmul.mubr.f32.gmra.mrb[0].mxu0 %v9952
    %v10240 = vpop.f32.mrb[0].mxu0
    %v10241 = vadd.f32 %v10096, %v10240
    %v10242 = vpop.f32.mrb[0].mxu0
    %10243 = vdwg.mxu0
    %v10244 = vmax.f32 %v10166, 0.0
    %v10245 = vmax.f32 %v10171, 0.0
    %v10246 = vmax.f32 %v10176, 0.0
    %v10247 = vmax.f32 %v10181, 0.0
    %v10248 = vmax.f32 %v10186, 0.0
    %v10249 = vmax.f32 %v10191, 0.0
    %v10250 = vmax.f32 %v10196, 0.0
    %v10251 = vmax.f32 %v10201, 0.0
    %v10252 = vmax.f32 %v10206, 0.0
    %v10253 = vmax.f32 %v10211, 0.0
    %v10254 = vmax.f32 %v10216, 0.0
    %v10255 = vmax.f32 %v10221, 0.0
    %v10256 = vmax.f32 %v10226, 0.0
    %v10257 = vmax.f32 %v10231, 0.0
    %v10258 = vmax.f32 %v10236, 0.0
    %v10259 = vmax.f32 %v10241, 0.0
    %10261 = vrot.lane.b32.xlu0 %v9899, 32
    %v10262 = vpop.permute.xlu0 %10261
    %10265 = vrot.lane.b32.xlu0 %v9900, 64
    %v10266 = vpop.permute.xlu0 %10265
    %10269 = vrot.lane.b32.xlu0 %v9901, 96
    %v10270 = vpop.permute.xlu0 %10269
    %10273 = vrot.lane.b32.xlu0 %v9903, 32
    %v10274 = vpop.permute.xlu0 %10273
    %10277 = vrot.lane.b32.xlu0 %v9904, 64
    %v10278 = vpop.permute.xlu0 %10277
    %10281 = vrot.lane.b32.xlu0 %v9905, 96
    %v10282 = vpop.permute.xlu0 %10281
    %10285 = vrot.lane.b32.xlu0 %v9907, 32
    %v10286 = vpop.permute.xlu0 %10285
    %10289 = vrot.lane.b32.xlu0 %v9908, 64
    %v10290 = vpop.permute.xlu0 %10289
    %10293 = vrot.lane.b32.xlu0 %v9909, 96
    %v10294 = vpop.permute.xlu0 %10293
    %10297 = vrot.lane.b32.xlu0 %v9911, 32
    %v10298 = vpop.permute.xlu0 %10297
    %10301 = vrot.lane.b32.xlu0 %v9912, 64
    %v10302 = vpop.permute.xlu0 %10301
    %10305 = vrot.lane.b32.xlu0 %v9913, 96
    %v10306 = vpop.permute.xlu0 %10305
    %v10308 = vsel %vm9319, %v9898, %v10262
    %v10309 = vsel %vm9352, %v10308, %v10266
    %v10310 = vsel %vm9385, %v10309, %v10270
    %v10311 = vsel %vm9319, %v9902, %v10274
    %v10312 = vsel %vm9352, %v10311, %v10278
    %v10313 = vsel %vm9385, %v10312, %v10282
    %v10314 = vsel %vm9319, %v9906, %v10286
    %v10315 = vsel %vm9352, %v10314, %v10290
    %v10316 = vsel %vm9385, %v10315, %v10294
    %v10317 = vsel %vm9319, %v9910, %v10298
    %v10318 = vsel %vm9352, %v10317, %v10302
    %v10319 = vsel %vm9385, %v10318, %v10306
    %10321 = vrot.lane.b32.xlu0 %v10245, 32
    %v10322 = vpop.permute.xlu0 %10321
    %10325 = vrot.lane.b32.xlu0 %v10246, 64
    %v10326 = vpop.permute.xlu0 %10325
    %10329 = vrot.lane.b32.xlu0 %v10247, 96
    %v10330 = vpop.permute.xlu0 %10329
    %10333 = vrot.lane.b32.xlu0 %v10249, 32
    %v10334 = vpop.permute.xlu0 %10333
    %10337 = vrot.lane.b32.xlu0 %v10250, 64
    %v10338 = vpop.permute.xlu0 %10337
    %10341 = vrot.lane.b32.xlu0 %v10251, 96
    %v10342 = vpop.permute.xlu0 %10341
    %10345 = vrot.lane.b32.xlu0 %v10253, 32
    %v10346 = vpop.permute.xlu0 %10345
    %10349 = vrot.lane.b32.xlu0 %v10254, 64
    %v10350 = vpop.permute.xlu0 %10349
    %10353 = vrot.lane.b32.xlu0 %v10255, 96
    %v10354 = vpop.permute.xlu0 %10353
    %10357 = vrot.lane.b32.xlu0 %v10257, 32
    %v10358 = vpop.permute.xlu0 %10357
    %10361 = vrot.lane.b32.xlu0 %v10258, 64
    %v10362 = vpop.permute.xlu0 %10361
    %10365 = vrot.lane.b32.xlu0 %v10259, 96
    %v10366 = vpop.permute.xlu0 %10365
    %v10368 = vsel %vm9319, %v10244, %v10322
    %v10369 = vsel %vm9352, %v10368, %v10326
    %v10370 = vsel %vm9385, %v10369, %v10330
    %v10371 = vsel %vm9319, %v10248, %v10334
    %v10372 = vsel %vm9352, %v10371, %v10338
    %v10373 = vsel %vm9385, %v10372, %v10342
    %v10374 = vsel %vm9319, %v10252, %v10346
    %v10375 = vsel %vm9352, %v10374, %v10350
    %v10376 = vsel %vm9385, %v10375, %v10354
    %v10377 = vsel %vm9319, %v10256, %v10358
    %v10378 = vsel %vm9352, %v10377, %v10362
    %v10379 = vsel %vm9385, %v10378, %v10366
    %v10380 = vld [vmem:[#allocation14] sm:$0xff]
    %v10381 = vld [vmem:[#allocation14 + $0x8] sm:$0xff]
    %v10382 = vld [vmem:[#allocation14 + $0x10] sm:$0xff]
    %v10383 = vld [vmem:[#allocation14 + $0x18] sm:$0xff]
    %v10384 = vld [vmem:[#allocation14 + $0x20] sm:$0xff]
    %v10385 = vld [vmem:[#allocation14 + $0x28] sm:$0xff]
    %v10386 = vld [vmem:[#allocation14 + $0x30] sm:$0xff]
    %v10387 = vld [vmem:[#allocation14 + $0x38] sm:$0xff]
    %v10388 = vld [vmem:[#allocation14 + $0x40] sm:$0xff]
    %v10389 = vld [vmem:[#allocation14 + $0x48] sm:$0xff]
    %v10390 = vld [vmem:[#allocation14 + $0x50] sm:$0xff]
    %v10391 = vld [vmem:[#allocation14 + $0x58] sm:$0xff]
    %v10392 = vld [vmem:[#allocation14 + $0x60] sm:$0xff]
    %v10393 = vld [vmem:[#allocation14 + $0x68] sm:$0xff]
    %v10394 = vld [vmem:[#allocation14 + $0x70] sm:$0xff]
    %v10395 = vld [vmem:[#allocation14 + $0x78] sm:$0xff]
    %v10396 = vld [vmem:[#allocation14 + $0x80] sm:$0xff]
    %v10397 = vld [vmem:[#allocation14 + $0x88] sm:$0xff]
    %v10398 = vld [vmem:[#allocation14 + $0x90] sm:$0xff]
    %v10399 = vld [vmem:[#allocation14 + $0x98] sm:$0xff]
    %v10400 = vld [vmem:[#allocation14 + $0xa0] sm:$0xff]
    %v10401 = vld [vmem:[#allocation14 + $0xa8] sm:$0xff]
    %v10402 = vld [vmem:[#allocation14 + $0xb0] sm:$0xff]
    %v10403 = vld [vmem:[#allocation14 + $0xb8] sm:$0xff]
    %v10404 = vld [vmem:[#allocation14 + $0xc0] sm:$0xff]
    %v10405 = vld [vmem:[#allocation14 + $0xc8] sm:$0xff]
    %v10406 = vld [vmem:[#allocation14 + $0xd0] sm:$0xff]
    %v10407 = vld [vmem:[#allocation14 + $0xd8] sm:$0xff]
    %v10408 = vld [vmem:[#allocation14 + $0xe0] sm:$0xff]
    %v10409 = vld [vmem:[#allocation14 + $0xe8] sm:$0xff]
    %v10410 = vld [vmem:[#allocation14 + $0xf0] sm:$0xff]
    %v10411 = vld [vmem:[#allocation14 + $0xf8] sm:$0xff]
    %v10412 = vld [vmem:[#allocation14 + $0x100] sm:$0xff]
    %v10413 = vld [vmem:[#allocation14 + $0x108] sm:$0xff]
    %v10414 = vld [vmem:[#allocation14 + $0x110] sm:$0xff]
    %v10415 = vld [vmem:[#allocation14 + $0x118] sm:$0xff]
    %v10416 = vld [vmem:[#allocation14 + $0x120] sm:$0xff]
    %v10417 = vld [vmem:[#allocation14 + $0x128] sm:$0xff]
    %v10418 = vld [vmem:[#allocation14 + $0x130] sm:$0xff]
    %v10419 = vld [vmem:[#allocation14 + $0x138] sm:$0xff]
    %v10420 = vld [vmem:[#allocation14 + $0x140] sm:$0xff]
    %v10421 = vld [vmem:[#allocation14 + $0x148] sm:$0xff]
    %v10422 = vld [vmem:[#allocation14 + $0x150] sm:$0xff]
    %v10423 = vld [vmem:[#allocation14 + $0x158] sm:$0xff]
    %v10424 = vld [vmem:[#allocation14 + $0x160] sm:$0xff]
    %v10425 = vld [vmem:[#allocation14 + $0x168] sm:$0xff]
    %v10426 = vld [vmem:[#allocation14 + $0x170] sm:$0xff]
    %v10427 = vld [vmem:[#allocation14 + $0x178] sm:$0xff]
    %v10428 = vld [vmem:[#allocation14 + $0x180] sm:$0xff]
    %v10429 = vld [vmem:[#allocation14 + $0x188] sm:$0xff]
    %v10430 = vld [vmem:[#allocation14 + $0x190] sm:$0xff]
    %v10431 = vld [vmem:[#allocation14 + $0x198] sm:$0xff]
    %v10432 = vld [vmem:[#allocation14 + $0x1a0] sm:$0xff]
    %v10433 = vld [vmem:[#allocation14 + $0x1a8] sm:$0xff]
    %v10434 = vld [vmem:[#allocation14 + $0x1b0] sm:$0xff]
    %v10435 = vld [vmem:[#allocation14 + $0x1b8] sm:$0xff]
    %v10436 = vld [vmem:[#allocation14 + $0x1c0] sm:$0xff]
    %v10437 = vld [vmem:[#allocation14 + $0x1c8] sm:$0xff]
    %v10438 = vld [vmem:[#allocation14 + $0x1d0] sm:$0xff]
    %v10439 = vld [vmem:[#allocation14 + $0x1d8] sm:$0xff]
    %v10440 = vld [vmem:[#allocation14 + $0x1e0] sm:$0xff]
    %v10441 = vld [vmem:[#allocation14 + $0x1e8] sm:$0xff]
    %v10442 = vld [vmem:[#allocation14 + $0x1f0] sm:$0xff]
    %v10443 = vld [vmem:[#allocation14 + $0x1f8] sm:$0xff]
    %v10444 = vld [vmem:[#allocation14 + $0x200] sm:$0xff]
    %v10445 = vld [vmem:[#allocation14 + $0x208] sm:$0xff]
    %v10446 = vld [vmem:[#allocation14 + $0x210] sm:$0xff]
    %v10447 = vld [vmem:[#allocation14 + $0x218] sm:$0xff]
    %v10448 = vld [vmem:[#allocation14 + $0x220] sm:$0xff]
    %v10449 = vld [vmem:[#allocation14 + $0x228] sm:$0xff]
    %v10450 = vld [vmem:[#allocation14 + $0x230] sm:$0xff]
    %v10451 = vld [vmem:[#allocation14 + $0x238] sm:$0xff]
    %v10452 = vld [vmem:[#allocation14 + $0x240] sm:$0xff]
    %v10453 = vld [vmem:[#allocation14 + $0x248] sm:$0xff]
    %v10454 = vld [vmem:[#allocation14 + $0x250] sm:$0xff]
    %v10455 = vld [vmem:[#allocation14 + $0x258] sm:$0xff]
    %v10456 = vld [vmem:[#allocation14 + $0x260] sm:$0xff]
    %v10457 = vld [vmem:[#allocation14 + $0x268] sm:$0xff]
    %v10458 = vld [vmem:[#allocation14 + $0x270] sm:$0xff]
    %v10459 = vld [vmem:[#allocation14 + $0x278] sm:$0xff]
    %v10460 = vld [vmem:[#allocation14 + $0x280] sm:$0xff]
    %v10461 = vld [vmem:[#allocation14 + $0x288] sm:$0xff]
    %v10462 = vld [vmem:[#allocation14 + $0x290] sm:$0xff]
    %v10463 = vld [vmem:[#allocation14 + $0x298] sm:$0xff]
    %v10464 = vld [vmem:[#allocation14 + $0x2a0] sm:$0xff]
    %v10465 = vld [vmem:[#allocation14 + $0x2a8] sm:$0xff]
    %v10466 = vld [vmem:[#allocation14 + $0x2b0] sm:$0xff]
    %v10467 = vld [vmem:[#allocation14 + $0x2b8] sm:$0xff]
    %v10468 = vld [vmem:[#allocation14 + $0x2c0] sm:$0xff]
    %v10469 = vld [vmem:[#allocation14 + $0x2c8] sm:$0xff]
    %v10470 = vld [vmem:[#allocation14 + $0x2d0] sm:$0xff]
    %v10471 = vld [vmem:[#allocation14 + $0x2d8] sm:$0xff]
    %v10472 = vld [vmem:[#allocation14 + $0x2e0] sm:$0xff]
    %v10473 = vld [vmem:[#allocation14 + $0x2e8] sm:$0xff]
    %v10474 = vld [vmem:[#allocation14 + $0x2f0] sm:$0xff]
    %v10475 = vld [vmem:[#allocation14 + $0x2f8] sm:$0xff]
    %v10476 = vld [vmem:[#allocation14 + $0x300] sm:$0xff]
    %v10477 = vld [vmem:[#allocation14 + $0x308] sm:$0xff]
    %v10478 = vld [vmem:[#allocation14 + $0x310] sm:$0xff]
    %v10479 = vld [vmem:[#allocation14 + $0x318] sm:$0xff]
    %v10480 = vld [vmem:[#allocation14 + $0x320] sm:$0xff]
    %v10481 = vld [vmem:[#allocation14 + $0x328] sm:$0xff]
    %v10482 = vld [vmem:[#allocation14 + $0x330] sm:$0xff]
    %v10483 = vld [vmem:[#allocation14 + $0x338] sm:$0xff]
    %v10484 = vld [vmem:[#allocation14 + $0x340] sm:$0xff]
    %v10485 = vld [vmem:[#allocation14 + $0x348] sm:$0xff]
    %v10486 = vld [vmem:[#allocation14 + $0x350] sm:$0xff]
    %v10487 = vld [vmem:[#allocation14 + $0x358] sm:$0xff]
    %v10488 = vld [vmem:[#allocation14 + $0x360] sm:$0xff]
    %v10489 = vld [vmem:[#allocation14 + $0x368] sm:$0xff]
    %v10490 = vld [vmem:[#allocation14 + $0x370] sm:$0xff]
    %v10491 = vld [vmem:[#allocation14 + $0x378] sm:$0xff]
    %v10492 = vld [vmem:[#allocation14 + $0x380] sm:$0xff]
    %v10493 = vld [vmem:[#allocation14 + $0x388] sm:$0xff]
    %v10494 = vld [vmem:[#allocation14 + $0x390] sm:$0xff]
    %v10495 = vld [vmem:[#allocation14 + $0x398] sm:$0xff]
    %v10496 = vld [vmem:[#allocation14 + $0x3a0] sm:$0xff]
    %v10497 = vld [vmem:[#allocation14 + $0x3a8] sm:$0xff]
    %v10498 = vld [vmem:[#allocation14 + $0x3b0] sm:$0xff]
    %v10499 = vld [vmem:[#allocation14 + $0x3b8] sm:$0xff]
    %v10500 = vld [vmem:[#allocation14 + $0x3c0] sm:$0xff]
    %v10501 = vld [vmem:[#allocation14 + $0x3c8] sm:$0xff]
    %v10502 = vld [vmem:[#allocation14 + $0x3d0] sm:$0xff]
    %v10503 = vld [vmem:[#allocation14 + $0x3d8] sm:$0xff]
    %v10504 = vld [vmem:[#allocation14 + $0x3e0] sm:$0xff]
    %v10505 = vld [vmem:[#allocation14 + $0x3e8] sm:$0xff]
    %v10506 = vld [vmem:[#allocation14 + $0x3f0] sm:$0xff]
    %v10507 = vld [vmem:[#allocation14 + $0x3f8] sm:$0xff]
    %v10508 = vld [vmem:[#allocation16] sm:$0x1]
    %v10510 = vlaneseq
    %v10511 = vshrl.u32 %v10510, 7
    %v10512 = vsub.s32 0, %v10511
    %v10513 = vrot.slane %v10508, %v10512
    %10515 = vmatprep.subr.mxu0 0.0
    %10516 = vmatpush1.msra.mxu0 %v10380
    %10517 = vmatprep.subr.mxu0 0.0
    %10518 = vmatpush1.msra.mxu0 %v10381
    %10519 = vmatprep.subr.mxu0 0.0
    %10520 = vmatpush1.msra.mxu0 %v10382
    %10521 = vmatprep.subr.mxu0 0.0
    %10522 = vmatpush1.msra.mxu0 %v10383
    %10523 = vmatprep.subr.mxu0 0.0
    %10524 = vmatpush1.msra.mxu0 %v10384
    %10525 = vmatprep.subr.mxu0 0.0
    %10526 = vmatpush1.msra.mxu0 %v10385
    %10527 = vmatprep.subr.mxu0 0.0
    %10528 = vmatpush1.msra.mxu0 %v10386
    %10529 = vmatprep.subr.mxu0 0.0
    %10530 = vmatpush1.msra.mxu0 %v10387
    %10531 = vmatprep.subr.mxu0 0.0
    %10532 = vmatpush1.msra.mxu0 %v10388
    %10533 = vmatprep.subr.mxu0 0.0
    %10534 = vmatpush1.msra.mxu0 %v10389
    %10535 = vmatprep.subr.mxu0 0.0
    %10536 = vmatpush1.msra.mxu0 %v10390
    %10537 = vmatprep.subr.mxu0 0.0
    %10538 = vmatpush1.msra.mxu0 %v10391
    %10539 = vmatprep.subr.mxu0 0.0
    %10540 = vmatpush1.msra.mxu0 %v10392
    %10541 = vmatprep.subr.mxu0 0.0
    %10542 = vmatpush1.msra.mxu0 %v10393
    %10543 = vmatprep.subr.mxu0 0.0
    %10544 = vmatpush1.msra.mxu0 %v10394
    %10545 = vmatprep.subr.mxu0 0.0
    %10546 = vmatpush1.msra.mxu0 %v10395
    %10547 = vmatprep.subr.mxu0 0.0
    %10548 = vmatpush1.msra.mxu0 %v10396
    %10549 = vmatprep.subr.mxu0 0.0
    %10550 = vmatpush1.msra.mxu0 %v10397
    %10551 = vmatprep.subr.mxu0 0.0
    %10552 = vmatpush1.msra.mxu0 %v10398
    %10553 = vmatprep.subr.mxu0 0.0
    %10554 = vmatpush1.msra.mxu0 %v10399
    %10555 = vmatprep.subr.mxu0 0.0
    %10556 = vmatpush1.msra.mxu0 %v10400
    %10557 = vmatprep.subr.mxu0 0.0
    %10558 = vmatpush1.msra.mxu0 %v10401
    %10559 = vmatprep.subr.mxu0 0.0
    %10560 = vmatpush1.msra.mxu0 %v10402
    %10561 = vmatprep.subr.mxu0 0.0
    %10562 = vmatpush1.msra.mxu0 %v10403
    %10563 = vmatprep.subr.mxu0 0.0
    %10564 = vmatpush1.msra.mxu0 %v10404
    %10565 = vmatprep.subr.mxu0 0.0
    %10566 = vmatpush1.msra.mxu0 %v10405
    %10567 = vmatprep.subr.mxu0 0.0
    %10568 = vmatpush1.msra.mxu0 %v10406
    %10569 = vmatprep.subr.mxu0 0.0
    %10570 = vmatpush1.msra.mxu0 %v10407
    %10571 = vmatprep.subr.mxu0 0.0
    %10572 = vmatpush1.msra.mxu0 %v10408
    %10573 = vmatprep.subr.mxu0 0.0
    %10574 = vmatpush1.msra.mxu0 %v10409
    %10575 = vmatprep.subr.mxu0 0.0
    %10576 = vmatpush1.msra.mxu0 %v10410
    %10577 = vmatprep.subr.mxu0 0.0
    %10578 = vmatpush1.msra.mxu0 %v10411
    %10579 = vmatprep.mubr.f32.mxu0 %v10313
    %10580 = vmatmul.mubr.f32.gmra.mrb[0].mxu0 %v10310
    %v10581 = vpop.f32.mrb[0].mxu0
    %v10582 = vadd.f32 %v10513, %v10581
    %v10583 = vpop.f32.mrb[0].mxu0
    %10584 = vdwg.mxu0
    %10585 = vmatprep.subr.mxu0 0.0
    %10586 = vmatpush1.msra.mxu0 %v10412
    %10587 = vmatprep.subr.mxu0 0.0
    %10588 = vmatpush1.msra.mxu0 %v10413
    %10589 = vmatprep.subr.mxu0 0.0
    %10590 = vmatpush1.msra.mxu0 %v10414
    %10591 = vmatprep.subr.mxu0 0.0
    %10592 = vmatpush1.msra.mxu0 %v10415
    %10593 = vmatprep.subr.mxu0 0.0
    %10594 = vmatpush1.msra.mxu0 %v10416
    %10595 = vmatprep.subr.mxu0 0.0
    %10596 = vmatpush1.msra.mxu0 %v10417
    %10597 = vmatprep.subr.mxu0 0.0
    %10598 = vmatpush1.msra.mxu0 %v10418
    %10599 = vmatprep.subr.mxu0 0.0
    %10600 = vmatpush1.msra.mxu0 %v10419
    %10601 = vmatprep.subr.mxu0 0.0
    %10602 = vmatpush1.msra.mxu0 %v10420
    %10603 = vmatprep.subr.mxu0 0.0
    %10604 = vmatpush1.msra.mxu0 %v10421
    %10605 = vmatprep.subr.mxu0 0.0
    %10606 = vmatpush1.msra.mxu0 %v10422
    %10607 = vmatprep.subr.mxu0 0.0
    %10608 = vmatpush1.msra.mxu0 %v10423
    %10609 = vmatprep.subr.mxu0 0.0
    %10610 = vmatpush1.msra.mxu0 %v10424
    %10611 = vmatprep.subr.mxu0 0.0
    %10612 = vmatpush1.msra.mxu0 %v10425
    %10613 = vmatprep.subr.mxu0 0.0
    %10614 = vmatpush1.msra.mxu0 %v10426
    %10615 = vmatprep.subr.mxu0 0.0
    %10616 = vmatpush1.msra.mxu0 %v10427
    %10617 = vmatprep.subr.mxu0 0.0
    %10618 = vmatpush1.msra.mxu0 %v10428
    %10619 = vmatprep.subr.mxu0 0.0
    %10620 = vmatpush1.msra.mxu0 %v10429
    %10621 = vmatprep.subr.mxu0 0.0
    %10622 = vmatpush1.msra.mxu0 %v10430
    %10623 = vmatprep.subr.mxu0 0.0
    %10624 = vmatpush1.msra.mxu0 %v10431
    %10625 = vmatprep.subr.mxu0 0.0
    %10626 = vmatpush1.msra.mxu0 %v10432
    %10627 = vmatprep.subr.mxu0 0.0
    %10628 = vmatpush1.msra.mxu0 %v10433
    %10629 = vmatprep.subr.mxu0 0.0
    %10630 = vmatpush1.msra.mxu0 %v10434
    %10631 = vmatprep.subr.mxu0 0.0
    %10632 = vmatpush1.msra.mxu0 %v10435
    %10633 = vmatprep.subr.mxu0 0.0
    %10634 = vmatpush1.msra.mxu0 %v10436
    %10635 = vmatprep.subr.mxu0 0.0
    %10636 = vmatpush1.msra.mxu0 %v10437
    %10637 = vmatprep.subr.mxu0 0.0
    %10638 = vmatpush1.msra.mxu0 %v10438
    %10639 = vmatprep.subr.mxu0 0.0
    %10640 = vmatpush1.msra.mxu0 %v10439
    %10641 = vmatprep.subr.mxu0 0.0
    %10642 = vmatpush1.msra.mxu0 %v10440
    %10643 = vmatprep.subr.mxu0 0.0
    %10644 = vmatpush1.msra.mxu0 %v10441
    %10645 = vmatprep.subr.mxu0 0.0
    %10646 = vmatpush1.msra.mxu0 %v10442
    %10647 = vmatprep.subr.mxu0 0.0
    %10648 = vmatpush1.msra.mxu0 %v10443
    %10649 = vmatprep.mubr.f32.mxu0 %v10319
    %10650 = vmatmul.mubr.f32.gmra.mrb[0].mxu0 %v10316
    %v10651 = vpop.f32.mrb[0].mxu0
    %v10652 = vadd.f32 %v10582, %v10651
    %v10653 = vpop.f32.mrb[0].mxu0
    %10654 = vdwg.mxu0
    %10655 = vmatprep.subr.mxu0 0.0
    %10656 = vmatpush1.msra.mxu0 %v10444
    %10657 = vmatprep.subr.mxu0 0.0
    %10658 = vmatpush1.msra.mxu0 %v10445
    %10659 = vmatprep.subr.mxu0 0.0
    %10660 = vmatpush1.msra.mxu0 %v10446
    %10661 = vmatprep.subr.mxu0 0.0
    %10662 = vmatpush1.msra.mxu0 %v10447
    %10663 = vmatprep.subr.mxu0 0.0
    %10664 = vmatpush1.msra.mxu0 %v10448
    %10665 = vmatprep.subr.mxu0 0.0
    %10666 = vmatpush1.msra.mxu0 %v10449
    %10667 = vmatprep.subr.mxu0 0.0
    %10668 = vmatpush1.msra.mxu0 %v10450
    %10669 = vmatprep.subr.mxu0 0.0
    %10670 = vmatpush1.msra.mxu0 %v10451
    %10671 = vmatprep.subr.mxu0 0.0
    %10672 = vmatpush1.msra.mxu0 %v10452
    %10673 = vmatprep.subr.mxu0 0.0
    %10674 = vmatpush1.msra.mxu0 %v10453
    %10675 = vmatprep.subr.mxu0 0.0
    %10676 = vmatpush1.msra.mxu0 %v10454
    %10677 = vmatprep.subr.mxu0 0.0
    %10678 = vmatpush1.msra.mxu0 %v10455
    %10679 = vmatprep.subr.mxu0 0.0
    %10680 = vmatpush1.msra.mxu0 %v10456
    %10681 = vmatprep.subr.mxu0 0.0
    %10682 = vmatpush1.msra.mxu0 %v10457
    %10683 = vmatprep.subr.mxu0 0.0
    %10684 = vmatpush1.msra.mxu0 %v10458
    %10685 = vmatprep.subr.mxu0 0.0
    %10686 = vmatpush1.msra.mxu0 %v10459
    %10687 = vmatprep.subr.mxu0 0.0
    %10688 = vmatpush1.msra.mxu0 %v10460
    %10689 = vmatprep.subr.mxu0 0.0
    %10690 = vmatpush1.msra.mxu0 %v10461
    %10691 = vmatprep.subr.mxu0 0.0
    %10692 = vmatpush1.msra.mxu0 %v10462
    %10693 = vmatprep.subr.mxu0 0.0
    %10694 = vmatpush1.msra.mxu0 %v10463
    %10695 = vmatprep.subr.mxu0 0.0
    %10696 = vmatpush1.msra.mxu0 %v10464
    %10697 = vmatprep.subr.mxu0 0.0
    %10698 = vmatpush1.msra.mxu0 %v10465
    %10699 = vmatprep.subr.mxu0 0.0
    %10700 = vmatpush1.msra.mxu0 %v10466
    %10701 = vmatprep.subr.mxu0 0.0
    %10702 = vmatpush1.msra.mxu0 %v10467
    %10703 = vmatprep.subr.mxu0 0.0
    %10704 = vmatpush1.msra.mxu0 %v10468
    %10705 = vmatprep.subr.mxu0 0.0
    %10706 = vmatpush1.msra.mxu0 %v10469
    %10707 = vmatprep.subr.mxu0 0.0
    %10708 = vmatpush1.msra.mxu0 %v10470
    %10709 = vmatprep.subr.mxu0 0.0
    %10710 = vmatpush1.msra.mxu0 %v10471
    %10711 = vmatprep.subr.mxu0 0.0
    %10712 = vmatpush1.msra.mxu0 %v10472
    %10713 = vmatprep.subr.mxu0 0.0
    %10714 = vmatpush1.msra.mxu0 %v10473
    %10715 = vmatprep.subr.mxu0 0.0
    %10716 = vmatpush1.msra.mxu0 %v10474
    %10717 = vmatprep.subr.mxu0 0.0
    %10718 = vmatpush1.msra.mxu0 %v10475
    %10719 = vmatprep.mubr.f32.mxu0 %v10373
    %10720 = vmatmul.mubr.f32.gmra.mrb[0].mxu0 %v10370
    %v10721 = vpop.f32.mrb[0].mxu0
    %v10722 = vadd.f32 %v10652, %v10721
    %v10723 = vpop.f32.mrb[0].mxu0
    %10724 = vdwg.mxu0
    %10725 = vmatprep.subr.mxu0 0.0
    %10726 = vmatpush1.msra.mxu0 %v10476
    %10727 = vmatprep.subr.mxu0 0.0
    %10728 = vmatpush1.msra.mxu0 %v10477
    %10729 = vmatprep.subr.mxu0 0.0
    %10730 = vmatpush1.msra.mxu0 %v10478
    %10731 = vmatprep.subr.mxu0 0.0
    %10732 = vmatpush1.msra.mxu0 %v10479
    %10733 = vmatprep.subr.mxu0 0.0
    %10734 = vmatpush1.msra.mxu0 %v10480
    %10735 = vmatprep.subr.mxu0 0.0
    %10736 = vmatpush1.msra.mxu0 %v10481
    %10737 = vmatprep.subr.mxu0 0.0
    %10738 = vmatpush1.msra.mxu0 %v10482
    %10739 = vmatprep.subr.mxu0 0.0
    %10740 = vmatpush1.msra.mxu0 %v10483
    %10741 = vmatprep.subr.mxu0 0.0
    %10742 = vmatpush1.msra.mxu0 %v10484
    %10743 = vmatprep.subr.mxu0 0.0
    %10744 = vmatpush1.msra.mxu0 %v10485
    %10745 = vmatprep.subr.mxu0 0.0
    %10746 = vmatpush1.msra.mxu0 %v10486
    %10747 = vmatprep.subr.mxu0 0.0
    %10748 = vmatpush1.msra.mxu0 %v10487
    %10749 = vmatprep.subr.mxu0 0.0
    %10750 = vmatpush1.msra.mxu0 %v10488
    %10751 = vmatprep.subr.mxu0 0.0
    %10752 = vmatpush1.msra.mxu0 %v10489
    %10753 = vmatprep.subr.mxu0 0.0
    %10754 = vmatpush1.msra.mxu0 %v10490
    %10755 = vmatprep.subr.mxu0 0.0
    %10756 = vmatpush1.msra.mxu0 %v10491
    %10757 = vmatprep.subr.mxu0 0.0
    %10758 = vmatpush1.msra.mxu0 %v10492
    %10759 = vmatprep.subr.mxu0 0.0
    %10760 = vmatpush1.msra.mxu0 %v10493
    %10761 = vmatprep.subr.mxu0 0.0
    %10762 = vmatpush1.msra.mxu0 %v10494
    %10763 = vmatprep.subr.mxu0 0.0
    %10764 = vmatpush1.msra.mxu0 %v10495
    %10765 = vmatprep.subr.mxu0 0.0
    %10766 = vmatpush1.msra.mxu0 %v10496
    %10767 = vmatprep.subr.mxu0 0.0
    %10768 = vmatpush1.msra.mxu0 %v10497
    %10769 = vmatprep.subr.mxu0 0.0
    %10770 = vmatpush1.msra.mxu0 %v10498
    %10771 = vmatprep.subr.mxu0 0.0
    %10772 = vmatpush1.msra.mxu0 %v10499
    %10773 = vmatprep.subr.mxu0 0.0
    %10774 = vmatpush1.msra.mxu0 %v10500
    %10775 = vmatprep.subr.mxu0 0.0
    %10776 = vmatpush1.msra.mxu0 %v10501
    %10777 = vmatprep.subr.mxu0 0.0
    %10778 = vmatpush1.msra.mxu0 %v10502
    %10779 = vmatprep.subr.mxu0 0.0
    %10780 = vmatpush1.msra.mxu0 %v10503
    %10781 = vmatprep.subr.mxu0 0.0
    %10782 = vmatpush1.msra.mxu0 %v10504
    %10783 = vmatprep.subr.mxu0 0.0
    %10784 = vmatpush1.msra.mxu0 %v10505
    %10785 = vmatprep.subr.mxu0 0.0
    %10786 = vmatpush1.msra.mxu0 %v10506
    %10787 = vmatprep.subr.mxu0 0.0
    %10788 = vmatpush1.msra.mxu0 %v10507
    %10789 = vmatprep.mubr.f32.mxu0 %v10379
    %10790 = vmatmul.mubr.f32.gmra.mrb[0].mxu0 %v10376
    %v10791 = vpop.f32.mrb[0].mxu0
    %v10792 = vadd.f32 %v10722, %v10791
    %v10793 = vpop.f32.mrb[0].mxu0
    %10794 = vdwg.mxu0
    %v10795 = vmax.f32 %v10792, 0.0
    %v10796 = vld [vmem:[#allocation17] sm:$0xff]
    %v10797 = vld [vmem:[#allocation17 + $0x8] sm:$0xff]
    %v10798 = vld [vmem:[#allocation17 + $0x10] sm:$0xff]
    %v10799 = vld [vmem:[#allocation17 + $0x18] sm:$0xff]
    %v10800 = vld [vmem:[#allocation19] sm:$0x1]
    %v10802 = vlaneseq
    %v10803 = vshrl.u32 %v10802, 7
    %v10804 = vsub.s32 0, %v10803
    %v10805 = vrot.slane %v10800, %v10804
    %v10808 = vsel %vm9319, %v10795, 0
    %10810 = vmatprep.subr.mxu0 0.0
    %10811 = vmatpush1.msra.mxu0 %v10796
    %10812 = vmatprep.subr.mxu0 0.0
    %10813 = vmatpush1.msra.mxu0 %v10797
    %10814 = vmatprep.subr.mxu0 0.0
    %10815 = vmatpush1.msra.mxu0 %v10798
    %10816 = vmatprep.subr.mxu0 0.0
    %10817 = vmatpush1.msra.mxu0 %v10799
    %10818 = vmatprep.subr.mxu0 0.0
    %10819 = vmatpush1.msra.mxu0 0.0
    %10820 = vmatprep.subr.mxu0 0.0
    %10821 = vmatpush1.msra.mxu0 0.0
    %10822 = vmatprep.subr.mxu0 0.0
    %10823 = vmatpush1.msra.mxu0 0.0
    %10824 = vmatprep.subr.mxu0 0.0
    %10825 = vmatpush1.msra.mxu0 0.0
    %10826 = vmatprep.subr.mxu0 0.0
    %10827 = vmatpush1.msra.mxu0 0.0
    %10828 = vmatprep.subr.mxu0 0.0
    %10829 = vmatpush1.msra.mxu0 0.0
    %10830 = vmatprep.subr.mxu0 0.0
    %10831 = vmatpush1.msra.mxu0 0.0
    %10832 = vmatprep.subr.mxu0 0.0
    %10833 = vmatpush1.msra.mxu0 0.0
    %10834 = vmatprep.subr.mxu0 0.0
    %10835 = vmatpush1.msra.mxu0 0.0
    %10836 = vmatprep.subr.mxu0 0.0
    %10837 = vmatpush1.msra.mxu0 0.0
    %10838 = vmatprep.subr.mxu0 0.0
    %10839 = vmatpush1.msra.mxu0 0.0
    %10840 = vmatprep.subr.mxu0 0.0
    %10841 = vmatpush1.msra.mxu0 0.0
    %10842 = vmatprep.subr.mxu0 0.0
    %10843 = vmatpush1.msra.mxu0 0.0
    %10844 = vmatprep.subr.mxu0 0.0
    %10845 = vmatpush1.msra.mxu0 0.0
    %10846 = vmatprep.subr.mxu0 0.0
    %10847 = vmatpush1.msra.mxu0 0.0
    %10848 = vmatprep.subr.mxu0 0.0
    %10849 = vmatpush1.msra.mxu0 0.0
    %10850 = vmatprep.subr.mxu0 0.0
    %10851 = vmatpush1.msra.mxu0 0.0
    %10852 = vmatprep.subr.mxu0 0.0
    %10853 = vmatpush1.msra.mxu0 0.0
    %10854 = vmatprep.subr.mxu0 0.0
    %10855 = vmatpush1.msra.mxu0 0.0
    %10856 = vmatprep.subr.mxu0 0.0
    %10857 = vmatpush1.msra.mxu0 0.0
    %10858 = vmatprep.subr.mxu0 0.0
    %10859 = vmatpush1.msra.mxu0 0.0
    %10860 = vmatprep.subr.mxu0 0.0
    %10861 = vmatpush1.msra.mxu0 0.0
    %10862 = vmatprep.subr.mxu0 0.0
    %10863 = vmatpush1.msra.mxu0 0.0
    %10864 = vmatprep.subr.mxu0 0.0
    %10865 = vmatpush1.msra.mxu0 0.0
    %10866 = vmatprep.subr.mxu0 0.0
    %10867 = vmatpush1.msra.mxu0 0.0
    %10868 = vmatprep.subr.mxu0 0.0
    %10869 = vmatpush1.msra.mxu0 0.0
    %10870 = vmatprep.subr.mxu0 0.0
    %10871 = vmatpush1.msra.mxu0 0.0
    %10872 = vmatprep.subr.mxu0 0.0
    %10873 = vmatpush1.msra.mxu0 0.0
    %10874 = vmatprep.mubr.f32.mxu0 0.0
    %10875 = vmatmul.mubr.f32.gmra.mrb[0].mxu0 %v10808
    %v10876 = vpop.f32.mrb[0].mxu0
    %v10877 = vadd.f32 %v10805, %v10876
    %v10878 = vpop.f32.mrb[0].mxu0
    %10879 = vdwg.mxu0
    %v10880 = vmax.f32 %v10877, 0.0
    %v10881 = vld [vmem:[#allocation20] sm:$0xff]
    %v10882 = vld [vmem:[#allocation20 + $0x8] sm:$0xff]
    %v10883 = vld [vmem:[#allocation20 + $0x10] sm:$0xff]
    %v10884 = vld [vmem:[#allocation20 + $0x18] sm:$0xff]
    %v10885 = vld [vmem:[#allocation22] sm:$0x1]
    %v10887 = vlaneseq
    %v10888 = vshrl.u32 %v10887, 7
    %v10889 = vsub.s32 0, %v10888
    %v10890 = vrot.slane %v10885, %v10889
    %v10893 = vsel %vm9319, %v10880, 0
    %10895 = vmatprep.subr.mxu0 0.0
    %10896 = vmatpush1.msra.mxu0 %v10881
    %10897 = vmatprep.subr.mxu0 0.0
    %10898 = vmatpush1.msra.mxu0 %v10882
    %10899 = vmatprep.subr.mxu0 0.0
    %10900 = vmatpush1.msra.mxu0 %v10883
    %10901 = vmatprep.subr.mxu0 0.0
    %10902 = vmatpush1.msra.mxu0 %v10884
    %10903 = vmatprep.subr.mxu0 0.0
    %10904 = vmatpush1.msra.mxu0 0.0
    %10905 = vmatprep.subr.mxu0 0.0
    %10906 = vmatpush1.msra.mxu0 0.0
    %10907 = vmatprep.subr.mxu0 0.0
    %10908 = vmatpush1.msra.mxu0 0.0
    %10909 = vmatprep.subr.mxu0 0.0
    %10910 = vmatpush1.msra.mxu0 0.0
    %10911 = vmatprep.subr.mxu0 0.0
    %10912 = vmatpush1.msra.mxu0 0.0
    %10913 = vmatprep.subr.mxu0 0.0
    %10914 = vmatpush1.msra.mxu0 0.0
    %10915 = vmatprep.subr.mxu0 0.0
    %10916 = vmatpush1.msra.mxu0 0.0
    %10917 = vmatprep.subr.mxu0 0.0
    %10918 = vmatpush1.msra.mxu0 0.0
    %10919 = vmatprep.subr.mxu0 0.0
    %10920 = vmatpush1.msra.mxu0 0.0
    %10921 = vmatprep.subr.mxu0 0.0
    %10922 = vmatpush1.msra.mxu0 0.0
    %10923 = vmatprep.subr.mxu0 0.0
    %10924 = vmatpush1.msra.mxu0 0.0
    %10925 = vmatprep.subr.mxu0 0.0
    %10926 = vmatpush1.msra.mxu0 0.0
    %10927 = vmatprep.subr.mxu0 0.0
    %10928 = vmatpush1.msra.mxu0 0.0
    %10929 = vmatprep.subr.mxu0 0.0
    %10930 = vmatpush1.msra.mxu0 0.0
    %10931 = vmatprep.subr.mxu0 0.0
    %10932 = vmatpush1.msra.mxu0 0.0
    %10933 = vmatprep.subr.mxu0 0.0
    %10934 = vmatpush1.msra.mxu0 0.0
    %10935 = vmatprep.subr.mxu0 0.0
    %10936 = vmatpush1.msra.mxu0 0.0
    %10937 = vmatprep.subr.mxu0 0.0
    %10938 = vmatpush1.msra.mxu0 0.0
    %10939 = vmatprep.subr.mxu0 0.0
    %10940 = vmatpush1.msra.mxu0 0.0
    %10941 = vmatprep.subr.mxu0 0.0
    %10942 = vmatpush1.msra.mxu0 0.0
    %10943 = vmatprep.subr.mxu0 0.0
    %10944 = vmatpush1.msra.mxu0 0.0
    %10945 = vmatprep.subr.mxu0 0.0
    %10946 = vmatpush1.msra.mxu0 0.0
    %10947 = vmatprep.subr.mxu0 0.0
    %10948 = vmatpush1.msra.mxu0 0.0
    %10949 = vmatprep.subr.mxu0 0.0
    %10950 = vmatpush1.msra.mxu0 0.0
    %10951 = vmatprep.subr.mxu0 0.0
    %10952 = vmatpush1.msra.mxu0 0.0
    %10953 = vmatprep.subr.mxu0 0.0
    %10954 = vmatpush1.msra.mxu0 0.0
    %10955 = vmatprep.subr.mxu0 0.0
    %10956 = vmatpush1.msra.mxu0 0.0
    %10957 = vmatprep.subr.mxu0 0.0
    %10958 = vmatpush1.msra.mxu0 0.0
    %10959 = vmatprep.mubr.f32.mxu0 0.0
    %10960 = vmatmul.mubr.f32.gmra.mrb[0].mxu0 %v10893
    %v10961 = vpop.f32.mrb[0].mxu0
    %v10962 = vadd.f32 %v10890, %v10961
    %v10963 = vpop.f32.mrb[0].mxu0
    %10964 = vdwg.mxu0
    %v10965 = vxor.u32 %v10962, 2147483648
    %v10966 = vmul.f32 %v10965, 1.442695
    %v10967 = vpow.pop %v10966
    %v10968 = vadd.f32 %v10967, 1.0
    %v10969 = vrcp.pop %v10968
    %v10970 = vmul.f32 1.0, %v10969
    %vm10971 = vcmask 15360
    %10972 = vst.msk [vmem:[#allocation23] sm:$0xff] %vm10971, %v10970
    // Predicated region
    $region106: #{tpu_custom_call.1} parent=1 // pred_check
      _
    $region107: #{tpu_custom_call.1} parent=1 // pred_check_branch
      %10974 = sbr.rel (0) target = $region109
    $region108: #{tpu_custom_call.1} parent=1 // pred_region
      %s10976 = ssub.s32 128, 128
      %10977 = vsyncadd [#allocation4], %s10976
      %s10979 = sshll.u32 [#allocation23], 4
      %s10980 = int_to_ptr.vmem [resolvable:$true] %s10979
      %10982 = dma.vmem_to_hbm [thread:$0]  %s10980, 128, %s13, [#allocation4]
    $region109: #{tpu_custom_call.1} parent=1 // pred_fallthru
      _
    // Predicated region
    $region110: #{tpu_custom_call.1} parent=1 // pred_check
      _
    $region111: #{tpu_custom_call.1} parent=1 // pred_check_branch
      %10984 = sbr.rel (0) target = $region113
    $region112: #{tpu_custom_call.1} parent=1 // pred_region
      %10985 = dma.done [#allocation4], 128
    $region113: #{tpu_custom_call.1} parent=1 // pred_fallthru
      _
    %10986 = vsyncpa [#allocation3], 1
    %10987 = vsyncpa [#allocation6], 1
    %10988 = vsyncpa [#allocation9], 1
    %10989 = vsyncpa [#allocation12], 1
    %10990 = vsyncpa [#allocation15], 1
    %10991 = vsyncpa [#allocation18], 1
    %10992 = vsyncpa [#allocation21], 1
    %10993 = vsyncpa [#allocation4], 1

</llo_original>
